<compile_context>
chip_gen: v5e
topology: v5e:2x2
jax: 0.10.0
libtpu: 0.0.40
codegen_flags: <defaults>
</compile_context>

<pallas_src>
import functools

import jax
import jax.numpy as jnp
from jax.experimental import pallas as pl
from jax.experimental.pallas import tpu as pltpu

EPS = 0.01


# ----------------------------------------------------------------------------
# In-kernel building blocks (operate on VMEM-resident values / param refs)
# ----------------------------------------------------------------------------
def _lin(x, p, relu=False):
    """Plain linear: x [M,K] @ w_ref [K,D] + b_ref [1,D]."""
    y = jnp.dot(x, p["w"][...], preferred_element_type=jnp.float32) + p["b"][...]
    return jnp.maximum(y, 0.0) if relu else y


def _split_lin(parts, p, relu=False):
    """Linear over a *logical* concatenation of `parts`, with pre-split weights.

    Equivalent to concat(parts, -1) @ W + b but concat-free: each part gets its own
    weight slab and the partial products accumulate in f32.
    """
    acc = p["b"][...]
    for part, w_ref in zip(parts, p["ws"]):
        acc = acc + jnp.dot(part, w_ref[...], preferred_element_type=jnp.float32)
    return jnp.maximum(acc, 0.0) if relu else acc


def _gnn(p, x_parts, ef_parts, src_oh, dst_oh, dst_ohT):
    """Message-passing GNN: input proj -> [edge MLP, sum-by-dst, residual node MLP] xL."""
    h = _split_lin(x_parts, p["inp"], relu=True)                       # [N, emb]
    for layer in p["layers"]:
        h_src = jnp.dot(src_oh, h, preferred_element_type=jnp.float32)  # [E, emb]
        h_dst = jnp.dot(dst_oh, h, preferred_element_type=jnp.float32)  # [E, emb]
        m = _split_lin([h_src, h_dst] + list(ef_parts), layer["edge"], relu=True)
        agg = jnp.dot(dst_ohT, m, preferred_element_type=jnp.float32)   # [N, emb]
        h = h + _split_lin([h, agg], layer["node"], relu=True)          # residual update
    return h


def _forward_kernel(*refs, treedef, n_data, n_params):
    (nodes_ref, static_ref, xtdyn_ref, ef_ref, xtef_ref, eps_ref,
     srcoh_ref, dstoh_ref, dstohT_ref) = refs[:n_data]
    param_refs = refs[n_data:n_data + n_params]
    out_ref, kl_ref = refs[n_data + n_params:]
    P = jax.tree_util.tree_unflatten(treedef, param_refs)   # params tree of VMEM refs

    nodes = nodes_ref[0]          # [N, C]
    static_part = static_ref[0]   # [N, n_static]
    xt_dyn = xtdyn_ref[0]         # [N, n_dyn]
    ef = ef_ref[0]                # [E, Fe]
    xt_ef = xtef_ref[0]           # [E, Fe]
    eps = eps_ref[0]              # [N, L]
    src_oh = srcoh_ref[...]       # [E, N]
    dst_oh = dstoh_ref[...]       # [E, N]
    dst_ohT = dstohT_ref[...]     # [N, E]

    # --- Encoder: LazyLinear(emb_dim) on nodes (tuple passthrough handled outside) ---
    e_nodes = _lin(nodes, P["enc"])                                   # [N, emb]

    # --- Processor: GNN, then (logically) concat static channels ---------------------
    proc = _gnn(P["proc"], [e_nodes], [ef], src_oh, dst_oh, dst_ohT)  # [N, emb]
    dec_in = [static_part, proc]     # logical concat, kept as parts (concat-free)

    # --- Probabilistic decoder: prior branch ------------------------------------------
    p_nodes = _gnn(P["prior_net"], dec_in, [ef], src_oh, dst_oh, dst_ohT)
    mu_p = _lin(p_nodes, P["prior_mu"])                               # [N, L]
    ls_p = _lin(p_nodes, P["prior_log_sigma"])                        # [N, L]

    # --- Probabilistic decoder: encoder (posterior) branch with x_true ----------------
    t = _lin(xt_dyn, P["xt_emb0"], relu=True)
    emb_t = _lin(t, P["xt_emb1"])                                     # [N, emb]
    q_nodes = _gnn(P["encoder_net"], dec_in + [emb_t], [ef, xt_ef],
                   src_oh, dst_oh, dst_ohT)
    mu_e = _lin(q_nodes, P["enc_mu"])                                 # [N, L]
    ls_e = _lin(q_nodes, P["enc_log_sigma"])                          # [N, L]

    # --- fused VAE head: softplus, reparameterization, elementwise Gaussian KL --------
    s_e = jnp.logaddexp(ls_e, 0.0) + EPS
    s_p = jnp.logaddexp(ls_p, 0.0) + EPS
    z = mu_e + s_e * eps
    kl = (jnp.log(s_p / s_e)
          + (s_e * s_e + (mu_e - mu_p) ** 2) / (2.0 * s_p * s_p) - 0.5)

    # --- decode z together with the processor output ----------------------------------
    out = _gnn(P["end_arch"], dec_in + [z], [ef], src_oh, dst_oh, dst_ohT)

    out_ref[0] = out
    kl_ref[0] = kl


# ----------------------------------------------------------------------------
# Parameter init (deterministic, in-script)
# ----------------------------------------------------------------------------
def linear_params(key, din, dout):
    k1, k2 = jax.random.split(key)
    w = jax.random.normal(k1, (din, dout), jnp.float32) / jnp.sqrt(float(din))
    b = 0.01 * jax.random.normal(k2, (1, dout), jnp.float32)
    return {"w": w, "b": b}


def split_linear_params(key, dins, dout):
    """One logical linear over concat(parts); stored pre-split by input part."""
    din = sum(dins)
    k1, k2 = jax.random.split(key)
    w = jax.random.normal(k1, (din, dout), jnp.float32) / jnp.sqrt(float(din))
    b = 0.01 * jax.random.normal(k2, (1, dout), jnp.float32)
    ws, off = [], 0
    for d in dins:
        ws.append(w[off:off + d])
        off += d
    return {"ws": ws, "b": b}


def gnn_params(key, in_dims, emb, edge_dims, num_layers):
    keys = jax.random.split(key, 1 + 2 * num_layers)
    p = {"inp": split_linear_params(keys[0], list(in_dims), emb), "layers": []}
    for l in range(num_layers):
        p["layers"].append({
            "edge": split_linear_params(keys[1 + 2 * l], [emb, emb] + list(edge_dims), emb),
            "node": split_linear_params(keys[2 + 2 * l], [emb, emb], emb),
        })
    return p


# ----------------------------------------------------------------------------
# Single fused pallas_call wrapper (whole forward pass)
# ----------------------------------------------------------------------------
def enc_proc_dec_forward(params, x, x_true, eps, dynamic_channels, static_channels):
    """Mirrors Enc_Proc_Dec.forward. x / x_true = (nodes, edge_idx, edge_feat)."""
    nodes, edge_idx, edge_feat = x
    xt_nodes, _, xt_edge_feat = x_true
    B, N, C = nodes.shape
    E = edge_idx.shape[1]
    Fe = edge_feat.shape[-1]
    emb = params["enc"]["w"].shape[1]
    latent = params["enc_mu"]["w"].shape[1]

    # cheap channel selections + one-hot edge matrices (built once, outside the kernel)
    static_part = nodes[..., list(static_channels)]                # [B, N, |static|]
    xt_dyn = xt_nodes[..., list(dynamic_channels)]                 # [B, N, |dyn|]
    src_oh = jax.nn.one_hot(edge_idx[0], N, dtype=jnp.float32)     # [E, N]
    dst_oh = jax.nn.one_hot(edge_idx[1], N, dtype=jnp.float32)     # [E, N]
    dst_ohT = dst_oh.T                                             # [N, E]

    flat_params, treedef = jax.tree_util.tree_flatten(params)
    n_params = len(flat_params)
    n_data = 9

    kernel = functools.partial(_forward_kernel, treedef=treedef,
                               n_data=n_data, n_params=n_params)

    data_specs = [
        pl.BlockSpec((1, N, C), lambda b: (b, 0, 0)),                       # nodes
        pl.BlockSpec((1, N, len(static_channels)), lambda b: (b, 0, 0)),    # static part
        pl.BlockSpec((1, N, len(dynamic_channels)), lambda b: (b, 0, 0)),   # x_true dyn
        pl.BlockSpec((1, E, Fe), lambda b: (b, 0, 0)),                      # edge_feat
        pl.BlockSpec((1, E, Fe), lambda b: (b, 0, 0)),                      # x_true edge_feat
        pl.BlockSpec((1, N, latent), lambda b: (b, 0, 0)),                  # eps
        pl.BlockSpec((E, N), lambda b: (0, 0)),                             # src one-hot
        pl.BlockSpec((E, N), lambda b: (0, 0)),                             # dst one-hot
        pl.BlockSpec((N, E), lambda b: (0, 0)),                             # dst one-hot^T
    ]
    # weights/biases: full-array blocks, constant block index -> stay VMEM-resident
    param_specs = [pl.BlockSpec(tuple(p.shape), lambda b, nd=p.ndim: (0,) * nd)
                   for p in flat_params]

    out_nodes, kl = pl.pallas_call(
        kernel,
        grid=(B,),
        in_specs=data_specs + param_specs,
        out_specs=(pl.BlockSpec((1, N, emb), lambda b: (b, 0, 0)),
                   pl.BlockSpec((1, N, latent), lambda b: (b, 0, 0))),
        out_shape=(jax.ShapeDtypeStruct((B, N, emb), jnp.float32),
                   jax.ShapeDtypeStruct((B, N, latent), jnp.float32)),
        compiler_params=pltpu.CompilerParams(dimension_semantics=("parallel",)),
    )(nodes, static_part, xt_dyn, edge_feat, xt_edge_feat, eps,
      src_oh, dst_oh, dst_ohT, *flat_params)

    # free-bits / detach only affect gradients; forward value is sum(kl)
    additional_loss = jnp.sum(kl)
    out = (out_nodes, edge_idx, edge_feat)
    return out, additional_loss


# ----------------------------------------------------------------------------
# Main
# ----------------------------------------------------------------------------
if __name__ == "__main__":
    key = jax.random.PRNGKey(0)

    # small, module-consistent shapes
    B, N, E = 2, 8, 16          # batch, nodes, edges
    im_dim, emb, latent, Fe = 4, 16, 8, 4
    num_layers = 2
    dynamic_channels = (0, 1)
    static_channels = (2, 3)
    n_static = len(static_channels)
    n_dyn = len(dynamic_channels)

    ks = jax.random.split(key, 18)

    # inputs: x and x_true tuples of (nodes, edge_idx, edge_feat)
    x_nodes = jax.random.normal(ks[0], (B, N, im_dim), jnp.float32)
    xt_nodes = jax.random.normal(ks[1], (B, N, im_dim), jnp.float32)
    src = jax.random.randint(ks[2], (E,), 0, N)
    dst = jax.random.randint(ks[3], (E,), 0, N)
    edge_idx = jnp.stack([src, dst]).astype(jnp.int32)
    edge_feat = jax.random.normal(ks[4], (B, E, Fe), jnp.float32)
    xt_edge_feat = jax.random.normal(ks[5], (B, E, Fe), jnp.float32)
    x = (x_nodes, edge_idx, edge_feat)
    x_true = (xt_nodes, edge_idx, xt_edge_feat)

    # deterministic parameter init (distinct keys for every linear, incl. mu vs log_sigma)
    params = {
        "enc": linear_params(ks[6], im_dim, emb),
        "proc": gnn_params(ks[7], [emb], emb, [Fe], num_layers),
        "prior_net": gnn_params(ks[8], [n_static, emb], emb, [Fe], num_layers),
        "encoder_net": gnn_params(ks[9], [n_static, emb, emb], emb, [Fe, Fe], num_layers),
        "end_arch": gnn_params(ks[10], [n_static, emb, latent], emb, [Fe], num_layers),
        "xt_emb0": linear_params(ks[11], n_dyn, emb),
        "xt_emb1": linear_params(ks[12], emb, emb),
        "enc_mu": linear_params(ks[13], emb, latent),
        "enc_log_sigma": linear_params(ks[14], emb, latent),
        "prior_mu": linear_params(ks[15], emb, latent),
        "prior_log_sigma": linear_params(ks[16], emb, latent),
    }

    # deterministic reparameterization noise
    eps = jax.random.normal(ks[17], (B, N, latent), jnp.float32)

    (out, additional_loss) = enc_proc_dec_forward(
        params, x, x_true, eps, dynamic_channels, static_channels
    )
    out_nodes, out_edge_idx, out_edge_feat = out
    jax.block_until_ready((out_nodes, additional_loss))

    assert out_nodes.shape == (B, N, emb)
    assert additional_loss.shape == ()
    assert bool(jnp.isfinite(additional_loss))
    print("KERNEL_OK")
</pallas_src>

<mosaic_0001>
module attributes {stable_mosaic.version = 11 : i64} {
  func.func @_forward_kernel(%arg0: i32, %arg1: memref<1x8x4xf32, #tpu.memory_space<vmem>>, %arg2: memref<1x8x2xf32, #tpu.memory_space<vmem>>, %arg3: memref<1x8x2xf32, #tpu.memory_space<vmem>>, %arg4: memref<1x16x4xf32, #tpu.memory_space<vmem>>, %arg5: memref<1x16x4xf32, #tpu.memory_space<vmem>>, %arg6: memref<1x8x8xf32, #tpu.memory_space<vmem>>, %arg7: memref<16x8xf32, #tpu.memory_space<vmem>>, %arg8: memref<16x8xf32, #tpu.memory_space<vmem>>, %arg9: memref<8x16xf32, #tpu.memory_space<vmem>>, %arg10: memref<1x16xf32, #tpu.memory_space<vmem>>, %arg11: memref<4x16xf32, #tpu.memory_space<vmem>>, %arg12: memref<1x8xf32, #tpu.memory_space<vmem>>, %arg13: memref<16x8xf32, #tpu.memory_space<vmem>>, %arg14: memref<1x8xf32, #tpu.memory_space<vmem>>, %arg15: memref<16x8xf32, #tpu.memory_space<vmem>>, %arg16: memref<1x16xf32, #tpu.memory_space<vmem>>, %arg17: memref<2x16xf32, #tpu.memory_space<vmem>>, %arg18: memref<16x16xf32, #tpu.memory_space<vmem>>, %arg19: memref<16x16xf32, #tpu.memory_space<vmem>>, %arg20: memref<1x16xf32, #tpu.memory_space<vmem>>, %arg21: memref<16x16xf32, #tpu.memory_space<vmem>>, %arg22: memref<16x16xf32, #tpu.memory_space<vmem>>, %arg23: memref<4x16xf32, #tpu.memory_space<vmem>>, %arg24: memref<4x16xf32, #tpu.memory_space<vmem>>, %arg25: memref<1x16xf32, #tpu.memory_space<vmem>>, %arg26: memref<16x16xf32, #tpu.memory_space<vmem>>, %arg27: memref<16x16xf32, #tpu.memory_space<vmem>>, %arg28: memref<1x16xf32, #tpu.memory_space<vmem>>, %arg29: memref<16x16xf32, #tpu.memory_space<vmem>>, %arg30: memref<16x16xf32, #tpu.memory_space<vmem>>, %arg31: memref<4x16xf32, #tpu.memory_space<vmem>>, %arg32: memref<4x16xf32, #tpu.memory_space<vmem>>, %arg33: memref<1x16xf32, #tpu.memory_space<vmem>>, %arg34: memref<16x16xf32, #tpu.memory_space<vmem>>, %arg35: memref<16x16xf32, #tpu.memory_space<vmem>>, %arg36: memref<1x16xf32, #tpu.memory_space<vmem>>, %arg37: memref<2x16xf32, #tpu.memory_space<vmem>>, %arg38: memref<16x16xf32, #tpu.memory_space<vmem>>, %arg39: memref<8x16xf32, #tpu.memory_space<vmem>>, %arg40: memref<1x16xf32, #tpu.memory_space<vmem>>, %arg41: memref<16x16xf32, #tpu.memory_space<vmem>>, %arg42: memref<16x16xf32, #tpu.memory_space<vmem>>, %arg43: memref<4x16xf32, #tpu.memory_space<vmem>>, %arg44: memref<1x16xf32, #tpu.memory_space<vmem>>, %arg45: memref<16x16xf32, #tpu.memory_space<vmem>>, %arg46: memref<16x16xf32, #tpu.memory_space<vmem>>, %arg47: memref<1x16xf32, #tpu.memory_space<vmem>>, %arg48: memref<16x16xf32, #tpu.memory_space<vmem>>, %arg49: memref<16x16xf32, #tpu.memory_space<vmem>>, %arg50: memref<4x16xf32, #tpu.memory_space<vmem>>, %arg51: memref<1x16xf32, #tpu.memory_space<vmem>>, %arg52: memref<16x16xf32, #tpu.memory_space<vmem>>, %arg53: memref<16x16xf32, #tpu.memory_space<vmem>>, %arg54: memref<1x8xf32, #tpu.memory_space<vmem>>, %arg55: memref<16x8xf32, #tpu.memory_space<vmem>>, %arg56: memref<1x8xf32, #tpu.memory_space<vmem>>, %arg57: memref<16x8xf32, #tpu.memory_space<vmem>>, %arg58: memref<1x16xf32, #tpu.memory_space<vmem>>, %arg59: memref<2x16xf32, #tpu.memory_space<vmem>>, %arg60: memref<16x16xf32, #tpu.memory_space<vmem>>, %arg61: memref<1x16xf32, #tpu.memory_space<vmem>>, %arg62: memref<16x16xf32, #tpu.memory_space<vmem>>, %arg63: memref<16x16xf32, #tpu.memory_space<vmem>>, %arg64: memref<4x16xf32, #tpu.memory_space<vmem>>, %arg65: memref<1x16xf32, #tpu.memory_space<vmem>>, %arg66: memref<16x16xf32, #tpu.memory_space<vmem>>, %arg67: memref<16x16xf32, #tpu.memory_space<vmem>>, %arg68: memref<1x16xf32, #tpu.memory_space<vmem>>, %arg69: memref<16x16xf32, #tpu.memory_space<vmem>>, %arg70: memref<16x16xf32, #tpu.memory_space<vmem>>, %arg71: memref<4x16xf32, #tpu.memory_space<vmem>>, %arg72: memref<1x16xf32, #tpu.memory_space<vmem>>, %arg73: memref<16x16xf32, #tpu.memory_space<vmem>>, %arg74: memref<16x16xf32, #tpu.memory_space<vmem>>, %arg75: memref<1x16xf32, #tpu.memory_space<vmem>>, %arg76: memref<16x16xf32, #tpu.memory_space<vmem>>, %arg77: memref<1x16xf32, #tpu.memory_space<vmem>>, %arg78: memref<16x16xf32, #tpu.memory_space<vmem>>, %arg79: memref<16x16xf32, #tpu.memory_space<vmem>>, %arg80: memref<4x16xf32, #tpu.memory_space<vmem>>, %arg81: memref<1x16xf32, #tpu.memory_space<vmem>>, %arg82: memref<16x16xf32, #tpu.memory_space<vmem>>, %arg83: memref<16x16xf32, #tpu.memory_space<vmem>>, %arg84: memref<1x16xf32, #tpu.memory_space<vmem>>, %arg85: memref<16x16xf32, #tpu.memory_space<vmem>>, %arg86: memref<16x16xf32, #tpu.memory_space<vmem>>, %arg87: memref<4x16xf32, #tpu.memory_space<vmem>>, %arg88: memref<1x16xf32, #tpu.memory_space<vmem>>, %arg89: memref<16x16xf32, #tpu.memory_space<vmem>>, %arg90: memref<16x16xf32, #tpu.memory_space<vmem>>, %arg91: memref<1x16xf32, #tpu.memory_space<vmem>>, %arg92: memref<2x16xf32, #tpu.memory_space<vmem>>, %arg93: memref<1x16xf32, #tpu.memory_space<vmem>>, %arg94: memref<16x16xf32, #tpu.memory_space<vmem>>, %arg95: memref<1x8x16xf32, #tpu.memory_space<vmem>>, %arg96: memref<1x8x8xf32, #tpu.memory_space<vmem>>) attributes {dimension_semantics = [#tpu.dimension_semantics<parallel>], iteration_bounds = array<i64: 2>, scalar_prefetch = 0 : i64, scratch_operands = 0 : i64, tpu.core_type = #tpu.core_type<tc>, window_params = [{transform_indices = @transform_0, window_bounds = array<i64: 1, 8, 4>}, {transform_indices = @transform_1, window_bounds = array<i64: 1, 8, 2>}, {transform_indices = @transform_2, window_bounds = array<i64: 1, 8, 2>}, {transform_indices = @transform_3, window_bounds = array<i64: 1, 16, 4>}, {transform_indices = @transform_4, window_bounds = array<i64: 1, 16, 4>}, {transform_indices = @transform_5, window_bounds = array<i64: 1, 8, 8>}, {pipeline_mode = #tpu.pipeline_mode<synchronous>, transform_indices = @transform_6, window_bounds = array<i64: 16, 8>}, {pipeline_mode = #tpu.pipeline_mode<synchronous>, transform_indices = @transform_7, window_bounds = array<i64: 16, 8>}, {pipeline_mode = #tpu.pipeline_mode<synchronous>, transform_indices = @transform_8, window_bounds = array<i64: 8, 16>}, {pipeline_mode = #tpu.pipeline_mode<synchronous>, transform_indices = @transform_9, window_bounds = array<i64: 1, 16>}, {pipeline_mode = #tpu.pipeline_mode<synchronous>, transform_indices = @transform_10, window_bounds = array<i64: 4, 16>}, {pipeline_mode = #tpu.pipeline_mode<synchronous>, transform_indices = @transform_11, window_bounds = array<i64: 1, 8>}, {pipeline_mode = #tpu.pipeline_mode<synchronous>, transform_indices = @transform_12, window_bounds = array<i64: 16, 8>}, {pipeline_mode = #tpu.pipeline_mode<synchronous>, transform_indices = @transform_13, window_bounds = array<i64: 1, 8>}, {pipeline_mode = #tpu.pipeline_mode<synchronous>, transform_indices = @transform_14, window_bounds = array<i64: 16, 8>}, {pipeline_mode = #tpu.pipeline_mode<synchronous>, transform_indices = @transform_15, window_bounds = array<i64: 1, 16>}, {pipeline_mode = #tpu.pipeline_mode<synchronous>, transform_indices = @transform_16, window_bounds = array<i64: 2, 16>}, {pipeline_mode = #tpu.pipeline_mode<synchronous>, transform_indices = @transform_17, window_bounds = array<i64: 16, 16>}, {pipeline_mode = #tpu.pipeline_mode<synchronous>, transform_indices = @transform_18, window_bounds = array<i64: 16, 16>}, {pipeline_mode = #tpu.pipeline_mode<synchronous>, transform_indices = @transform_19, window_bounds = array<i64: 1, 16>}, {pipeline_mode = #tpu.pipeline_mode<synchronous>, transform_indices = @transform_20, window_bounds = array<i64: 16, 16>}, {pipeline_mode = #tpu.pipeline_mode<synchronous>, transform_indices = @transform_21, window_bounds = array<i64: 16, 16>}, {pipeline_mode = #tpu.pipeline_mode<synchronous>, transform_indices = @transform_22, window_bounds = array<i64: 4, 16>}, {pipeline_mode = #tpu.pipeline_mode<synchronous>, transform_indices = @transform_23, window_bounds = array<i64: 4, 16>}, {pipeline_mode = #tpu.pipeline_mode<synchronous>, transform_indices = @transform_24, window_bounds = array<i64: 1, 16>}, {pipeline_mode = #tpu.pipeline_mode<synchronous>, transform_indices = @transform_25, window_bounds = array<i64: 16, 16>}, {pipeline_mode = #tpu.pipeline_mode<synchronous>, transform_indices = @transform_26, window_bounds = array<i64: 16, 16>}, {pipeline_mode = #tpu.pipeline_mode<synchronous>, transform_indices = @transform_27, window_bounds = array<i64: 1, 16>}, {pipeline_mode = #tpu.pipeline_mode<synchronous>, transform_indices = @transform_28, window_bounds = array<i64: 16, 16>}, {pipeline_mode = #tpu.pipeline_mode<synchronous>, transform_indices = @transform_29, window_bounds = array<i64: 16, 16>}, {pipeline_mode = #tpu.pipeline_mode<synchronous>, transform_indices = @transform_30, window_bounds = array<i64: 4, 16>}, {pipeline_mode = #tpu.pipeline_mode<synchronous>, transform_indices = @transform_31, window_bounds = array<i64: 4, 16>}, {pipeline_mode = #tpu.pipeline_mode<synchronous>, transform_indices = @transform_32, window_bounds = array<i64: 1, 16>}, {pipeline_mode = #tpu.pipeline_mode<synchronous>, transform_indices = @transform_33, window_bounds = array<i64: 16, 16>}, {pipeline_mode = #tpu.pipeline_mode<synchronous>, transform_indices = @transform_34, window_bounds = array<i64: 16, 16>}, {pipeline_mode = #tpu.pipeline_mode<synchronous>, transform_indices = @transform_35, window_bounds = array<i64: 1, 16>}, {pipeline_mode = #tpu.pipeline_mode<synchronous>, transform_indices = @transform_36, window_bounds = array<i64: 2, 16>}, {pipeline_mode = #tpu.pipeline_mode<synchronous>, transform_indices = @transform_37, window_bounds = array<i64: 16, 16>}, {pipeline_mode = #tpu.pipeline_mode<synchronous>, transform_indices = @transform_38, window_bounds = array<i64: 8, 16>}, {pipeline_mode = #tpu.pipeline_mode<synchronous>, transform_indices = @transform_39, window_bounds = array<i64: 1, 16>}, {pipeline_mode = #tpu.pipeline_mode<synchronous>, transform_indices = @transform_40, window_bounds = array<i64: 16, 16>}, {pipeline_mode = #tpu.pipeline_mode<synchronous>, transform_indices = @transform_41, window_bounds = array<i64: 16, 16>}, {pipeline_mode = #tpu.pipeline_mode<synchronous>, transform_indices = @transform_42, window_bounds = array<i64: 4, 16>}, {pipeline_mode = #tpu.pipeline_mode<synchronous>, transform_indices = @transform_43, window_bounds = array<i64: 1, 16>}, {pipeline_mode = #tpu.pipeline_mode<synchronous>, transform_indices = @transform_44, window_bounds = array<i64: 16, 16>}, {pipeline_mode = #tpu.pipeline_mode<synchronous>, transform_indices = @transform_45, window_bounds = array<i64: 16, 16>}, {pipeline_mode = #tpu.pipeline_mode<synchronous>, transform_indices = @transform_46, window_bounds = array<i64: 1, 16>}, {pipeline_mode = #tpu.pipeline_mode<synchronous>, transform_indices = @transform_47, window_bounds = array<i64: 16, 16>}, {pipeline_mode = #tpu.pipeline_mode<synchronous>, transform_indices = @transform_48, window_bounds = array<i64: 16, 16>}, {pipeline_mode = #tpu.pipeline_mode<synchronous>, transform_indices = @transform_49, window_bounds = array<i64: 4, 16>}, {pipeline_mode = #tpu.pipeline_mode<synchronous>, transform_indices = @transform_50, window_bounds = array<i64: 1, 16>}, {pipeline_mode = #tpu.pipeline_mode<synchronous>, transform_indices = @transform_51, window_bounds = array<i64: 16, 16>}, {pipeline_mode = #tpu.pipeline_mode<synchronous>, transform_indices = @transform_52, window_bounds = array<i64: 16, 16>}, {pipeline_mode = #tpu.pipeline_mode<synchronous>, transform_indices = @transform_53, window_bounds = array<i64: 1, 8>}, {pipeline_mode = #tpu.pipeline_mode<synchronous>, transform_indices = @transform_54, window_bounds = array<i64: 16, 8>}, {pipeline_mode = #tpu.pipeline_mode<synchronous>, transform_indices = @transform_55, window_bounds = array<i64: 1, 8>}, {pipeline_mode = #tpu.pipeline_mode<synchronous>, transform_indices = @transform_56, window_bounds = array<i64: 16, 8>}, {pipeline_mode = #tpu.pipeline_mode<synchronous>, transform_indices = @transform_57, window_bounds = array<i64: 1, 16>}, {pipeline_mode = #tpu.pipeline_mode<synchronous>, transform_indices = @transform_58, window_bounds = array<i64: 2, 16>}, {pipeline_mode = #tpu.pipeline_mode<synchronous>, transform_indices = @transform_59, window_bounds = array<i64: 16, 16>}, {pipeline_mode = #tpu.pipeline_mode<synchronous>, transform_indices = @transform_60, window_bounds = array<i64: 1, 16>}, {pipeline_mode = #tpu.pipeline_mode<synchronous>, transform_indices = @transform_61, window_bounds = array<i64: 16, 16>}, {pipeline_mode = #tpu.pipeline_mode<synchronous>, transform_indices = @transform_62, window_bounds = array<i64: 16, 16>}, {pipeline_mode = #tpu.pipeline_mode<synchronous>, transform_indices = @transform_63, window_bounds = array<i64: 4, 16>}, {pipeline_mode = #tpu.pipeline_mode<synchronous>, transform_indices = @transform_64, window_bounds = array<i64: 1, 16>}, {pipeline_mode = #tpu.pipeline_mode<synchronous>, transform_indices = @transform_65, window_bounds = array<i64: 16, 16>}, {pipeline_mode = #tpu.pipeline_mode<synchronous>, transform_indices = @transform_66, window_bounds = array<i64: 16, 16>}, {pipeline_mode = #tpu.pipeline_mode<synchronous>, transform_indices = @transform_67, window_bounds = array<i64: 1, 16>}, {pipeline_mode = #tpu.pipeline_mode<synchronous>, transform_indices = @transform_68, window_bounds = array<i64: 16, 16>}, {pipeline_mode = #tpu.pipeline_mode<synchronous>, transform_indices = @transform_69, window_bounds = array<i64: 16, 16>}, {pipeline_mode = #tpu.pipeline_mode<synchronous>, transform_indices = @transform_70, window_bounds = array<i64: 4, 16>}, {pipeline_mode = #tpu.pipeline_mode<synchronous>, transform_indices = @transform_71, window_bounds = array<i64: 1, 16>}, {pipeline_mode = #tpu.pipeline_mode<synchronous>, transform_indices = @transform_72, window_bounds = array<i64: 16, 16>}, {pipeline_mode = #tpu.pipeline_mode<synchronous>, transform_indices = @transform_73, window_bounds = array<i64: 16, 16>}, {pipeline_mode = #tpu.pipeline_mode<synchronous>, transform_indices = @transform_74, window_bounds = array<i64: 1, 16>}, {pipeline_mode = #tpu.pipeline_mode<synchronous>, transform_indices = @transform_75, window_bounds = array<i64: 16, 16>}, {pipeline_mode = #tpu.pipeline_mode<synchronous>, transform_indices = @transform_76, window_bounds = array<i64: 1, 16>}, {pipeline_mode = #tpu.pipeline_mode<synchronous>, transform_indices = @transform_77, window_bounds = array<i64: 16, 16>}, {pipeline_mode = #tpu.pipeline_mode<synchronous>, transform_indices = @transform_78, window_bounds = array<i64: 16, 16>}, {pipeline_mode = #tpu.pipeline_mode<synchronous>, transform_indices = @transform_79, window_bounds = array<i64: 4, 16>}, {pipeline_mode = #tpu.pipeline_mode<synchronous>, transform_indices = @transform_80, window_bounds = array<i64: 1, 16>}, {pipeline_mode = #tpu.pipeline_mode<synchronous>, transform_indices = @transform_81, window_bounds = array<i64: 16, 16>}, {pipeline_mode = #tpu.pipeline_mode<synchronous>, transform_indices = @transform_82, window_bounds = array<i64: 16, 16>}, {pipeline_mode = #tpu.pipeline_mode<synchronous>, transform_indices = @transform_83, window_bounds = array<i64: 1, 16>}, {pipeline_mode = #tpu.pipeline_mode<synchronous>, transform_indices = @transform_84, window_bounds = array<i64: 16, 16>}, {pipeline_mode = #tpu.pipeline_mode<synchronous>, transform_indices = @transform_85, window_bounds = array<i64: 16, 16>}, {pipeline_mode = #tpu.pipeline_mode<synchronous>, transform_indices = @transform_86, window_bounds = array<i64: 4, 16>}, {pipeline_mode = #tpu.pipeline_mode<synchronous>, transform_indices = @transform_87, window_bounds = array<i64: 1, 16>}, {pipeline_mode = #tpu.pipeline_mode<synchronous>, transform_indices = @transform_88, window_bounds = array<i64: 16, 16>}, {pipeline_mode = #tpu.pipeline_mode<synchronous>, transform_indices = @transform_89, window_bounds = array<i64: 16, 16>}, {pipeline_mode = #tpu.pipeline_mode<synchronous>, transform_indices = @transform_90, window_bounds = array<i64: 1, 16>}, {pipeline_mode = #tpu.pipeline_mode<synchronous>, transform_indices = @transform_91, window_bounds = array<i64: 2, 16>}, {pipeline_mode = #tpu.pipeline_mode<synchronous>, transform_indices = @transform_92, window_bounds = array<i64: 1, 16>}, {pipeline_mode = #tpu.pipeline_mode<synchronous>, transform_indices = @transform_93, window_bounds = array<i64: 16, 16>}, {transform_indices = @transform_94, window_bounds = array<i64: 1, 8, 16>}, {transform_indices = @transform_95, window_bounds = array<i64: 1, 8, 8>}]} {
    %c0 = arith.constant 0 : index
    %c0_0 = arith.constant 0 : index
    %c0_1 = arith.constant 0 : index
    %0 = vector.load %arg1[%c0, %c0_0, %c0_1] : memref<1x8x4xf32, #tpu.memory_space<vmem>>, vector<1x8x4xf32>
    %1 = vector.shape_cast %0 : vector<1x8x4xf32> to vector<8x4xf32>
    %c0_2 = arith.constant 0 : index
    %c0_3 = arith.constant 0 : index
    %c0_4 = arith.constant 0 : index
    %2 = vector.load %arg2[%c0_2, %c0_3, %c0_4] : memref<1x8x2xf32, #tpu.memory_space<vmem>>, vector<1x8x2xf32>
    %3 = vector.shape_cast %2 : vector<1x8x2xf32> to vector<8x2xf32>
    %c0_5 = arith.constant 0 : index
    %c0_6 = arith.constant 0 : index
    %c0_7 = arith.constant 0 : index
    %4 = vector.load %arg3[%c0_5, %c0_6, %c0_7] : memref<1x8x2xf32, #tpu.memory_space<vmem>>, vector<1x8x2xf32>
    %5 = vector.shape_cast %4 : vector<1x8x2xf32> to vector<8x2xf32>
    %c0_8 = arith.constant 0 : index
    %c0_9 = arith.constant 0 : index
    %c0_10 = arith.constant 0 : index
    %6 = vector.load %arg4[%c0_8, %c0_9, %c0_10] : memref<1x16x4xf32, #tpu.memory_space<vmem>>, vector<1x16x4xf32>
    %7 = vector.shape_cast %6 : vector<1x16x4xf32> to vector<16x4xf32>
    %c0_11 = arith.constant 0 : index
    %c0_12 = arith.constant 0 : index
    %c0_13 = arith.constant 0 : index
    %8 = vector.load %arg5[%c0_11, %c0_12, %c0_13] : memref<1x16x4xf32, #tpu.memory_space<vmem>>, vector<1x16x4xf32>
    %9 = vector.shape_cast %8 : vector<1x16x4xf32> to vector<16x4xf32>
    %c0_14 = arith.constant 0 : index
    %c0_15 = arith.constant 0 : index
    %c0_16 = arith.constant 0 : index
    %10 = vector.load %arg6[%c0_14, %c0_15, %c0_16] : memref<1x8x8xf32, #tpu.memory_space<vmem>>, vector<1x8x8xf32>
    %11 = vector.shape_cast %10 : vector<1x8x8xf32> to vector<8x8xf32>
    %c0_17 = arith.constant 0 : index
    %c0_18 = arith.constant 0 : index
    %12 = vector.load %arg7[%c0_17, %c0_18] : memref<16x8xf32, #tpu.memory_space<vmem>>, vector<16x8xf32>
    %c0_19 = arith.constant 0 : index
    %c0_20 = arith.constant 0 : index
    %13 = vector.load %arg8[%c0_19, %c0_20] : memref<16x8xf32, #tpu.memory_space<vmem>>, vector<16x8xf32>
    %c0_21 = arith.constant 0 : index
    %c0_22 = arith.constant 0 : index
    %14 = vector.load %arg9[%c0_21, %c0_22] : memref<8x16xf32, #tpu.memory_space<vmem>>, vector<8x16xf32>
    %c0_23 = arith.constant 0 : index
    %c0_24 = arith.constant 0 : index
    %15 = vector.load %arg11[%c0_23, %c0_24] : memref<4x16xf32, #tpu.memory_space<vmem>>, vector<4x16xf32>
    %cst = arith.constant dense<0.000000e+00> : vector<8x16xf32>
    %16 = tpu.matmul %1, %15, %cst {dimension_numbers = #tpu.dot_dimension_numbers<[1], [0], [0], [1], [0, 0, 1, 1], [], []>} : vector<8x4xf32>, vector<4x16xf32>, vector<8x16xf32> -> vector<8x16xf32>
    %c0_25 = arith.constant 0 : index
    %c0_26 = arith.constant 0 : index
    %17 = vector.load %arg10[%c0_25, %c0_26] : memref<1x16xf32, #tpu.memory_space<vmem>>, vector<1x16xf32>
    %18 = vector.broadcast %17 : vector<1x16xf32> to vector<8x16xf32>
    %19 = arith.addf %16, %18 : vector<8x16xf32>
    %c0_27 = arith.constant 0 : index
    %c0_28 = arith.constant 0 : index
    %20 = vector.load %arg75[%c0_27, %c0_28] : memref<1x16xf32, #tpu.memory_space<vmem>>, vector<1x16xf32>
    %c0_29 = arith.constant 0 : index
    %c0_30 = arith.constant 0 : index
    %21 = vector.load %arg76[%c0_29, %c0_30] : memref<16x16xf32, #tpu.memory_space<vmem>>, vector<16x16xf32>
    %cst_31 = arith.constant dense<0.000000e+00> : vector<8x16xf32>
    %22 = tpu.matmul %19, %21, %cst_31 {dimension_numbers = #tpu.dot_dimension_numbers<[1], [0], [0], [1], [0, 0, 1, 1], [], []>} : vector<8x16xf32>, vector<16x16xf32>, vector<8x16xf32> -> vector<8x16xf32>
    %23 = vector.broadcast %20 : vector<1x16xf32> to vector<8x16xf32>
    %24 = arith.addf %23, %22 : vector<8x16xf32>
    %cst_32 = arith.constant 0.000000e+00 : f32
    %25 = vector.broadcast %cst_32 : f32 to vector<8x16xf32>
    %26 = arith.maximumf %24, %25 : vector<8x16xf32>
    %cst_33 = arith.constant dense<0.000000e+00> : vector<16x16xf32>
    %27 = tpu.matmul %12, %26, %cst_33 {dimension_numbers = #tpu.dot_dimension_numbers<[1], [0], [0], [1], [0, 0, 1, 1], [], []>} : vector<16x8xf32>, vector<8x16xf32>, vector<16x16xf32> -> vector<16x16xf32>
    %cst_34 = arith.constant dense<0.000000e+00> : vector<16x16xf32>
    %28 = tpu.matmul %13, %26, %cst_34 {dimension_numbers = #tpu.dot_dimension_numbers<[1], [0], [0], [1], [0, 0, 1, 1], [], []>} : vector<16x8xf32>, vector<8x16xf32>, vector<16x16xf32> -> vector<16x16xf32>
    %c0_35 = arith.constant 0 : index
    %c0_36 = arith.constant 0 : index
    %29 = vector.load %arg77[%c0_35, %c0_36] : memref<1x16xf32, #tpu.memory_space<vmem>>, vector<1x16xf32>
    %c0_37 = arith.constant 0 : index
    %c0_38 = arith.constant 0 : index
    %30 = vector.load %arg78[%c0_37, %c0_38] : memref<16x16xf32, #tpu.memory_space<vmem>>, vector<16x16xf32>
    %cst_39 = arith.constant dense<0.000000e+00> : vector<16x16xf32>
    %31 = tpu.matmul %27, %30, %cst_39 {dimension_numbers = #tpu.dot_dimension_numbers<[1], [0], [0], [1], [0, 0, 1, 1], [], []>} : vector<16x16xf32>, vector<16x16xf32>, vector<16x16xf32> -> vector<16x16xf32>
    %32 = vector.broadcast %29 : vector<1x16xf32> to vector<16x16xf32>
    %33 = arith.addf %32, %31 : vector<16x16xf32>
    %c0_40 = arith.constant 0 : index
    %c0_41 = arith.constant 0 : index
    %34 = vector.load %arg79[%c0_40, %c0_41] : memref<16x16xf32, #tpu.memory_space<vmem>>, vector<16x16xf32>
    %cst_42 = arith.constant dense<0.000000e+00> : vector<16x16xf32>
    %35 = tpu.matmul %28, %34, %cst_42 {dimension_numbers = #tpu.dot_dimension_numbers<[1], [0], [0], [1], [0, 0, 1, 1], [], []>} : vector<16x16xf32>, vector<16x16xf32>, vector<16x16xf32> -> vector<16x16xf32>
    %36 = arith.addf %33, %35 : vector<16x16xf32>
    %c0_43 = arith.constant 0 : index
    %c0_44 = arith.constant 0 : index
    %37 = vector.load %arg80[%c0_43, %c0_44] : memref<4x16xf32, #tpu.memory_space<vmem>>, vector<4x16xf32>
    %cst_45 = arith.constant dense<0.000000e+00> : vector<16x16xf32>
    %38 = tpu.matmul %7, %37, %cst_45 {dimension_numbers = #tpu.dot_dimension_numbers<[1], [0], [0], [1], [0, 0, 1, 1], [], []>} : vector<16x4xf32>, vector<4x16xf32>, vector<16x16xf32> -> vector<16x16xf32>
    %39 = arith.addf %36, %38 : vector<16x16xf32>
    %cst_46 = arith.constant 0.000000e+00 : f32
    %40 = vector.broadcast %cst_46 : f32 to vector<16x16xf32>
    %41 = arith.maximumf %39, %40 : vector<16x16xf32>
    %cst_47 = arith.constant dense<0.000000e+00> : vector<8x16xf32>
    %42 = tpu.matmul %14, %41, %cst_47 {dimension_numbers = #tpu.dot_dimension_numbers<[1], [0], [0], [1], [0, 0, 1, 1], [], []>} : vector<8x16xf32>, vector<16x16xf32>, vector<8x16xf32> -> vector<8x16xf32>
    %c0_48 = arith.constant 0 : index
    %c0_49 = arith.constant 0 : index
    %43 = vector.load %arg81[%c0_48, %c0_49] : memref<1x16xf32, #tpu.memory_space<vmem>>, vector<1x16xf32>
    %c0_50 = arith.constant 0 : index
    %c0_51 = arith.constant 0 : index
    %44 = vector.load %arg82[%c0_50, %c0_51] : memref<16x16xf32, #tpu.memory_space<vmem>>, vector<16x16xf32>
    %cst_52 = arith.constant dense<0.000000e+00> : vector<8x16xf32>
    %45 = tpu.matmul %26, %44, %cst_52 {dimension_numbers = #tpu.dot_dimension_numbers<[1], [0], [0], [1], [0, 0, 1, 1], [], []>} : vector<8x16xf32>, vector<16x16xf32>, vector<8x16xf32> -> vector<8x16xf32>
    %46 = vector.broadcast %43 : vector<1x16xf32> to vector<8x16xf32>
    %47 = arith.addf %46, %45 : vector<8x16xf32>
    %c0_53 = arith.constant 0 : index
    %c0_54 = arith.constant 0 : index
    %48 = vector.load %arg83[%c0_53, %c0_54] : memref<16x16xf32, #tpu.memory_space<vmem>>, vector<16x16xf32>
    %cst_55 = arith.constant dense<0.000000e+00> : vector<8x16xf32>
    %49 = tpu.matmul %42, %48, %cst_55 {dimension_numbers = #tpu.dot_dimension_numbers<[1], [0], [0], [1], [0, 0, 1, 1], [], []>} : vector<8x16xf32>, vector<16x16xf32>, vector<8x16xf32> -> vector<8x16xf32>
    %50 = arith.addf %47, %49 : vector<8x16xf32>
    %cst_56 = arith.constant 0.000000e+00 : f32
    %51 = vector.broadcast %cst_56 : f32 to vector<8x16xf32>
    %52 = arith.maximumf %50, %51 : vector<8x16xf32>
    %53 = arith.addf %26, %52 : vector<8x16xf32>
    %cst_57 = arith.constant dense<0.000000e+00> : vector<16x16xf32>
    %54 = tpu.matmul %12, %53, %cst_57 {dimension_numbers = #tpu.dot_dimension_numbers<[1], [0], [0], [1], [0, 0, 1, 1], [], []>} : vector<16x8xf32>, vector<8x16xf32>, vector<16x16xf32> -> vector<16x16xf32>
    %cst_58 = arith.constant dense<0.000000e+00> : vector<16x16xf32>
    %55 = tpu.matmul %13, %53, %cst_58 {dimension_numbers = #tpu.dot_dimension_numbers<[1], [0], [0], [1], [0, 0, 1, 1], [], []>} : vector<16x8xf32>, vector<8x16xf32>, vector<16x16xf32> -> vector<16x16xf32>
    %c0_59 = arith.constant 0 : index
    %c0_60 = arith.constant 0 : index
    %56 = vector.load %arg84[%c0_59, %c0_60] : memref<1x16xf32, #tpu.memory_space<vmem>>, vector<1x16xf32>
    %c0_61 = arith.constant 0 : index
    %c0_62 = arith.constant 0 : index
    %57 = vector.load %arg85[%c0_61, %c0_62] : memref<16x16xf32, #tpu.memory_space<vmem>>, vector<16x16xf32>
    %cst_63 = arith.constant dense<0.000000e+00> : vector<16x16xf32>
    %58 = tpu.matmul %54, %57, %cst_63 {dimension_numbers = #tpu.dot_dimension_numbers<[1], [0], [0], [1], [0, 0, 1, 1], [], []>} : vector<16x16xf32>, vector<16x16xf32>, vector<16x16xf32> -> vector<16x16xf32>
    %59 = vector.broadcast %56 : vector<1x16xf32> to vector<16x16xf32>
    %60 = arith.addf %59, %58 : vector<16x16xf32>
    %c0_64 = arith.constant 0 : index
    %c0_65 = arith.constant 0 : index
    %61 = vector.load %arg86[%c0_64, %c0_65] : memref<16x16xf32, #tpu.memory_space<vmem>>, vector<16x16xf32>
    %cst_66 = arith.constant dense<0.000000e+00> : vector<16x16xf32>
    %62 = tpu.matmul %55, %61, %cst_66 {dimension_numbers = #tpu.dot_dimension_numbers<[1], [0], [0], [1], [0, 0, 1, 1], [], []>} : vector<16x16xf32>, vector<16x16xf32>, vector<16x16xf32> -> vector<16x16xf32>
    %63 = arith.addf %60, %62 : vector<16x16xf32>
    %c0_67 = arith.constant 0 : index
    %c0_68 = arith.constant 0 : index
    %64 = vector.load %arg87[%c0_67, %c0_68] : memref<4x16xf32, #tpu.memory_space<vmem>>, vector<4x16xf32>
    %cst_69 = arith.constant dense<0.000000e+00> : vector<16x16xf32>
    %65 = tpu.matmul %7, %64, %cst_69 {dimension_numbers = #tpu.dot_dimension_numbers<[1], [0], [0], [1], [0, 0, 1, 1], [], []>} : vector<16x4xf32>, vector<4x16xf32>, vector<16x16xf32> -> vector<16x16xf32>
    %66 = arith.addf %63, %65 : vector<16x16xf32>
    %cst_70 = arith.constant 0.000000e+00 : f32
    %67 = vector.broadcast %cst_70 : f32 to vector<16x16xf32>
    %68 = arith.maximumf %66, %67 : vector<16x16xf32>
    %cst_71 = arith.constant dense<0.000000e+00> : vector<8x16xf32>
    %69 = tpu.matmul %14, %68, %cst_71 {dimension_numbers = #tpu.dot_dimension_numbers<[1], [0], [0], [1], [0, 0, 1, 1], [], []>} : vector<8x16xf32>, vector<16x16xf32>, vector<8x16xf32> -> vector<8x16xf32>
    %c0_72 = arith.constant 0 : index
    %c0_73 = arith.constant 0 : index
    %70 = vector.load %arg88[%c0_72, %c0_73] : memref<1x16xf32, #tpu.memory_space<vmem>>, vector<1x16xf32>
    %c0_74 = arith.constant 0 : index
    %c0_75 = arith.constant 0 : index
    %71 = vector.load %arg89[%c0_74, %c0_75] : memref<16x16xf32, #tpu.memory_space<vmem>>, vector<16x16xf32>
    %cst_76 = arith.constant dense<0.000000e+00> : vector<8x16xf32>
    %72 = tpu.matmul %53, %71, %cst_76 {dimension_numbers = #tpu.dot_dimension_numbers<[1], [0], [0], [1], [0, 0, 1, 1], [], []>} : vector<8x16xf32>, vector<16x16xf32>, vector<8x16xf32> -> vector<8x16xf32>
    %73 = vector.broadcast %70 : vector<1x16xf32> to vector<8x16xf32>
    %74 = arith.addf %73, %72 : vector<8x16xf32>
    %c0_77 = arith.constant 0 : index
    %c0_78 = arith.constant 0 : index
    %75 = vector.load %arg90[%c0_77, %c0_78] : memref<16x16xf32, #tpu.memory_space<vmem>>, vector<16x16xf32>
    %cst_79 = arith.constant dense<0.000000e+00> : vector<8x16xf32>
    %76 = tpu.matmul %69, %75, %cst_79 {dimension_numbers = #tpu.dot_dimension_numbers<[1], [0], [0], [1], [0, 0, 1, 1], [], []>} : vector<8x16xf32>, vector<16x16xf32>, vector<8x16xf32> -> vector<8x16xf32>
    %77 = arith.addf %74, %76 : vector<8x16xf32>
    %cst_80 = arith.constant 0.000000e+00 : f32
    %78 = vector.broadcast %cst_80 : f32 to vector<8x16xf32>
    %79 = arith.maximumf %77, %78 : vector<8x16xf32>
    %80 = arith.addf %53, %79 : vector<8x16xf32>
    %c0_81 = arith.constant 0 : index
    %c0_82 = arith.constant 0 : index
    %81 = vector.load %arg58[%c0_81, %c0_82] : memref<1x16xf32, #tpu.memory_space<vmem>>, vector<1x16xf32>
    %c0_83 = arith.constant 0 : index
    %c0_84 = arith.constant 0 : index
    %82 = vector.load %arg59[%c0_83, %c0_84] : memref<2x16xf32, #tpu.memory_space<vmem>>, vector<2x16xf32>
    %cst_85 = arith.constant dense<0.000000e+00> : vector<8x16xf32>
    %83 = tpu.matmul %3, %82, %cst_85 {dimension_numbers = #tpu.dot_dimension_numbers<[1], [0], [0], [1], [0, 0, 1, 1], [], []>} : vector<8x2xf32>, vector<2x16xf32>, vector<8x16xf32> -> vector<8x16xf32>
    %84 = vector.broadcast %81 : vector<1x16xf32> to vector<8x16xf32>
    %85 = arith.addf %84, %83 : vector<8x16xf32>
    %c0_86 = arith.constant 0 : index
    %c0_87 = arith.constant 0 : index
    %86 = vector.load %arg60[%c0_86, %c0_87] : memref<16x16xf32, #tpu.memory_space<vmem>>, vector<16x16xf32>
    %cst_88 = arith.constant dense<0.000000e+00> : vector<8x16xf32>
    %87 = tpu.matmul %80, %86, %cst_88 {dimension_numbers = #tpu.dot_dimension_numbers<[1], [0], [0], [1], [0, 0, 1, 1], [], []>} : vector<8x16xf32>, vector<16x16xf32>, vector<8x16xf32> -> vector<8x16xf32>
    %88 = arith.addf %85, %87 : vector<8x16xf32>
    %cst_89 = arith.constant 0.000000e+00 : f32
    %89 = vector.broadcast %cst_89 : f32 to vector<8x16xf32>
    %90 = arith.maximumf %88, %89 : vector<8x16xf32>
    %cst_90 = arith.constant dense<0.000000e+00> : vector<16x16xf32>
    %91 = tpu.matmul %12, %90, %cst_90 {dimension_numbers = #tpu.dot_dimension_numbers<[1], [0], [0], [1], [0, 0, 1, 1], [], []>} : vector<16x8xf32>, vector<8x16xf32>, vector<16x16xf32> -> vector<16x16xf32>
    %cst_91 = arith.constant dense<0.000000e+00> : vector<16x16xf32>
    %92 = tpu.matmul %13, %90, %cst_91 {dimension_numbers = #tpu.dot_dimension_numbers<[1], [0], [0], [1], [0, 0, 1, 1], [], []>} : vector<16x8xf32>, vector<8x16xf32>, vector<16x16xf32> -> vector<16x16xf32>
    %c0_92 = arith.constant 0 : index
    %c0_93 = arith.constant 0 : index
    %93 = vector.load %arg61[%c0_92, %c0_93] : memref<1x16xf32, #tpu.memory_space<vmem>>, vector<1x16xf32>
    %c0_94 = arith.constant 0 : index
    %c0_95 = arith.constant 0 : index
    %94 = vector.load %arg62[%c0_94, %c0_95] : memref<16x16xf32, #tpu.memory_space<vmem>>, vector<16x16xf32>
    %cst_96 = arith.constant dense<0.000000e+00> : vector<16x16xf32>
    %95 = tpu.matmul %91, %94, %cst_96 {dimension_numbers = #tpu.dot_dimension_numbers<[1], [0], [0], [1], [0, 0, 1, 1], [], []>} : vector<16x16xf32>, vector<16x16xf32>, vector<16x16xf32> -> vector<16x16xf32>
    %96 = vector.broadcast %93 : vector<1x16xf32> to vector<16x16xf32>
    %97 = arith.addf %96, %95 : vector<16x16xf32>
    %c0_97 = arith.constant 0 : index
    %c0_98 = arith.constant 0 : index
    %98 = vector.load %arg63[%c0_97, %c0_98] : memref<16x16xf32, #tpu.memory_space<vmem>>, vector<16x16xf32>
    %cst_99 = arith.constant dense<0.000000e+00> : vector<16x16xf32>
    %99 = tpu.matmul %92, %98, %cst_99 {dimension_numbers = #tpu.dot_dimension_numbers<[1], [0], [0], [1], [0, 0, 1, 1], [], []>} : vector<16x16xf32>, vector<16x16xf32>, vector<16x16xf32> -> vector<16x16xf32>
    %100 = arith.addf %97, %99 : vector<16x16xf32>
    %c0_100 = arith.constant 0 : index
    %c0_101 = arith.constant 0 : index
    %101 = vector.load %arg64[%c0_100, %c0_101] : memref<4x16xf32, #tpu.memory_space<vmem>>, vector<4x16xf32>
    %cst_102 = arith.constant dense<0.000000e+00> : vector<16x16xf32>
    %102 = tpu.matmul %7, %101, %cst_102 {dimension_numbers = #tpu.dot_dimension_numbers<[1], [0], [0], [1], [0, 0, 1, 1], [], []>} : vector<16x4xf32>, vector<4x16xf32>, vector<16x16xf32> -> vector<16x16xf32>
    %103 = arith.addf %100, %102 : vector<16x16xf32>
    %cst_103 = arith.constant 0.000000e+00 : f32
    %104 = vector.broadcast %cst_103 : f32 to vector<16x16xf32>
    %105 = arith.maximumf %103, %104 : vector<16x16xf32>
    %cst_104 = arith.constant dense<0.000000e+00> : vector<8x16xf32>
    %106 = tpu.matmul %14, %105, %cst_104 {dimension_numbers = #tpu.dot_dimension_numbers<[1], [0], [0], [1], [0, 0, 1, 1], [], []>} : vector<8x16xf32>, vector<16x16xf32>, vector<8x16xf32> -> vector<8x16xf32>
    %c0_105 = arith.constant 0 : index
    %c0_106 = arith.constant 0 : index
    %107 = vector.load %arg65[%c0_105, %c0_106] : memref<1x16xf32, #tpu.memory_space<vmem>>, vector<1x16xf32>
    %c0_107 = arith.constant 0 : index
    %c0_108 = arith.constant 0 : index
    %108 = vector.load %arg66[%c0_107, %c0_108] : memref<16x16xf32, #tpu.memory_space<vmem>>, vector<16x16xf32>
    %cst_109 = arith.constant dense<0.000000e+00> : vector<8x16xf32>
    %109 = tpu.matmul %90, %108, %cst_109 {dimension_numbers = #tpu.dot_dimension_numbers<[1], [0], [0], [1], [0, 0, 1, 1], [], []>} : vector<8x16xf32>, vector<16x16xf32>, vector<8x16xf32> -> vector<8x16xf32>
    %110 = vector.broadcast %107 : vector<1x16xf32> to vector<8x16xf32>
    %111 = arith.addf %110, %109 : vector<8x16xf32>
    %c0_110 = arith.constant 0 : index
    %c0_111 = arith.constant 0 : index
    %112 = vector.load %arg67[%c0_110, %c0_111] : memref<16x16xf32, #tpu.memory_space<vmem>>, vector<16x16xf32>
    %cst_112 = arith.constant dense<0.000000e+00> : vector<8x16xf32>
    %113 = tpu.matmul %106, %112, %cst_112 {dimension_numbers = #tpu.dot_dimension_numbers<[1], [0], [0], [1], [0, 0, 1, 1], [], []>} : vector<8x16xf32>, vector<16x16xf32>, vector<8x16xf32> -> vector<8x16xf32>
    %114 = arith.addf %111, %113 : vector<8x16xf32>
    %cst_113 = arith.constant 0.000000e+00 : f32
    %115 = vector.broadcast %cst_113 : f32 to vector<8x16xf32>
    %116 = arith.maximumf %114, %115 : vector<8x16xf32>
    %117 = arith.addf %90, %116 : vector<8x16xf32>
    %cst_114 = arith.constant dense<0.000000e+00> : vector<16x16xf32>
    %118 = tpu.matmul %12, %117, %cst_114 {dimension_numbers = #tpu.dot_dimension_numbers<[1], [0], [0], [1], [0, 0, 1, 1], [], []>} : vector<16x8xf32>, vector<8x16xf32>, vector<16x16xf32> -> vector<16x16xf32>
    %cst_115 = arith.constant dense<0.000000e+00> : vector<16x16xf32>
    %119 = tpu.matmul %13, %117, %cst_115 {dimension_numbers = #tpu.dot_dimension_numbers<[1], [0], [0], [1], [0, 0, 1, 1], [], []>} : vector<16x8xf32>, vector<8x16xf32>, vector<16x16xf32> -> vector<16x16xf32>
    %c0_116 = arith.constant 0 : index
    %c0_117 = arith.constant 0 : index
    %120 = vector.load %arg68[%c0_116, %c0_117] : memref<1x16xf32, #tpu.memory_space<vmem>>, vector<1x16xf32>
    %c0_118 = arith.constant 0 : index
    %c0_119 = arith.constant 0 : index
    %121 = vector.load %arg69[%c0_118, %c0_119] : memref<16x16xf32, #tpu.memory_space<vmem>>, vector<16x16xf32>
    %cst_120 = arith.constant dense<0.000000e+00> : vector<16x16xf32>
    %122 = tpu.matmul %118, %121, %cst_120 {dimension_numbers = #tpu.dot_dimension_numbers<[1], [0], [0], [1], [0, 0, 1, 1], [], []>} : vector<16x16xf32>, vector<16x16xf32>, vector<16x16xf32> -> vector<16x16xf32>
    %123 = vector.broadcast %120 : vector<1x16xf32> to vector<16x16xf32>
    %124 = arith.addf %123, %122 : vector<16x16xf32>
    %c0_121 = arith.constant 0 : index
    %c0_122 = arith.constant 0 : index
    %125 = vector.load %arg70[%c0_121, %c0_122] : memref<16x16xf32, #tpu.memory_space<vmem>>, vector<16x16xf32>
    %cst_123 = arith.constant dense<0.000000e+00> : vector<16x16xf32>
    %126 = tpu.matmul %119, %125, %cst_123 {dimension_numbers = #tpu.dot_dimension_numbers<[1], [0], [0], [1], [0, 0, 1, 1], [], []>} : vector<16x16xf32>, vector<16x16xf32>, vector<16x16xf32> -> vector<16x16xf32>
    %127 = arith.addf %124, %126 : vector<16x16xf32>
    %c0_124 = arith.constant 0 : index
    %c0_125 = arith.constant 0 : index
    %128 = vector.load %arg71[%c0_124, %c0_125] : memref<4x16xf32, #tpu.memory_space<vmem>>, vector<4x16xf32>
    %cst_126 = arith.constant dense<0.000000e+00> : vector<16x16xf32>
    %129 = tpu.matmul %7, %128, %cst_126 {dimension_numbers = #tpu.dot_dimension_numbers<[1], [0], [0], [1], [0, 0, 1, 1], [], []>} : vector<16x4xf32>, vector<4x16xf32>, vector<16x16xf32> -> vector<16x16xf32>
    %130 = arith.addf %127, %129 : vector<16x16xf32>
    %cst_127 = arith.constant 0.000000e+00 : f32
    %131 = vector.broadcast %cst_127 : f32 to vector<16x16xf32>
    %132 = arith.maximumf %130, %131 : vector<16x16xf32>
    %cst_128 = arith.constant dense<0.000000e+00> : vector<8x16xf32>
    %133 = tpu.matmul %14, %132, %cst_128 {dimension_numbers = #tpu.dot_dimension_numbers<[1], [0], [0], [1], [0, 0, 1, 1], [], []>} : vector<8x16xf32>, vector<16x16xf32>, vector<8x16xf32> -> vector<8x16xf32>
    %c0_129 = arith.constant 0 : index
    %c0_130 = arith.constant 0 : index
    %134 = vector.load %arg72[%c0_129, %c0_130] : memref<1x16xf32, #tpu.memory_space<vmem>>, vector<1x16xf32>
    %c0_131 = arith.constant 0 : index
    %c0_132 = arith.constant 0 : index
    %135 = vector.load %arg73[%c0_131, %c0_132] : memref<16x16xf32, #tpu.memory_space<vmem>>, vector<16x16xf32>
    %cst_133 = arith.constant dense<0.000000e+00> : vector<8x16xf32>
    %136 = tpu.matmul %117, %135, %cst_133 {dimension_numbers = #tpu.dot_dimension_numbers<[1], [0], [0], [1], [0, 0, 1, 1], [], []>} : vector<8x16xf32>, vector<16x16xf32>, vector<8x16xf32> -> vector<8x16xf32>
    %137 = vector.broadcast %134 : vector<1x16xf32> to vector<8x16xf32>
    %138 = arith.addf %137, %136 : vector<8x16xf32>
    %c0_134 = arith.constant 0 : index
    %c0_135 = arith.constant 0 : index
    %139 = vector.load %arg74[%c0_134, %c0_135] : memref<16x16xf32, #tpu.memory_space<vmem>>, vector<16x16xf32>
    %cst_136 = arith.constant dense<0.000000e+00> : vector<8x16xf32>
    %140 = tpu.matmul %133, %139, %cst_136 {dimension_numbers = #tpu.dot_dimension_numbers<[1], [0], [0], [1], [0, 0, 1, 1], [], []>} : vector<8x16xf32>, vector<16x16xf32>, vector<8x16xf32> -> vector<8x16xf32>
    %141 = arith.addf %138, %140 : vector<8x16xf32>
    %cst_137 = arith.constant 0.000000e+00 : f32
    %142 = vector.broadcast %cst_137 : f32 to vector<8x16xf32>
    %143 = arith.maximumf %141, %142 : vector<8x16xf32>
    %144 = arith.addf %117, %143 : vector<8x16xf32>
    %c0_138 = arith.constant 0 : index
    %c0_139 = arith.constant 0 : index
    %145 = vector.load %arg57[%c0_138, %c0_139] : memref<16x8xf32, #tpu.memory_space<vmem>>, vector<16x8xf32>
    %cst_140 = arith.constant dense<0.000000e+00> : vector<8x8xf32>
    %146 = tpu.matmul %144, %145, %cst_140 {dimension_numbers = #tpu.dot_dimension_numbers<[1], [0], [0], [1], [0, 0, 1, 1], [], []>} : vector<8x16xf32>, vector<16x8xf32>, vector<8x8xf32> -> vector<8x8xf32>
    %c0_141 = arith.constant 0 : index
    %c0_142 = arith.constant 0 : index
    %147 = vector.load %arg56[%c0_141, %c0_142] : memref<1x8xf32, #tpu.memory_space<vmem>>, vector<1x8xf32>
    %148 = vector.broadcast %147 : vector<1x8xf32> to vector<8x8xf32>
    %149 = arith.addf %146, %148 : vector<8x8xf32>
    %c0_143 = arith.constant 0 : index
    %c0_144 = arith.constant 0 : index
    %150 = vector.load %arg55[%c0_143, %c0_144] : memref<16x8xf32, #tpu.memory_space<vmem>>, vector<16x8xf32>
    %cst_145 = arith.constant dense<0.000000e+00> : vector<8x8xf32>
    %151 = tpu.matmul %144, %150, %cst_145 {dimension_numbers = #tpu.dot_dimension_numbers<[1], [0], [0], [1], [0, 0, 1, 1], [], []>} : vector<8x16xf32>, vector<16x8xf32>, vector<8x8xf32> -> vector<8x8xf32>
    %c0_146 = arith.constant 0 : index
    %c0_147 = arith.constant 0 : index
    %152 = vector.load %arg54[%c0_146, %c0_147] : memref<1x8xf32, #tpu.memory_space<vmem>>, vector<1x8xf32>
    %153 = vector.broadcast %152 : vector<1x8xf32> to vector<8x8xf32>
    %154 = arith.addf %151, %153 : vector<8x8xf32>
    %c0_148 = arith.constant 0 : index
    %c0_149 = arith.constant 0 : index
    %155 = vector.load %arg92[%c0_148, %c0_149] : memref<2x16xf32, #tpu.memory_space<vmem>>, vector<2x16xf32>
    %cst_150 = arith.constant dense<0.000000e+00> : vector<8x16xf32>
    %156 = tpu.matmul %5, %155, %cst_150 {dimension_numbers = #tpu.dot_dimension_numbers<[1], [0], [0], [1], [0, 0, 1, 1], [], []>} : vector<8x2xf32>, vector<2x16xf32>, vector<8x16xf32> -> vector<8x16xf32>
    %c0_151 = arith.constant 0 : index
    %c0_152 = arith.constant 0 : index
    %157 = vector.load %arg91[%c0_151, %c0_152] : memref<1x16xf32, #tpu.memory_space<vmem>>, vector<1x16xf32>
    %158 = vector.broadcast %157 : vector<1x16xf32> to vector<8x16xf32>
    %159 = arith.addf %156, %158 : vector<8x16xf32>
    %cst_153 = arith.constant 0.000000e+00 : f32
    %160 = vector.broadcast %cst_153 : f32 to vector<8x16xf32>
    %161 = arith.maximumf %159, %160 : vector<8x16xf32>
    %c0_154 = arith.constant 0 : index
    %c0_155 = arith.constant 0 : index
    %162 = vector.load %arg94[%c0_154, %c0_155] : memref<16x16xf32, #tpu.memory_space<vmem>>, vector<16x16xf32>
    %cst_156 = arith.constant dense<0.000000e+00> : vector<8x16xf32>
    %163 = tpu.matmul %161, %162, %cst_156 {dimension_numbers = #tpu.dot_dimension_numbers<[1], [0], [0], [1], [0, 0, 1, 1], [], []>} : vector<8x16xf32>, vector<16x16xf32>, vector<8x16xf32> -> vector<8x16xf32>
    %c0_157 = arith.constant 0 : index
    %c0_158 = arith.constant 0 : index
    %164 = vector.load %arg93[%c0_157, %c0_158] : memref<1x16xf32, #tpu.memory_space<vmem>>, vector<1x16xf32>
    %165 = vector.broadcast %164 : vector<1x16xf32> to vector<8x16xf32>
    %166 = arith.addf %163, %165 : vector<8x16xf32>
    %c0_159 = arith.constant 0 : index
    %c0_160 = arith.constant 0 : index
    %167 = vector.load %arg16[%c0_159, %c0_160] : memref<1x16xf32, #tpu.memory_space<vmem>>, vector<1x16xf32>
    %c0_161 = arith.constant 0 : index
    %c0_162 = arith.constant 0 : index
    %168 = vector.load %arg17[%c0_161, %c0_162] : memref<2x16xf32, #tpu.memory_space<vmem>>, vector<2x16xf32>
    %cst_163 = arith.constant dense<0.000000e+00> : vector<8x16xf32>
    %169 = tpu.matmul %3, %168, %cst_163 {dimension_numbers = #tpu.dot_dimension_numbers<[1], [0], [0], [1], [0, 0, 1, 1], [], []>} : vector<8x2xf32>, vector<2x16xf32>, vector<8x16xf32> -> vector<8x16xf32>
    %170 = vector.broadcast %167 : vector<1x16xf32> to vector<8x16xf32>
    %171 = arith.addf %170, %169 : vector<8x16xf32>
    %c0_164 = arith.constant 0 : index
    %c0_165 = arith.constant 0 : index
    %172 = vector.load %arg18[%c0_164, %c0_165] : memref<16x16xf32, #tpu.memory_space<vmem>>, vector<16x16xf32>
    %cst_166 = arith.constant dense<0.000000e+00> : vector<8x16xf32>
    %173 = tpu.matmul %80, %172, %cst_166 {dimension_numbers = #tpu.dot_dimension_numbers<[1], [0], [0], [1], [0, 0, 1, 1], [], []>} : vector<8x16xf32>, vector<16x16xf32>, vector<8x16xf32> -> vector<8x16xf32>
    %174 = arith.addf %171, %173 : vector<8x16xf32>
    %c0_167 = arith.constant 0 : index
    %c0_168 = arith.constant 0 : index
    %175 = vector.load %arg19[%c0_167, %c0_168] : memref<16x16xf32, #tpu.memory_space<vmem>>, vector<16x16xf32>
    %cst_169 = arith.constant dense<0.000000e+00> : vector<8x16xf32>
    %176 = tpu.matmul %166, %175, %cst_169 {dimension_numbers = #tpu.dot_dimension_numbers<[1], [0], [0], [1], [0, 0, 1, 1], [], []>} : vector<8x16xf32>, vector<16x16xf32>, vector<8x16xf32> -> vector<8x16xf32>
    %177 = arith.addf %174, %176 : vector<8x16xf32>
    %cst_170 = arith.constant 0.000000e+00 : f32
    %178 = vector.broadcast %cst_170 : f32 to vector<8x16xf32>
    %179 = arith.maximumf %177, %178 : vector<8x16xf32>
    %cst_171 = arith.constant dense<0.000000e+00> : vector<16x16xf32>
    %180 = tpu.matmul %12, %179, %cst_171 {dimension_numbers = #tpu.dot_dimension_numbers<[1], [0], [0], [1], [0, 0, 1, 1], [], []>} : vector<16x8xf32>, vector<8x16xf32>, vector<16x16xf32> -> vector<16x16xf32>
    %cst_172 = arith.constant dense<0.000000e+00> : vector<16x16xf32>
    %181 = tpu.matmul %13, %179, %cst_172 {dimension_numbers = #tpu.dot_dimension_numbers<[1], [0], [0], [1], [0, 0, 1, 1], [], []>} : vector<16x8xf32>, vector<8x16xf32>, vector<16x16xf32> -> vector<16x16xf32>
    %c0_173 = arith.constant 0 : index
    %c0_174 = arith.constant 0 : index
    %182 = vector.load %arg20[%c0_173, %c0_174] : memref<1x16xf32, #tpu.memory_space<vmem>>, vector<1x16xf32>
    %c0_175 = arith.constant 0 : index
    %c0_176 = arith.constant 0 : index
    %183 = vector.load %arg21[%c0_175, %c0_176] : memref<16x16xf32, #tpu.memory_space<vmem>>, vector<16x16xf32>
    %cst_177 = arith.constant dense<0.000000e+00> : vector<16x16xf32>
    %184 = tpu.matmul %180, %183, %cst_177 {dimension_numbers = #tpu.dot_dimension_numbers<[1], [0], [0], [1], [0, 0, 1, 1], [], []>} : vector<16x16xf32>, vector<16x16xf32>, vector<16x16xf32> -> vector<16x16xf32>
    %185 = vector.broadcast %182 : vector<1x16xf32> to vector<16x16xf32>
    %186 = arith.addf %185, %184 : vector<16x16xf32>
    %c0_178 = arith.constant 0 : index
    %c0_179 = arith.constant 0 : index
    %187 = vector.load %arg22[%c0_178, %c0_179] : memref<16x16xf32, #tpu.memory_space<vmem>>, vector<16x16xf32>
    %cst_180 = arith.constant dense<0.000000e+00> : vector<16x16xf32>
    %188 = tpu.matmul %181, %187, %cst_180 {dimension_numbers = #tpu.dot_dimension_numbers<[1], [0], [0], [1], [0, 0, 1, 1], [], []>} : vector<16x16xf32>, vector<16x16xf32>, vector<16x16xf32> -> vector<16x16xf32>
    %189 = arith.addf %186, %188 : vector<16x16xf32>
    %c0_181 = arith.constant 0 : index
    %c0_182 = arith.constant 0 : index
    %190 = vector.load %arg23[%c0_181, %c0_182] : memref<4x16xf32, #tpu.memory_space<vmem>>, vector<4x16xf32>
    %cst_183 = arith.constant dense<0.000000e+00> : vector<16x16xf32>
    %191 = tpu.matmul %7, %190, %cst_183 {dimension_numbers = #tpu.dot_dimension_numbers<[1], [0], [0], [1], [0, 0, 1, 1], [], []>} : vector<16x4xf32>, vector<4x16xf32>, vector<16x16xf32> -> vector<16x16xf32>
    %192 = arith.addf %189, %191 : vector<16x16xf32>
    %c0_184 = arith.constant 0 : index
    %c0_185 = arith.constant 0 : index
    %193 = vector.load %arg24[%c0_184, %c0_185] : memref<4x16xf32, #tpu.memory_space<vmem>>, vector<4x16xf32>
    %cst_186 = arith.constant dense<0.000000e+00> : vector<16x16xf32>
    %194 = tpu.matmul %9, %193, %cst_186 {dimension_numbers = #tpu.dot_dimension_numbers<[1], [0], [0], [1], [0, 0, 1, 1], [], []>} : vector<16x4xf32>, vector<4x16xf32>, vector<16x16xf32> -> vector<16x16xf32>
    %195 = arith.addf %192, %194 : vector<16x16xf32>
    %cst_187 = arith.constant 0.000000e+00 : f32
    %196 = vector.broadcast %cst_187 : f32 to vector<16x16xf32>
    %197 = arith.maximumf %195, %196 : vector<16x16xf32>
    %cst_188 = arith.constant dense<0.000000e+00> : vector<8x16xf32>
    %198 = tpu.matmul %14, %197, %cst_188 {dimension_numbers = #tpu.dot_dimension_numbers<[1], [0], [0], [1], [0, 0, 1, 1], [], []>} : vector<8x16xf32>, vector<16x16xf32>, vector<8x16xf32> -> vector<8x16xf32>
    %c0_189 = arith.constant 0 : index
    %c0_190 = arith.constant 0 : index
    %199 = vector.load %arg25[%c0_189, %c0_190] : memref<1x16xf32, #tpu.memory_space<vmem>>, vector<1x16xf32>
    %c0_191 = arith.constant 0 : index
    %c0_192 = arith.constant 0 : index
    %200 = vector.load %arg26[%c0_191, %c0_192] : memref<16x16xf32, #tpu.memory_space<vmem>>, vector<16x16xf32>
    %cst_193 = arith.constant dense<0.000000e+00> : vector<8x16xf32>
    %201 = tpu.matmul %179, %200, %cst_193 {dimension_numbers = #tpu.dot_dimension_numbers<[1], [0], [0], [1], [0, 0, 1, 1], [], []>} : vector<8x16xf32>, vector<16x16xf32>, vector<8x16xf32> -> vector<8x16xf32>
    %202 = vector.broadcast %199 : vector<1x16xf32> to vector<8x16xf32>
    %203 = arith.addf %202, %201 : vector<8x16xf32>
    %c0_194 = arith.constant 0 : index
    %c0_195 = arith.constant 0 : index
    %204 = vector.load %arg27[%c0_194, %c0_195] : memref<16x16xf32, #tpu.memory_space<vmem>>, vector<16x16xf32>
    %cst_196 = arith.constant dense<0.000000e+00> : vector<8x16xf32>
    %205 = tpu.matmul %198, %204, %cst_196 {dimension_numbers = #tpu.dot_dimension_numbers<[1], [0], [0], [1], [0, 0, 1, 1], [], []>} : vector<8x16xf32>, vector<16x16xf32>, vector<8x16xf32> -> vector<8x16xf32>
    %206 = arith.addf %203, %205 : vector<8x16xf32>
    %cst_197 = arith.constant 0.000000e+00 : f32
    %207 = vector.broadcast %cst_197 : f32 to vector<8x16xf32>
    %208 = arith.maximumf %206, %207 : vector<8x16xf32>
    %209 = arith.addf %179, %208 : vector<8x16xf32>
    %cst_198 = arith.constant dense<0.000000e+00> : vector<16x16xf32>
    %210 = tpu.matmul %12, %209, %cst_198 {dimension_numbers = #tpu.dot_dimension_numbers<[1], [0], [0], [1], [0, 0, 1, 1], [], []>} : vector<16x8xf32>, vector<8x16xf32>, vector<16x16xf32> -> vector<16x16xf32>
    %cst_199 = arith.constant dense<0.000000e+00> : vector<16x16xf32>
    %211 = tpu.matmul %13, %209, %cst_199 {dimension_numbers = #tpu.dot_dimension_numbers<[1], [0], [0], [1], [0, 0, 1, 1], [], []>} : vector<16x8xf32>, vector<8x16xf32>, vector<16x16xf32> -> vector<16x16xf32>
    %c0_200 = arith.constant 0 : index
    %c0_201 = arith.constant 0 : index
    %212 = vector.load %arg28[%c0_200, %c0_201] : memref<1x16xf32, #tpu.memory_space<vmem>>, vector<1x16xf32>
    %c0_202 = arith.constant 0 : index
    %c0_203 = arith.constant 0 : index
    %213 = vector.load %arg29[%c0_202, %c0_203] : memref<16x16xf32, #tpu.memory_space<vmem>>, vector<16x16xf32>
    %cst_204 = arith.constant dense<0.000000e+00> : vector<16x16xf32>
    %214 = tpu.matmul %210, %213, %cst_204 {dimension_numbers = #tpu.dot_dimension_numbers<[1], [0], [0], [1], [0, 0, 1, 1], [], []>} : vector<16x16xf32>, vector<16x16xf32>, vector<16x16xf32> -> vector<16x16xf32>
    %215 = vector.broadcast %212 : vector<1x16xf32> to vector<16x16xf32>
    %216 = arith.addf %215, %214 : vector<16x16xf32>
    %c0_205 = arith.constant 0 : index
    %c0_206 = arith.constant 0 : index
    %217 = vector.load %arg30[%c0_205, %c0_206] : memref<16x16xf32, #tpu.memory_space<vmem>>, vector<16x16xf32>
    %cst_207 = arith.constant dense<0.000000e+00> : vector<16x16xf32>
    %218 = tpu.matmul %211, %217, %cst_207 {dimension_numbers = #tpu.dot_dimension_numbers<[1], [0], [0], [1], [0, 0, 1, 1], [], []>} : vector<16x16xf32>, vector<16x16xf32>, vector<16x16xf32> -> vector<16x16xf32>
    %219 = arith.addf %216, %218 : vector<16x16xf32>
    %c0_208 = arith.constant 0 : index
    %c0_209 = arith.constant 0 : index
    %220 = vector.load %arg31[%c0_208, %c0_209] : memref<4x16xf32, #tpu.memory_space<vmem>>, vector<4x16xf32>
    %cst_210 = arith.constant dense<0.000000e+00> : vector<16x16xf32>
    %221 = tpu.matmul %7, %220, %cst_210 {dimension_numbers = #tpu.dot_dimension_numbers<[1], [0], [0], [1], [0, 0, 1, 1], [], []>} : vector<16x4xf32>, vector<4x16xf32>, vector<16x16xf32> -> vector<16x16xf32>
    %222 = arith.addf %219, %221 : vector<16x16xf32>
    %c0_211 = arith.constant 0 : index
    %c0_212 = arith.constant 0 : index
    %223 = vector.load %arg32[%c0_211, %c0_212] : memref<4x16xf32, #tpu.memory_space<vmem>>, vector<4x16xf32>
    %cst_213 = arith.constant dense<0.000000e+00> : vector<16x16xf32>
    %224 = tpu.matmul %9, %223, %cst_213 {dimension_numbers = #tpu.dot_dimension_numbers<[1], [0], [0], [1], [0, 0, 1, 1], [], []>} : vector<16x4xf32>, vector<4x16xf32>, vector<16x16xf32> -> vector<16x16xf32>
    %225 = arith.addf %222, %224 : vector<16x16xf32>
    %cst_214 = arith.constant 0.000000e+00 : f32
    %226 = vector.broadcast %cst_214 : f32 to vector<16x16xf32>
    %227 = arith.maximumf %225, %226 : vector<16x16xf32>
    %cst_215 = arith.constant dense<0.000000e+00> : vector<8x16xf32>
    %228 = tpu.matmul %14, %227, %cst_215 {dimension_numbers = #tpu.dot_dimension_numbers<[1], [0], [0], [1], [0, 0, 1, 1], [], []>} : vector<8x16xf32>, vector<16x16xf32>, vector<8x16xf32> -> vector<8x16xf32>
    %c0_216 = arith.constant 0 : index
    %c0_217 = arith.constant 0 : index
    %229 = vector.load %arg33[%c0_216, %c0_217] : memref<1x16xf32, #tpu.memory_space<vmem>>, vector<1x16xf32>
    %c0_218 = arith.constant 0 : index
    %c0_219 = arith.constant 0 : index
    %230 = vector.load %arg34[%c0_218, %c0_219] : memref<16x16xf32, #tpu.memory_space<vmem>>, vector<16x16xf32>
    %cst_220 = arith.constant dense<0.000000e+00> : vector<8x16xf32>
    %231 = tpu.matmul %209, %230, %cst_220 {dimension_numbers = #tpu.dot_dimension_numbers<[1], [0], [0], [1], [0, 0, 1, 1], [], []>} : vector<8x16xf32>, vector<16x16xf32>, vector<8x16xf32> -> vector<8x16xf32>
    %232 = vector.broadcast %229 : vector<1x16xf32> to vector<8x16xf32>
    %233 = arith.addf %232, %231 : vector<8x16xf32>
    %c0_221 = arith.constant 0 : index
    %c0_222 = arith.constant 0 : index
    %234 = vector.load %arg35[%c0_221, %c0_222] : memref<16x16xf32, #tpu.memory_space<vmem>>, vector<16x16xf32>
    %cst_223 = arith.constant dense<0.000000e+00> : vector<8x16xf32>
    %235 = tpu.matmul %228, %234, %cst_223 {dimension_numbers = #tpu.dot_dimension_numbers<[1], [0], [0], [1], [0, 0, 1, 1], [], []>} : vector<8x16xf32>, vector<16x16xf32>, vector<8x16xf32> -> vector<8x16xf32>
    %236 = arith.addf %233, %235 : vector<8x16xf32>
    %cst_224 = arith.constant 0.000000e+00 : f32
    %237 = vector.broadcast %cst_224 : f32 to vector<8x16xf32>
    %238 = arith.maximumf %236, %237 : vector<8x16xf32>
    %239 = arith.addf %209, %238 : vector<8x16xf32>
    %c0_225 = arith.constant 0 : index
    %c0_226 = arith.constant 0 : index
    %240 = vector.load %arg15[%c0_225, %c0_226] : memref<16x8xf32, #tpu.memory_space<vmem>>, vector<16x8xf32>
    %cst_227 = arith.constant dense<0.000000e+00> : vector<8x8xf32>
    %241 = tpu.matmul %239, %240, %cst_227 {dimension_numbers = #tpu.dot_dimension_numbers<[1], [0], [0], [1], [0, 0, 1, 1], [], []>} : vector<8x16xf32>, vector<16x8xf32>, vector<8x8xf32> -> vector<8x8xf32>
    %c0_228 = arith.constant 0 : index
    %c0_229 = arith.constant 0 : index
    %242 = vector.load %arg14[%c0_228, %c0_229] : memref<1x8xf32, #tpu.memory_space<vmem>>, vector<1x8xf32>
    %243 = vector.broadcast %242 : vector<1x8xf32> to vector<8x8xf32>
    %244 = arith.addf %241, %243 : vector<8x8xf32>
    %c0_230 = arith.constant 0 : index
    %c0_231 = arith.constant 0 : index
    %245 = vector.load %arg13[%c0_230, %c0_231] : memref<16x8xf32, #tpu.memory_space<vmem>>, vector<16x8xf32>
    %cst_232 = arith.constant dense<0.000000e+00> : vector<8x8xf32>
    %246 = tpu.matmul %239, %245, %cst_232 {dimension_numbers = #tpu.dot_dimension_numbers<[1], [0], [0], [1], [0, 0, 1, 1], [], []>} : vector<8x16xf32>, vector<16x8xf32>, vector<8x8xf32> -> vector<8x8xf32>
    %c0_233 = arith.constant 0 : index
    %c0_234 = arith.constant 0 : index
    %247 = vector.load %arg12[%c0_233, %c0_234] : memref<1x8xf32, #tpu.memory_space<vmem>>, vector<1x8xf32>
    %248 = vector.broadcast %247 : vector<1x8xf32> to vector<8x8xf32>
    %249 = arith.addf %246, %248 : vector<8x8xf32>
    %cst_235 = arith.constant 0.000000e+00 : f32
    %250 = vector.broadcast %cst_235 : f32 to vector<8x8xf32>
    %251 = arith.maximumf %249, %250 : vector<8x8xf32>
    %252 = vector.broadcast %cst_235 : f32 to vector<8x8xf32>
    %253 = arith.subf %249, %252 : vector<8x8xf32>
    %254 = arith.cmpf one, %253, %253 : vector<8x8xf32>
    %255 = vector.broadcast %cst_235 : f32 to vector<8x8xf32>
    %256 = arith.addf %249, %255 : vector<8x8xf32>
    %257 = math.absf %253 : vector<8x8xf32>
    %cst_236 = arith.constant 0.000000e+00 : f32
    %258 = vector.broadcast %cst_236 : f32 to vector<8x8xf32>
    %259 = arith.subf %258, %257 : vector<8x8xf32>
    %260 = math.exp %259 : vector<8x8xf32>
    %261 = math.log1p %260 : vector<8x8xf32>
    %262 = arith.addf %251, %261 : vector<8x8xf32>
    %263 = arith.select %254, %256, %262 : vector<8x8xi1>, vector<8x8xf32>
    %cst_237 = arith.constant 0.00999999977 : f32
    %264 = vector.broadcast %cst_237 : f32 to vector<8x8xf32>
    %265 = arith.addf %263, %264 : vector<8x8xf32>
    %cst_238 = arith.constant 0.000000e+00 : f32
    %266 = vector.broadcast %cst_238 : f32 to vector<8x8xf32>
    %267 = arith.maximumf %154, %266 : vector<8x8xf32>
    %268 = vector.broadcast %cst_238 : f32 to vector<8x8xf32>
    %269 = arith.subf %154, %268 : vector<8x8xf32>
    %270 = arith.cmpf one, %269, %269 : vector<8x8xf32>
    %271 = vector.broadcast %cst_238 : f32 to vector<8x8xf32>
    %272 = arith.addf %154, %271 : vector<8x8xf32>
    %273 = math.absf %269 : vector<8x8xf32>
    %cst_239 = arith.constant 0.000000e+00 : f32
    %274 = vector.broadcast %cst_239 : f32 to vector<8x8xf32>
    %275 = arith.subf %274, %273 : vector<8x8xf32>
    %276 = math.exp %275 : vector<8x8xf32>
    %277 = math.log1p %276 : vector<8x8xf32>
    %278 = arith.addf %267, %277 : vector<8x8xf32>
    %279 = arith.select %270, %272, %278 : vector<8x8xi1>, vector<8x8xf32>
    %cst_240 = arith.constant 0.00999999977 : f32
    %280 = vector.broadcast %cst_240 : f32 to vector<8x8xf32>
    %281 = arith.addf %279, %280 : vector<8x8xf32>
    %282 = arith.mulf %265, %11 : vector<8x8xf32>
    %283 = arith.addf %244, %282 : vector<8x8xf32>
    %284 = arith.divf %281, %265 : vector<8x8xf32>
    %285 = math.log %284 : vector<8x8xf32>
    %286 = arith.mulf %265, %265 : vector<8x8xf32>
    %287 = arith.subf %244, %149 : vector<8x8xf32>
    %288 = arith.mulf %287, %287 : vector<8x8xf32>
    %289 = arith.addf %286, %288 : vector<8x8xf32>
    %cst_241 = arith.constant 2.000000e+00 : f32
    %290 = vector.broadcast %cst_241 : f32 to vector<8x8xf32>
    %291 = arith.mulf %290, %281 : vector<8x8xf32>
    %292 = arith.mulf %291, %281 : vector<8x8xf32>
    %293 = arith.divf %289, %292 : vector<8x8xf32>
    %294 = arith.addf %285, %293 : vector<8x8xf32>
    %cst_242 = arith.constant 5.000000e-01 : f32
    %295 = vector.broadcast %cst_242 : f32 to vector<8x8xf32>
    %296 = arith.subf %294, %295 : vector<8x8xf32>
    %c0_243 = arith.constant 0 : index
    %c0_244 = arith.constant 0 : index
    %297 = vector.load %arg36[%c0_243, %c0_244] : memref<1x16xf32, #tpu.memory_space<vmem>>, vector<1x16xf32>
    %c0_245 = arith.constant 0 : index
    %c0_246 = arith.constant 0 : index
    %298 = vector.load %arg37[%c0_245, %c0_246] : memref<2x16xf32, #tpu.memory_space<vmem>>, vector<2x16xf32>
    %cst_247 = arith.constant dense<0.000000e+00> : vector<8x16xf32>
    %299 = tpu.matmul %3, %298, %cst_247 {dimension_numbers = #tpu.dot_dimension_numbers<[1], [0], [0], [1], [0, 0, 1, 1], [], []>} : vector<8x2xf32>, vector<2x16xf32>, vector<8x16xf32> -> vector<8x16xf32>
    %300 = vector.broadcast %297 : vector<1x16xf32> to vector<8x16xf32>
    %301 = arith.addf %300, %299 : vector<8x16xf32>
    %c0_248 = arith.constant 0 : index
    %c0_249 = arith.constant 0 : index
    %302 = vector.load %arg38[%c0_248, %c0_249] : memref<16x16xf32, #tpu.memory_space<vmem>>, vector<16x16xf32>
    %cst_250 = arith.constant dense<0.000000e+00> : vector<8x16xf32>
    %303 = tpu.matmul %80, %302, %cst_250 {dimension_numbers = #tpu.dot_dimension_numbers<[1], [0], [0], [1], [0, 0, 1, 1], [], []>} : vector<8x16xf32>, vector<16x16xf32>, vector<8x16xf32> -> vector<8x16xf32>
    %304 = arith.addf %301, %303 : vector<8x16xf32>
    %c0_251 = arith.constant 0 : index
    %c0_252 = arith.constant 0 : index
    %305 = vector.load %arg39[%c0_251, %c0_252] : memref<8x16xf32, #tpu.memory_space<vmem>>, vector<8x16xf32>
    %cst_253 = arith.constant dense<0.000000e+00> : vector<8x16xf32>
    %306 = tpu.matmul %283, %305, %cst_253 {dimension_numbers = #tpu.dot_dimension_numbers<[1], [0], [0], [1], [0, 0, 1, 1], [], []>} : vector<8x8xf32>, vector<8x16xf32>, vector<8x16xf32> -> vector<8x16xf32>
    %307 = arith.addf %304, %306 : vector<8x16xf32>
    %cst_254 = arith.constant 0.000000e+00 : f32
    %308 = vector.broadcast %cst_254 : f32 to vector<8x16xf32>
    %309 = arith.maximumf %307, %308 : vector<8x16xf32>
    %cst_255 = arith.constant dense<0.000000e+00> : vector<16x16xf32>
    %310 = tpu.matmul %12, %309, %cst_255 {dimension_numbers = #tpu.dot_dimension_numbers<[1], [0], [0], [1], [0, 0, 1, 1], [], []>} : vector<16x8xf32>, vector<8x16xf32>, vector<16x16xf32> -> vector<16x16xf32>
    %cst_256 = arith.constant dense<0.000000e+00> : vector<16x16xf32>
    %311 = tpu.matmul %13, %309, %cst_256 {dimension_numbers = #tpu.dot_dimension_numbers<[1], [0], [0], [1], [0, 0, 1, 1], [], []>} : vector<16x8xf32>, vector<8x16xf32>, vector<16x16xf32> -> vector<16x16xf32>
    %c0_257 = arith.constant 0 : index
    %c0_258 = arith.constant 0 : index
    %312 = vector.load %arg40[%c0_257, %c0_258] : memref<1x16xf32, #tpu.memory_space<vmem>>, vector<1x16xf32>
    %c0_259 = arith.constant 0 : index
    %c0_260 = arith.constant 0 : index
    %313 = vector.load %arg41[%c0_259, %c0_260] : memref<16x16xf32, #tpu.memory_space<vmem>>, vector<16x16xf32>
    %cst_261 = arith.constant dense<0.000000e+00> : vector<16x16xf32>
    %314 = tpu.matmul %310, %313, %cst_261 {dimension_numbers = #tpu.dot_dimension_numbers<[1], [0], [0], [1], [0, 0, 1, 1], [], []>} : vector<16x16xf32>, vector<16x16xf32>, vector<16x16xf32> -> vector<16x16xf32>
    %315 = vector.broadcast %312 : vector<1x16xf32> to vector<16x16xf32>
    %316 = arith.addf %315, %314 : vector<16x16xf32>
    %c0_262 = arith.constant 0 : index
    %c0_263 = arith.constant 0 : index
    %317 = vector.load %arg42[%c0_262, %c0_263] : memref<16x16xf32, #tpu.memory_space<vmem>>, vector<16x16xf32>
    %cst_264 = arith.constant dense<0.000000e+00> : vector<16x16xf32>
    %318 = tpu.matmul %311, %317, %cst_264 {dimension_numbers = #tpu.dot_dimension_numbers<[1], [0], [0], [1], [0, 0, 1, 1], [], []>} : vector<16x16xf32>, vector<16x16xf32>, vector<16x16xf32> -> vector<16x16xf32>
    %319 = arith.addf %316, %318 : vector<16x16xf32>
    %c0_265 = arith.constant 0 : index
    %c0_266 = arith.constant 0 : index
    %320 = vector.load %arg43[%c0_265, %c0_266] : memref<4x16xf32, #tpu.memory_space<vmem>>, vector<4x16xf32>
    %cst_267 = arith.constant dense<0.000000e+00> : vector<16x16xf32>
    %321 = tpu.matmul %7, %320, %cst_267 {dimension_numbers = #tpu.dot_dimension_numbers<[1], [0], [0], [1], [0, 0, 1, 1], [], []>} : vector<16x4xf32>, vector<4x16xf32>, vector<16x16xf32> -> vector<16x16xf32>
    %322 = arith.addf %319, %321 : vector<16x16xf32>
    %cst_268 = arith.constant 0.000000e+00 : f32
    %323 = vector.broadcast %cst_268 : f32 to vector<16x16xf32>
    %324 = arith.maximumf %322, %323 : vector<16x16xf32>
    %cst_269 = arith.constant dense<0.000000e+00> : vector<8x16xf32>
    %325 = tpu.matmul %14, %324, %cst_269 {dimension_numbers = #tpu.dot_dimension_numbers<[1], [0], [0], [1], [0, 0, 1, 1], [], []>} : vector<8x16xf32>, vector<16x16xf32>, vector<8x16xf32> -> vector<8x16xf32>
    %c0_270 = arith.constant 0 : index
    %c0_271 = arith.constant 0 : index
    %326 = vector.load %arg44[%c0_270, %c0_271] : memref<1x16xf32, #tpu.memory_space<vmem>>, vector<1x16xf32>
    %c0_272 = arith.constant 0 : index
    %c0_273 = arith.constant 0 : index
    %327 = vector.load %arg45[%c0_272, %c0_273] : memref<16x16xf32, #tpu.memory_space<vmem>>, vector<16x16xf32>
    %cst_274 = arith.constant dense<0.000000e+00> : vector<8x16xf32>
    %328 = tpu.matmul %309, %327, %cst_274 {dimension_numbers = #tpu.dot_dimension_numbers<[1], [0], [0], [1], [0, 0, 1, 1], [], []>} : vector<8x16xf32>, vector<16x16xf32>, vector<8x16xf32> -> vector<8x16xf32>
    %329 = vector.broadcast %326 : vector<1x16xf32> to vector<8x16xf32>
    %330 = arith.addf %329, %328 : vector<8x16xf32>
    %c0_275 = arith.constant 0 : index
    %c0_276 = arith.constant 0 : index
    %331 = vector.load %arg46[%c0_275, %c0_276] : memref<16x16xf32, #tpu.memory_space<vmem>>, vector<16x16xf32>
    %cst_277 = arith.constant dense<0.000000e+00> : vector<8x16xf32>
    %332 = tpu.matmul %325, %331, %cst_277 {dimension_numbers = #tpu.dot_dimension_numbers<[1], [0], [0], [1], [0, 0, 1, 1], [], []>} : vector<8x16xf32>, vector<16x16xf32>, vector<8x16xf32> -> vector<8x16xf32>
    %333 = arith.addf %330, %332 : vector<8x16xf32>
    %cst_278 = arith.constant 0.000000e+00 : f32
    %334 = vector.broadcast %cst_278 : f32 to vector<8x16xf32>
    %335 = arith.maximumf %333, %334 : vector<8x16xf32>
    %336 = arith.addf %309, %335 : vector<8x16xf32>
    %cst_279 = arith.constant dense<0.000000e+00> : vector<16x16xf32>
    %337 = tpu.matmul %12, %336, %cst_279 {dimension_numbers = #tpu.dot_dimension_numbers<[1], [0], [0], [1], [0, 0, 1, 1], [], []>} : vector<16x8xf32>, vector<8x16xf32>, vector<16x16xf32> -> vector<16x16xf32>
    %cst_280 = arith.constant dense<0.000000e+00> : vector<16x16xf32>
    %338 = tpu.matmul %13, %336, %cst_280 {dimension_numbers = #tpu.dot_dimension_numbers<[1], [0], [0], [1], [0, 0, 1, 1], [], []>} : vector<16x8xf32>, vector<8x16xf32>, vector<16x16xf32> -> vector<16x16xf32>
    %c0_281 = arith.constant 0 : index
    %c0_282 = arith.constant 0 : index
    %339 = vector.load %arg47[%c0_281, %c0_282] : memref<1x16xf32, #tpu.memory_space<vmem>>, vector<1x16xf32>
    %c0_283 = arith.constant 0 : index
    %c0_284 = arith.constant 0 : index
    %340 = vector.load %arg48[%c0_283, %c0_284] : memref<16x16xf32, #tpu.memory_space<vmem>>, vector<16x16xf32>
    %cst_285 = arith.constant dense<0.000000e+00> : vector<16x16xf32>
    %341 = tpu.matmul %337, %340, %cst_285 {dimension_numbers = #tpu.dot_dimension_numbers<[1], [0], [0], [1], [0, 0, 1, 1], [], []>} : vector<16x16xf32>, vector<16x16xf32>, vector<16x16xf32> -> vector<16x16xf32>
    %342 = vector.broadcast %339 : vector<1x16xf32> to vector<16x16xf32>
    %343 = arith.addf %342, %341 : vector<16x16xf32>
    %c0_286 = arith.constant 0 : index
    %c0_287 = arith.constant 0 : index
    %344 = vector.load %arg49[%c0_286, %c0_287] : memref<16x16xf32, #tpu.memory_space<vmem>>, vector<16x16xf32>
    %cst_288 = arith.constant dense<0.000000e+00> : vector<16x16xf32>
    %345 = tpu.matmul %338, %344, %cst_288 {dimension_numbers = #tpu.dot_dimension_numbers<[1], [0], [0], [1], [0, 0, 1, 1], [], []>} : vector<16x16xf32>, vector<16x16xf32>, vector<16x16xf32> -> vector<16x16xf32>
    %346 = arith.addf %343, %345 : vector<16x16xf32>
    %c0_289 = arith.constant 0 : index
    %c0_290 = arith.constant 0 : index
    %347 = vector.load %arg50[%c0_289, %c0_290] : memref<4x16xf32, #tpu.memory_space<vmem>>, vector<4x16xf32>
    %cst_291 = arith.constant dense<0.000000e+00> : vector<16x16xf32>
    %348 = tpu.matmul %7, %347, %cst_291 {dimension_numbers = #tpu.dot_dimension_numbers<[1], [0], [0], [1], [0, 0, 1, 1], [], []>} : vector<16x4xf32>, vector<4x16xf32>, vector<16x16xf32> -> vector<16x16xf32>
    %349 = arith.addf %346, %348 : vector<16x16xf32>
    %cst_292 = arith.constant 0.000000e+00 : f32
    %350 = vector.broadcast %cst_292 : f32 to vector<16x16xf32>
    %351 = arith.maximumf %349, %350 : vector<16x16xf32>
    %cst_293 = arith.constant dense<0.000000e+00> : vector<8x16xf32>
    %352 = tpu.matmul %14, %351, %cst_293 {dimension_numbers = #tpu.dot_dimension_numbers<[1], [0], [0], [1], [0, 0, 1, 1], [], []>} : vector<8x16xf32>, vector<16x16xf32>, vector<8x16xf32> -> vector<8x16xf32>
    %c0_294 = arith.constant 0 : index
    %c0_295 = arith.constant 0 : index
    %353 = vector.load %arg51[%c0_294, %c0_295] : memref<1x16xf32, #tpu.memory_space<vmem>>, vector<1x16xf32>
    %c0_296 = arith.constant 0 : index
    %c0_297 = arith.constant 0 : index
    %354 = vector.load %arg52[%c0_296, %c0_297] : memref<16x16xf32, #tpu.memory_space<vmem>>, vector<16x16xf32>
    %cst_298 = arith.constant dense<0.000000e+00> : vector<8x16xf32>
    %355 = tpu.matmul %336, %354, %cst_298 {dimension_numbers = #tpu.dot_dimension_numbers<[1], [0], [0], [1], [0, 0, 1, 1], [], []>} : vector<8x16xf32>, vector<16x16xf32>, vector<8x16xf32> -> vector<8x16xf32>
    %356 = vector.broadcast %353 : vector<1x16xf32> to vector<8x16xf32>
    %357 = arith.addf %356, %355 : vector<8x16xf32>
    %c0_299 = arith.constant 0 : index
    %c0_300 = arith.constant 0 : index
    %358 = vector.load %arg53[%c0_299, %c0_300] : memref<16x16xf32, #tpu.memory_space<vmem>>, vector<16x16xf32>
    %cst_301 = arith.constant dense<0.000000e+00> : vector<8x16xf32>
    %359 = tpu.matmul %352, %358, %cst_301 {dimension_numbers = #tpu.dot_dimension_numbers<[1], [0], [0], [1], [0, 0, 1, 1], [], []>} : vector<8x16xf32>, vector<16x16xf32>, vector<8x16xf32> -> vector<8x16xf32>
    %360 = arith.addf %357, %359 : vector<8x16xf32>
    %cst_302 = arith.constant 0.000000e+00 : f32
    %361 = vector.broadcast %cst_302 : f32 to vector<8x16xf32>
    %362 = arith.maximumf %360, %361 : vector<8x16xf32>
    %363 = arith.addf %336, %362 : vector<8x16xf32>
    %c0_303 = arith.constant 0 : index
    %c0_304 = arith.constant 0 : index
    %c0_305 = arith.constant 0 : index
    %364 = vector.load %arg95[%c0_303, %c0_304, %c0_305] : memref<1x8x16xf32, #tpu.memory_space<vmem>>, vector<1x8x16xf32>
    %365 = vector.shape_cast %364 : vector<1x8x16xf32> to vector<8x16xf32>
    %366 = vector.shape_cast %363 : vector<8x16xf32> to vector<1x8x16xf32>
    tpu.vector_store %arg95[%c0_303, %c0_304, %c0_305], %366 {strides = array<i32>} : memref<1x8x16xf32, #tpu.memory_space<vmem>>, vector<1x8x16xf32>,
    %c0_306 = arith.constant 0 : index
    %c0_307 = arith.constant 0 : index
    %c0_308 = arith.constant 0 : index
    %367 = vector.load %arg96[%c0_306, %c0_307, %c0_308] : memref<1x8x8xf32, #tpu.memory_space<vmem>>, vector<1x8x8xf32>
    %368 = vector.shape_cast %367 : vector<1x8x8xf32> to vector<8x8xf32>
    %369 = vector.shape_cast %296 : vector<8x8xf32> to vector<1x8x8xf32>
    tpu.vector_store %arg96[%c0_306, %c0_307, %c0_308], %369 {strides = array<i32>} : memref<1x8x8xf32, #tpu.memory_space<vmem>>, vector<1x8x8xf32>,
    return
  }
  func.func @transform_0(%arg0: i32) -> (i32, i32, i32) {
    %c0_i32 = arith.constant 0 : i32
    %c0_i32_0 = arith.constant 0 : i32
    %c0_i32_1 = arith.constant 0 : i32
    return %arg0, %c0_i32, %c0_i32_0 : i32, i32, i32
  }
  func.func @transform_1(%arg0: i32) -> (i32, i32, i32) {
    %c0_i32 = arith.constant 0 : i32
    %c0_i32_0 = arith.constant 0 : i32
    %c0_i32_1 = arith.constant 0 : i32
    return %arg0, %c0_i32, %c0_i32_0 : i32, i32, i32
  }
  func.func @transform_2(%arg0: i32) -> (i32, i32, i32) {
    %c0_i32 = arith.constant 0 : i32
    %c0_i32_0 = arith.constant 0 : i32
    %c0_i32_1 = arith.constant 0 : i32
    return %arg0, %c0_i32, %c0_i32_0 : i32, i32, i32
  }
  func.func @transform_3(%arg0: i32) -> (i32, i32, i32) {
    %c0_i32 = arith.constant 0 : i32
    %c0_i32_0 = arith.constant 0 : i32
    %c0_i32_1 = arith.constant 0 : i32
    return %arg0, %c0_i32, %c0_i32_0 : i32, i32, i32
  }
  func.func @transform_4(%arg0: i32) -> (i32, i32, i32) {
    %c0_i32 = arith.constant 0 : i32
    %c0_i32_0 = arith.constant 0 : i32
    %c0_i32_1 = arith.constant 0 : i32
    return %arg0, %c0_i32, %c0_i32_0 : i32, i32, i32
  }
  func.func @transform_5(%arg0: i32) -> (i32, i32, i32) {
    %c0_i32 = arith.constant 0 : i32
    %c0_i32_0 = arith.constant 0 : i32
    %c0_i32_1 = arith.constant 0 : i32
    return %arg0, %c0_i32, %c0_i32_0 : i32, i32, i32
  }
  func.func @transform_6(%arg0: i32) -> (i32, i32) {
    %c0_i32 = arith.constant 0 : i32
    %c0_i32_0 = arith.constant 0 : i32
    %c0_i32_1 = arith.constant 0 : i32
    return %c0_i32, %c0_i32_0 : i32, i32
  }
  func.func @transform_7(%arg0: i32) -> (i32, i32) {
    %c0_i32 = arith.constant 0 : i32
    %c0_i32_0 = arith.constant 0 : i32
    %c0_i32_1 = arith.constant 0 : i32
    return %c0_i32, %c0_i32_0 : i32, i32
  }
  func.func @transform_8(%arg0: i32) -> (i32, i32) {
    %c0_i32 = arith.constant 0 : i32
    %c0_i32_0 = arith.constant 0 : i32
    %c0_i32_1 = arith.constant 0 : i32
    return %c0_i32, %c0_i32_0 : i32, i32
  }
  func.func @transform_9(%arg0: i32) -> (i32, i32) {
    %c0_i32 = arith.constant 0 : i32
    %c0_i32_0 = arith.constant 0 : i32
    %c0_i32_1 = arith.constant 0 : i32
    return %c0_i32, %c0_i32_0 : i32, i32
  }
  func.func @transform_10(%arg0: i32) -> (i32, i32) {
    %c0_i32 = arith.constant 0 : i32
    %c0_i32_0 = arith.constant 0 : i32
    %c0_i32_1 = arith.constant 0 : i32
    return %c0_i32, %c0_i32_0 : i32, i32
  }
  func.func @transform_11(%arg0: i32) -> (i32, i32) {
    %c0_i32 = arith.constant 0 : i32
    %c0_i32_0 = arith.constant 0 : i32
    %c0_i32_1 = arith.constant 0 : i32
    return %c0_i32, %c0_i32_0 : i32, i32
  }
  func.func @transform_12(%arg0: i32) -> (i32, i32) {
    %c0_i32 = arith.constant 0 : i32
    %c0_i32_0 = arith.constant 0 : i32
    %c0_i32_1 = arith.constant 0 : i32
    return %c0_i32, %c0_i32_0 : i32, i32
  }
  func.func @transform_13(%arg0: i32) -> (i32, i32) {
    %c0_i32 = arith.constant 0 : i32
    %c0_i32_0 = arith.constant 0 : i32
    %c0_i32_1 = arith.constant 0 : i32
    return %c0_i32, %c0_i32_0 : i32, i32
  }
  func.func @transform_14(%arg0: i32) -> (i32, i32) {
    %c0_i32 = arith.constant 0 : i32
    %c0_i32_0 = arith.constant 0 : i32
    %c0_i32_1 = arith.constant 0 : i32
    return %c0_i32, %c0_i32_0 : i32, i32
  }
  func.func @transform_15(%arg0: i32) -> (i32, i32) {
    %c0_i32 = arith.constant 0 : i32
    %c0_i32_0 = arith.constant 0 : i32
    %c0_i32_1 = arith.constant 0 : i32
    return %c0_i32, %c0_i32_0 : i32, i32
  }
  func.func @transform_16(%arg0: i32) -> (i32, i32) {
    %c0_i32 = arith.constant 0 : i32
    %c0_i32_0 = arith.constant 0 : i32
    %c0_i32_1 = arith.constant 0 : i32
    return %c0_i32, %c0_i32_0 : i32, i32
  }
  func.func @transform_17(%arg0: i32) -> (i32, i32) {
    %c0_i32 = arith.constant 0 : i32
    %c0_i32_0 = arith.constant 0 : i32
    %c0_i32_1 = arith.constant 0 : i32
    return %c0_i32, %c0_i32_0 : i32, i32
  }
  func.func @transform_18(%arg0: i32) -> (i32, i32) {
    %c0_i32 = arith.constant 0 : i32
    %c0_i32_0 = arith.constant 0 : i32
    %c0_i32_1 = arith.constant 0 : i32
    return %c0_i32, %c0_i32_0 : i32, i32
  }
  func.func @transform_19(%arg0: i32) -> (i32, i32) {
    %c0_i32 = arith.constant 0 : i32
    %c0_i32_0 = arith.constant 0 : i32
    %c0_i32_1 = arith.constant 0 : i32
    return %c0_i32, %c0_i32_0 : i32, i32
  }
  func.func @transform_20(%arg0: i32) -> (i32, i32) {
    %c0_i32 = arith.constant 0 : i32
    %c0_i32_0 = arith.constant 0 : i32
    %c0_i32_1 = arith.constant 0 : i32
    return %c0_i32, %c0_i32_0 : i32, i32
  }
  func.func @transform_21(%arg0: i32) -> (i32, i32) {
    %c0_i32 = arith.constant 0 : i32
    %c0_i32_0 = arith.constant 0 : i32
    %c0_i32_1 = arith.constant 0 : i32
    return %c0_i32, %c0_i32_0 : i32, i32
  }
  func.func @transform_22(%arg0: i32) -> (i32, i32) {
    %c0_i32 = arith.constant 0 : i32
    %c0_i32_0 = arith.constant 0 : i32
    %c0_i32_1 = arith.constant 0 : i32
    return %c0_i32, %c0_i32_0 : i32, i32
  }
  func.func @transform_23(%arg0: i32) -> (i32, i32) {
    %c0_i32 = arith.constant 0 : i32
    %c0_i32_0 = arith.constant 0 : i32
    %c0_i32_1 = arith.constant 0 : i32
    return %c0_i32, %c0_i32_0 : i32, i32
  }
  func.func @transform_24(%arg0: i32) -> (i32, i32) {
    %c0_i32 = arith.constant 0 : i32
    %c0_i32_0 = arith.constant 0 : i32
    %c0_i32_1 = arith.constant 0 : i32
    return %c0_i32, %c0_i32_0 : i32, i32
  }
  func.func @transform_25(%arg0: i32) -> (i32, i32) {
    %c0_i32 = arith.constant 0 : i32
    %c0_i32_0 = arith.constant 0 : i32
    %c0_i32_1 = arith.constant 0 : i32
    return %c0_i32, %c0_i32_0 : i32, i32
  }
  func.func @transform_26(%arg0: i32) -> (i32, i32) {
    %c0_i32 = arith.constant 0 : i32
    %c0_i32_0 = arith.constant 0 : i32
    %c0_i32_1 = arith.constant 0 : i32
    return %c0_i32, %c0_i32_0 : i32, i32
  }
  func.func @transform_27(%arg0: i32) -> (i32, i32) {
    %c0_i32 = arith.constant 0 : i32
    %c0_i32_0 = arith.constant 0 : i32
    %c0_i32_1 = arith.constant 0 : i32
    return %c0_i32, %c0_i32_0 : i32, i32
  }
  func.func @transform_28(%arg0: i32) -> (i32, i32) {
    %c0_i32 = arith.constant 0 : i32
    %c0_i32_0 = arith.constant 0 : i32
    %c0_i32_1 = arith.constant 0 : i32
    return %c0_i32, %c0_i32_0 : i32, i32
  }
  func.func @transform_29(%arg0: i32) -> (i32, i32) {
    %c0_i32 = arith.constant 0 : i32
    %c0_i32_0 = arith.constant 0 : i32
    %c0_i32_1 = arith.constant 0 : i32
    return %c0_i32, %c0_i32_0 : i32, i32
  }
  func.func @transform_30(%arg0: i32) -> (i32, i32) {
    %c0_i32 = arith.constant 0 : i32
    %c0_i32_0 = arith.constant 0 : i32
    %c0_i32_1 = arith.constant 0 : i32
    return %c0_i32, %c0_i32_0 : i32, i32
  }
  func.func @transform_31(%arg0: i32) -> (i32, i32) {
    %c0_i32 = arith.constant 0 : i32
    %c0_i32_0 = arith.constant 0 : i32
    %c0_i32_1 = arith.constant 0 : i32
    return %c0_i32, %c0_i32_0 : i32, i32
  }
  func.func @transform_32(%arg0: i32) -> (i32, i32) {
    %c0_i32 = arith.constant 0 : i32
    %c0_i32_0 = arith.constant 0 : i32
    %c0_i32_1 = arith.constant 0 : i32
    return %c0_i32, %c0_i32_0 : i32, i32
  }
  func.func @transform_33(%arg0: i32) -> (i32, i32) {
    %c0_i32 = arith.constant 0 : i32
    %c0_i32_0 = arith.constant 0 : i32
    %c0_i32_1 = arith.constant 0 : i32
    return %c0_i32, %c0_i32_0 : i32, i32
  }
  func.func @transform_34(%arg0: i32) -> (i32, i32) {
    %c0_i32 = arith.constant 0 : i32
    %c0_i32_0 = arith.constant 0 : i32
    %c0_i32_1 = arith.constant 0 : i32
    return %c0_i32, %c0_i32_0 : i32, i32
  }
  func.func @transform_35(%arg0: i32) -> (i32, i32) {
    %c0_i32 = arith.constant 0 : i32
    %c0_i32_0 = arith.constant 0 : i32
    %c0_i32_1 = arith.constant 0 : i32
    return %c0_i32, %c0_i32_0 : i32, i32
  }
  func.func @transform_36(%arg0: i32) -> (i32, i32) {
    %c0_i32 = arith.constant 0 : i32
    %c0_i32_0 = arith.constant 0 : i32
    %c0_i32_1 = arith.constant 0 : i32
    return %c0_i32, %c0_i32_0 : i32, i32
  }
  func.func @transform_37(%arg0: i32) -> (i32, i32) {
    %c0_i32 = arith.constant 0 : i32
    %c0_i32_0 = arith.constant 0 : i32
    %c0_i32_1 = arith.constant 0 : i32
    return %c0_i32, %c0_i32_0 : i32, i32
  }
  func.func @transform_38(%arg0: i32) -> (i32, i32) {
    %c0_i32 = arith.constant 0 : i32
    %c0_i32_0 = arith.constant 0 : i32
    %c0_i32_1 = arith.constant 0 : i32
    return %c0_i32, %c0_i32_0 : i32, i32
  }
  func.func @transform_39(%arg0: i32) -> (i32, i32) {
    %c0_i32 = arith.constant 0 : i32
    %c0_i32_0 = arith.constant 0 : i32
    %c0_i32_1 = arith.constant 0 : i32
    return %c0_i32, %c0_i32_0 : i32, i32
  }
  func.func @transform_40(%arg0: i32) -> (i32, i32) {
    %c0_i32 = arith.constant 0 : i32
    %c0_i32_0 = arith.constant 0 : i32
    %c0_i32_1 = arith.constant 0 : i32
    return %c0_i32, %c0_i32_0 : i32, i32
  }
  func.func @transform_41(%arg0: i32) -> (i32, i32) {
    %c0_i32 = arith.constant 0 : i32
    %c0_i32_0 = arith.constant 0 : i32
    %c0_i32_1 = arith.constant 0 : i32
    return %c0_i32, %c0_i32_0 : i32, i32
  }
  func.func @transform_42(%arg0: i32) -> (i32, i32) {
    %c0_i32 = arith.constant 0 : i32
    %c0_i32_0 = arith.constant 0 : i32
    %c0_i32_1 = arith.constant 0 : i32
    return %c0_i32, %c0_i32_0 : i32, i32
  }
  func.func @transform_43(%arg0: i32) -> (i32, i32) {
    %c0_i32 = arith.constant 0 : i32
    %c0_i32_0 = arith.constant 0 : i32
    %c0_i32_1 = arith.constant 0 : i32
    return %c0_i32, %c0_i32_0 : i32, i32
  }
  func.func @transform_44(%arg0: i32) -> (i32, i32) {
    %c0_i32 = arith.constant 0 : i32
    %c0_i32_0 = arith.constant 0 : i32
    %c0_i32_1 = arith.constant 0 : i32
    return %c0_i32, %c0_i32_0 : i32, i32
  }
  func.func @transform_45(%arg0: i32) -> (i32, i32) {
    %c0_i32 = arith.constant 0 : i32
    %c0_i32_0 = arith.constant 0 : i32
    %c0_i32_1 = arith.constant 0 : i32
    return %c0_i32, %c0_i32_0 : i32, i32
  }
  func.func @transform_46(%arg0: i32) -> (i32, i32) {
    %c0_i32 = arith.constant 0 : i32
    %c0_i32_0 = arith.constant 0 : i32
    %c0_i32_1 = arith.constant 0 : i32
    return %c0_i32, %c0_i32_0 : i32, i32
  }
  func.func @transform_47(%arg0: i32) -> (i32, i32) {
    %c0_i32 = arith.constant 0 : i32
    %c0_i32_0 = arith.constant 0 : i32
    %c0_i32_1 = arith.constant 0 : i32
    return %c0_i32, %c0_i32_0 : i32, i32
  }
  func.func @transform_48(%arg0: i32) -> (i32, i32) {
    %c0_i32 = arith.constant 0 : i32
    %c0_i32_0 = arith.constant 0 : i32
    %c0_i32_1 = arith.constant 0 : i32
    return %c0_i32, %c0_i32_0 : i32, i32
  }
  func.func @transform_49(%arg0: i32) -> (i32, i32) {
    %c0_i32 = arith.constant 0 : i32
    %c0_i32_0 = arith.constant 0 : i32
    %c0_i32_1 = arith.constant 0 : i32
    return %c0_i32, %c0_i32_0 : i32, i32
  }
  func.func @transform_50(%arg0: i32) -> (i32, i32) {
    %c0_i32 = arith.constant 0 : i32
    %c0_i32_0 = arith.constant 0 : i32
    %c0_i32_1 = arith.constant 0 : i32
    return %c0_i32, %c0_i32_0 : i32, i32
  }
  func.func @transform_51(%arg0: i32) -> (i32, i32) {
    %c0_i32 = arith.constant 0 : i32
    %c0_i32_0 = arith.constant 0 : i32
    %c0_i32_1 = arith.constant 0 : i32
    return %c0_i32, %c0_i32_0 : i32, i32
  }
  func.func @transform_52(%arg0: i32) -> (i32, i32) {
    %c0_i32 = arith.constant 0 : i32
    %c0_i32_0 = arith.constant 0 : i32
    %c0_i32_1 = arith.constant 0 : i32
    return %c0_i32, %c0_i32_0 : i32, i32
  }
  func.func @transform_53(%arg0: i32) -> (i32, i32) {
    %c0_i32 = arith.constant 0 : i32
    %c0_i32_0 = arith.constant 0 : i32
    %c0_i32_1 = arith.constant 0 : i32
    return %c0_i32, %c0_i32_0 : i32, i32
  }
  func.func @transform_54(%arg0: i32) -> (i32, i32) {
    %c0_i32 = arith.constant 0 : i32
    %c0_i32_0 = arith.constant 0 : i32
    %c0_i32_1 = arith.constant 0 : i32
    return %c0_i32, %c0_i32_0 : i32, i32
  }
  func.func @transform_55(%arg0: i32) -> (i32, i32) {
    %c0_i32 = arith.constant 0 : i32
    %c0_i32_0 = arith.constant 0 : i32
    %c0_i32_1 = arith.constant 0 : i32
    return %c0_i32, %c0_i32_0 : i32, i32
  }
  func.func @transform_56(%arg0: i32) -> (i32, i32) {
    %c0_i32 = arith.constant 0 : i32
    %c0_i32_0 = arith.constant 0 : i32
    %c0_i32_1 = arith.constant 0 : i32
    return %c0_i32, %c0_i32_0 : i32, i32
  }
  func.func @transform_57(%arg0: i32) -> (i32, i32) {
    %c0_i32 = arith.constant 0 : i32
    %c0_i32_0 = arith.constant 0 : i32
    %c0_i32_1 = arith.constant 0 : i32
    return %c0_i32, %c0_i32_0 : i32, i32
  }
  func.func @transform_58(%arg0: i32) -> (i32, i32) {
    %c0_i32 = arith.constant 0 : i32
    %c0_i32_0 = arith.constant 0 : i32
    %c0_i32_1 = arith.constant 0 : i32
    return %c0_i32, %c0_i32_0 : i32, i32
  }
  func.func @transform_59(%arg0: i32) -> (i32, i32) {
    %c0_i32 = arith.constant 0 : i32
    %c0_i32_0 = arith.constant 0 : i32
    %c0_i32_1 = arith.constant 0 : i32
    return %c0_i32, %c0_i32_0 : i32, i32
  }
  func.func @transform_60(%arg0: i32) -> (i32, i32) {
    %c0_i32 = arith.constant 0 : i32
    %c0_i32_0 = arith.constant 0 : i32
    %c0_i32_1 = arith.constant 0 : i32
    return %c0_i32, %c0_i32_0 : i32, i32
  }
  func.func @transform_61(%arg0: i32) -> (i32, i32) {
    %c0_i32 = arith.constant 0 : i32
    %c0_i32_0 = arith.constant 0 : i32
    %c0_i32_1 = arith.constant 0 : i32
    return %c0_i32, %c0_i32_0 : i32, i32
  }
  func.func @transform_62(%arg0: i32) -> (i32, i32) {
    %c0_i32 = arith.constant 0 : i32
    %c0_i32_0 = arith.constant 0 : i32
    %c0_i32_1 = arith.constant 0 : i32
    return %c0_i32, %c0_i32_0 : i32, i32
  }
  func.func @transform_63(%arg0: i32) -> (i32, i32) {
    %c0_i32 = arith.constant 0 : i32
    %c0_i32_0 = arith.constant 0 : i32
    %c0_i32_1 = arith.constant 0 : i32
    return %c0_i32, %c0_i32_0 : i32, i32
  }
  func.func @transform_64(%arg0: i32) -> (i32, i32) {
    %c0_i32 = arith.constant 0 : i32
    %c0_i32_0 = arith.constant 0 : i32
    %c0_i32_1 = arith.constant 0 : i32
    return %c0_i32, %c0_i32_0 : i32, i32
  }
  func.func @transform_65(%arg0: i32) -> (i32, i32) {
    %c0_i32 = arith.constant 0 : i32
    %c0_i32_0 = arith.constant 0 : i32
    %c0_i32_1 = arith.constant 0 : i32
    return %c0_i32, %c0_i32_0 : i32, i32
  }
  func.func @transform_66(%arg0: i32) -> (i32, i32) {
    %c0_i32 = arith.constant 0 : i32
    %c0_i32_0 = arith.constant 0 : i32
    %c0_i32_1 = arith.constant 0 : i32
    return %c0_i32, %c0_i32_0 : i32, i32
  }
  func.func @transform_67(%arg0: i32) -> (i32, i32) {
    %c0_i32 = arith.constant 0 : i32
    %c0_i32_0 = arith.constant 0 : i32
    %c0_i32_1 = arith.constant 0 : i32
    return %c0_i32, %c0_i32_0 : i32, i32
  }
  func.func @transform_68(%arg0: i32) -> (i32, i32) {
    %c0_i32 = arith.constant 0 : i32
    %c0_i32_0 = arith.constant 0 : i32
    %c0_i32_1 = arith.constant 0 : i32
    return %c0_i32, %c0_i32_0 : i32, i32
  }
  func.func @transform_69(%arg0: i32) -> (i32, i32) {
    %c0_i32 = arith.constant 0 : i32
    %c0_i32_0 = arith.constant 0 : i32
    %c0_i32_1 = arith.constant 0 : i32
    return %c0_i32, %c0_i32_0 : i32, i32
  }
  func.func @transform_70(%arg0: i32) -> (i32, i32) {
    %c0_i32 = arith.constant 0 : i32
    %c0_i32_0 = arith.constant 0 : i32
    %c0_i32_1 = arith.constant 0 : i32
    return %c0_i32, %c0_i32_0 : i32, i32
  }
  func.func @transform_71(%arg0: i32) -> (i32, i32) {
    %c0_i32 = arith.constant 0 : i32
    %c0_i32_0 = arith.constant 0 : i32
    %c0_i32_1 = arith.constant 0 : i32
    return %c0_i32, %c0_i32_0 : i32, i32
  }
  func.func @transform_72(%arg0: i32) -> (i32, i32) {
    %c0_i32 = arith.constant 0 : i32
    %c0_i32_0 = arith.constant 0 : i32
    %c0_i32_1 = arith.constant 0 : i32
    return %c0_i32, %c0_i32_0 : i32, i32
  }
  func.func @transform_73(%arg0: i32) -> (i32, i32) {
    %c0_i32 = arith.constant 0 : i32
    %c0_i32_0 = arith.constant 0 : i32
    %c0_i32_1 = arith.constant 0 : i32
    return %c0_i32, %c0_i32_0 : i32, i32
  }
  func.func @transform_74(%arg0: i32) -> (i32, i32) {
    %c0_i32 = arith.constant 0 : i32
    %c0_i32_0 = arith.constant 0 : i32
    %c0_i32_1 = arith.constant 0 : i32
    return %c0_i32, %c0_i32_0 : i32, i32
  }
  func.func @transform_75(%arg0: i32) -> (i32, i32) {
    %c0_i32 = arith.constant 0 : i32
    %c0_i32_0 = arith.constant 0 : i32
    %c0_i32_1 = arith.constant 0 : i32
    return %c0_i32, %c0_i32_0 : i32, i32
  }
  func.func @transform_76(%arg0: i32) -> (i32, i32) {
    %c0_i32 = arith.constant 0 : i32
    %c0_i32_0 = arith.constant 0 : i32
    %c0_i32_1 = arith.constant 0 : i32
    return %c0_i32, %c0_i32_0 : i32, i32
  }
  func.func @transform_77(%arg0: i32) -> (i32, i32) {
    %c0_i32 = arith.constant 0 : i32
    %c0_i32_0 = arith.constant 0 : i32
    %c0_i32_1 = arith.constant 0 : i32
    return %c0_i32, %c0_i32_0 : i32, i32
  }
  func.func @transform_78(%arg0: i32) -> (i32, i32) {
    %c0_i32 = arith.constant 0 : i32
    %c0_i32_0 = arith.constant 0 : i32
    %c0_i32_1 = arith.constant 0 : i32
    return %c0_i32, %c0_i32_0 : i32, i32
  }
  func.func @transform_79(%arg0: i32) -> (i32, i32) {
    %c0_i32 = arith.constant 0 : i32
    %c0_i32_0 = arith.constant 0 : i32
    %c0_i32_1 = arith.constant 0 : i32
    return %c0_i32, %c0_i32_0 : i32, i32
  }
  func.func @transform_80(%arg0: i32) -> (i32, i32) {
    %c0_i32 = arith.constant 0 : i32
    %c0_i32_0 = arith.constant 0 : i32
    %c0_i32_1 = arith.constant 0 : i32
    return %c0_i32, %c0_i32_0 : i32, i32
  }
  func.func @transform_81(%arg0: i32) -> (i32, i32) {
    %c0_i32 = arith.constant 0 : i32
    %c0_i32_0 = arith.constant 0 : i32
    %c0_i32_1 = arith.constant 0 : i32
    return %c0_i32, %c0_i32_0 : i32, i32
  }
  func.func @transform_82(%arg0: i32) -> (i32, i32) {
    %c0_i32 = arith.constant 0 : i32
    %c0_i32_0 = arith.constant 0 : i32
    %c0_i32_1 = arith.constant 0 : i32
    return %c0_i32, %c0_i32_0 : i32, i32
  }
  func.func @transform_83(%arg0: i32) -> (i32, i32) {
    %c0_i32 = arith.constant 0 : i32
    %c0_i32_0 = arith.constant 0 : i32
    %c0_i32_1 = arith.constant 0 : i32
    return %c0_i32, %c0_i32_0 : i32, i32
  }
  func.func @transform_84(%arg0: i32) -> (i32, i32) {
    %c0_i32 = arith.constant 0 : i32
    %c0_i32_0 = arith.constant 0 : i32
    %c0_i32_1 = arith.constant 0 : i32
    return %c0_i32, %c0_i32_0 : i32, i32
  }
  func.func @transform_85(%arg0: i32) -> (i32, i32) {
    %c0_i32 = arith.constant 0 : i32
    %c0_i32_0 = arith.constant 0 : i32
    %c0_i32_1 = arith.constant 0 : i32
    return %c0_i32, %c0_i32_0 : i32, i32
  }
  func.func @transform_86(%arg0: i32) -> (i32, i32) {
    %c0_i32 = arith.constant 0 : i32
    %c0_i32_0 = arith.constant 0 : i32
    %c0_i32_1 = arith.constant 0 : i32
    return %c0_i32, %c0_i32_0 : i32, i32
  }
  func.func @transform_87(%arg0: i32) -> (i32, i32) {
    %c0_i32 = arith.constant 0 : i32
    %c0_i32_0 = arith.constant 0 : i32
    %c0_i32_1 = arith.constant 0 : i32
    return %c0_i32, %c0_i32_0 : i32, i32
  }
  func.func @transform_88(%arg0: i32) -> (i32, i32) {
    %c0_i32 = arith.constant 0 : i32
    %c0_i32_0 = arith.constant 0 : i32
    %c0_i32_1 = arith.constant 0 : i32
    return %c0_i32, %c0_i32_0 : i32, i32
  }
  func.func @transform_89(%arg0: i32) -> (i32, i32) {
    %c0_i32 = arith.constant 0 : i32
    %c0_i32_0 = arith.constant 0 : i32
    %c0_i32_1 = arith.constant 0 : i32
    return %c0_i32, %c0_i32_0 : i32, i32
  }
  func.func @transform_90(%arg0: i32) -> (i32, i32) {
    %c0_i32 = arith.constant 0 : i32
    %c0_i32_0 = arith.constant 0 : i32
    %c0_i32_1 = arith.constant 0 : i32
    return %c0_i32, %c0_i32_0 : i32, i32
  }
  func.func @transform_91(%arg0: i32) -> (i32, i32) {
    %c0_i32 = arith.constant 0 : i32
    %c0_i32_0 = arith.constant 0 : i32
    %c0_i32_1 = arith.constant 0 : i32
    return %c0_i32, %c0_i32_0 : i32, i32
  }
  func.func @transform_92(%arg0: i32) -> (i32, i32) {
    %c0_i32 = arith.constant 0 : i32
    %c0_i32_0 = arith.constant 0 : i32
    %c0_i32_1 = arith.constant 0 : i32
    return %c0_i32, %c0_i32_0 : i32, i32
  }
  func.func @transform_93(%arg0: i32) -> (i32, i32) {
    %c0_i32 = arith.constant 0 : i32
    %c0_i32_0 = arith.constant 0 : i32
    %c0_i32_1 = arith.constant 0 : i32
    return %c0_i32, %c0_i32_0 : i32, i32
  }
  func.func @transform_94(%arg0: i32) -> (i32, i32, i32) {
    %c0_i32 = arith.constant 0 : i32
    %c0_i32_0 = arith.constant 0 : i32
    %c0_i32_1 = arith.constant 0 : i32
    return %arg0, %c0_i32, %c0_i32_0 : i32, i32, i32
  }
  func.func @transform_95(%arg0: i32) -> (i32, i32, i32) {
    %c0_i32 = arith.constant 0 : i32
    %c0_i32_0 = arith.constant 0 : i32
    %c0_i32_1 = arith.constant 0 : i32
    return %arg0, %c0_i32, %c0_i32_0 : i32, i32, i32
  }
}

</mosaic_0001>

<llo_original>
// kernel: tpu_custom_call.1
$region0: #{tpu_custom_call.1}
  #allocation0 [shape = 'u32[]', space=smem, size = 0x4, offset = 0x4, fixed_abs, tag = 'smem constant byte address 0x4 - core index']
  #allocation1 [shape = 'u32[72,128]{1,0:T(1,128)}', space=vmem, size = 0x9000, scoped, tag = 'internal scratch']
  %s0 = inlined_call_operand.smem [shape: u32[96], index: -1, kind: input, shape index: {}]
  %s1 = sld [smem:[%s0]]
  %s2 = scalar_lea.smem %s0, 1
  %s3 = sld [smem:[%s2]]
  %s4 = scalar_lea.smem %s0, 2
  %s5 = sld [smem:[%s4]]
  %s6 = scalar_lea.smem %s0, 3
  %s7 = sld [smem:[%s6]]
  %s8 = scalar_lea.smem %s0, 4
  %s9 = sld [smem:[%s8]]
  %s10 = scalar_lea.smem %s0, 5
  %s11 = sld [smem:[%s10]]
  %s12 = scalar_lea.smem %s0, 6
  %s13 = sld [smem:[%s12]]
  %s14 = scalar_lea.smem %s0, 7
  %s15 = sld [smem:[%s14]]
  %s16 = scalar_lea.smem %s0, 8
  %s17 = sld [smem:[%s16]]
  %s18 = scalar_lea.smem %s0, 9
  %s19 = sld [smem:[%s18]]
  %s20 = scalar_lea.smem %s0, 10
  %s21 = sld [smem:[%s20]]
  %s22 = scalar_lea.smem %s0, 11
  %s23 = sld [smem:[%s22]]
  %s24 = scalar_lea.smem %s0, 12
  %s25 = sld [smem:[%s24]]
  %s26 = scalar_lea.smem %s0, 13
  %s27 = sld [smem:[%s26]]
  %s28 = scalar_lea.smem %s0, 14
  %s29 = sld [smem:[%s28]]
  %s30 = scalar_lea.smem %s0, 15
  %s31 = sld [smem:[%s30]]
  %s32 = scalar_lea.smem %s0, 16
  %s33 = sld [smem:[%s32]]
  %s34 = scalar_lea.smem %s0, 17
  %s35 = sld [smem:[%s34]]
  %s36 = scalar_lea.smem %s0, 18
  %s37 = sld [smem:[%s36]]
  %s38 = scalar_lea.smem %s0, 19
  %s39 = sld [smem:[%s38]]
  %s40 = scalar_lea.smem %s0, 20
  %s41 = sld [smem:[%s40]]
  %s42 = scalar_lea.smem %s0, 21
  %s43 = sld [smem:[%s42]]
  %s44 = scalar_lea.smem %s0, 22
  %s45 = sld [smem:[%s44]]
  %s46 = scalar_lea.smem %s0, 23
  %s47 = sld [smem:[%s46]]
  %s48 = scalar_lea.smem %s0, 24
  %s49 = sld [smem:[%s48]]
  %s50 = scalar_lea.smem %s0, 25
  %s51 = sld [smem:[%s50]]
  %s52 = scalar_lea.smem %s0, 26
  %s53 = sld [smem:[%s52]]
  %s54 = scalar_lea.smem %s0, 27
  %s55 = sld [smem:[%s54]]
  %s56 = scalar_lea.smem %s0, 28
  %s57 = sld [smem:[%s56]]
  %s58 = scalar_lea.smem %s0, 29
  %s59 = sld [smem:[%s58]]
  %s60 = scalar_lea.smem %s0, 30
  %s61 = sld [smem:[%s60]]
  %s62 = scalar_lea.smem %s0, 31
  %s63 = sld [smem:[%s62]]
  %s64 = scalar_lea.smem %s0, 32
  %s65 = sld [smem:[%s64]]
  %s66 = scalar_lea.smem %s0, 33
  %s67 = sld [smem:[%s66]]
  %s68 = scalar_lea.smem %s0, 34
  %s69 = sld [smem:[%s68]]
  %s70 = scalar_lea.smem %s0, 35
  %s71 = sld [smem:[%s70]]
  %s72 = scalar_lea.smem %s0, 36
  %s73 = sld [smem:[%s72]]
  %s74 = scalar_lea.smem %s0, 37
  %s75 = sld [smem:[%s74]]
  %s76 = scalar_lea.smem %s0, 38
  %s77 = sld [smem:[%s76]]
  %s78 = scalar_lea.smem %s0, 39
  %s79 = sld [smem:[%s78]]
  %s80 = scalar_lea.smem %s0, 40
  %s81 = sld [smem:[%s80]]
  %s82 = scalar_lea.smem %s0, 41
  %s83 = sld [smem:[%s82]]
  %s84 = scalar_lea.smem %s0, 42
  %s85 = sld [smem:[%s84]]
  %s86 = scalar_lea.smem %s0, 43
  %s87 = sld [smem:[%s86]]
  %s88 = scalar_lea.smem %s0, 44
  %s89 = sld [smem:[%s88]]
  %s90 = scalar_lea.smem %s0, 45
  %s91 = sld [smem:[%s90]]
  %s92 = scalar_lea.smem %s0, 46
  %s93 = sld [smem:[%s92]]
  %s94 = scalar_lea.smem %s0, 47
  %s95 = sld [smem:[%s94]]
  %s96 = scalar_lea.smem %s0, 48
  %s97 = sld [smem:[%s96]]
  %s98 = scalar_lea.smem %s0, 49
  %s99 = sld [smem:[%s98]]
  %s100 = scalar_lea.smem %s0, 50
  %s101 = sld [smem:[%s100]]
  %s102 = scalar_lea.smem %s0, 51
  %s103 = sld [smem:[%s102]]
  %s104 = scalar_lea.smem %s0, 52
  %s105 = sld [smem:[%s104]]
  %s106 = scalar_lea.smem %s0, 53
  %s107 = sld [smem:[%s106]]
  %s108 = scalar_lea.smem %s0, 54
  %s109 = sld [smem:[%s108]]
  %s110 = scalar_lea.smem %s0, 55
  %s111 = sld [smem:[%s110]]
  %s112 = scalar_lea.smem %s0, 56
  %s113 = sld [smem:[%s112]]
  %s114 = scalar_lea.smem %s0, 57
  %s115 = sld [smem:[%s114]]
  %s116 = scalar_lea.smem %s0, 58
  %s117 = sld [smem:[%s116]]
  %s118 = scalar_lea.smem %s0, 59
  %s119 = sld [smem:[%s118]]
  %s120 = scalar_lea.smem %s0, 60
  %s121 = sld [smem:[%s120]]
  %s122 = scalar_lea.smem %s0, 61
  %s123 = sld [smem:[%s122]]
  %s124 = scalar_lea.smem %s0, 62
  %s125 = sld [smem:[%s124]]
  %s126 = scalar_lea.smem %s0, 63
  %s127 = sld [smem:[%s126]]
  %s128 = scalar_lea.smem %s0, 64
  %s129 = sld [smem:[%s128]]
  %s130 = scalar_lea.smem %s0, 65
  %s131 = sld [smem:[%s130]]
  %s132 = scalar_lea.smem %s0, 66
  %s133 = sld [smem:[%s132]]
  %s134 = scalar_lea.smem %s0, 67
  %s135 = sld [smem:[%s134]]
  %s136 = scalar_lea.smem %s0, 68
  %s137 = sld [smem:[%s136]]
  %s138 = scalar_lea.smem %s0, 69
  %s139 = sld [smem:[%s138]]
  %s140 = scalar_lea.smem %s0, 70
  %s141 = sld [smem:[%s140]]
  %s142 = scalar_lea.smem %s0, 71
  %s143 = sld [smem:[%s142]]
  %s144 = scalar_lea.smem %s0, 72
  %s145 = sld [smem:[%s144]]
  %s146 = scalar_lea.smem %s0, 73
  %s147 = sld [smem:[%s146]]
  %s148 = scalar_lea.smem %s0, 74
  %s149 = sld [smem:[%s148]]
  %s150 = scalar_lea.smem %s0, 75
  %s151 = sld [smem:[%s150]]
  %s152 = scalar_lea.smem %s0, 76
  %s153 = sld [smem:[%s152]]
  %s154 = scalar_lea.smem %s0, 77
  %s155 = sld [smem:[%s154]]
  %s156 = scalar_lea.smem %s0, 78
  %s157 = sld [smem:[%s156]]
  %s158 = scalar_lea.smem %s0, 79
  %s159 = sld [smem:[%s158]]
  %s160 = scalar_lea.smem %s0, 80
  %s161 = sld [smem:[%s160]]
  %s162 = scalar_lea.smem %s0, 81
  %s163 = sld [smem:[%s162]]
  %s164 = scalar_lea.smem %s0, 82
  %s165 = sld [smem:[%s164]]
  %s166 = scalar_lea.smem %s0, 83
  %s167 = sld [smem:[%s166]]
  %s168 = scalar_lea.smem %s0, 84
  %s169 = sld [smem:[%s168]]
  %s170 = scalar_lea.smem %s0, 85
  %s171 = sld [smem:[%s170]]
  %s172 = scalar_lea.smem %s0, 86
  %s173 = sld [smem:[%s172]]
  %s174 = scalar_lea.smem %s0, 87
  %s175 = sld [smem:[%s174]]
  %s176 = scalar_lea.smem %s0, 88
  %s177 = sld [smem:[%s176]]
  %s178 = scalar_lea.smem %s0, 89
  %s179 = sld [smem:[%s178]]
  %s180 = scalar_lea.smem %s0, 90
  %s181 = sld [smem:[%s180]]
  %s182 = scalar_lea.smem %s0, 91
  %s183 = sld [smem:[%s182]]
  %s184 = scalar_lea.smem %s0, 92
  %s185 = sld [smem:[%s184]]
  %s186 = scalar_lea.smem %s0, 93
  %s187 = sld [smem:[%s186]]
  %s188 = scalar_lea.smem %s0, 94
  %s189 = sld [smem:[%s188]]
  %s190 = scalar_lea.smem %s0, 95
  %s191 = sld [smem:[%s190]]
  %192 = xla_tuple %s189, %s191
  %s193 = sld [smem:[#allocation0]]
  $region673: #{tpu_custom_call.1} parent=0
    _
  %s195 = ssub.s32 1, %s193
  %s196 = scalar_select 0, %s195, %s193
  $region1: #{tpu_custom_call.1} parent=0
    #allocation2 [shape = 'u8[4096]{0}', space=vmem, size = 0x1000, scoped, tag = 'input window, operand 8, single buffered']
    #allocation3 [shape = 's32[2]{0}', space=sflag, size = 0x8, scoped, tag = 'scoped memory for tpu_custom_call.1']
    #allocation4 [shape = 's32[2]{0}', space=sflag, size = 0x8, scoped, tag = 'scoped memory for tpu_custom_call.1']
    #allocation5 [shape = 'u8[512]{0}', space=vmem, size = 0x400, scoped, tag = 'input window, operand 9, single buffered']
    #allocation6 [shape = 's32[1]{0}', space=sflag, size = 0x4, scoped, tag = 'scoped memory for tpu_custom_call.1']
    #allocation7 [shape = 'u8[2048]{0}', space=vmem, size = 0x800, scoped, tag = 'input window, operand 10, single buffered']
    #allocation8 [shape = 'u8[512]{0}', space=vmem, size = 0x400, scoped, tag = 'input window, operand 11, single buffered']
    #allocation9 [shape = 's32[1]{0}', space=sflag, size = 0x4, scoped, tag = 'scoped memory for tpu_custom_call.1']
    #allocation10 [shape = 'u8[512]{0}', space=vmem, size = 0x400, scoped, tag = 'input window, operand 13, single buffered']
    #allocation11 [shape = 'u8[512]{0}', space=vmem, size = 0x400, scoped, tag = 'input window, operand 15, single buffered']
    #allocation12 [shape = 's32[1]{0}', space=sflag, size = 0x4, scoped, tag = 'scoped memory for tpu_custom_call.1']
    #allocation13 [shape = 'u8[1024]{0}', space=vmem, size = 0x400, scoped, tag = 'input window, operand 16, single buffered']
    #allocation14 [shape = 'u8[512]{0}', space=vmem, size = 0x400, scoped, tag = 'input window, operand 19, single buffered']
    #allocation15 [shape = 's32[1]{0}', space=sflag, size = 0x4, scoped, tag = 'scoped memory for tpu_custom_call.1']
    #allocation16 [shape = 'u8[2048]{0}', space=vmem, size = 0x800, scoped, tag = 'input window, operand 22, single buffered']
    #allocation17 [shape = 'u8[2048]{0}', space=vmem, size = 0x800, scoped, tag = 'input window, operand 23, single buffered']
    #allocation18 [shape = 's32[1]{0}', space=sflag, size = 0x4, scoped, tag = 'scoped memory for tpu_custom_call.1']
    #allocation19 [shape = 'u8[512]{0}', space=vmem, size = 0x400, scoped, tag = 'input window, operand 24, single buffered']
    #allocation20 [shape = 'u8[512]{0}', space=vmem, size = 0x400, scoped, tag = 'input window, operand 27, single buffered']
    #allocation21 [shape = 's32[1]{0}', space=sflag, size = 0x4, scoped, tag = 'scoped memory for tpu_custom_call.1']
    #allocation22 [shape = 'u8[2048]{0}', space=vmem, size = 0x800, scoped, tag = 'input window, operand 30, single buffered']
    #allocation23 [shape = 'u8[2048]{0}', space=vmem, size = 0x800, scoped, tag = 'input window, operand 31, single buffered']
    #allocation24 [shape = 's32[1]{0}', space=sflag, size = 0x4, scoped, tag = 'scoped memory for tpu_custom_call.1']
    #allocation25 [shape = 'u8[512]{0}', space=vmem, size = 0x400, scoped, tag = 'input window, operand 32, single buffered']
    #allocation26 [shape = 'u8[512]{0}', space=vmem, size = 0x400, scoped, tag = 'input window, operand 35, single buffered']
    #allocation27 [shape = 's32[1]{0}', space=sflag, size = 0x4, scoped, tag = 'scoped memory for tpu_custom_call.1']
    #allocation28 [shape = 'u8[1024]{0}', space=vmem, size = 0x400, scoped, tag = 'input window, operand 36, single buffered']
    #allocation29 [shape = 'u8[4096]{0}', space=vmem, size = 0x1000, scoped, tag = 'input window, operand 38, single buffered']
    #allocation30 [shape = 's32[1]{0}', space=sflag, size = 0x4, scoped, tag = 'scoped memory for tpu_custom_call.1']
    #allocation31 [shape = 'u8[512]{0}', space=vmem, size = 0x400, scoped, tag = 'input window, operand 39, single buffered']
    #allocation32 [shape = 'u8[2048]{0}', space=vmem, size = 0x800, scoped, tag = 'input window, operand 42, single buffered']
    #allocation33 [shape = 's32[1]{0}', space=sflag, size = 0x4, scoped, tag = 'scoped memory for tpu_custom_call.1']
    #allocation34 [shape = 'u8[512]{0}', space=vmem, size = 0x400, scoped, tag = 'input window, operand 43, single buffered']
    #allocation35 [shape = 'u8[512]{0}', space=vmem, size = 0x400, scoped, tag = 'input window, operand 46, single buffered']
    #allocation36 [shape = 's32[1]{0}', space=sflag, size = 0x4, scoped, tag = 'scoped memory for tpu_custom_call.1']
    #allocation37 [shape = 'u8[8192]{0}', space=vmem, size = 0x2000, scoped, tag = 'input window, operand 47, single buffered']
    #allocation38 [shape = 'u8[8192]{0}', space=vmem, size = 0x2000, scoped, tag = 'input window, operand 48, single buffered']
    #allocation39 [shape = 's32[1]{0}', space=sflag, size = 0x4, scoped, tag = 'scoped memory for tpu_custom_call.1']
    #allocation40 [shape = 'u8[2048]{0}', space=vmem, size = 0x800, scoped, tag = 'input window, operand 49, single buffered']
    #allocation41 [shape = 'u8[512]{0}', space=vmem, size = 0x400, scoped, tag = 'input window, operand 50, single buffered']
    #allocation42 [shape = 's32[1]{0}', space=sflag, size = 0x4, scoped, tag = 'scoped memory for tpu_custom_call.1']
    #allocation43 [shape = 'u8[8192]{0}', space=vmem, size = 0x2000, scoped, tag = 'input window, operand 51, single buffered']
    #allocation44 [shape = 'u8[8192]{0}', space=vmem, size = 0x2000, scoped, tag = 'input window, operand 52, single buffered']
    #allocation45 [shape = 's32[1]{0}', space=sflag, size = 0x4, scoped, tag = 'scoped memory for tpu_custom_call.1']
    #allocation46 [shape = 'u8[512]{0}', space=vmem, size = 0x400, scoped, tag = 'input window, operand 53, single buffered']
    #allocation47 [shape = 'u8[512]{0}', space=vmem, size = 0x400, scoped, tag = 'input window, operand 55, single buffered']
    #allocation48 [shape = 's32[1]{0}', space=sflag, size = 0x4, scoped, tag = 'scoped memory for tpu_custom_call.1']
    #allocation49 [shape = 'u8[512]{0}', space=vmem, size = 0x400, scoped, tag = 'input window, operand 57, single buffered']
    #allocation50 [shape = 'u8[1024]{0}', space=vmem, size = 0x400, scoped, tag = 'input window, operand 58, single buffered']
    #allocation51 [shape = 's32[1]{0}', space=sflag, size = 0x4, scoped, tag = 'scoped memory for tpu_custom_call.1']
    #allocation52 [shape = 'u8[8192]{0}', space=vmem, size = 0x2000, scoped, tag = 'input window, operand 59, single buffered']
    #allocation53 [shape = 'u8[512]{0}', space=vmem, size = 0x400, scoped, tag = 'input window, operand 60, single buffered']
    #allocation54 [shape = 's32[1]{0}', space=sflag, size = 0x4, scoped, tag = 'scoped memory for tpu_custom_call.1']
    #allocation55 [shape = 'u8[8192]{0}', space=vmem, size = 0x2000, scoped, tag = 'input window, operand 62, single buffered']
    #allocation56 [shape = 'u8[2048]{0}', space=vmem, size = 0x800, scoped, tag = 'input window, operand 63, single buffered']
    #allocation57 [shape = 's32[1]{0}', space=sflag, size = 0x4, scoped, tag = 'scoped memory for tpu_custom_call.1']
    #allocation58 [shape = 'u8[512]{0}', space=vmem, size = 0x400, scoped, tag = 'input window, operand 64, single buffered']
    #allocation59 [shape = 'u8[8192]{0}', space=vmem, size = 0x2000, scoped, tag = 'input window, operand 65, single buffered']
    #allocation60 [shape = 's32[1]{0}', space=sflag, size = 0x4, scoped, tag = 'scoped memory for tpu_custom_call.1']
    #allocation61 [shape = 'u8[8192]{0}', space=vmem, size = 0x2000, scoped, tag = 'input window, operand 66, single buffered']
    #allocation62 [shape = 'u8[512]{0}', space=vmem, size = 0x400, scoped, tag = 'input window, operand 67, single buffered']
    #allocation63 [shape = 's32[1]{0}', space=sflag, size = 0x4, scoped, tag = 'scoped memory for tpu_custom_call.1']
    #allocation64 [shape = 'u8[8192]{0}', space=vmem, size = 0x2000, scoped, tag = 'input window, operand 68, single buffered']
    #allocation65 [shape = 'u8[8192]{0}', space=vmem, size = 0x2000, scoped, tag = 'input window, operand 69, single buffered']
    #allocation66 [shape = 's32[1]{0}', space=sflag, size = 0x4, scoped, tag = 'scoped memory for tpu_custom_call.1']
    #allocation67 [shape = 'u8[2048]{0}', space=vmem, size = 0x800, scoped, tag = 'input window, operand 70, single buffered']
    #allocation68 [shape = 'u8[512]{0}', space=vmem, size = 0x400, scoped, tag = 'input window, operand 71, single buffered']
    #allocation69 [shape = 's32[1]{0}', space=sflag, size = 0x4, scoped, tag = 'scoped memory for tpu_custom_call.1']
    #allocation70 [shape = 'u8[8192]{0}', space=vmem, size = 0x2000, scoped, tag = 'input window, operand 72, single buffered']
    #allocation71 [shape = 'u8[8192]{0}', space=vmem, size = 0x2000, scoped, tag = 'input window, operand 73, single buffered']
    #allocation72 [shape = 's32[1]{0}', space=sflag, size = 0x4, scoped, tag = 'scoped memory for tpu_custom_call.1']
    #allocation73 [shape = 'u8[512]{0}', space=vmem, size = 0x400, scoped, tag = 'input window, operand 74, single buffered']
    #allocation74 [shape = 'u8[8192]{0}', space=vmem, size = 0x2000, scoped, tag = 'input window, operand 75, single buffered']
    #allocation75 [shape = 's32[1]{0}', space=sflag, size = 0x4, scoped, tag = 'scoped memory for tpu_custom_call.1']
    #allocation76 [shape = 'u8[512]{0}', space=vmem, size = 0x400, scoped, tag = 'input window, operand 76, single buffered']
    #allocation77 [shape = 'u8[8192]{0}', space=vmem, size = 0x2000, scoped, tag = 'input window, operand 78, single buffered']
    #allocation78 [shape = 's32[1]{0}', space=sflag, size = 0x4, scoped, tag = 'scoped memory for tpu_custom_call.1']
    #allocation79 [shape = 'u8[2048]{0}', space=vmem, size = 0x800, scoped, tag = 'input window, operand 79, single buffered']
    #allocation80 [shape = 'u8[512]{0}', space=vmem, size = 0x400, scoped, tag = 'input window, operand 80, single buffered']
    #allocation81 [shape = 's32[1]{0}', space=sflag, size = 0x4, scoped, tag = 'scoped memory for tpu_custom_call.1']
    #allocation82 [shape = 'u8[8192]{0}', space=vmem, size = 0x2000, scoped, tag = 'input window, operand 81, single buffered']
    #allocation83 [shape = 'u8[8192]{0}', space=vmem, size = 0x2000, scoped, tag = 'input window, operand 82, single buffered']
    #allocation84 [shape = 's32[1]{0}', space=sflag, size = 0x4, scoped, tag = 'scoped memory for tpu_custom_call.1']
    #allocation85 [shape = 'u8[512]{0}', space=vmem, size = 0x400, scoped, tag = 'input window, operand 83, single buffered']
    #allocation86 [shape = 'u8[8192]{0}', space=vmem, size = 0x2000, scoped, tag = 'input window, operand 84, single buffered']
    #allocation87 [shape = 's32[1]{0}', space=sflag, size = 0x4, scoped, tag = 'scoped memory for tpu_custom_call.1']
    #allocation88 [shape = 'u8[8192]{0}', space=vmem, size = 0x2000, scoped, tag = 'input window, operand 85, single buffered']
    #allocation89 [shape = 'u8[2048]{0}', space=vmem, size = 0x800, scoped, tag = 'input window, operand 86, single buffered']
    #allocation90 [shape = 's32[1]{0}', space=sflag, size = 0x4, scoped, tag = 'scoped memory for tpu_custom_call.1']
    #allocation91 [shape = 'u8[512]{0}', space=vmem, size = 0x400, scoped, tag = 'input window, operand 87, single buffered']
    #allocation92 [shape = 'u8[8192]{0}', space=vmem, size = 0x2000, scoped, tag = 'input window, operand 88, single buffered']
    #allocation93 [shape = 's32[1]{0}', space=sflag, size = 0x4, scoped, tag = 'scoped memory for tpu_custom_call.1']
    #allocation94 [shape = 'u8[8192]{0}', space=vmem, size = 0x2000, scoped, tag = 'input window, operand 89, single buffered']
    #allocation95 [shape = 'u8[512]{0}', space=vmem, size = 0x400, scoped, tag = 'input window, operand 90, single buffered']
    #allocation96 [shape = 's32[1]{0}', space=sflag, size = 0x4, scoped, tag = 'scoped memory for tpu_custom_call.1']
    #allocation97 [shape = 'u8[1024]{0}', space=vmem, size = 0x400, scoped, tag = 'input window, operand 91, single buffered']
    #allocation98 [shape = 'u8[512]{0}', space=vmem, size = 0x400, scoped, tag = 'input window, operand 92, single buffered']
    #allocation99 [shape = 's32[1]{0}', space=sflag, size = 0x4, scoped, tag = 'scoped memory for tpu_custom_call.1']
    #allocation100 [shape = 'u8[8192]{0}', space=vmem, size = 0x2000, scoped, tag = 'output window, operand 0']
    #allocation101 [shape = 'u8[8192]{0}', space=vmem, size = 0x2000, scoped, tag = 'output window, operand 1']
    #allocation102 [shape = 's32[2]{0}', space=sflag, size = 0x8, scoped, tag = 'scoped memory for tpu_custom_call.1']
    %197 = vsyncpa [#allocation3], 0
    %198 = vsyncpa [#allocation6], 0
    %199 = vsyncpa [#allocation9], 0
    %200 = vsyncpa [#allocation12], 0
    %201 = vsyncpa [#allocation15], 0
    %202 = vsyncpa [#allocation18], 0
    %203 = vsyncpa [#allocation21], 0
    %204 = vsyncpa [#allocation24], 0
    %205 = vsyncpa [#allocation27], 0
    %206 = vsyncpa [#allocation30], 0
    %207 = vsyncpa [#allocation33], 0
    %208 = vsyncpa [#allocation36], 0
    %209 = vsyncpa [#allocation39], 0
    %210 = vsyncpa [#allocation42], 0
    %211 = vsyncpa [#allocation45], 0
    %212 = vsyncpa [#allocation48], 0
    %213 = vsyncpa [#allocation51], 0
    %214 = vsyncpa [#allocation54], 0
    %215 = vsyncpa [#allocation57], 0
    %216 = vsyncpa [#allocation60], 0
    %217 = vsyncpa [#allocation63], 0
    %218 = vsyncpa [#allocation66], 0
    %219 = vsyncpa [#allocation69], 0
    %220 = vsyncpa [#allocation72], 0
    %221 = vsyncpa [#allocation75], 0
    %222 = vsyncpa [#allocation78], 0
    %223 = vsyncpa [#allocation81], 0
    %224 = vsyncpa [#allocation84], 0
    %225 = vsyncpa [#allocation87], 0
    %226 = vsyncpa [#allocation90], 0
    %227 = vsyncpa [#allocation93], 0
    %228 = vsyncpa [#allocation96], 0
    %229 = vsyncpa [#allocation99], 0
    %230 = vsyncpa [#allocation4], 0
    %s231 = scalar_lea.sflag [#allocation4], 1
    %232 = vsyncpa %s231, 0
    %233 = vsyncpa [#allocation102], 0
    %s234 = scalar_lea.sflag [#allocation102], 1
    %235 = vsyncpa %s234, 0
    loop: start=0, step=1, limit=4
    $region2: #{tpu_custom_call.1} parent=1 // loop_pre_header
      _
    $region3: #{tpu_custom_call.1} parent=1 // loop_header
      %s237 = sphi 0, %s241
      %p238 = scmp.ge.s32.totalorder %s237, 4
      %s247 = sphi 0, %s249
      %s250 = sphi 0, %s247
      %s251 = sphi 0, %s250
      %s267 = sphi 0, %s251
      %s273 = sphi 0, %s275
      %s276 = sphi 0, %s273
      %s277 = sphi 0, %s276
      %s293 = sphi 0, %s277
      %s299 = sphi 0, %s301
      %s302 = sphi 0, %s299
      %s303 = sphi 0, %s302
      %s319 = sphi 0, %s303
      %s325 = sphi 0, %s327
      %s328 = sphi 0, %s325
      %s329 = sphi 0, %s328
      %s345 = sphi 0, %s329
      %s351 = sphi 0, %s353
      %s354 = sphi 0, %s351
      %s355 = sphi 0, %s354
      %s371 = sphi 0, %s355
      %s377 = sphi 0, %s379
      %s380 = sphi 0, %s377
      %s381 = sphi 0, %s380
      %s397 = sphi 0, %s381
      %s401 = sphi 0, %s401
      %s403 = sphi 0, %s401
      %s404 = sphi 0, %s403
      %s418 = sphi 0, %s404
      %s422 = sphi 0, %s422
      %s424 = sphi 0, %s422
      %s425 = sphi 0, %s424
      %s439 = sphi 0, %s425
      %s443 = sphi 0, %s443
      %s445 = sphi 0, %s443
      %s446 = sphi 0, %s445
      %s460 = sphi 0, %s446
      %s464 = sphi 0, %s464
      %s466 = sphi 0, %s464
      %s467 = sphi 0, %s466
      %s481 = sphi 0, %s467
      %s485 = sphi 0, %s485
      %s487 = sphi 0, %s485
      %s488 = sphi 0, %s487
      %s502 = sphi 0, %s488
      %s506 = sphi 0, %s506
      %s508 = sphi 0, %s506
      %s509 = sphi 0, %s508
      %s523 = sphi 0, %s509
      %s527 = sphi 0, %s527
      %s529 = sphi 0, %s527
      %s530 = sphi 0, %s529
      %s544 = sphi 0, %s530
      %s548 = sphi 0, %s548
      %s550 = sphi 0, %s548
      %s551 = sphi 0, %s550
      %s565 = sphi 0, %s551
      %s569 = sphi 0, %s569
      %s571 = sphi 0, %s569
      %s572 = sphi 0, %s571
      %s586 = sphi 0, %s572
      %s590 = sphi 0, %s590
      %s592 = sphi 0, %s590
      %s593 = sphi 0, %s592
      %s607 = sphi 0, %s593
      %s611 = sphi 0, %s611
      %s613 = sphi 0, %s611
      %s614 = sphi 0, %s613
      %s628 = sphi 0, %s614
      %s632 = sphi 0, %s632
      %s634 = sphi 0, %s632
      %s635 = sphi 0, %s634
      %s649 = sphi 0, %s635
      %s653 = sphi 0, %s653
      %s655 = sphi 0, %s653
      %s656 = sphi 0, %s655
      %s670 = sphi 0, %s656
      %s674 = sphi 0, %s674
      %s676 = sphi 0, %s674
      %s677 = sphi 0, %s676
      %s691 = sphi 0, %s677
      %s695 = sphi 0, %s695
      %s697 = sphi 0, %s695
      %s698 = sphi 0, %s697
      %s712 = sphi 0, %s698
      %s716 = sphi 0, %s716
      %s718 = sphi 0, %s716
      %s719 = sphi 0, %s718
      %s733 = sphi 0, %s719
      %s737 = sphi 0, %s737
      %s739 = sphi 0, %s737
      %s740 = sphi 0, %s739
      %s754 = sphi 0, %s740
      %s758 = sphi 0, %s758
      %s760 = sphi 0, %s758
      %s761 = sphi 0, %s760
      %s775 = sphi 0, %s761
      %s779 = sphi 0, %s779
      %s781 = sphi 0, %s779
      %s782 = sphi 0, %s781
      %s796 = sphi 0, %s782
      %s800 = sphi 0, %s800
      %s802 = sphi 0, %s800
      %s803 = sphi 0, %s802
      %s817 = sphi 0, %s803
      %s821 = sphi 0, %s821
      %s823 = sphi 0, %s821
      %s824 = sphi 0, %s823
      %s838 = sphi 0, %s824
      %s842 = sphi 0, %s842
      %s844 = sphi 0, %s842
      %s845 = sphi 0, %s844
      %s859 = sphi 0, %s845
      %s863 = sphi 0, %s863
      %s865 = sphi 0, %s863
      %s866 = sphi 0, %s865
      %s880 = sphi 0, %s866
      %s884 = sphi 0, %s884
      %s886 = sphi 0, %s884
      %s887 = sphi 0, %s886
      %s901 = sphi 0, %s887
      %s905 = sphi 0, %s905
      %s907 = sphi 0, %s905
      %s908 = sphi 0, %s907
      %s922 = sphi 0, %s908
      %s926 = sphi 0, %s926
      %s928 = sphi 0, %s926
      %s929 = sphi 0, %s928
      %s943 = sphi 0, %s929
      %s947 = sphi 0, %s947
      %s949 = sphi 0, %s947
      %s950 = sphi 0, %s949
      %s964 = sphi 0, %s950
      %s968 = sphi 0, %s968
      %s970 = sphi 0, %s968
      %s971 = sphi 0, %s970
      %s985 = sphi 0, %s971
      %s989 = sphi 0, %s989
      %s991 = sphi 0, %s989
      %s992 = sphi 0, %s991
      %s1006 = sphi 0, %s992
      %s1010 = sphi 0, %s1010
      %s1012 = sphi 0, %s1010
      %s1013 = sphi 0, %s1012
      %s1027 = sphi 0, %s1013
      %s1031 = sphi 0, %s1031
      %s1033 = sphi 0, %s1031
      %s1034 = sphi 0, %s1033
      %s1048 = sphi 0, %s1034
      %s1052 = sphi 0, %s1052
      %s1054 = sphi 0, %s1052
      %s1055 = sphi 0, %s1054
      %s1069 = sphi 0, %s1055
      %s1073 = sphi 0, %s1073
      %s1075 = sphi 0, %s1073
      %s1076 = sphi 0, %s1075
      %s1090 = sphi 0, %s1076
      %s1094 = sphi 0, %s1094
      %s1096 = sphi 0, %s1094
      %s1097 = sphi 0, %s1096
      %s1111 = sphi 0, %s1097
      %s1115 = sphi 0, %s1115
      %s1117 = sphi 0, %s1115
      %s1118 = sphi 0, %s1117
      %s1132 = sphi 0, %s1118
      %s1136 = sphi 0, %s1136
      %s1138 = sphi 0, %s1136
      %s1139 = sphi 0, %s1138
      %s1153 = sphi 0, %s1139
      %s1157 = sphi 0, %s1157
      %s1159 = sphi 0, %s1157
      %s1160 = sphi 0, %s1159
      %s1174 = sphi 0, %s1160
      %s1178 = sphi 0, %s1178
      %s1180 = sphi 0, %s1178
      %s1181 = sphi 0, %s1180
      %s1195 = sphi 0, %s1181
      %s1199 = sphi 0, %s1199
      %s1201 = sphi 0, %s1199
      %s1202 = sphi 0, %s1201
      %s1216 = sphi 0, %s1202
      %s1220 = sphi 0, %s1220
      %s1222 = sphi 0, %s1220
      %s1223 = sphi 0, %s1222
      %s1237 = sphi 0, %s1223
      %s1241 = sphi 0, %s1241
      %s1243 = sphi 0, %s1241
      %s1244 = sphi 0, %s1243
      %s1258 = sphi 0, %s1244
      %s1262 = sphi 0, %s1262
      %s1264 = sphi 0, %s1262
      %s1265 = sphi 0, %s1264
      %s1279 = sphi 0, %s1265
      %s1283 = sphi 0, %s1283
      %s1285 = sphi 0, %s1283
      %s1286 = sphi 0, %s1285
      %s1300 = sphi 0, %s1286
      %s1304 = sphi 0, %s1304
      %s1306 = sphi 0, %s1304
      %s1307 = sphi 0, %s1306
      %s1321 = sphi 0, %s1307
      %s1325 = sphi 0, %s1325
      %s1327 = sphi 0, %s1325
      %s1328 = sphi 0, %s1327
      %s1342 = sphi 0, %s1328
      %s1346 = sphi 0, %s1346
      %s1348 = sphi 0, %s1346
      %s1349 = sphi 0, %s1348
      %s1363 = sphi 0, %s1349
      %s1367 = sphi 0, %s1367
      %s1369 = sphi 0, %s1367
      %s1370 = sphi 0, %s1369
      %s1384 = sphi 0, %s1370
      %s1388 = sphi 0, %s1388
      %s1390 = sphi 0, %s1388
      %s1391 = sphi 0, %s1390
      %s1405 = sphi 0, %s1391
      %s1409 = sphi 0, %s1409
      %s1411 = sphi 0, %s1409
      %s1412 = sphi 0, %s1411
      %s1426 = sphi 0, %s1412
      %s1430 = sphi 0, %s1430
      %s1432 = sphi 0, %s1430
      %s1433 = sphi 0, %s1432
      %s1447 = sphi 0, %s1433
      %s1451 = sphi 0, %s1451
      %s1453 = sphi 0, %s1451
      %s1454 = sphi 0, %s1453
      %s1468 = sphi 0, %s1454
      %s1472 = sphi 0, %s1472
      %s1474 = sphi 0, %s1472
      %s1475 = sphi 0, %s1474
      %s1489 = sphi 0, %s1475
      %s1493 = sphi 0, %s1493
      %s1495 = sphi 0, %s1493
      %s1496 = sphi 0, %s1495
      %s1510 = sphi 0, %s1496
      %s1514 = sphi 0, %s1514
      %s1516 = sphi 0, %s1514
      %s1517 = sphi 0, %s1516
      %s1531 = sphi 0, %s1517
      %s1535 = sphi 0, %s1535
      %s1537 = sphi 0, %s1535
      %s1538 = sphi 0, %s1537
      %s1552 = sphi 0, %s1538
      %s1556 = sphi 0, %s1556
      %s1558 = sphi 0, %s1556
      %s1559 = sphi 0, %s1558
      %s1573 = sphi 0, %s1559
      %s1577 = sphi 0, %s1577
      %s1579 = sphi 0, %s1577
      %s1580 = sphi 0, %s1579
      %s1594 = sphi 0, %s1580
      %s1598 = sphi 0, %s1598
      %s1600 = sphi 0, %s1598
      %s1601 = sphi 0, %s1600
      %s1615 = sphi 0, %s1601
      %s1619 = sphi 0, %s1619
      %s1621 = sphi 0, %s1619
      %s1622 = sphi 0, %s1621
      %s1636 = sphi 0, %s1622
      %s1640 = sphi 0, %s1640
      %s1642 = sphi 0, %s1640
      %s1643 = sphi 0, %s1642
      %s1657 = sphi 0, %s1643
      %s1661 = sphi 0, %s1661
      %s1663 = sphi 0, %s1661
      %s1664 = sphi 0, %s1663
      %s1678 = sphi 0, %s1664
      %s1682 = sphi 0, %s1682
      %s1684 = sphi 0, %s1682
      %s1685 = sphi 0, %s1684
      %s1699 = sphi 0, %s1685
      %s1703 = sphi 0, %s1703
      %s1705 = sphi 0, %s1703
      %s1706 = sphi 0, %s1705
      %s1720 = sphi 0, %s1706
      %s1724 = sphi 0, %s1724
      %s1726 = sphi 0, %s1724
      %s1727 = sphi 0, %s1726
      %s1741 = sphi 0, %s1727
      %s1745 = sphi 0, %s1745
      %s1747 = sphi 0, %s1745
      %s1748 = sphi 0, %s1747
      %s1762 = sphi 0, %s1748
      %s1766 = sphi 0, %s1766
      %s1768 = sphi 0, %s1766
      %s1769 = sphi 0, %s1768
      %s1783 = sphi 0, %s1769
      %s1787 = sphi 0, %s1787
      %s1789 = sphi 0, %s1787
      %s1790 = sphi 0, %s1789
      %s1804 = sphi 0, %s1790
      %s1808 = sphi 0, %s1808
      %s1810 = sphi 0, %s1808
      %s1811 = sphi 0, %s1810
      %s1825 = sphi 0, %s1811
      %s1829 = sphi 0, %s1829
      %s1831 = sphi 0, %s1829
      %s1832 = sphi 0, %s1831
      %s1846 = sphi 0, %s1832
      %s1850 = sphi 0, %s1850
      %s1852 = sphi 0, %s1850
      %s1853 = sphi 0, %s1852
      %s1867 = sphi 0, %s1853
      %s1871 = sphi 0, %s1871
      %s1873 = sphi 0, %s1871
      %s1874 = sphi 0, %s1873
      %s1888 = sphi 0, %s1874
      %s1892 = sphi 0, %s1892
      %s1894 = sphi 0, %s1892
      %s1895 = sphi 0, %s1894
      %s1909 = sphi 0, %s1895
      %s1913 = sphi 0, %s1913
      %s1915 = sphi 0, %s1913
      %s1916 = sphi 0, %s1915
      %s1930 = sphi 0, %s1916
      %s1934 = sphi 0, %s1934
      %s1936 = sphi 0, %s1934
      %s1937 = sphi 0, %s1936
      %s1951 = sphi 0, %s1937
      %s1955 = sphi 0, %s1955
      %s1957 = sphi 0, %s1955
      %s1958 = sphi 0, %s1957
      %s1972 = sphi 0, %s1958
      %s1976 = sphi 0, %s1976
      %s1978 = sphi 0, %s1976
      %s1979 = sphi 0, %s1978
      %s1993 = sphi 0, %s1979
      %s1997 = sphi 0, %s1997
      %s1999 = sphi 0, %s1997
      %s2000 = sphi 0, %s1999
      %s2014 = sphi 0, %s2000
      %s2018 = sphi 0, %s2018
      %s2020 = sphi 0, %s2018
      %s2021 = sphi 0, %s2020
      %s2035 = sphi 0, %s2021
      %s2039 = sphi 0, %s2039
      %s2041 = sphi 0, %s2039
      %s2042 = sphi 0, %s2041
      %s2056 = sphi 0, %s2042
      %s2060 = sphi 0, %s2060
      %s2062 = sphi 0, %s2060
      %s2063 = sphi 0, %s2062
      %s2077 = sphi 0, %s2063
      %s2081 = sphi 0, %s2081
      %s2083 = sphi 0, %s2081
      %s2084 = sphi 0, %s2083
      %s2098 = sphi 0, %s2084
      %s2102 = sphi 0, %s2102
      %s2104 = sphi 0, %s2102
      %s2105 = sphi 0, %s2104
      %s2119 = sphi 0, %s2105
      %s2123 = sphi 0, %s2123
      %s2125 = sphi 0, %s2123
      %s2126 = sphi 0, %s2125
      %s2140 = sphi 0, %s2126
      %s2144 = sphi 0, %s2144
      %s2146 = sphi 0, %s2144
      %s2147 = sphi 0, %s2146
      %s2161 = sphi 0, %s2147
      %s2165 = sphi 0, %s2165
      %s2167 = sphi 0, %s2165
      %s2168 = sphi 0, %s2167
      %s2182 = sphi 0, %s2168
      %s2186 = sphi 0, %s2186
      %s2188 = sphi 0, %s2186
      %s2189 = sphi 0, %s2188
      %s2203 = sphi 0, %s2189
      %s2207 = sphi 0, %s2207
      %s2209 = sphi 0, %s2207
      %s2210 = sphi 0, %s2209
      %s2224 = sphi 0, %s2210
      %s2228 = sphi 0, %s2228
      %s2230 = sphi 0, %s2228
      %s2231 = sphi 0, %s2230
      %s2245 = sphi 0, %s2231
      %s2251 = sphi 0, %s2253
      %s2254 = sphi 0, %s2251
      %s2255 = sphi 0, %s2254
      %s2271 = sphi 0, %s2255
      %s2277 = sphi 0, %s2279
      %s2280 = sphi 0, %s2277
      %s2281 = sphi 0, %s2280
      %s2297 = sphi 0, %s2281
    $region4: #{tpu_custom_call.1} parent=1 // loop_header_branch
      %240 = sbr.rel (%p238) target = $region8
    $region5: #{tpu_custom_call.1} parent=1 // loop_body
      %s242 = ssub.s32 %s237, 1
      %s243 = ssub.s32 %s237, 2
      %s244 = sadd.s32 %s237, 1
      %s245 = ssub.s32 %s237, %s244
      %p246 = scmp.eq.s32.totalorder %s245, 0
      %s248 = sadd.s32 %s247, 1
      %s249 = scalar_select %p246, %s247, %s248
      %p252 = pneg %p246
      %p253 = scmp.eq.s32.totalorder %s237, 1
      %p254 = por %p252, %p253
      %p255 = scmp.ne.s32.totalorder %s247, %s250
      %p256 = scmp.eq.s32.totalorder %s237, 0
      %p257 = por %p255, %p256
      %p258 = scmp.ne.s32.totalorder %s247, %s250
      %p259 = scmp.eq.s32.totalorder %s242, 1
      %p260 = por %p258, %p259
      %p261 = scmp.ne.s32.totalorder %s250, %s251
      %p262 = scmp.eq.s32.totalorder %s242, 0
      %p263 = por %p261, %p262
      %p264 = scmp.ne.s32.totalorder %s250, %s251
      %p265 = scmp.eq.s32.totalorder %s243, 1
      %p266 = por %p264, %p265
      %p268 = scmp.ne.s32.totalorder %s251, %s267
      %p269 = scmp.eq.s32.totalorder %s243, 0
      %p270 = por %p268, %p269
      %s271 = ssub.s32 %s237, %s244
      %p272 = scmp.eq.s32.totalorder %s271, 0
      %s274 = sadd.s32 %s273, 1
      %s275 = scalar_select %p272, %s273, %s274
      %p278 = pneg %p272
      %p279 = scmp.eq.s32.totalorder %s237, 1
      %p280 = por %p278, %p279
      %p281 = scmp.ne.s32.totalorder %s273, %s276
      %p282 = scmp.eq.s32.totalorder %s237, 0
      %p283 = por %p281, %p282
      %p284 = scmp.ne.s32.totalorder %s273, %s276
      %p285 = scmp.eq.s32.totalorder %s242, 1
      %p286 = por %p284, %p285
      %p287 = scmp.ne.s32.totalorder %s276, %s277
      %p288 = scmp.eq.s32.totalorder %s242, 0
      %p289 = por %p287, %p288
      %p290 = scmp.ne.s32.totalorder %s276, %s277
      %p291 = scmp.eq.s32.totalorder %s243, 1
      %p292 = por %p290, %p291
      %p294 = scmp.ne.s32.totalorder %s277, %s293
      %p295 = scmp.eq.s32.totalorder %s243, 0
      %p296 = por %p294, %p295
      %s297 = ssub.s32 %s237, %s244
      %p298 = scmp.eq.s32.totalorder %s297, 0
      %s300 = sadd.s32 %s299, 1
      %s301 = scalar_select %p298, %s299, %s300
      %p304 = pneg %p298
      %p305 = scmp.eq.s32.totalorder %s237, 1
      %p306 = por %p304, %p305
      %p307 = scmp.ne.s32.totalorder %s299, %s302
      %p308 = scmp.eq.s32.totalorder %s237, 0
      %p309 = por %p307, %p308
      %p310 = scmp.ne.s32.totalorder %s299, %s302
      %p311 = scmp.eq.s32.totalorder %s242, 1
      %p312 = por %p310, %p311
      %p313 = scmp.ne.s32.totalorder %s302, %s303
      %p314 = scmp.eq.s32.totalorder %s242, 0
      %p315 = por %p313, %p314
      %p316 = scmp.ne.s32.totalorder %s302, %s303
      %p317 = scmp.eq.s32.totalorder %s243, 1
      %p318 = por %p316, %p317
      %p320 = scmp.ne.s32.totalorder %s303, %s319
      %p321 = scmp.eq.s32.totalorder %s243, 0
      %p322 = por %p320, %p321
      %s323 = ssub.s32 %s237, %s244
      %p324 = scmp.eq.s32.totalorder %s323, 0
      %s326 = sadd.s32 %s325, 1
      %s327 = scalar_select %p324, %s325, %s326
      %p330 = pneg %p324
      %p331 = scmp.eq.s32.totalorder %s237, 1
      %p332 = por %p330, %p331
      %p333 = scmp.ne.s32.totalorder %s325, %s328
      %p334 = scmp.eq.s32.totalorder %s237, 0
      %p335 = por %p333, %p334
      %p336 = scmp.ne.s32.totalorder %s325, %s328
      %p337 = scmp.eq.s32.totalorder %s242, 1
      %p338 = por %p336, %p337
      %p339 = scmp.ne.s32.totalorder %s328, %s329
      %p340 = scmp.eq.s32.totalorder %s242, 0
      %p341 = por %p339, %p340
      %p342 = scmp.ne.s32.totalorder %s328, %s329
      %p343 = scmp.eq.s32.totalorder %s243, 1
      %p344 = por %p342, %p343
      %p346 = scmp.ne.s32.totalorder %s329, %s345
      %p347 = scmp.eq.s32.totalorder %s243, 0
      %p348 = por %p346, %p347
      %s349 = ssub.s32 %s237, %s244
      %p350 = scmp.eq.s32.totalorder %s349, 0
      %s352 = sadd.s32 %s351, 1
      %s353 = scalar_select %p350, %s351, %s352
      %p356 = pneg %p350
      %p357 = scmp.eq.s32.totalorder %s237, 1
      %p358 = por %p356, %p357
      %p359 = scmp.ne.s32.totalorder %s351, %s354
      %p360 = scmp.eq.s32.totalorder %s237, 0
      %p361 = por %p359, %p360
      %p362 = scmp.ne.s32.totalorder %s351, %s354
      %p363 = scmp.eq.s32.totalorder %s242, 1
      %p364 = por %p362, %p363
      %p365 = scmp.ne.s32.totalorder %s354, %s355
      %p366 = scmp.eq.s32.totalorder %s242, 0
      %p367 = por %p365, %p366
      %p368 = scmp.ne.s32.totalorder %s354, %s355
      %p369 = scmp.eq.s32.totalorder %s243, 1
      %p370 = por %p368, %p369
      %p372 = scmp.ne.s32.totalorder %s355, %s371
      %p373 = scmp.eq.s32.totalorder %s243, 0
      %p374 = por %p372, %p373
      %s375 = ssub.s32 %s237, %s244
      %p376 = scmp.eq.s32.totalorder %s375, 0
      %s378 = sadd.s32 %s377, 1
      %s379 = scalar_select %p376, %s377, %s378
      %p382 = pneg %p376
      %p383 = scmp.eq.s32.totalorder %s237, 1
      %p384 = por %p382, %p383
      %p385 = scmp.ne.s32.totalorder %s377, %s380
      %p386 = scmp.eq.s32.totalorder %s237, 0
      %p387 = por %p385, %p386
      %p388 = scmp.ne.s32.totalorder %s377, %s380
      %p389 = scmp.eq.s32.totalorder %s242, 1
      %p390 = por %p388, %p389
      %p391 = scmp.ne.s32.totalorder %s380, %s381
      %p392 = scmp.eq.s32.totalorder %s242, 0
      %p393 = por %p391, %p392
      %p394 = scmp.ne.s32.totalorder %s380, %s381
      %p395 = scmp.eq.s32.totalorder %s243, 1
      %p396 = por %p394, %p395
      %p398 = scmp.ne.s32.totalorder %s381, %s397
      %p399 = scmp.eq.s32.totalorder %s243, 0
      %p400 = por %p398, %p399
      %s402 = sadd.s32 %s401, 1
      %p405 = scmp.eq.s32.totalorder %s237, 1
      %p406 = scmp.ne.s32.totalorder %s401, %s403
      %p407 = scmp.eq.s32.totalorder %s237, 0
      %p408 = por %p406, %p407
      %p409 = scmp.ne.s32.totalorder %s401, %s403
      %p410 = scmp.eq.s32.totalorder %s242, 1
      %p411 = por %p409, %p410
      %p412 = scmp.ne.s32.totalorder %s403, %s404
      %p413 = scmp.eq.s32.totalorder %s242, 0
      %p414 = por %p412, %p413
      %p415 = scmp.ne.s32.totalorder %s403, %s404
      %p416 = scmp.eq.s32.totalorder %s243, 1
      %p417 = por %p415, %p416
      %p419 = scmp.ne.s32.totalorder %s404, %s418
      %p420 = scmp.eq.s32.totalorder %s243, 0
      %p421 = por %p419, %p420
      %s423 = sadd.s32 %s422, 1
      %p426 = scmp.eq.s32.totalorder %s237, 1
      %p427 = scmp.ne.s32.totalorder %s422, %s424
      %p428 = scmp.eq.s32.totalorder %s237, 0
      %p429 = por %p427, %p428
      %p430 = scmp.ne.s32.totalorder %s422, %s424
      %p431 = scmp.eq.s32.totalorder %s242, 1
      %p432 = por %p430, %p431
      %p433 = scmp.ne.s32.totalorder %s424, %s425
      %p434 = scmp.eq.s32.totalorder %s242, 0
      %p435 = por %p433, %p434
      %p436 = scmp.ne.s32.totalorder %s424, %s425
      %p437 = scmp.eq.s32.totalorder %s243, 1
      %p438 = por %p436, %p437
      %p440 = scmp.ne.s32.totalorder %s425, %s439
      %p441 = scmp.eq.s32.totalorder %s243, 0
      %p442 = por %p440, %p441
      %s444 = sadd.s32 %s443, 1
      %p447 = scmp.eq.s32.totalorder %s237, 1
      %p448 = scmp.ne.s32.totalorder %s443, %s445
      %p449 = scmp.eq.s32.totalorder %s237, 0
      %p450 = por %p448, %p449
      %p451 = scmp.ne.s32.totalorder %s443, %s445
      %p452 = scmp.eq.s32.totalorder %s242, 1
      %p453 = por %p451, %p452
      %p454 = scmp.ne.s32.totalorder %s445, %s446
      %p455 = scmp.eq.s32.totalorder %s242, 0
      %p456 = por %p454, %p455
      %p457 = scmp.ne.s32.totalorder %s445, %s446
      %p458 = scmp.eq.s32.totalorder %s243, 1
      %p459 = por %p457, %p458
      %p461 = scmp.ne.s32.totalorder %s446, %s460
      %p462 = scmp.eq.s32.totalorder %s243, 0
      %p463 = por %p461, %p462
      %s465 = sadd.s32 %s464, 1
      %p468 = scmp.eq.s32.totalorder %s237, 1
      %p469 = scmp.ne.s32.totalorder %s464, %s466
      %p470 = scmp.eq.s32.totalorder %s237, 0
      %p471 = por %p469, %p470
      %p472 = scmp.ne.s32.totalorder %s464, %s466
      %p473 = scmp.eq.s32.totalorder %s242, 1
      %p474 = por %p472, %p473
      %p475 = scmp.ne.s32.totalorder %s466, %s467
      %p476 = scmp.eq.s32.totalorder %s242, 0
      %p477 = por %p475, %p476
      %p478 = scmp.ne.s32.totalorder %s466, %s467
      %p479 = scmp.eq.s32.totalorder %s243, 1
      %p480 = por %p478, %p479
      %p482 = scmp.ne.s32.totalorder %s467, %s481
      %p483 = scmp.eq.s32.totalorder %s243, 0
      %p484 = por %p482, %p483
      %s486 = sadd.s32 %s485, 1
      %p489 = scmp.eq.s32.totalorder %s237, 1
      %p490 = scmp.ne.s32.totalorder %s485, %s487
      %p491 = scmp.eq.s32.totalorder %s237, 0
      %p492 = por %p490, %p491
      %p493 = scmp.ne.s32.totalorder %s485, %s487
      %p494 = scmp.eq.s32.totalorder %s242, 1
      %p495 = por %p493, %p494
      %p496 = scmp.ne.s32.totalorder %s487, %s488
      %p497 = scmp.eq.s32.totalorder %s242, 0
      %p498 = por %p496, %p497
      %p499 = scmp.ne.s32.totalorder %s487, %s488
      %p500 = scmp.eq.s32.totalorder %s243, 1
      %p501 = por %p499, %p500
      %p503 = scmp.ne.s32.totalorder %s488, %s502
      %p504 = scmp.eq.s32.totalorder %s243, 0
      %p505 = por %p503, %p504
      %s507 = sadd.s32 %s506, 1
      %p510 = scmp.eq.s32.totalorder %s237, 1
      %p511 = scmp.ne.s32.totalorder %s506, %s508
      %p512 = scmp.eq.s32.totalorder %s237, 0
      %p513 = por %p511, %p512
      %p514 = scmp.ne.s32.totalorder %s506, %s508
      %p515 = scmp.eq.s32.totalorder %s242, 1
      %p516 = por %p514, %p515
      %p517 = scmp.ne.s32.totalorder %s508, %s509
      %p518 = scmp.eq.s32.totalorder %s242, 0
      %p519 = por %p517, %p518
      %p520 = scmp.ne.s32.totalorder %s508, %s509
      %p521 = scmp.eq.s32.totalorder %s243, 1
      %p522 = por %p520, %p521
      %p524 = scmp.ne.s32.totalorder %s509, %s523
      %p525 = scmp.eq.s32.totalorder %s243, 0
      %p526 = por %p524, %p525
      %s528 = sadd.s32 %s527, 1
      %p531 = scmp.eq.s32.totalorder %s237, 1
      %p532 = scmp.ne.s32.totalorder %s527, %s529
      %p533 = scmp.eq.s32.totalorder %s237, 0
      %p534 = por %p532, %p533
      %p535 = scmp.ne.s32.totalorder %s527, %s529
      %p536 = scmp.eq.s32.totalorder %s242, 1
      %p537 = por %p535, %p536
      %p538 = scmp.ne.s32.totalorder %s529, %s530
      %p539 = scmp.eq.s32.totalorder %s242, 0
      %p540 = por %p538, %p539
      %p541 = scmp.ne.s32.totalorder %s529, %s530
      %p542 = scmp.eq.s32.totalorder %s243, 1
      %p543 = por %p541, %p542
      %p545 = scmp.ne.s32.totalorder %s530, %s544
      %p546 = scmp.eq.s32.totalorder %s243, 0
      %p547 = por %p545, %p546
      %s549 = sadd.s32 %s548, 1
      %p552 = scmp.eq.s32.totalorder %s237, 1
      %p553 = scmp.ne.s32.totalorder %s548, %s550
      %p554 = scmp.eq.s32.totalorder %s237, 0
      %p555 = por %p553, %p554
      %p556 = scmp.ne.s32.totalorder %s548, %s550
      %p557 = scmp.eq.s32.totalorder %s242, 1
      %p558 = por %p556, %p557
      %p559 = scmp.ne.s32.totalorder %s550, %s551
      %p560 = scmp.eq.s32.totalorder %s242, 0
      %p561 = por %p559, %p560
      %p562 = scmp.ne.s32.totalorder %s550, %s551
      %p563 = scmp.eq.s32.totalorder %s243, 1
      %p564 = por %p562, %p563
      %p566 = scmp.ne.s32.totalorder %s551, %s565
      %p567 = scmp.eq.s32.totalorder %s243, 0
      %p568 = por %p566, %p567
      %s570 = sadd.s32 %s569, 1
      %p573 = scmp.eq.s32.totalorder %s237, 1
      %p574 = scmp.ne.s32.totalorder %s569, %s571
      %p575 = scmp.eq.s32.totalorder %s237, 0
      %p576 = por %p574, %p575
      %p577 = scmp.ne.s32.totalorder %s569, %s571
      %p578 = scmp.eq.s32.totalorder %s242, 1
      %p579 = por %p577, %p578
      %p580 = scmp.ne.s32.totalorder %s571, %s572
      %p581 = scmp.eq.s32.totalorder %s242, 0
      %p582 = por %p580, %p581
      %p583 = scmp.ne.s32.totalorder %s571, %s572
      %p584 = scmp.eq.s32.totalorder %s243, 1
      %p585 = por %p583, %p584
      %p587 = scmp.ne.s32.totalorder %s572, %s586
      %p588 = scmp.eq.s32.totalorder %s243, 0
      %p589 = por %p587, %p588
      %s591 = sadd.s32 %s590, 1
      %p594 = scmp.eq.s32.totalorder %s237, 1
      %p595 = scmp.ne.s32.totalorder %s590, %s592
      %p596 = scmp.eq.s32.totalorder %s237, 0
      %p597 = por %p595, %p596
      %p598 = scmp.ne.s32.totalorder %s590, %s592
      %p599 = scmp.eq.s32.totalorder %s242, 1
      %p600 = por %p598, %p599
      %p601 = scmp.ne.s32.totalorder %s592, %s593
      %p602 = scmp.eq.s32.totalorder %s242, 0
      %p603 = por %p601, %p602
      %p604 = scmp.ne.s32.totalorder %s592, %s593
      %p605 = scmp.eq.s32.totalorder %s243, 1
      %p606 = por %p604, %p605
      %p608 = scmp.ne.s32.totalorder %s593, %s607
      %p609 = scmp.eq.s32.totalorder %s243, 0
      %p610 = por %p608, %p609
      %s612 = sadd.s32 %s611, 1
      %p615 = scmp.eq.s32.totalorder %s237, 1
      %p616 = scmp.ne.s32.totalorder %s611, %s613
      %p617 = scmp.eq.s32.totalorder %s237, 0
      %p618 = por %p616, %p617
      %p619 = scmp.ne.s32.totalorder %s611, %s613
      %p620 = scmp.eq.s32.totalorder %s242, 1
      %p621 = por %p619, %p620
      %p622 = scmp.ne.s32.totalorder %s613, %s614
      %p623 = scmp.eq.s32.totalorder %s242, 0
      %p624 = por %p622, %p623
      %p625 = scmp.ne.s32.totalorder %s613, %s614
      %p626 = scmp.eq.s32.totalorder %s243, 1
      %p627 = por %p625, %p626
      %p629 = scmp.ne.s32.totalorder %s614, %s628
      %p630 = scmp.eq.s32.totalorder %s243, 0
      %p631 = por %p629, %p630
      %s633 = sadd.s32 %s632, 1
      %p636 = scmp.eq.s32.totalorder %s237, 1
      %p637 = scmp.ne.s32.totalorder %s632, %s634
      %p638 = scmp.eq.s32.totalorder %s237, 0
      %p639 = por %p637, %p638
      %p640 = scmp.ne.s32.totalorder %s632, %s634
      %p641 = scmp.eq.s32.totalorder %s242, 1
      %p642 = por %p640, %p641
      %p643 = scmp.ne.s32.totalorder %s634, %s635
      %p644 = scmp.eq.s32.totalorder %s242, 0
      %p645 = por %p643, %p644
      %p646 = scmp.ne.s32.totalorder %s634, %s635
      %p647 = scmp.eq.s32.totalorder %s243, 1
      %p648 = por %p646, %p647
      %p650 = scmp.ne.s32.totalorder %s635, %s649
      %p651 = scmp.eq.s32.totalorder %s243, 0
      %p652 = por %p650, %p651
      %s654 = sadd.s32 %s653, 1
      %p657 = scmp.eq.s32.totalorder %s237, 1
      %p658 = scmp.ne.s32.totalorder %s653, %s655
      %p659 = scmp.eq.s32.totalorder %s237, 0
      %p660 = por %p658, %p659
      %p661 = scmp.ne.s32.totalorder %s653, %s655
      %p662 = scmp.eq.s32.totalorder %s242, 1
      %p663 = por %p661, %p662
      %p664 = scmp.ne.s32.totalorder %s655, %s656
      %p665 = scmp.eq.s32.totalorder %s242, 0
      %p666 = por %p664, %p665
      %p667 = scmp.ne.s32.totalorder %s655, %s656
      %p668 = scmp.eq.s32.totalorder %s243, 1
      %p669 = por %p667, %p668
      %p671 = scmp.ne.s32.totalorder %s656, %s670
      %p672 = scmp.eq.s32.totalorder %s243, 0
      %p673 = por %p671, %p672
      %s675 = sadd.s32 %s674, 1
      %p678 = scmp.eq.s32.totalorder %s237, 1
      %p679 = scmp.ne.s32.totalorder %s674, %s676
      %p680 = scmp.eq.s32.totalorder %s237, 0
      %p681 = por %p679, %p680
      %p682 = scmp.ne.s32.totalorder %s674, %s676
      %p683 = scmp.eq.s32.totalorder %s242, 1
      %p684 = por %p682, %p683
      %p685 = scmp.ne.s32.totalorder %s676, %s677
      %p686 = scmp.eq.s32.totalorder %s242, 0
      %p687 = por %p685, %p686
      %p688 = scmp.ne.s32.totalorder %s676, %s677
      %p689 = scmp.eq.s32.totalorder %s243, 1
      %p690 = por %p688, %p689
      %p692 = scmp.ne.s32.totalorder %s677, %s691
      %p693 = scmp.eq.s32.totalorder %s243, 0
      %p694 = por %p692, %p693
      %s696 = sadd.s32 %s695, 1
      %p699 = scmp.eq.s32.totalorder %s237, 1
      %p700 = scmp.ne.s32.totalorder %s695, %s697
      %p701 = scmp.eq.s32.totalorder %s237, 0
      %p702 = por %p700, %p701
      %p703 = scmp.ne.s32.totalorder %s695, %s697
      %p704 = scmp.eq.s32.totalorder %s242, 1
      %p705 = por %p703, %p704
      %p706 = scmp.ne.s32.totalorder %s697, %s698
      %p707 = scmp.eq.s32.totalorder %s242, 0
      %p708 = por %p706, %p707
      %p709 = scmp.ne.s32.totalorder %s697, %s698
      %p710 = scmp.eq.s32.totalorder %s243, 1
      %p711 = por %p709, %p710
      %p713 = scmp.ne.s32.totalorder %s698, %s712
      %p714 = scmp.eq.s32.totalorder %s243, 0
      %p715 = por %p713, %p714
      %s717 = sadd.s32 %s716, 1
      %p720 = scmp.eq.s32.totalorder %s237, 1
      %p721 = scmp.ne.s32.totalorder %s716, %s718
      %p722 = scmp.eq.s32.totalorder %s237, 0
      %p723 = por %p721, %p722
      %p724 = scmp.ne.s32.totalorder %s716, %s718
      %p725 = scmp.eq.s32.totalorder %s242, 1
      %p726 = por %p724, %p725
      %p727 = scmp.ne.s32.totalorder %s718, %s719
      %p728 = scmp.eq.s32.totalorder %s242, 0
      %p729 = por %p727, %p728
      %p730 = scmp.ne.s32.totalorder %s718, %s719
      %p731 = scmp.eq.s32.totalorder %s243, 1
      %p732 = por %p730, %p731
      %p734 = scmp.ne.s32.totalorder %s719, %s733
      %p735 = scmp.eq.s32.totalorder %s243, 0
      %p736 = por %p734, %p735
      %s738 = sadd.s32 %s737, 1
      %p741 = scmp.eq.s32.totalorder %s237, 1
      %p742 = scmp.ne.s32.totalorder %s737, %s739
      %p743 = scmp.eq.s32.totalorder %s237, 0
      %p744 = por %p742, %p743
      %p745 = scmp.ne.s32.totalorder %s737, %s739
      %p746 = scmp.eq.s32.totalorder %s242, 1
      %p747 = por %p745, %p746
      %p748 = scmp.ne.s32.totalorder %s739, %s740
      %p749 = scmp.eq.s32.totalorder %s242, 0
      %p750 = por %p748, %p749
      %p751 = scmp.ne.s32.totalorder %s739, %s740
      %p752 = scmp.eq.s32.totalorder %s243, 1
      %p753 = por %p751, %p752
      %p755 = scmp.ne.s32.totalorder %s740, %s754
      %p756 = scmp.eq.s32.totalorder %s243, 0
      %p757 = por %p755, %p756
      %s759 = sadd.s32 %s758, 1
      %p762 = scmp.eq.s32.totalorder %s237, 1
      %p763 = scmp.ne.s32.totalorder %s758, %s760
      %p764 = scmp.eq.s32.totalorder %s237, 0
      %p765 = por %p763, %p764
      %p766 = scmp.ne.s32.totalorder %s758, %s760
      %p767 = scmp.eq.s32.totalorder %s242, 1
      %p768 = por %p766, %p767
      %p769 = scmp.ne.s32.totalorder %s760, %s761
      %p770 = scmp.eq.s32.totalorder %s242, 0
      %p771 = por %p769, %p770
      %p772 = scmp.ne.s32.totalorder %s760, %s761
      %p773 = scmp.eq.s32.totalorder %s243, 1
      %p774 = por %p772, %p773
      %p776 = scmp.ne.s32.totalorder %s761, %s775
      %p777 = scmp.eq.s32.totalorder %s243, 0
      %p778 = por %p776, %p777
      %s780 = sadd.s32 %s779, 1
      %p783 = scmp.eq.s32.totalorder %s237, 1
      %p784 = scmp.ne.s32.totalorder %s779, %s781
      %p785 = scmp.eq.s32.totalorder %s237, 0
      %p786 = por %p784, %p785
      %p787 = scmp.ne.s32.totalorder %s779, %s781
      %p788 = scmp.eq.s32.totalorder %s242, 1
      %p789 = por %p787, %p788
      %p790 = scmp.ne.s32.totalorder %s781, %s782
      %p791 = scmp.eq.s32.totalorder %s242, 0
      %p792 = por %p790, %p791
      %p793 = scmp.ne.s32.totalorder %s781, %s782
      %p794 = scmp.eq.s32.totalorder %s243, 1
      %p795 = por %p793, %p794
      %p797 = scmp.ne.s32.totalorder %s782, %s796
      %p798 = scmp.eq.s32.totalorder %s243, 0
      %p799 = por %p797, %p798
      %s801 = sadd.s32 %s800, 1
      %p804 = scmp.eq.s32.totalorder %s237, 1
      %p805 = scmp.ne.s32.totalorder %s800, %s802
      %p806 = scmp.eq.s32.totalorder %s237, 0
      %p807 = por %p805, %p806
      %p808 = scmp.ne.s32.totalorder %s800, %s802
      %p809 = scmp.eq.s32.totalorder %s242, 1
      %p810 = por %p808, %p809
      %p811 = scmp.ne.s32.totalorder %s802, %s803
      %p812 = scmp.eq.s32.totalorder %s242, 0
      %p813 = por %p811, %p812
      %p814 = scmp.ne.s32.totalorder %s802, %s803
      %p815 = scmp.eq.s32.totalorder %s243, 1
      %p816 = por %p814, %p815
      %p818 = scmp.ne.s32.totalorder %s803, %s817
      %p819 = scmp.eq.s32.totalorder %s243, 0
      %p820 = por %p818, %p819
      %s822 = sadd.s32 %s821, 1
      %p825 = scmp.eq.s32.totalorder %s237, 1
      %p826 = scmp.ne.s32.totalorder %s821, %s823
      %p827 = scmp.eq.s32.totalorder %s237, 0
      %p828 = por %p826, %p827
      %p829 = scmp.ne.s32.totalorder %s821, %s823
      %p830 = scmp.eq.s32.totalorder %s242, 1
      %p831 = por %p829, %p830
      %p832 = scmp.ne.s32.totalorder %s823, %s824
      %p833 = scmp.eq.s32.totalorder %s242, 0
      %p834 = por %p832, %p833
      %p835 = scmp.ne.s32.totalorder %s823, %s824
      %p836 = scmp.eq.s32.totalorder %s243, 1
      %p837 = por %p835, %p836
      %p839 = scmp.ne.s32.totalorder %s824, %s838
      %p840 = scmp.eq.s32.totalorder %s243, 0
      %p841 = por %p839, %p840
      %s843 = sadd.s32 %s842, 1
      %p846 = scmp.eq.s32.totalorder %s237, 1
      %p847 = scmp.ne.s32.totalorder %s842, %s844
      %p848 = scmp.eq.s32.totalorder %s237, 0
      %p849 = por %p847, %p848
      %p850 = scmp.ne.s32.totalorder %s842, %s844
      %p851 = scmp.eq.s32.totalorder %s242, 1
      %p852 = por %p850, %p851
      %p853 = scmp.ne.s32.totalorder %s844, %s845
      %p854 = scmp.eq.s32.totalorder %s242, 0
      %p855 = por %p853, %p854
      %p856 = scmp.ne.s32.totalorder %s844, %s845
      %p857 = scmp.eq.s32.totalorder %s243, 1
      %p858 = por %p856, %p857
      %p860 = scmp.ne.s32.totalorder %s845, %s859
      %p861 = scmp.eq.s32.totalorder %s243, 0
      %p862 = por %p860, %p861
      %s864 = sadd.s32 %s863, 1
      %p867 = scmp.eq.s32.totalorder %s237, 1
      %p868 = scmp.ne.s32.totalorder %s863, %s865
      %p869 = scmp.eq.s32.totalorder %s237, 0
      %p870 = por %p868, %p869
      %p871 = scmp.ne.s32.totalorder %s863, %s865
      %p872 = scmp.eq.s32.totalorder %s242, 1
      %p873 = por %p871, %p872
      %p874 = scmp.ne.s32.totalorder %s865, %s866
      %p875 = scmp.eq.s32.totalorder %s242, 0
      %p876 = por %p874, %p875
      %p877 = scmp.ne.s32.totalorder %s865, %s866
      %p878 = scmp.eq.s32.totalorder %s243, 1
      %p879 = por %p877, %p878
      %p881 = scmp.ne.s32.totalorder %s866, %s880
      %p882 = scmp.eq.s32.totalorder %s243, 0
      %p883 = por %p881, %p882
      %s885 = sadd.s32 %s884, 1
      %p888 = scmp.eq.s32.totalorder %s237, 1
      %p889 = scmp.ne.s32.totalorder %s884, %s886
      %p890 = scmp.eq.s32.totalorder %s237, 0
      %p891 = por %p889, %p890
      %p892 = scmp.ne.s32.totalorder %s884, %s886
      %p893 = scmp.eq.s32.totalorder %s242, 1
      %p894 = por %p892, %p893
      %p895 = scmp.ne.s32.totalorder %s886, %s887
      %p896 = scmp.eq.s32.totalorder %s242, 0
      %p897 = por %p895, %p896
      %p898 = scmp.ne.s32.totalorder %s886, %s887
      %p899 = scmp.eq.s32.totalorder %s243, 1
      %p900 = por %p898, %p899
      %p902 = scmp.ne.s32.totalorder %s887, %s901
      %p903 = scmp.eq.s32.totalorder %s243, 0
      %p904 = por %p902, %p903
      %s906 = sadd.s32 %s905, 1
      %p909 = scmp.eq.s32.totalorder %s237, 1
      %p910 = scmp.ne.s32.totalorder %s905, %s907
      %p911 = scmp.eq.s32.totalorder %s237, 0
      %p912 = por %p910, %p911
      %p913 = scmp.ne.s32.totalorder %s905, %s907
      %p914 = scmp.eq.s32.totalorder %s242, 1
      %p915 = por %p913, %p914
      %p916 = scmp.ne.s32.totalorder %s907, %s908
      %p917 = scmp.eq.s32.totalorder %s242, 0
      %p918 = por %p916, %p917
      %p919 = scmp.ne.s32.totalorder %s907, %s908
      %p920 = scmp.eq.s32.totalorder %s243, 1
      %p921 = por %p919, %p920
      %p923 = scmp.ne.s32.totalorder %s908, %s922
      %p924 = scmp.eq.s32.totalorder %s243, 0
      %p925 = por %p923, %p924
      %s927 = sadd.s32 %s926, 1
      %p930 = scmp.eq.s32.totalorder %s237, 1
      %p931 = scmp.ne.s32.totalorder %s926, %s928
      %p932 = scmp.eq.s32.totalorder %s237, 0
      %p933 = por %p931, %p932
      %p934 = scmp.ne.s32.totalorder %s926, %s928
      %p935 = scmp.eq.s32.totalorder %s242, 1
      %p936 = por %p934, %p935
      %p937 = scmp.ne.s32.totalorder %s928, %s929
      %p938 = scmp.eq.s32.totalorder %s242, 0
      %p939 = por %p937, %p938
      %p940 = scmp.ne.s32.totalorder %s928, %s929
      %p941 = scmp.eq.s32.totalorder %s243, 1
      %p942 = por %p940, %p941
      %p944 = scmp.ne.s32.totalorder %s929, %s943
      %p945 = scmp.eq.s32.totalorder %s243, 0
      %p946 = por %p944, %p945
      %s948 = sadd.s32 %s947, 1
      %p951 = scmp.eq.s32.totalorder %s237, 1
      %p952 = scmp.ne.s32.totalorder %s947, %s949
      %p953 = scmp.eq.s32.totalorder %s237, 0
      %p954 = por %p952, %p953
      %p955 = scmp.ne.s32.totalorder %s947, %s949
      %p956 = scmp.eq.s32.totalorder %s242, 1
      %p957 = por %p955, %p956
      %p958 = scmp.ne.s32.totalorder %s949, %s950
      %p959 = scmp.eq.s32.totalorder %s242, 0
      %p960 = por %p958, %p959
      %p961 = scmp.ne.s32.totalorder %s949, %s950
      %p962 = scmp.eq.s32.totalorder %s243, 1
      %p963 = por %p961, %p962
      %p965 = scmp.ne.s32.totalorder %s950, %s964
      %p966 = scmp.eq.s32.totalorder %s243, 0
      %p967 = por %p965, %p966
      %s969 = sadd.s32 %s968, 1
      %p972 = scmp.eq.s32.totalorder %s237, 1
      %p973 = scmp.ne.s32.totalorder %s968, %s970
      %p974 = scmp.eq.s32.totalorder %s237, 0
      %p975 = por %p973, %p974
      %p976 = scmp.ne.s32.totalorder %s968, %s970
      %p977 = scmp.eq.s32.totalorder %s242, 1
      %p978 = por %p976, %p977
      %p979 = scmp.ne.s32.totalorder %s970, %s971
      %p980 = scmp.eq.s32.totalorder %s242, 0
      %p981 = por %p979, %p980
      %p982 = scmp.ne.s32.totalorder %s970, %s971
      %p983 = scmp.eq.s32.totalorder %s243, 1
      %p984 = por %p982, %p983
      %p986 = scmp.ne.s32.totalorder %s971, %s985
      %p987 = scmp.eq.s32.totalorder %s243, 0
      %p988 = por %p986, %p987
      %s990 = sadd.s32 %s989, 1
      %p993 = scmp.eq.s32.totalorder %s237, 1
      %p994 = scmp.ne.s32.totalorder %s989, %s991
      %p995 = scmp.eq.s32.totalorder %s237, 0
      %p996 = por %p994, %p995
      %p997 = scmp.ne.s32.totalorder %s989, %s991
      %p998 = scmp.eq.s32.totalorder %s242, 1
      %p999 = por %p997, %p998
      %p1000 = scmp.ne.s32.totalorder %s991, %s992
      %p1001 = scmp.eq.s32.totalorder %s242, 0
      %p1002 = por %p1000, %p1001
      %p1003 = scmp.ne.s32.totalorder %s991, %s992
      %p1004 = scmp.eq.s32.totalorder %s243, 1
      %p1005 = por %p1003, %p1004
      %p1007 = scmp.ne.s32.totalorder %s992, %s1006
      %p1008 = scmp.eq.s32.totalorder %s243, 0
      %p1009 = por %p1007, %p1008
      %s1011 = sadd.s32 %s1010, 1
      %p1014 = scmp.eq.s32.totalorder %s237, 1
      %p1015 = scmp.ne.s32.totalorder %s1010, %s1012
      %p1016 = scmp.eq.s32.totalorder %s237, 0
      %p1017 = por %p1015, %p1016
      %p1018 = scmp.ne.s32.totalorder %s1010, %s1012
      %p1019 = scmp.eq.s32.totalorder %s242, 1
      %p1020 = por %p1018, %p1019
      %p1021 = scmp.ne.s32.totalorder %s1012, %s1013
      %p1022 = scmp.eq.s32.totalorder %s242, 0
      %p1023 = por %p1021, %p1022
      %p1024 = scmp.ne.s32.totalorder %s1012, %s1013
      %p1025 = scmp.eq.s32.totalorder %s243, 1
      %p1026 = por %p1024, %p1025
      %p1028 = scmp.ne.s32.totalorder %s1013, %s1027
      %p1029 = scmp.eq.s32.totalorder %s243, 0
      %p1030 = por %p1028, %p1029
      %s1032 = sadd.s32 %s1031, 1
      %p1035 = scmp.eq.s32.totalorder %s237, 1
      %p1036 = scmp.ne.s32.totalorder %s1031, %s1033
      %p1037 = scmp.eq.s32.totalorder %s237, 0
      %p1038 = por %p1036, %p1037
      %p1039 = scmp.ne.s32.totalorder %s1031, %s1033
      %p1040 = scmp.eq.s32.totalorder %s242, 1
      %p1041 = por %p1039, %p1040
      %p1042 = scmp.ne.s32.totalorder %s1033, %s1034
      %p1043 = scmp.eq.s32.totalorder %s242, 0
      %p1044 = por %p1042, %p1043
      %p1045 = scmp.ne.s32.totalorder %s1033, %s1034
      %p1046 = scmp.eq.s32.totalorder %s243, 1
      %p1047 = por %p1045, %p1046
      %p1049 = scmp.ne.s32.totalorder %s1034, %s1048
      %p1050 = scmp.eq.s32.totalorder %s243, 0
      %p1051 = por %p1049, %p1050
      %s1053 = sadd.s32 %s1052, 1
      %p1056 = scmp.eq.s32.totalorder %s237, 1
      %p1057 = scmp.ne.s32.totalorder %s1052, %s1054
      %p1058 = scmp.eq.s32.totalorder %s237, 0
      %p1059 = por %p1057, %p1058
      %p1060 = scmp.ne.s32.totalorder %s1052, %s1054
      %p1061 = scmp.eq.s32.totalorder %s242, 1
      %p1062 = por %p1060, %p1061
      %p1063 = scmp.ne.s32.totalorder %s1054, %s1055
      %p1064 = scmp.eq.s32.totalorder %s242, 0
      %p1065 = por %p1063, %p1064
      %p1066 = scmp.ne.s32.totalorder %s1054, %s1055
      %p1067 = scmp.eq.s32.totalorder %s243, 1
      %p1068 = por %p1066, %p1067
      %p1070 = scmp.ne.s32.totalorder %s1055, %s1069
      %p1071 = scmp.eq.s32.totalorder %s243, 0
      %p1072 = por %p1070, %p1071
      %s1074 = sadd.s32 %s1073, 1
      %p1077 = scmp.eq.s32.totalorder %s237, 1
      %p1078 = scmp.ne.s32.totalorder %s1073, %s1075
      %p1079 = scmp.eq.s32.totalorder %s237, 0
      %p1080 = por %p1078, %p1079
      %p1081 = scmp.ne.s32.totalorder %s1073, %s1075
      %p1082 = scmp.eq.s32.totalorder %s242, 1
      %p1083 = por %p1081, %p1082
      %p1084 = scmp.ne.s32.totalorder %s1075, %s1076
      %p1085 = scmp.eq.s32.totalorder %s242, 0
      %p1086 = por %p1084, %p1085
      %p1087 = scmp.ne.s32.totalorder %s1075, %s1076
      %p1088 = scmp.eq.s32.totalorder %s243, 1
      %p1089 = por %p1087, %p1088
      %p1091 = scmp.ne.s32.totalorder %s1076, %s1090
      %p1092 = scmp.eq.s32.totalorder %s243, 0
      %p1093 = por %p1091, %p1092
      %s1095 = sadd.s32 %s1094, 1
      %p1098 = scmp.eq.s32.totalorder %s237, 1
      %p1099 = scmp.ne.s32.totalorder %s1094, %s1096
      %p1100 = scmp.eq.s32.totalorder %s237, 0
      %p1101 = por %p1099, %p1100
      %p1102 = scmp.ne.s32.totalorder %s1094, %s1096
      %p1103 = scmp.eq.s32.totalorder %s242, 1
      %p1104 = por %p1102, %p1103
      %p1105 = scmp.ne.s32.totalorder %s1096, %s1097
      %p1106 = scmp.eq.s32.totalorder %s242, 0
      %p1107 = por %p1105, %p1106
      %p1108 = scmp.ne.s32.totalorder %s1096, %s1097
      %p1109 = scmp.eq.s32.totalorder %s243, 1
      %p1110 = por %p1108, %p1109
      %p1112 = scmp.ne.s32.totalorder %s1097, %s1111
      %p1113 = scmp.eq.s32.totalorder %s243, 0
      %p1114 = por %p1112, %p1113
      %s1116 = sadd.s32 %s1115, 1
      %p1119 = scmp.eq.s32.totalorder %s237, 1
      %p1120 = scmp.ne.s32.totalorder %s1115, %s1117
      %p1121 = scmp.eq.s32.totalorder %s237, 0
      %p1122 = por %p1120, %p1121
      %p1123 = scmp.ne.s32.totalorder %s1115, %s1117
      %p1124 = scmp.eq.s32.totalorder %s242, 1
      %p1125 = por %p1123, %p1124
      %p1126 = scmp.ne.s32.totalorder %s1117, %s1118
      %p1127 = scmp.eq.s32.totalorder %s242, 0
      %p1128 = por %p1126, %p1127
      %p1129 = scmp.ne.s32.totalorder %s1117, %s1118
      %p1130 = scmp.eq.s32.totalorder %s243, 1
      %p1131 = por %p1129, %p1130
      %p1133 = scmp.ne.s32.totalorder %s1118, %s1132
      %p1134 = scmp.eq.s32.totalorder %s243, 0
      %p1135 = por %p1133, %p1134
      %s1137 = sadd.s32 %s1136, 1
      %p1140 = scmp.eq.s32.totalorder %s237, 1
      %p1141 = scmp.ne.s32.totalorder %s1136, %s1138
      %p1142 = scmp.eq.s32.totalorder %s237, 0
      %p1143 = por %p1141, %p1142
      %p1144 = scmp.ne.s32.totalorder %s1136, %s1138
      %p1145 = scmp.eq.s32.totalorder %s242, 1
      %p1146 = por %p1144, %p1145
      %p1147 = scmp.ne.s32.totalorder %s1138, %s1139
      %p1148 = scmp.eq.s32.totalorder %s242, 0
      %p1149 = por %p1147, %p1148
      %p1150 = scmp.ne.s32.totalorder %s1138, %s1139
      %p1151 = scmp.eq.s32.totalorder %s243, 1
      %p1152 = por %p1150, %p1151
      %p1154 = scmp.ne.s32.totalorder %s1139, %s1153
      %p1155 = scmp.eq.s32.totalorder %s243, 0
      %p1156 = por %p1154, %p1155
      %s1158 = sadd.s32 %s1157, 1
      %p1161 = scmp.eq.s32.totalorder %s237, 1
      %p1162 = scmp.ne.s32.totalorder %s1157, %s1159
      %p1163 = scmp.eq.s32.totalorder %s237, 0
      %p1164 = por %p1162, %p1163
      %p1165 = scmp.ne.s32.totalorder %s1157, %s1159
      %p1166 = scmp.eq.s32.totalorder %s242, 1
      %p1167 = por %p1165, %p1166
      %p1168 = scmp.ne.s32.totalorder %s1159, %s1160
      %p1169 = scmp.eq.s32.totalorder %s242, 0
      %p1170 = por %p1168, %p1169
      %p1171 = scmp.ne.s32.totalorder %s1159, %s1160
      %p1172 = scmp.eq.s32.totalorder %s243, 1
      %p1173 = por %p1171, %p1172
      %p1175 = scmp.ne.s32.totalorder %s1160, %s1174
      %p1176 = scmp.eq.s32.totalorder %s243, 0
      %p1177 = por %p1175, %p1176
      %s1179 = sadd.s32 %s1178, 1
      %p1182 = scmp.eq.s32.totalorder %s237, 1
      %p1183 = scmp.ne.s32.totalorder %s1178, %s1180
      %p1184 = scmp.eq.s32.totalorder %s237, 0
      %p1185 = por %p1183, %p1184
      %p1186 = scmp.ne.s32.totalorder %s1178, %s1180
      %p1187 = scmp.eq.s32.totalorder %s242, 1
      %p1188 = por %p1186, %p1187
      %p1189 = scmp.ne.s32.totalorder %s1180, %s1181
      %p1190 = scmp.eq.s32.totalorder %s242, 0
      %p1191 = por %p1189, %p1190
      %p1192 = scmp.ne.s32.totalorder %s1180, %s1181
      %p1193 = scmp.eq.s32.totalorder %s243, 1
      %p1194 = por %p1192, %p1193
      %p1196 = scmp.ne.s32.totalorder %s1181, %s1195
      %p1197 = scmp.eq.s32.totalorder %s243, 0
      %p1198 = por %p1196, %p1197
      %s1200 = sadd.s32 %s1199, 1
      %p1203 = scmp.eq.s32.totalorder %s237, 1
      %p1204 = scmp.ne.s32.totalorder %s1199, %s1201
      %p1205 = scmp.eq.s32.totalorder %s237, 0
      %p1206 = por %p1204, %p1205
      %p1207 = scmp.ne.s32.totalorder %s1199, %s1201
      %p1208 = scmp.eq.s32.totalorder %s242, 1
      %p1209 = por %p1207, %p1208
      %p1210 = scmp.ne.s32.totalorder %s1201, %s1202
      %p1211 = scmp.eq.s32.totalorder %s242, 0
      %p1212 = por %p1210, %p1211
      %p1213 = scmp.ne.s32.totalorder %s1201, %s1202
      %p1214 = scmp.eq.s32.totalorder %s243, 1
      %p1215 = por %p1213, %p1214
      %p1217 = scmp.ne.s32.totalorder %s1202, %s1216
      %p1218 = scmp.eq.s32.totalorder %s243, 0
      %p1219 = por %p1217, %p1218
      %s1221 = sadd.s32 %s1220, 1
      %p1224 = scmp.eq.s32.totalorder %s237, 1
      %p1225 = scmp.ne.s32.totalorder %s1220, %s1222
      %p1226 = scmp.eq.s32.totalorder %s237, 0
      %p1227 = por %p1225, %p1226
      %p1228 = scmp.ne.s32.totalorder %s1220, %s1222
      %p1229 = scmp.eq.s32.totalorder %s242, 1
      %p1230 = por %p1228, %p1229
      %p1231 = scmp.ne.s32.totalorder %s1222, %s1223
      %p1232 = scmp.eq.s32.totalorder %s242, 0
      %p1233 = por %p1231, %p1232
      %p1234 = scmp.ne.s32.totalorder %s1222, %s1223
      %p1235 = scmp.eq.s32.totalorder %s243, 1
      %p1236 = por %p1234, %p1235
      %p1238 = scmp.ne.s32.totalorder %s1223, %s1237
      %p1239 = scmp.eq.s32.totalorder %s243, 0
      %p1240 = por %p1238, %p1239
      %s1242 = sadd.s32 %s1241, 1
      %p1245 = scmp.eq.s32.totalorder %s237, 1
      %p1246 = scmp.ne.s32.totalorder %s1241, %s1243
      %p1247 = scmp.eq.s32.totalorder %s237, 0
      %p1248 = por %p1246, %p1247
      %p1249 = scmp.ne.s32.totalorder %s1241, %s1243
      %p1250 = scmp.eq.s32.totalorder %s242, 1
      %p1251 = por %p1249, %p1250
      %p1252 = scmp.ne.s32.totalorder %s1243, %s1244
      %p1253 = scmp.eq.s32.totalorder %s242, 0
      %p1254 = por %p1252, %p1253
      %p1255 = scmp.ne.s32.totalorder %s1243, %s1244
      %p1256 = scmp.eq.s32.totalorder %s243, 1
      %p1257 = por %p1255, %p1256
      %p1259 = scmp.ne.s32.totalorder %s1244, %s1258
      %p1260 = scmp.eq.s32.totalorder %s243, 0
      %p1261 = por %p1259, %p1260
      %s1263 = sadd.s32 %s1262, 1
      %p1266 = scmp.eq.s32.totalorder %s237, 1
      %p1267 = scmp.ne.s32.totalorder %s1262, %s1264
      %p1268 = scmp.eq.s32.totalorder %s237, 0
      %p1269 = por %p1267, %p1268
      %p1270 = scmp.ne.s32.totalorder %s1262, %s1264
      %p1271 = scmp.eq.s32.totalorder %s242, 1
      %p1272 = por %p1270, %p1271
      %p1273 = scmp.ne.s32.totalorder %s1264, %s1265
      %p1274 = scmp.eq.s32.totalorder %s242, 0
      %p1275 = por %p1273, %p1274
      %p1276 = scmp.ne.s32.totalorder %s1264, %s1265
      %p1277 = scmp.eq.s32.totalorder %s243, 1
      %p1278 = por %p1276, %p1277
      %p1280 = scmp.ne.s32.totalorder %s1265, %s1279
      %p1281 = scmp.eq.s32.totalorder %s243, 0
      %p1282 = por %p1280, %p1281
      %s1284 = sadd.s32 %s1283, 1
      %p1287 = scmp.eq.s32.totalorder %s237, 1
      %p1288 = scmp.ne.s32.totalorder %s1283, %s1285
      %p1289 = scmp.eq.s32.totalorder %s237, 0
      %p1290 = por %p1288, %p1289
      %p1291 = scmp.ne.s32.totalorder %s1283, %s1285
      %p1292 = scmp.eq.s32.totalorder %s242, 1
      %p1293 = por %p1291, %p1292
      %p1294 = scmp.ne.s32.totalorder %s1285, %s1286
      %p1295 = scmp.eq.s32.totalorder %s242, 0
      %p1296 = por %p1294, %p1295
      %p1297 = scmp.ne.s32.totalorder %s1285, %s1286
      %p1298 = scmp.eq.s32.totalorder %s243, 1
      %p1299 = por %p1297, %p1298
      %p1301 = scmp.ne.s32.totalorder %s1286, %s1300
      %p1302 = scmp.eq.s32.totalorder %s243, 0
      %p1303 = por %p1301, %p1302
      %s1305 = sadd.s32 %s1304, 1
      %p1308 = scmp.eq.s32.totalorder %s237, 1
      %p1309 = scmp.ne.s32.totalorder %s1304, %s1306
      %p1310 = scmp.eq.s32.totalorder %s237, 0
      %p1311 = por %p1309, %p1310
      %p1312 = scmp.ne.s32.totalorder %s1304, %s1306
      %p1313 = scmp.eq.s32.totalorder %s242, 1
      %p1314 = por %p1312, %p1313
      %p1315 = scmp.ne.s32.totalorder %s1306, %s1307
      %p1316 = scmp.eq.s32.totalorder %s242, 0
      %p1317 = por %p1315, %p1316
      %p1318 = scmp.ne.s32.totalorder %s1306, %s1307
      %p1319 = scmp.eq.s32.totalorder %s243, 1
      %p1320 = por %p1318, %p1319
      %p1322 = scmp.ne.s32.totalorder %s1307, %s1321
      %p1323 = scmp.eq.s32.totalorder %s243, 0
      %p1324 = por %p1322, %p1323
      %s1326 = sadd.s32 %s1325, 1
      %p1329 = scmp.eq.s32.totalorder %s237, 1
      %p1330 = scmp.ne.s32.totalorder %s1325, %s1327
      %p1331 = scmp.eq.s32.totalorder %s237, 0
      %p1332 = por %p1330, %p1331
      %p1333 = scmp.ne.s32.totalorder %s1325, %s1327
      %p1334 = scmp.eq.s32.totalorder %s242, 1
      %p1335 = por %p1333, %p1334
      %p1336 = scmp.ne.s32.totalorder %s1327, %s1328
      %p1337 = scmp.eq.s32.totalorder %s242, 0
      %p1338 = por %p1336, %p1337
      %p1339 = scmp.ne.s32.totalorder %s1327, %s1328
      %p1340 = scmp.eq.s32.totalorder %s243, 1
      %p1341 = por %p1339, %p1340
      %p1343 = scmp.ne.s32.totalorder %s1328, %s1342
      %p1344 = scmp.eq.s32.totalorder %s243, 0
      %p1345 = por %p1343, %p1344
      %s1347 = sadd.s32 %s1346, 1
      %p1350 = scmp.eq.s32.totalorder %s237, 1
      %p1351 = scmp.ne.s32.totalorder %s1346, %s1348
      %p1352 = scmp.eq.s32.totalorder %s237, 0
      %p1353 = por %p1351, %p1352
      %p1354 = scmp.ne.s32.totalorder %s1346, %s1348
      %p1355 = scmp.eq.s32.totalorder %s242, 1
      %p1356 = por %p1354, %p1355
      %p1357 = scmp.ne.s32.totalorder %s1348, %s1349
      %p1358 = scmp.eq.s32.totalorder %s242, 0
      %p1359 = por %p1357, %p1358
      %p1360 = scmp.ne.s32.totalorder %s1348, %s1349
      %p1361 = scmp.eq.s32.totalorder %s243, 1
      %p1362 = por %p1360, %p1361
      %p1364 = scmp.ne.s32.totalorder %s1349, %s1363
      %p1365 = scmp.eq.s32.totalorder %s243, 0
      %p1366 = por %p1364, %p1365
      %s1368 = sadd.s32 %s1367, 1
      %p1371 = scmp.eq.s32.totalorder %s237, 1
      %p1372 = scmp.ne.s32.totalorder %s1367, %s1369
      %p1373 = scmp.eq.s32.totalorder %s237, 0
      %p1374 = por %p1372, %p1373
      %p1375 = scmp.ne.s32.totalorder %s1367, %s1369
      %p1376 = scmp.eq.s32.totalorder %s242, 1
      %p1377 = por %p1375, %p1376
      %p1378 = scmp.ne.s32.totalorder %s1369, %s1370
      %p1379 = scmp.eq.s32.totalorder %s242, 0
      %p1380 = por %p1378, %p1379
      %p1381 = scmp.ne.s32.totalorder %s1369, %s1370
      %p1382 = scmp.eq.s32.totalorder %s243, 1
      %p1383 = por %p1381, %p1382
      %p1385 = scmp.ne.s32.totalorder %s1370, %s1384
      %p1386 = scmp.eq.s32.totalorder %s243, 0
      %p1387 = por %p1385, %p1386
      %s1389 = sadd.s32 %s1388, 1
      %p1392 = scmp.eq.s32.totalorder %s237, 1
      %p1393 = scmp.ne.s32.totalorder %s1388, %s1390
      %p1394 = scmp.eq.s32.totalorder %s237, 0
      %p1395 = por %p1393, %p1394
      %p1396 = scmp.ne.s32.totalorder %s1388, %s1390
      %p1397 = scmp.eq.s32.totalorder %s242, 1
      %p1398 = por %p1396, %p1397
      %p1399 = scmp.ne.s32.totalorder %s1390, %s1391
      %p1400 = scmp.eq.s32.totalorder %s242, 0
      %p1401 = por %p1399, %p1400
      %p1402 = scmp.ne.s32.totalorder %s1390, %s1391
      %p1403 = scmp.eq.s32.totalorder %s243, 1
      %p1404 = por %p1402, %p1403
      %p1406 = scmp.ne.s32.totalorder %s1391, %s1405
      %p1407 = scmp.eq.s32.totalorder %s243, 0
      %p1408 = por %p1406, %p1407
      %s1410 = sadd.s32 %s1409, 1
      %p1413 = scmp.eq.s32.totalorder %s237, 1
      %p1414 = scmp.ne.s32.totalorder %s1409, %s1411
      %p1415 = scmp.eq.s32.totalorder %s237, 0
      %p1416 = por %p1414, %p1415
      %p1417 = scmp.ne.s32.totalorder %s1409, %s1411
      %p1418 = scmp.eq.s32.totalorder %s242, 1
      %p1419 = por %p1417, %p1418
      %p1420 = scmp.ne.s32.totalorder %s1411, %s1412
      %p1421 = scmp.eq.s32.totalorder %s242, 0
      %p1422 = por %p1420, %p1421
      %p1423 = scmp.ne.s32.totalorder %s1411, %s1412
      %p1424 = scmp.eq.s32.totalorder %s243, 1
      %p1425 = por %p1423, %p1424
      %p1427 = scmp.ne.s32.totalorder %s1412, %s1426
      %p1428 = scmp.eq.s32.totalorder %s243, 0
      %p1429 = por %p1427, %p1428
      %s1431 = sadd.s32 %s1430, 1
      %p1434 = scmp.eq.s32.totalorder %s237, 1
      %p1435 = scmp.ne.s32.totalorder %s1430, %s1432
      %p1436 = scmp.eq.s32.totalorder %s237, 0
      %p1437 = por %p1435, %p1436
      %p1438 = scmp.ne.s32.totalorder %s1430, %s1432
      %p1439 = scmp.eq.s32.totalorder %s242, 1
      %p1440 = por %p1438, %p1439
      %p1441 = scmp.ne.s32.totalorder %s1432, %s1433
      %p1442 = scmp.eq.s32.totalorder %s242, 0
      %p1443 = por %p1441, %p1442
      %p1444 = scmp.ne.s32.totalorder %s1432, %s1433
      %p1445 = scmp.eq.s32.totalorder %s243, 1
      %p1446 = por %p1444, %p1445
      %p1448 = scmp.ne.s32.totalorder %s1433, %s1447
      %p1449 = scmp.eq.s32.totalorder %s243, 0
      %p1450 = por %p1448, %p1449
      %s1452 = sadd.s32 %s1451, 1
      %p1455 = scmp.eq.s32.totalorder %s237, 1
      %p1456 = scmp.ne.s32.totalorder %s1451, %s1453
      %p1457 = scmp.eq.s32.totalorder %s237, 0
      %p1458 = por %p1456, %p1457
      %p1459 = scmp.ne.s32.totalorder %s1451, %s1453
      %p1460 = scmp.eq.s32.totalorder %s242, 1
      %p1461 = por %p1459, %p1460
      %p1462 = scmp.ne.s32.totalorder %s1453, %s1454
      %p1463 = scmp.eq.s32.totalorder %s242, 0
      %p1464 = por %p1462, %p1463
      %p1465 = scmp.ne.s32.totalorder %s1453, %s1454
      %p1466 = scmp.eq.s32.totalorder %s243, 1
      %p1467 = por %p1465, %p1466
      %p1469 = scmp.ne.s32.totalorder %s1454, %s1468
      %p1470 = scmp.eq.s32.totalorder %s243, 0
      %p1471 = por %p1469, %p1470
      %s1473 = sadd.s32 %s1472, 1
      %p1476 = scmp.eq.s32.totalorder %s237, 1
      %p1477 = scmp.ne.s32.totalorder %s1472, %s1474
      %p1478 = scmp.eq.s32.totalorder %s237, 0
      %p1479 = por %p1477, %p1478
      %p1480 = scmp.ne.s32.totalorder %s1472, %s1474
      %p1481 = scmp.eq.s32.totalorder %s242, 1
      %p1482 = por %p1480, %p1481
      %p1483 = scmp.ne.s32.totalorder %s1474, %s1475
      %p1484 = scmp.eq.s32.totalorder %s242, 0
      %p1485 = por %p1483, %p1484
      %p1486 = scmp.ne.s32.totalorder %s1474, %s1475
      %p1487 = scmp.eq.s32.totalorder %s243, 1
      %p1488 = por %p1486, %p1487
      %p1490 = scmp.ne.s32.totalorder %s1475, %s1489
      %p1491 = scmp.eq.s32.totalorder %s243, 0
      %p1492 = por %p1490, %p1491
      %s1494 = sadd.s32 %s1493, 1
      %p1497 = scmp.eq.s32.totalorder %s237, 1
      %p1498 = scmp.ne.s32.totalorder %s1493, %s1495
      %p1499 = scmp.eq.s32.totalorder %s237, 0
      %p1500 = por %p1498, %p1499
      %p1501 = scmp.ne.s32.totalorder %s1493, %s1495
      %p1502 = scmp.eq.s32.totalorder %s242, 1
      %p1503 = por %p1501, %p1502
      %p1504 = scmp.ne.s32.totalorder %s1495, %s1496
      %p1505 = scmp.eq.s32.totalorder %s242, 0
      %p1506 = por %p1504, %p1505
      %p1507 = scmp.ne.s32.totalorder %s1495, %s1496
      %p1508 = scmp.eq.s32.totalorder %s243, 1
      %p1509 = por %p1507, %p1508
      %p1511 = scmp.ne.s32.totalorder %s1496, %s1510
      %p1512 = scmp.eq.s32.totalorder %s243, 0
      %p1513 = por %p1511, %p1512
      %s1515 = sadd.s32 %s1514, 1
      %p1518 = scmp.eq.s32.totalorder %s237, 1
      %p1519 = scmp.ne.s32.totalorder %s1514, %s1516
      %p1520 = scmp.eq.s32.totalorder %s237, 0
      %p1521 = por %p1519, %p1520
      %p1522 = scmp.ne.s32.totalorder %s1514, %s1516
      %p1523 = scmp.eq.s32.totalorder %s242, 1
      %p1524 = por %p1522, %p1523
      %p1525 = scmp.ne.s32.totalorder %s1516, %s1517
      %p1526 = scmp.eq.s32.totalorder %s242, 0
      %p1527 = por %p1525, %p1526
      %p1528 = scmp.ne.s32.totalorder %s1516, %s1517
      %p1529 = scmp.eq.s32.totalorder %s243, 1
      %p1530 = por %p1528, %p1529
      %p1532 = scmp.ne.s32.totalorder %s1517, %s1531
      %p1533 = scmp.eq.s32.totalorder %s243, 0
      %p1534 = por %p1532, %p1533
      %s1536 = sadd.s32 %s1535, 1
      %p1539 = scmp.eq.s32.totalorder %s237, 1
      %p1540 = scmp.ne.s32.totalorder %s1535, %s1537
      %p1541 = scmp.eq.s32.totalorder %s237, 0
      %p1542 = por %p1540, %p1541
      %p1543 = scmp.ne.s32.totalorder %s1535, %s1537
      %p1544 = scmp.eq.s32.totalorder %s242, 1
      %p1545 = por %p1543, %p1544
      %p1546 = scmp.ne.s32.totalorder %s1537, %s1538
      %p1547 = scmp.eq.s32.totalorder %s242, 0
      %p1548 = por %p1546, %p1547
      %p1549 = scmp.ne.s32.totalorder %s1537, %s1538
      %p1550 = scmp.eq.s32.totalorder %s243, 1
      %p1551 = por %p1549, %p1550
      %p1553 = scmp.ne.s32.totalorder %s1538, %s1552
      %p1554 = scmp.eq.s32.totalorder %s243, 0
      %p1555 = por %p1553, %p1554
      %s1557 = sadd.s32 %s1556, 1
      %p1560 = scmp.eq.s32.totalorder %s237, 1
      %p1561 = scmp.ne.s32.totalorder %s1556, %s1558
      %p1562 = scmp.eq.s32.totalorder %s237, 0
      %p1563 = por %p1561, %p1562
      %p1564 = scmp.ne.s32.totalorder %s1556, %s1558
      %p1565 = scmp.eq.s32.totalorder %s242, 1
      %p1566 = por %p1564, %p1565
      %p1567 = scmp.ne.s32.totalorder %s1558, %s1559
      %p1568 = scmp.eq.s32.totalorder %s242, 0
      %p1569 = por %p1567, %p1568
      %p1570 = scmp.ne.s32.totalorder %s1558, %s1559
      %p1571 = scmp.eq.s32.totalorder %s243, 1
      %p1572 = por %p1570, %p1571
      %p1574 = scmp.ne.s32.totalorder %s1559, %s1573
      %p1575 = scmp.eq.s32.totalorder %s243, 0
      %p1576 = por %p1574, %p1575
      %s1578 = sadd.s32 %s1577, 1
      %p1581 = scmp.eq.s32.totalorder %s237, 1
      %p1582 = scmp.ne.s32.totalorder %s1577, %s1579
      %p1583 = scmp.eq.s32.totalorder %s237, 0
      %p1584 = por %p1582, %p1583
      %p1585 = scmp.ne.s32.totalorder %s1577, %s1579
      %p1586 = scmp.eq.s32.totalorder %s242, 1
      %p1587 = por %p1585, %p1586
      %p1588 = scmp.ne.s32.totalorder %s1579, %s1580
      %p1589 = scmp.eq.s32.totalorder %s242, 0
      %p1590 = por %p1588, %p1589
      %p1591 = scmp.ne.s32.totalorder %s1579, %s1580
      %p1592 = scmp.eq.s32.totalorder %s243, 1
      %p1593 = por %p1591, %p1592
      %p1595 = scmp.ne.s32.totalorder %s1580, %s1594
      %p1596 = scmp.eq.s32.totalorder %s243, 0
      %p1597 = por %p1595, %p1596
      %s1599 = sadd.s32 %s1598, 1
      %p1602 = scmp.eq.s32.totalorder %s237, 1
      %p1603 = scmp.ne.s32.totalorder %s1598, %s1600
      %p1604 = scmp.eq.s32.totalorder %s237, 0
      %p1605 = por %p1603, %p1604
      %p1606 = scmp.ne.s32.totalorder %s1598, %s1600
      %p1607 = scmp.eq.s32.totalorder %s242, 1
      %p1608 = por %p1606, %p1607
      %p1609 = scmp.ne.s32.totalorder %s1600, %s1601
      %p1610 = scmp.eq.s32.totalorder %s242, 0
      %p1611 = por %p1609, %p1610
      %p1612 = scmp.ne.s32.totalorder %s1600, %s1601
      %p1613 = scmp.eq.s32.totalorder %s243, 1
      %p1614 = por %p1612, %p1613
      %p1616 = scmp.ne.s32.totalorder %s1601, %s1615
      %p1617 = scmp.eq.s32.totalorder %s243, 0
      %p1618 = por %p1616, %p1617
      %s1620 = sadd.s32 %s1619, 1
      %p1623 = scmp.eq.s32.totalorder %s237, 1
      %p1624 = scmp.ne.s32.totalorder %s1619, %s1621
      %p1625 = scmp.eq.s32.totalorder %s237, 0
      %p1626 = por %p1624, %p1625
      %p1627 = scmp.ne.s32.totalorder %s1619, %s1621
      %p1628 = scmp.eq.s32.totalorder %s242, 1
      %p1629 = por %p1627, %p1628
      %p1630 = scmp.ne.s32.totalorder %s1621, %s1622
      %p1631 = scmp.eq.s32.totalorder %s242, 0
      %p1632 = por %p1630, %p1631
      %p1633 = scmp.ne.s32.totalorder %s1621, %s1622
      %p1634 = scmp.eq.s32.totalorder %s243, 1
      %p1635 = por %p1633, %p1634
      %p1637 = scmp.ne.s32.totalorder %s1622, %s1636
      %p1638 = scmp.eq.s32.totalorder %s243, 0
      %p1639 = por %p1637, %p1638
      %s1641 = sadd.s32 %s1640, 1
      %p1644 = scmp.eq.s32.totalorder %s237, 1
      %p1645 = scmp.ne.s32.totalorder %s1640, %s1642
      %p1646 = scmp.eq.s32.totalorder %s237, 0
      %p1647 = por %p1645, %p1646
      %p1648 = scmp.ne.s32.totalorder %s1640, %s1642
      %p1649 = scmp.eq.s32.totalorder %s242, 1
      %p1650 = por %p1648, %p1649
      %p1651 = scmp.ne.s32.totalorder %s1642, %s1643
      %p1652 = scmp.eq.s32.totalorder %s242, 0
      %p1653 = por %p1651, %p1652
      %p1654 = scmp.ne.s32.totalorder %s1642, %s1643
      %p1655 = scmp.eq.s32.totalorder %s243, 1
      %p1656 = por %p1654, %p1655
      %p1658 = scmp.ne.s32.totalorder %s1643, %s1657
      %p1659 = scmp.eq.s32.totalorder %s243, 0
      %p1660 = por %p1658, %p1659
      %s1662 = sadd.s32 %s1661, 1
      %p1665 = scmp.eq.s32.totalorder %s237, 1
      %p1666 = scmp.ne.s32.totalorder %s1661, %s1663
      %p1667 = scmp.eq.s32.totalorder %s237, 0
      %p1668 = por %p1666, %p1667
      %p1669 = scmp.ne.s32.totalorder %s1661, %s1663
      %p1670 = scmp.eq.s32.totalorder %s242, 1
      %p1671 = por %p1669, %p1670
      %p1672 = scmp.ne.s32.totalorder %s1663, %s1664
      %p1673 = scmp.eq.s32.totalorder %s242, 0
      %p1674 = por %p1672, %p1673
      %p1675 = scmp.ne.s32.totalorder %s1663, %s1664
      %p1676 = scmp.eq.s32.totalorder %s243, 1
      %p1677 = por %p1675, %p1676
      %p1679 = scmp.ne.s32.totalorder %s1664, %s1678
      %p1680 = scmp.eq.s32.totalorder %s243, 0
      %p1681 = por %p1679, %p1680
      %s1683 = sadd.s32 %s1682, 1
      %p1686 = scmp.eq.s32.totalorder %s237, 1
      %p1687 = scmp.ne.s32.totalorder %s1682, %s1684
      %p1688 = scmp.eq.s32.totalorder %s237, 0
      %p1689 = por %p1687, %p1688
      %p1690 = scmp.ne.s32.totalorder %s1682, %s1684
      %p1691 = scmp.eq.s32.totalorder %s242, 1
      %p1692 = por %p1690, %p1691
      %p1693 = scmp.ne.s32.totalorder %s1684, %s1685
      %p1694 = scmp.eq.s32.totalorder %s242, 0
      %p1695 = por %p1693, %p1694
      %p1696 = scmp.ne.s32.totalorder %s1684, %s1685
      %p1697 = scmp.eq.s32.totalorder %s243, 1
      %p1698 = por %p1696, %p1697
      %p1700 = scmp.ne.s32.totalorder %s1685, %s1699
      %p1701 = scmp.eq.s32.totalorder %s243, 0
      %p1702 = por %p1700, %p1701
      %s1704 = sadd.s32 %s1703, 1
      %p1707 = scmp.eq.s32.totalorder %s237, 1
      %p1708 = scmp.ne.s32.totalorder %s1703, %s1705
      %p1709 = scmp.eq.s32.totalorder %s237, 0
      %p1710 = por %p1708, %p1709
      %p1711 = scmp.ne.s32.totalorder %s1703, %s1705
      %p1712 = scmp.eq.s32.totalorder %s242, 1
      %p1713 = por %p1711, %p1712
      %p1714 = scmp.ne.s32.totalorder %s1705, %s1706
      %p1715 = scmp.eq.s32.totalorder %s242, 0
      %p1716 = por %p1714, %p1715
      %p1717 = scmp.ne.s32.totalorder %s1705, %s1706
      %p1718 = scmp.eq.s32.totalorder %s243, 1
      %p1719 = por %p1717, %p1718
      %p1721 = scmp.ne.s32.totalorder %s1706, %s1720
      %p1722 = scmp.eq.s32.totalorder %s243, 0
      %p1723 = por %p1721, %p1722
      %s1725 = sadd.s32 %s1724, 1
      %p1728 = scmp.eq.s32.totalorder %s237, 1
      %p1729 = scmp.ne.s32.totalorder %s1724, %s1726
      %p1730 = scmp.eq.s32.totalorder %s237, 0
      %p1731 = por %p1729, %p1730
      %p1732 = scmp.ne.s32.totalorder %s1724, %s1726
      %p1733 = scmp.eq.s32.totalorder %s242, 1
      %p1734 = por %p1732, %p1733
      %p1735 = scmp.ne.s32.totalorder %s1726, %s1727
      %p1736 = scmp.eq.s32.totalorder %s242, 0
      %p1737 = por %p1735, %p1736
      %p1738 = scmp.ne.s32.totalorder %s1726, %s1727
      %p1739 = scmp.eq.s32.totalorder %s243, 1
      %p1740 = por %p1738, %p1739
      %p1742 = scmp.ne.s32.totalorder %s1727, %s1741
      %p1743 = scmp.eq.s32.totalorder %s243, 0
      %p1744 = por %p1742, %p1743
      %s1746 = sadd.s32 %s1745, 1
      %p1749 = scmp.eq.s32.totalorder %s237, 1
      %p1750 = scmp.ne.s32.totalorder %s1745, %s1747
      %p1751 = scmp.eq.s32.totalorder %s237, 0
      %p1752 = por %p1750, %p1751
      %p1753 = scmp.ne.s32.totalorder %s1745, %s1747
      %p1754 = scmp.eq.s32.totalorder %s242, 1
      %p1755 = por %p1753, %p1754
      %p1756 = scmp.ne.s32.totalorder %s1747, %s1748
      %p1757 = scmp.eq.s32.totalorder %s242, 0
      %p1758 = por %p1756, %p1757
      %p1759 = scmp.ne.s32.totalorder %s1747, %s1748
      %p1760 = scmp.eq.s32.totalorder %s243, 1
      %p1761 = por %p1759, %p1760
      %p1763 = scmp.ne.s32.totalorder %s1748, %s1762
      %p1764 = scmp.eq.s32.totalorder %s243, 0
      %p1765 = por %p1763, %p1764
      %s1767 = sadd.s32 %s1766, 1
      %p1770 = scmp.eq.s32.totalorder %s237, 1
      %p1771 = scmp.ne.s32.totalorder %s1766, %s1768
      %p1772 = scmp.eq.s32.totalorder %s237, 0
      %p1773 = por %p1771, %p1772
      %p1774 = scmp.ne.s32.totalorder %s1766, %s1768
      %p1775 = scmp.eq.s32.totalorder %s242, 1
      %p1776 = por %p1774, %p1775
      %p1777 = scmp.ne.s32.totalorder %s1768, %s1769
      %p1778 = scmp.eq.s32.totalorder %s242, 0
      %p1779 = por %p1777, %p1778
      %p1780 = scmp.ne.s32.totalorder %s1768, %s1769
      %p1781 = scmp.eq.s32.totalorder %s243, 1
      %p1782 = por %p1780, %p1781
      %p1784 = scmp.ne.s32.totalorder %s1769, %s1783
      %p1785 = scmp.eq.s32.totalorder %s243, 0
      %p1786 = por %p1784, %p1785
      %s1788 = sadd.s32 %s1787, 1
      %p1791 = scmp.eq.s32.totalorder %s237, 1
      %p1792 = scmp.ne.s32.totalorder %s1787, %s1789
      %p1793 = scmp.eq.s32.totalorder %s237, 0
      %p1794 = por %p1792, %p1793
      %p1795 = scmp.ne.s32.totalorder %s1787, %s1789
      %p1796 = scmp.eq.s32.totalorder %s242, 1
      %p1797 = por %p1795, %p1796
      %p1798 = scmp.ne.s32.totalorder %s1789, %s1790
      %p1799 = scmp.eq.s32.totalorder %s242, 0
      %p1800 = por %p1798, %p1799
      %p1801 = scmp.ne.s32.totalorder %s1789, %s1790
      %p1802 = scmp.eq.s32.totalorder %s243, 1
      %p1803 = por %p1801, %p1802
      %p1805 = scmp.ne.s32.totalorder %s1790, %s1804
      %p1806 = scmp.eq.s32.totalorder %s243, 0
      %p1807 = por %p1805, %p1806
      %s1809 = sadd.s32 %s1808, 1
      %p1812 = scmp.eq.s32.totalorder %s237, 1
      %p1813 = scmp.ne.s32.totalorder %s1808, %s1810
      %p1814 = scmp.eq.s32.totalorder %s237, 0
      %p1815 = por %p1813, %p1814
      %p1816 = scmp.ne.s32.totalorder %s1808, %s1810
      %p1817 = scmp.eq.s32.totalorder %s242, 1
      %p1818 = por %p1816, %p1817
      %p1819 = scmp.ne.s32.totalorder %s1810, %s1811
      %p1820 = scmp.eq.s32.totalorder %s242, 0
      %p1821 = por %p1819, %p1820
      %p1822 = scmp.ne.s32.totalorder %s1810, %s1811
      %p1823 = scmp.eq.s32.totalorder %s243, 1
      %p1824 = por %p1822, %p1823
      %p1826 = scmp.ne.s32.totalorder %s1811, %s1825
      %p1827 = scmp.eq.s32.totalorder %s243, 0
      %p1828 = por %p1826, %p1827
      %s1830 = sadd.s32 %s1829, 1
      %p1833 = scmp.eq.s32.totalorder %s237, 1
      %p1834 = scmp.ne.s32.totalorder %s1829, %s1831
      %p1835 = scmp.eq.s32.totalorder %s237, 0
      %p1836 = por %p1834, %p1835
      %p1837 = scmp.ne.s32.totalorder %s1829, %s1831
      %p1838 = scmp.eq.s32.totalorder %s242, 1
      %p1839 = por %p1837, %p1838
      %p1840 = scmp.ne.s32.totalorder %s1831, %s1832
      %p1841 = scmp.eq.s32.totalorder %s242, 0
      %p1842 = por %p1840, %p1841
      %p1843 = scmp.ne.s32.totalorder %s1831, %s1832
      %p1844 = scmp.eq.s32.totalorder %s243, 1
      %p1845 = por %p1843, %p1844
      %p1847 = scmp.ne.s32.totalorder %s1832, %s1846
      %p1848 = scmp.eq.s32.totalorder %s243, 0
      %p1849 = por %p1847, %p1848
      %s1851 = sadd.s32 %s1850, 1
      %p1854 = scmp.eq.s32.totalorder %s237, 1
      %p1855 = scmp.ne.s32.totalorder %s1850, %s1852
      %p1856 = scmp.eq.s32.totalorder %s237, 0
      %p1857 = por %p1855, %p1856
      %p1858 = scmp.ne.s32.totalorder %s1850, %s1852
      %p1859 = scmp.eq.s32.totalorder %s242, 1
      %p1860 = por %p1858, %p1859
      %p1861 = scmp.ne.s32.totalorder %s1852, %s1853
      %p1862 = scmp.eq.s32.totalorder %s242, 0
      %p1863 = por %p1861, %p1862
      %p1864 = scmp.ne.s32.totalorder %s1852, %s1853
      %p1865 = scmp.eq.s32.totalorder %s243, 1
      %p1866 = por %p1864, %p1865
      %p1868 = scmp.ne.s32.totalorder %s1853, %s1867
      %p1869 = scmp.eq.s32.totalorder %s243, 0
      %p1870 = por %p1868, %p1869
      %s1872 = sadd.s32 %s1871, 1
      %p1875 = scmp.eq.s32.totalorder %s237, 1
      %p1876 = scmp.ne.s32.totalorder %s1871, %s1873
      %p1877 = scmp.eq.s32.totalorder %s237, 0
      %p1878 = por %p1876, %p1877
      %p1879 = scmp.ne.s32.totalorder %s1871, %s1873
      %p1880 = scmp.eq.s32.totalorder %s242, 1
      %p1881 = por %p1879, %p1880
      %p1882 = scmp.ne.s32.totalorder %s1873, %s1874
      %p1883 = scmp.eq.s32.totalorder %s242, 0
      %p1884 = por %p1882, %p1883
      %p1885 = scmp.ne.s32.totalorder %s1873, %s1874
      %p1886 = scmp.eq.s32.totalorder %s243, 1
      %p1887 = por %p1885, %p1886
      %p1889 = scmp.ne.s32.totalorder %s1874, %s1888
      %p1890 = scmp.eq.s32.totalorder %s243, 0
      %p1891 = por %p1889, %p1890
      %s1893 = sadd.s32 %s1892, 1
      %p1896 = scmp.eq.s32.totalorder %s237, 1
      %p1897 = scmp.ne.s32.totalorder %s1892, %s1894
      %p1898 = scmp.eq.s32.totalorder %s237, 0
      %p1899 = por %p1897, %p1898
      %p1900 = scmp.ne.s32.totalorder %s1892, %s1894
      %p1901 = scmp.eq.s32.totalorder %s242, 1
      %p1902 = por %p1900, %p1901
      %p1903 = scmp.ne.s32.totalorder %s1894, %s1895
      %p1904 = scmp.eq.s32.totalorder %s242, 0
      %p1905 = por %p1903, %p1904
      %p1906 = scmp.ne.s32.totalorder %s1894, %s1895
      %p1907 = scmp.eq.s32.totalorder %s243, 1
      %p1908 = por %p1906, %p1907
      %p1910 = scmp.ne.s32.totalorder %s1895, %s1909
      %p1911 = scmp.eq.s32.totalorder %s243, 0
      %p1912 = por %p1910, %p1911
      %s1914 = sadd.s32 %s1913, 1
      %p1917 = scmp.eq.s32.totalorder %s237, 1
      %p1918 = scmp.ne.s32.totalorder %s1913, %s1915
      %p1919 = scmp.eq.s32.totalorder %s237, 0
      %p1920 = por %p1918, %p1919
      %p1921 = scmp.ne.s32.totalorder %s1913, %s1915
      %p1922 = scmp.eq.s32.totalorder %s242, 1
      %p1923 = por %p1921, %p1922
      %p1924 = scmp.ne.s32.totalorder %s1915, %s1916
      %p1925 = scmp.eq.s32.totalorder %s242, 0
      %p1926 = por %p1924, %p1925
      %p1927 = scmp.ne.s32.totalorder %s1915, %s1916
      %p1928 = scmp.eq.s32.totalorder %s243, 1
      %p1929 = por %p1927, %p1928
      %p1931 = scmp.ne.s32.totalorder %s1916, %s1930
      %p1932 = scmp.eq.s32.totalorder %s243, 0
      %p1933 = por %p1931, %p1932
      %s1935 = sadd.s32 %s1934, 1
      %p1938 = scmp.eq.s32.totalorder %s237, 1
      %p1939 = scmp.ne.s32.totalorder %s1934, %s1936
      %p1940 = scmp.eq.s32.totalorder %s237, 0
      %p1941 = por %p1939, %p1940
      %p1942 = scmp.ne.s32.totalorder %s1934, %s1936
      %p1943 = scmp.eq.s32.totalorder %s242, 1
      %p1944 = por %p1942, %p1943
      %p1945 = scmp.ne.s32.totalorder %s1936, %s1937
      %p1946 = scmp.eq.s32.totalorder %s242, 0
      %p1947 = por %p1945, %p1946
      %p1948 = scmp.ne.s32.totalorder %s1936, %s1937
      %p1949 = scmp.eq.s32.totalorder %s243, 1
      %p1950 = por %p1948, %p1949
      %p1952 = scmp.ne.s32.totalorder %s1937, %s1951
      %p1953 = scmp.eq.s32.totalorder %s243, 0
      %p1954 = por %p1952, %p1953
      %s1956 = sadd.s32 %s1955, 1
      %p1959 = scmp.eq.s32.totalorder %s237, 1
      %p1960 = scmp.ne.s32.totalorder %s1955, %s1957
      %p1961 = scmp.eq.s32.totalorder %s237, 0
      %p1962 = por %p1960, %p1961
      %p1963 = scmp.ne.s32.totalorder %s1955, %s1957
      %p1964 = scmp.eq.s32.totalorder %s242, 1
      %p1965 = por %p1963, %p1964
      %p1966 = scmp.ne.s32.totalorder %s1957, %s1958
      %p1967 = scmp.eq.s32.totalorder %s242, 0
      %p1968 = por %p1966, %p1967
      %p1969 = scmp.ne.s32.totalorder %s1957, %s1958
      %p1970 = scmp.eq.s32.totalorder %s243, 1
      %p1971 = por %p1969, %p1970
      %p1973 = scmp.ne.s32.totalorder %s1958, %s1972
      %p1974 = scmp.eq.s32.totalorder %s243, 0
      %p1975 = por %p1973, %p1974
      %s1977 = sadd.s32 %s1976, 1
      %p1980 = scmp.eq.s32.totalorder %s237, 1
      %p1981 = scmp.ne.s32.totalorder %s1976, %s1978
      %p1982 = scmp.eq.s32.totalorder %s237, 0
      %p1983 = por %p1981, %p1982
      %p1984 = scmp.ne.s32.totalorder %s1976, %s1978
      %p1985 = scmp.eq.s32.totalorder %s242, 1
      %p1986 = por %p1984, %p1985
      %p1987 = scmp.ne.s32.totalorder %s1978, %s1979
      %p1988 = scmp.eq.s32.totalorder %s242, 0
      %p1989 = por %p1987, %p1988
      %p1990 = scmp.ne.s32.totalorder %s1978, %s1979
      %p1991 = scmp.eq.s32.totalorder %s243, 1
      %p1992 = por %p1990, %p1991
      %p1994 = scmp.ne.s32.totalorder %s1979, %s1993
      %p1995 = scmp.eq.s32.totalorder %s243, 0
      %p1996 = por %p1994, %p1995
      %s1998 = sadd.s32 %s1997, 1
      %p2001 = scmp.eq.s32.totalorder %s237, 1
      %p2002 = scmp.ne.s32.totalorder %s1997, %s1999
      %p2003 = scmp.eq.s32.totalorder %s237, 0
      %p2004 = por %p2002, %p2003
      %p2005 = scmp.ne.s32.totalorder %s1997, %s1999
      %p2006 = scmp.eq.s32.totalorder %s242, 1
      %p2007 = por %p2005, %p2006
      %p2008 = scmp.ne.s32.totalorder %s1999, %s2000
      %p2009 = scmp.eq.s32.totalorder %s242, 0
      %p2010 = por %p2008, %p2009
      %p2011 = scmp.ne.s32.totalorder %s1999, %s2000
      %p2012 = scmp.eq.s32.totalorder %s243, 1
      %p2013 = por %p2011, %p2012
      %p2015 = scmp.ne.s32.totalorder %s2000, %s2014
      %p2016 = scmp.eq.s32.totalorder %s243, 0
      %p2017 = por %p2015, %p2016
      %s2019 = sadd.s32 %s2018, 1
      %p2022 = scmp.eq.s32.totalorder %s237, 1
      %p2023 = scmp.ne.s32.totalorder %s2018, %s2020
      %p2024 = scmp.eq.s32.totalorder %s237, 0
      %p2025 = por %p2023, %p2024
      %p2026 = scmp.ne.s32.totalorder %s2018, %s2020
      %p2027 = scmp.eq.s32.totalorder %s242, 1
      %p2028 = por %p2026, %p2027
      %p2029 = scmp.ne.s32.totalorder %s2020, %s2021
      %p2030 = scmp.eq.s32.totalorder %s242, 0
      %p2031 = por %p2029, %p2030
      %p2032 = scmp.ne.s32.totalorder %s2020, %s2021
      %p2033 = scmp.eq.s32.totalorder %s243, 1
      %p2034 = por %p2032, %p2033
      %p2036 = scmp.ne.s32.totalorder %s2021, %s2035
      %p2037 = scmp.eq.s32.totalorder %s243, 0
      %p2038 = por %p2036, %p2037
      %s2040 = sadd.s32 %s2039, 1
      %p2043 = scmp.eq.s32.totalorder %s237, 1
      %p2044 = scmp.ne.s32.totalorder %s2039, %s2041
      %p2045 = scmp.eq.s32.totalorder %s237, 0
      %p2046 = por %p2044, %p2045
      %p2047 = scmp.ne.s32.totalorder %s2039, %s2041
      %p2048 = scmp.eq.s32.totalorder %s242, 1
      %p2049 = por %p2047, %p2048
      %p2050 = scmp.ne.s32.totalorder %s2041, %s2042
      %p2051 = scmp.eq.s32.totalorder %s242, 0
      %p2052 = por %p2050, %p2051
      %p2053 = scmp.ne.s32.totalorder %s2041, %s2042
      %p2054 = scmp.eq.s32.totalorder %s243, 1
      %p2055 = por %p2053, %p2054
      %p2057 = scmp.ne.s32.totalorder %s2042, %s2056
      %p2058 = scmp.eq.s32.totalorder %s243, 0
      %p2059 = por %p2057, %p2058
      %s2061 = sadd.s32 %s2060, 1
      %p2064 = scmp.eq.s32.totalorder %s237, 1
      %p2065 = scmp.ne.s32.totalorder %s2060, %s2062
      %p2066 = scmp.eq.s32.totalorder %s237, 0
      %p2067 = por %p2065, %p2066
      %p2068 = scmp.ne.s32.totalorder %s2060, %s2062
      %p2069 = scmp.eq.s32.totalorder %s242, 1
      %p2070 = por %p2068, %p2069
      %p2071 = scmp.ne.s32.totalorder %s2062, %s2063
      %p2072 = scmp.eq.s32.totalorder %s242, 0
      %p2073 = por %p2071, %p2072
      %p2074 = scmp.ne.s32.totalorder %s2062, %s2063
      %p2075 = scmp.eq.s32.totalorder %s243, 1
      %p2076 = por %p2074, %p2075
      %p2078 = scmp.ne.s32.totalorder %s2063, %s2077
      %p2079 = scmp.eq.s32.totalorder %s243, 0
      %p2080 = por %p2078, %p2079
      %s2082 = sadd.s32 %s2081, 1
      %p2085 = scmp.eq.s32.totalorder %s237, 1
      %p2086 = scmp.ne.s32.totalorder %s2081, %s2083
      %p2087 = scmp.eq.s32.totalorder %s237, 0
      %p2088 = por %p2086, %p2087
      %p2089 = scmp.ne.s32.totalorder %s2081, %s2083
      %p2090 = scmp.eq.s32.totalorder %s242, 1
      %p2091 = por %p2089, %p2090
      %p2092 = scmp.ne.s32.totalorder %s2083, %s2084
      %p2093 = scmp.eq.s32.totalorder %s242, 0
      %p2094 = por %p2092, %p2093
      %p2095 = scmp.ne.s32.totalorder %s2083, %s2084
      %p2096 = scmp.eq.s32.totalorder %s243, 1
      %p2097 = por %p2095, %p2096
      %p2099 = scmp.ne.s32.totalorder %s2084, %s2098
      %p2100 = scmp.eq.s32.totalorder %s243, 0
      %p2101 = por %p2099, %p2100
      %s2103 = sadd.s32 %s2102, 1
      %p2106 = scmp.eq.s32.totalorder %s237, 1
      %p2107 = scmp.ne.s32.totalorder %s2102, %s2104
      %p2108 = scmp.eq.s32.totalorder %s237, 0
      %p2109 = por %p2107, %p2108
      %p2110 = scmp.ne.s32.totalorder %s2102, %s2104
      %p2111 = scmp.eq.s32.totalorder %s242, 1
      %p2112 = por %p2110, %p2111
      %p2113 = scmp.ne.s32.totalorder %s2104, %s2105
      %p2114 = scmp.eq.s32.totalorder %s242, 0
      %p2115 = por %p2113, %p2114
      %p2116 = scmp.ne.s32.totalorder %s2104, %s2105
      %p2117 = scmp.eq.s32.totalorder %s243, 1
      %p2118 = por %p2116, %p2117
      %p2120 = scmp.ne.s32.totalorder %s2105, %s2119
      %p2121 = scmp.eq.s32.totalorder %s243, 0
      %p2122 = por %p2120, %p2121
      %s2124 = sadd.s32 %s2123, 1
      %p2127 = scmp.eq.s32.totalorder %s237, 1
      %p2128 = scmp.ne.s32.totalorder %s2123, %s2125
      %p2129 = scmp.eq.s32.totalorder %s237, 0
      %p2130 = por %p2128, %p2129
      %p2131 = scmp.ne.s32.totalorder %s2123, %s2125
      %p2132 = scmp.eq.s32.totalorder %s242, 1
      %p2133 = por %p2131, %p2132
      %p2134 = scmp.ne.s32.totalorder %s2125, %s2126
      %p2135 = scmp.eq.s32.totalorder %s242, 0
      %p2136 = por %p2134, %p2135
      %p2137 = scmp.ne.s32.totalorder %s2125, %s2126
      %p2138 = scmp.eq.s32.totalorder %s243, 1
      %p2139 = por %p2137, %p2138
      %p2141 = scmp.ne.s32.totalorder %s2126, %s2140
      %p2142 = scmp.eq.s32.totalorder %s243, 0
      %p2143 = por %p2141, %p2142
      %s2145 = sadd.s32 %s2144, 1
      %p2148 = scmp.eq.s32.totalorder %s237, 1
      %p2149 = scmp.ne.s32.totalorder %s2144, %s2146
      %p2150 = scmp.eq.s32.totalorder %s237, 0
      %p2151 = por %p2149, %p2150
      %p2152 = scmp.ne.s32.totalorder %s2144, %s2146
      %p2153 = scmp.eq.s32.totalorder %s242, 1
      %p2154 = por %p2152, %p2153
      %p2155 = scmp.ne.s32.totalorder %s2146, %s2147
      %p2156 = scmp.eq.s32.totalorder %s242, 0
      %p2157 = por %p2155, %p2156
      %p2158 = scmp.ne.s32.totalorder %s2146, %s2147
      %p2159 = scmp.eq.s32.totalorder %s243, 1
      %p2160 = por %p2158, %p2159
      %p2162 = scmp.ne.s32.totalorder %s2147, %s2161
      %p2163 = scmp.eq.s32.totalorder %s243, 0
      %p2164 = por %p2162, %p2163
      %s2166 = sadd.s32 %s2165, 1
      %p2169 = scmp.eq.s32.totalorder %s237, 1
      %p2170 = scmp.ne.s32.totalorder %s2165, %s2167
      %p2171 = scmp.eq.s32.totalorder %s237, 0
      %p2172 = por %p2170, %p2171
      %p2173 = scmp.ne.s32.totalorder %s2165, %s2167
      %p2174 = scmp.eq.s32.totalorder %s242, 1
      %p2175 = por %p2173, %p2174
      %p2176 = scmp.ne.s32.totalorder %s2167, %s2168
      %p2177 = scmp.eq.s32.totalorder %s242, 0
      %p2178 = por %p2176, %p2177
      %p2179 = scmp.ne.s32.totalorder %s2167, %s2168
      %p2180 = scmp.eq.s32.totalorder %s243, 1
      %p2181 = por %p2179, %p2180
      %p2183 = scmp.ne.s32.totalorder %s2168, %s2182
      %p2184 = scmp.eq.s32.totalorder %s243, 0
      %p2185 = por %p2183, %p2184
      %s2187 = sadd.s32 %s2186, 1
      %p2190 = scmp.eq.s32.totalorder %s237, 1
      %p2191 = scmp.ne.s32.totalorder %s2186, %s2188
      %p2192 = scmp.eq.s32.totalorder %s237, 0
      %p2193 = por %p2191, %p2192
      %p2194 = scmp.ne.s32.totalorder %s2186, %s2188
      %p2195 = scmp.eq.s32.totalorder %s242, 1
      %p2196 = por %p2194, %p2195
      %p2197 = scmp.ne.s32.totalorder %s2188, %s2189
      %p2198 = scmp.eq.s32.totalorder %s242, 0
      %p2199 = por %p2197, %p2198
      %p2200 = scmp.ne.s32.totalorder %s2188, %s2189
      %p2201 = scmp.eq.s32.totalorder %s243, 1
      %p2202 = por %p2200, %p2201
      %p2204 = scmp.ne.s32.totalorder %s2189, %s2203
      %p2205 = scmp.eq.s32.totalorder %s243, 0
      %p2206 = por %p2204, %p2205
      %s2208 = sadd.s32 %s2207, 1
      %p2211 = scmp.eq.s32.totalorder %s237, 1
      %p2212 = scmp.ne.s32.totalorder %s2207, %s2209
      %p2213 = scmp.eq.s32.totalorder %s237, 0
      %p2214 = por %p2212, %p2213
      %p2215 = scmp.ne.s32.totalorder %s2207, %s2209
      %p2216 = scmp.eq.s32.totalorder %s242, 1
      %p2217 = por %p2215, %p2216
      %p2218 = scmp.ne.s32.totalorder %s2209, %s2210
      %p2219 = scmp.eq.s32.totalorder %s242, 0
      %p2220 = por %p2218, %p2219
      %p2221 = scmp.ne.s32.totalorder %s2209, %s2210
      %p2222 = scmp.eq.s32.totalorder %s243, 1
      %p2223 = por %p2221, %p2222
      %p2225 = scmp.ne.s32.totalorder %s2210, %s2224
      %p2226 = scmp.eq.s32.totalorder %s243, 0
      %p2227 = por %p2225, %p2226
      %s2229 = sadd.s32 %s2228, 1
      %p2232 = scmp.eq.s32.totalorder %s237, 1
      %p2233 = scmp.ne.s32.totalorder %s2228, %s2230
      %p2234 = scmp.eq.s32.totalorder %s237, 0
      %p2235 = por %p2233, %p2234
      %p2236 = scmp.ne.s32.totalorder %s2228, %s2230
      %p2237 = scmp.eq.s32.totalorder %s242, 1
      %p2238 = por %p2236, %p2237
      %p2239 = scmp.ne.s32.totalorder %s2230, %s2231
      %p2240 = scmp.eq.s32.totalorder %s242, 0
      %p2241 = por %p2239, %p2240
      %p2242 = scmp.ne.s32.totalorder %s2230, %s2231
      %p2243 = scmp.eq.s32.totalorder %s243, 1
      %p2244 = por %p2242, %p2243
      %p2246 = scmp.ne.s32.totalorder %s2231, %s2245
      %p2247 = scmp.eq.s32.totalorder %s243, 0
      %p2248 = por %p2246, %p2247
      %s2249 = ssub.s32 %s237, %s244
      %p2250 = scmp.eq.s32.totalorder %s2249, 0
      %s2252 = sadd.s32 %s2251, 1
      %s2253 = scalar_select %p2250, %s2251, %s2252
      %p2256 = pneg %p2250
      %p2257 = scmp.eq.s32.totalorder %s237, 1
      %p2258 = por %p2256, %p2257
      %p2259 = scmp.ne.s32.totalorder %s2251, %s2254
      %p2260 = scmp.eq.s32.totalorder %s237, 0
      %p2261 = por %p2259, %p2260
      %p2262 = scmp.ne.s32.totalorder %s2251, %s2254
      %p2263 = scmp.eq.s32.totalorder %s242, 1
      %p2264 = por %p2262, %p2263
      %p2265 = scmp.ne.s32.totalorder %s2254, %s2255
      %p2266 = scmp.eq.s32.totalorder %s242, 0
      %p2267 = por %p2265, %p2266
      %p2268 = scmp.ne.s32.totalorder %s2254, %s2255
      %p2269 = scmp.eq.s32.totalorder %s243, 1
      %p2270 = por %p2268, %p2269
      %p2272 = scmp.ne.s32.totalorder %s2255, %s2271
      %p2273 = scmp.eq.s32.totalorder %s243, 0
      %p2274 = por %p2272, %p2273
      %s2275 = ssub.s32 %s237, %s244
      %p2276 = scmp.eq.s32.totalorder %s2275, 0
      %s2278 = sadd.s32 %s2277, 1
      %s2279 = scalar_select %p2276, %s2277, %s2278
      %p2282 = pneg %p2276
      %p2283 = scmp.eq.s32.totalorder %s237, 1
      %p2284 = por %p2282, %p2283
      %p2285 = scmp.ne.s32.totalorder %s2277, %s2280
      %p2286 = scmp.eq.s32.totalorder %s237, 0
      %p2287 = por %p2285, %p2286
      %p2288 = scmp.ne.s32.totalorder %s2277, %s2280
      %p2289 = scmp.eq.s32.totalorder %s242, 1
      %p2290 = por %p2288, %p2289
      %p2291 = scmp.ne.s32.totalorder %s2280, %s2281
      %p2292 = scmp.eq.s32.totalorder %s242, 0
      %p2293 = por %p2291, %p2292
      %p2294 = scmp.ne.s32.totalorder %s2280, %s2281
      %p2295 = scmp.eq.s32.totalorder %s243, 1
      %p2296 = por %p2294, %p2295
      %p2298 = scmp.ne.s32.totalorder %s2281, %s2297
      %p2299 = scmp.eq.s32.totalorder %s243, 0
      %p2300 = por %p2298, %p2299
      %p2301 = scmp.le.s32.totalorder 1, %s237
      %p2302 = scmp.lt.s32.totalorder %s237, 3
      %p2303 = pnand %p2301, %p2302
      %p2304 = pneg %p2303
      // Predicated region
      $region9: #{tpu_custom_call.1} parent=5 // pred_check
        _
      $region10: #{tpu_custom_call.1} parent=5 // pred_check_branch
        %2306 = sbr.rel (%p2303) target = $region12
      $region11: #{tpu_custom_call.1} parent=5 // pred_region
        %s2307 = ssub.s32 %s237, 1
        // Predicated region
        $region13: #{tpu_custom_call.1} parent=11 // pred_check
          %p2308 = pneg %p414
        $region14: #{tpu_custom_call.1} parent=11 // pred_check_branch
          %2310 = sbr.rel (%p2308) target = $region16
        $region15: #{tpu_custom_call.1} parent=11 // pred_region
          _
        $region16: #{tpu_custom_call.1} parent=11 // pred_fallthru
          _
        // Predicated region
        $region17: #{tpu_custom_call.1} parent=11 // pred_check
          %p2311 = pneg %p435
        $region18: #{tpu_custom_call.1} parent=11 // pred_check_branch
          %2313 = sbr.rel (%p2311) target = $region20
        $region19: #{tpu_custom_call.1} parent=11 // pred_region
          _
        $region20: #{tpu_custom_call.1} parent=11 // pred_fallthru
          _
        // Predicated region
        $region21: #{tpu_custom_call.1} parent=11 // pred_check
          %p2314 = pneg %p456
        $region22: #{tpu_custom_call.1} parent=11 // pred_check_branch
          %2316 = sbr.rel (%p2314) target = $region24
        $region23: #{tpu_custom_call.1} parent=11 // pred_region
          %2318 = vsyncadd [#allocation3], 0
          %s2320 = sshll.u32 %s17, 4
          %s2321 = int_to_ptr.hbm [resolvable:$true] %s2320
          %s2322 = sshll.u32 [#allocation2], 4
          %s2323 = int_to_ptr.vmem [resolvable:$true] %s2322
          %2325 = dma.hbm_to_vmem [thread:$0]  %s2321, 128, %s2323, [#allocation3]
        $region24: #{tpu_custom_call.1} parent=11 // pred_fallthru
          _
        // Predicated region
        $region25: #{tpu_custom_call.1} parent=11 // pred_check
          %p2326 = pneg %p477
        $region26: #{tpu_custom_call.1} parent=11 // pred_check_branch
          %2328 = sbr.rel (%p2326) target = $region28
        $region27: #{tpu_custom_call.1} parent=11 // pred_region
          %2330 = vsyncadd [#allocation6], 0
          %s2332 = sshll.u32 %s19, 4
          %s2333 = int_to_ptr.hbm [resolvable:$true] %s2332
          %s2334 = sshll.u32 [#allocation5], 4
          %s2335 = int_to_ptr.vmem [resolvable:$true] %s2334
          %2337 = dma.hbm_to_vmem [thread:$0]  %s2333, 16, %s2335, [#allocation6]
        $region28: #{tpu_custom_call.1} parent=11 // pred_fallthru
          _
        // Predicated region
        $region29: #{tpu_custom_call.1} parent=11 // pred_check
          %p2338 = pneg %p498
        $region30: #{tpu_custom_call.1} parent=11 // pred_check_branch
          %2340 = sbr.rel (%p2338) target = $region32
        $region31: #{tpu_custom_call.1} parent=11 // pred_region
          %2342 = vsyncadd [#allocation6], 0
          %s2344 = sshll.u32 %s21, 4
          %s2345 = int_to_ptr.hbm [resolvable:$true] %s2344
          %s2346 = sshll.u32 [#allocation7], 4
          %s2347 = int_to_ptr.vmem [resolvable:$true] %s2346
          %2349 = dma.hbm_to_vmem [thread:$0]  %s2345, 64, %s2347, [#allocation6]
        $region32: #{tpu_custom_call.1} parent=11 // pred_fallthru
          _
        // Predicated region
        $region33: #{tpu_custom_call.1} parent=11 // pred_check
          %p2350 = pneg %p519
        $region34: #{tpu_custom_call.1} parent=11 // pred_check_branch
          %2352 = sbr.rel (%p2350) target = $region36
        $region35: #{tpu_custom_call.1} parent=11 // pred_region
          %2354 = vsyncadd [#allocation9], 0
          %s2356 = sshll.u32 %s23, 4
          %s2357 = int_to_ptr.hbm [resolvable:$true] %s2356
          %s2358 = sshll.u32 [#allocation8], 4
          %s2359 = int_to_ptr.vmem [resolvable:$true] %s2358
          %2361 = dma.hbm_to_vmem [thread:$0]  %s2357, 16, %s2359, [#allocation9]
        $region36: #{tpu_custom_call.1} parent=11 // pred_fallthru
          _
        // Predicated region
        $region37: #{tpu_custom_call.1} parent=11 // pred_check
          %p2362 = pneg %p540
        $region38: #{tpu_custom_call.1} parent=11 // pred_check_branch
          %2364 = sbr.rel (%p2362) target = $region40
        $region39: #{tpu_custom_call.1} parent=11 // pred_region
          _
        $region40: #{tpu_custom_call.1} parent=11 // pred_fallthru
          _
        // Predicated region
        $region41: #{tpu_custom_call.1} parent=11 // pred_check
          %p2365 = pneg %p561
        $region42: #{tpu_custom_call.1} parent=11 // pred_check_branch
          %2367 = sbr.rel (%p2365) target = $region44
        $region43: #{tpu_custom_call.1} parent=11 // pred_region
          %2369 = vsyncadd [#allocation9], 0
          %s2371 = sshll.u32 %s27, 4
          %s2372 = int_to_ptr.hbm [resolvable:$true] %s2371
          %s2373 = sshll.u32 [#allocation10], 4
          %s2374 = int_to_ptr.vmem [resolvable:$true] %s2373
          %2376 = dma.hbm_to_vmem [thread:$0]  %s2372, 16, %s2374, [#allocation9]
        $region44: #{tpu_custom_call.1} parent=11 // pred_fallthru
          _
        // Predicated region
        $region45: #{tpu_custom_call.1} parent=11 // pred_check
          %p2377 = pneg %p582
        $region46: #{tpu_custom_call.1} parent=11 // pred_check_branch
          %2379 = sbr.rel (%p2377) target = $region48
        $region47: #{tpu_custom_call.1} parent=11 // pred_region
          _
        $region48: #{tpu_custom_call.1} parent=11 // pred_fallthru
          _
        // Predicated region
        $region49: #{tpu_custom_call.1} parent=11 // pred_check
          %p2380 = pneg %p603
        $region50: #{tpu_custom_call.1} parent=11 // pred_check_branch
          %2382 = sbr.rel (%p2380) target = $region52
        $region51: #{tpu_custom_call.1} parent=11 // pred_region
          %2384 = vsyncadd [#allocation12], 0
          %s2386 = sshll.u32 %s31, 4
          %s2387 = int_to_ptr.hbm [resolvable:$true] %s2386
          %s2388 = sshll.u32 [#allocation11], 4
          %s2389 = int_to_ptr.vmem [resolvable:$true] %s2388
          %2391 = dma.hbm_to_vmem [thread:$0]  %s2387, 16, %s2389, [#allocation12]
        $region52: #{tpu_custom_call.1} parent=11 // pred_fallthru
          _
        // Predicated region
        $region53: #{tpu_custom_call.1} parent=11 // pred_check
          %p2392 = pneg %p624
        $region54: #{tpu_custom_call.1} parent=11 // pred_check_branch
          %2394 = sbr.rel (%p2392) target = $region56
        $region55: #{tpu_custom_call.1} parent=11 // pred_region
          %2396 = vsyncadd [#allocation12], 0
          %s2398 = sshll.u32 %s33, 4
          %s2399 = int_to_ptr.hbm [resolvable:$true] %s2398
          %s2400 = sshll.u32 [#allocation13], 4
          %s2401 = int_to_ptr.vmem [resolvable:$true] %s2400
          %2403 = dma.hbm_to_vmem [thread:$0]  %s2399, 32, %s2401, [#allocation12]
        $region56: #{tpu_custom_call.1} parent=11 // pred_fallthru
          _
        // Predicated region
        $region57: #{tpu_custom_call.1} parent=11 // pred_check
          %p2404 = pneg %p645
        $region58: #{tpu_custom_call.1} parent=11 // pred_check_branch
          %2406 = sbr.rel (%p2404) target = $region60
        $region59: #{tpu_custom_call.1} parent=11 // pred_region
          _
        $region60: #{tpu_custom_call.1} parent=11 // pred_fallthru
          _
        // Predicated region
        $region61: #{tpu_custom_call.1} parent=11 // pred_check
          %p2407 = pneg %p666
        $region62: #{tpu_custom_call.1} parent=11 // pred_check_branch
          %2409 = sbr.rel (%p2407) target = $region64
        $region63: #{tpu_custom_call.1} parent=11 // pred_region
          _
        $region64: #{tpu_custom_call.1} parent=11 // pred_fallthru
          _
        // Predicated region
        $region65: #{tpu_custom_call.1} parent=11 // pred_check
          %p2410 = pneg %p687
        $region66: #{tpu_custom_call.1} parent=11 // pred_check_branch
          %2412 = sbr.rel (%p2410) target = $region68
        $region67: #{tpu_custom_call.1} parent=11 // pred_region
          %2414 = vsyncadd [#allocation15], 0
          %s2416 = sshll.u32 %s39, 4
          %s2417 = int_to_ptr.hbm [resolvable:$true] %s2416
          %s2418 = sshll.u32 [#allocation14], 4
          %s2419 = int_to_ptr.vmem [resolvable:$true] %s2418
          %2421 = dma.hbm_to_vmem [thread:$0]  %s2417, 16, %s2419, [#allocation15]
        $region68: #{tpu_custom_call.1} parent=11 // pred_fallthru
          _
        // Predicated region
        $region69: #{tpu_custom_call.1} parent=11 // pred_check
          %p2422 = pneg %p708
        $region70: #{tpu_custom_call.1} parent=11 // pred_check_branch
          %2424 = sbr.rel (%p2422) target = $region72
        $region71: #{tpu_custom_call.1} parent=11 // pred_region
          _
        $region72: #{tpu_custom_call.1} parent=11 // pred_fallthru
          _
        // Predicated region
        $region73: #{tpu_custom_call.1} parent=11 // pred_check
          %p2425 = pneg %p729
        $region74: #{tpu_custom_call.1} parent=11 // pred_check_branch
          %2427 = sbr.rel (%p2425) target = $region76
        $region75: #{tpu_custom_call.1} parent=11 // pred_region
          _
        $region76: #{tpu_custom_call.1} parent=11 // pred_fallthru
          _
        // Predicated region
        $region77: #{tpu_custom_call.1} parent=11 // pred_check
          %p2428 = pneg %p750
        $region78: #{tpu_custom_call.1} parent=11 // pred_check_branch
          %2430 = sbr.rel (%p2428) target = $region80
        $region79: #{tpu_custom_call.1} parent=11 // pred_region
          %2432 = vsyncadd [#allocation15], 0
          %s2434 = sshll.u32 %s45, 4
          %s2435 = int_to_ptr.hbm [resolvable:$true] %s2434
          %s2436 = sshll.u32 [#allocation16], 4
          %s2437 = int_to_ptr.vmem [resolvable:$true] %s2436
          %2439 = dma.hbm_to_vmem [thread:$0]  %s2435, 64, %s2437, [#allocation15]
        $region80: #{tpu_custom_call.1} parent=11 // pred_fallthru
          _
        // Predicated region
        $region81: #{tpu_custom_call.1} parent=11 // pred_check
          %p2440 = pneg %p771
        $region82: #{tpu_custom_call.1} parent=11 // pred_check_branch
          %2442 = sbr.rel (%p2440) target = $region84
        $region83: #{tpu_custom_call.1} parent=11 // pred_region
          %2444 = vsyncadd [#allocation18], 0
          %s2446 = sshll.u32 %s47, 4
          %s2447 = int_to_ptr.hbm [resolvable:$true] %s2446
          %s2448 = sshll.u32 [#allocation17], 4
          %s2449 = int_to_ptr.vmem [resolvable:$true] %s2448
          %2451 = dma.hbm_to_vmem [thread:$0]  %s2447, 64, %s2449, [#allocation18]
        $region84: #{tpu_custom_call.1} parent=11 // pred_fallthru
          _
        // Predicated region
        $region85: #{tpu_custom_call.1} parent=11 // pred_check
          %p2452 = pneg %p792
        $region86: #{tpu_custom_call.1} parent=11 // pred_check_branch
          %2454 = sbr.rel (%p2452) target = $region88
        $region87: #{tpu_custom_call.1} parent=11 // pred_region
          %2456 = vsyncadd [#allocation18], 0
          %s2458 = sshll.u32 %s49, 4
          %s2459 = int_to_ptr.hbm [resolvable:$true] %s2458
          %s2460 = sshll.u32 [#allocation19], 4
          %s2461 = int_to_ptr.vmem [resolvable:$true] %s2460
          %2463 = dma.hbm_to_vmem [thread:$0]  %s2459, 16, %s2461, [#allocation18]
        $region88: #{tpu_custom_call.1} parent=11 // pred_fallthru
          _
        // Predicated region
        $region89: #{tpu_custom_call.1} parent=11 // pred_check
          %p2464 = pneg %p813
        $region90: #{tpu_custom_call.1} parent=11 // pred_check_branch
          %2466 = sbr.rel (%p2464) target = $region92
        $region91: #{tpu_custom_call.1} parent=11 // pred_region
          _
        $region92: #{tpu_custom_call.1} parent=11 // pred_fallthru
          _
        // Predicated region
        $region93: #{tpu_custom_call.1} parent=11 // pred_check
          %p2467 = pneg %p834
        $region94: #{tpu_custom_call.1} parent=11 // pred_check_branch
          %2469 = sbr.rel (%p2467) target = $region96
        $region95: #{tpu_custom_call.1} parent=11 // pred_region
          _
        $region96: #{tpu_custom_call.1} parent=11 // pred_fallthru
          _
        // Predicated region
        $region97: #{tpu_custom_call.1} parent=11 // pred_check
          %p2470 = pneg %p855
        $region98: #{tpu_custom_call.1} parent=11 // pred_check_branch
          %2472 = sbr.rel (%p2470) target = $region100
        $region99: #{tpu_custom_call.1} parent=11 // pred_region
          %2474 = vsyncadd [#allocation21], 0
          %s2476 = sshll.u32 %s55, 4
          %s2477 = int_to_ptr.hbm [resolvable:$true] %s2476
          %s2478 = sshll.u32 [#allocation20], 4
          %s2479 = int_to_ptr.vmem [resolvable:$true] %s2478
          %2481 = dma.hbm_to_vmem [thread:$0]  %s2477, 16, %s2479, [#allocation21]
        $region100: #{tpu_custom_call.1} parent=11 // pred_fallthru
          _
        // Predicated region
        $region101: #{tpu_custom_call.1} parent=11 // pred_check
          %p2482 = pneg %p876
        $region102: #{tpu_custom_call.1} parent=11 // pred_check_branch
          %2484 = sbr.rel (%p2482) target = $region104
        $region103: #{tpu_custom_call.1} parent=11 // pred_region
          _
        $region104: #{tpu_custom_call.1} parent=11 // pred_fallthru
          _
        // Predicated region
        $region105: #{tpu_custom_call.1} parent=11 // pred_check
          %p2485 = pneg %p897
        $region106: #{tpu_custom_call.1} parent=11 // pred_check_branch
          %2487 = sbr.rel (%p2485) target = $region108
        $region107: #{tpu_custom_call.1} parent=11 // pred_region
          _
        $region108: #{tpu_custom_call.1} parent=11 // pred_fallthru
          _
        // Predicated region
        $region109: #{tpu_custom_call.1} parent=11 // pred_check
          %p2488 = pneg %p918
        $region110: #{tpu_custom_call.1} parent=11 // pred_check_branch
          %2490 = sbr.rel (%p2488) target = $region112
        $region111: #{tpu_custom_call.1} parent=11 // pred_region
          %2492 = vsyncadd [#allocation21], 0
          %s2494 = sshll.u32 %s61, 4
          %s2495 = int_to_ptr.hbm [resolvable:$true] %s2494
          %s2496 = sshll.u32 [#allocation22], 4
          %s2497 = int_to_ptr.vmem [resolvable:$true] %s2496
          %2499 = dma.hbm_to_vmem [thread:$0]  %s2495, 64, %s2497, [#allocation21]
        $region112: #{tpu_custom_call.1} parent=11 // pred_fallthru
          _
        // Predicated region
        $region113: #{tpu_custom_call.1} parent=11 // pred_check
          %p2500 = pneg %p939
        $region114: #{tpu_custom_call.1} parent=11 // pred_check_branch
          %2502 = sbr.rel (%p2500) target = $region116
        $region115: #{tpu_custom_call.1} parent=11 // pred_region
          %2504 = vsyncadd [#allocation24], 0
          %s2506 = sshll.u32 %s63, 4
          %s2507 = int_to_ptr.hbm [resolvable:$true] %s2506
          %s2508 = sshll.u32 [#allocation23], 4
          %s2509 = int_to_ptr.vmem [resolvable:$true] %s2508
          %2511 = dma.hbm_to_vmem [thread:$0]  %s2507, 64, %s2509, [#allocation24]
        $region116: #{tpu_custom_call.1} parent=11 // pred_fallthru
          _
        // Predicated region
        $region117: #{tpu_custom_call.1} parent=11 // pred_check
          %p2512 = pneg %p960
        $region118: #{tpu_custom_call.1} parent=11 // pred_check_branch
          %2514 = sbr.rel (%p2512) target = $region120
        $region119: #{tpu_custom_call.1} parent=11 // pred_region
          %2516 = vsyncadd [#allocation24], 0
          %s2518 = sshll.u32 %s65, 4
          %s2519 = int_to_ptr.hbm [resolvable:$true] %s2518
          %s2520 = sshll.u32 [#allocation25], 4
          %s2521 = int_to_ptr.vmem [resolvable:$true] %s2520
          %2523 = dma.hbm_to_vmem [thread:$0]  %s2519, 16, %s2521, [#allocation24]
        $region120: #{tpu_custom_call.1} parent=11 // pred_fallthru
          _
        // Predicated region
        $region121: #{tpu_custom_call.1} parent=11 // pred_check
          %p2524 = pneg %p981
        $region122: #{tpu_custom_call.1} parent=11 // pred_check_branch
          %2526 = sbr.rel (%p2524) target = $region124
        $region123: #{tpu_custom_call.1} parent=11 // pred_region
          _
        $region124: #{tpu_custom_call.1} parent=11 // pred_fallthru
          _
        // Predicated region
        $region125: #{tpu_custom_call.1} parent=11 // pred_check
          %p2527 = pneg %p1002
        $region126: #{tpu_custom_call.1} parent=11 // pred_check_branch
          %2529 = sbr.rel (%p2527) target = $region128
        $region127: #{tpu_custom_call.1} parent=11 // pred_region
          _
        $region128: #{tpu_custom_call.1} parent=11 // pred_fallthru
          _
        // Predicated region
        $region129: #{tpu_custom_call.1} parent=11 // pred_check
          %p2530 = pneg %p1023
        $region130: #{tpu_custom_call.1} parent=11 // pred_check_branch
          %2532 = sbr.rel (%p2530) target = $region132
        $region131: #{tpu_custom_call.1} parent=11 // pred_region
          %2534 = vsyncadd [#allocation27], 0
          %s2536 = sshll.u32 %s71, 4
          %s2537 = int_to_ptr.hbm [resolvable:$true] %s2536
          %s2538 = sshll.u32 [#allocation26], 4
          %s2539 = int_to_ptr.vmem [resolvable:$true] %s2538
          %2541 = dma.hbm_to_vmem [thread:$0]  %s2537, 16, %s2539, [#allocation27]
        $region132: #{tpu_custom_call.1} parent=11 // pred_fallthru
          _
        // Predicated region
        $region133: #{tpu_custom_call.1} parent=11 // pred_check
          %p2542 = pneg %p1044
        $region134: #{tpu_custom_call.1} parent=11 // pred_check_branch
          %2544 = sbr.rel (%p2542) target = $region136
        $region135: #{tpu_custom_call.1} parent=11 // pred_region
          %2546 = vsyncadd [#allocation27], 0
          %s2548 = sshll.u32 %s73, 4
          %s2549 = int_to_ptr.hbm [resolvable:$true] %s2548
          %s2550 = sshll.u32 [#allocation28], 4
          %s2551 = int_to_ptr.vmem [resolvable:$true] %s2550
          %2553 = dma.hbm_to_vmem [thread:$0]  %s2549, 32, %s2551, [#allocation27]
        $region136: #{tpu_custom_call.1} parent=11 // pred_fallthru
          _
        // Predicated region
        $region137: #{tpu_custom_call.1} parent=11 // pred_check
          %p2554 = pneg %p1065
        $region138: #{tpu_custom_call.1} parent=11 // pred_check_branch
          %2556 = sbr.rel (%p2554) target = $region140
        $region139: #{tpu_custom_call.1} parent=11 // pred_region
          _
        $region140: #{tpu_custom_call.1} parent=11 // pred_fallthru
          _
        // Predicated region
        $region141: #{tpu_custom_call.1} parent=11 // pred_check
          %p2557 = pneg %p1086
        $region142: #{tpu_custom_call.1} parent=11 // pred_check_branch
          %2559 = sbr.rel (%p2557) target = $region144
        $region143: #{tpu_custom_call.1} parent=11 // pred_region
          %2561 = vsyncadd [#allocation30], 0
          %s2563 = sshll.u32 %s77, 4
          %s2564 = int_to_ptr.hbm [resolvable:$true] %s2563
          %s2565 = sshll.u32 [#allocation29], 4
          %s2566 = int_to_ptr.vmem [resolvable:$true] %s2565
          %2568 = dma.hbm_to_vmem [thread:$0]  %s2564, 128, %s2566, [#allocation30]
        $region144: #{tpu_custom_call.1} parent=11 // pred_fallthru
          _
        // Predicated region
        $region145: #{tpu_custom_call.1} parent=11 // pred_check
          %p2569 = pneg %p1107
        $region146: #{tpu_custom_call.1} parent=11 // pred_check_branch
          %2571 = sbr.rel (%p2569) target = $region148
        $region147: #{tpu_custom_call.1} parent=11 // pred_region
          %2573 = vsyncadd [#allocation30], 0
          %s2575 = sshll.u32 %s79, 4
          %s2576 = int_to_ptr.hbm [resolvable:$true] %s2575
          %s2577 = sshll.u32 [#allocation31], 4
          %s2578 = int_to_ptr.vmem [resolvable:$true] %s2577
          %2580 = dma.hbm_to_vmem [thread:$0]  %s2576, 16, %s2578, [#allocation30]
        $region148: #{tpu_custom_call.1} parent=11 // pred_fallthru
          _
        // Predicated region
        $region149: #{tpu_custom_call.1} parent=11 // pred_check
          %p2581 = pneg %p1128
        $region150: #{tpu_custom_call.1} parent=11 // pred_check_branch
          %2583 = sbr.rel (%p2581) target = $region152
        $region151: #{tpu_custom_call.1} parent=11 // pred_region
          _
        $region152: #{tpu_custom_call.1} parent=11 // pred_fallthru
          _
        // Predicated region
        $region153: #{tpu_custom_call.1} parent=11 // pred_check
          %p2584 = pneg %p1149
        $region154: #{tpu_custom_call.1} parent=11 // pred_check_branch
          %2586 = sbr.rel (%p2584) target = $region156
        $region155: #{tpu_custom_call.1} parent=11 // pred_region
          _
        $region156: #{tpu_custom_call.1} parent=11 // pred_fallthru
          _
        // Predicated region
        $region157: #{tpu_custom_call.1} parent=11 // pred_check
          %p2587 = pneg %p1170
        $region158: #{tpu_custom_call.1} parent=11 // pred_check_branch
          %2589 = sbr.rel (%p2587) target = $region160
        $region159: #{tpu_custom_call.1} parent=11 // pred_region
          %2591 = vsyncadd [#allocation33], 0
          %s2593 = sshll.u32 %s85, 4
          %s2594 = int_to_ptr.hbm [resolvable:$true] %s2593
          %s2595 = sshll.u32 [#allocation32], 4
          %s2596 = int_to_ptr.vmem [resolvable:$true] %s2595
          %2598 = dma.hbm_to_vmem [thread:$0]  %s2594, 64, %s2596, [#allocation33]
        $region160: #{tpu_custom_call.1} parent=11 // pred_fallthru
          _
        // Predicated region
        $region161: #{tpu_custom_call.1} parent=11 // pred_check
          %p2599 = pneg %p1191
        $region162: #{tpu_custom_call.1} parent=11 // pred_check_branch
          %2601 = sbr.rel (%p2599) target = $region164
        $region163: #{tpu_custom_call.1} parent=11 // pred_region
          %2603 = vsyncadd [#allocation33], 0
          %s2605 = sshll.u32 %s87, 4
          %s2606 = int_to_ptr.hbm [resolvable:$true] %s2605
          %s2607 = sshll.u32 [#allocation34], 4
          %s2608 = int_to_ptr.vmem [resolvable:$true] %s2607
          %2610 = dma.hbm_to_vmem [thread:$0]  %s2606, 16, %s2608, [#allocation33]
        $region164: #{tpu_custom_call.1} parent=11 // pred_fallthru
          _
        // Predicated region
        $region165: #{tpu_custom_call.1} parent=11 // pred_check
          %p2611 = pneg %p1212
        $region166: #{tpu_custom_call.1} parent=11 // pred_check_branch
          %2613 = sbr.rel (%p2611) target = $region168
        $region167: #{tpu_custom_call.1} parent=11 // pred_region
          _
        $region168: #{tpu_custom_call.1} parent=11 // pred_fallthru
          _
        // Predicated region
        $region169: #{tpu_custom_call.1} parent=11 // pred_check
          %p2614 = pneg %p1233
        $region170: #{tpu_custom_call.1} parent=11 // pred_check_branch
          %2616 = sbr.rel (%p2614) target = $region172
        $region171: #{tpu_custom_call.1} parent=11 // pred_region
          _
        $region172: #{tpu_custom_call.1} parent=11 // pred_fallthru
          _
        // Predicated region
        $region173: #{tpu_custom_call.1} parent=11 // pred_check
          %p2617 = pneg %p1254
        $region174: #{tpu_custom_call.1} parent=11 // pred_check_branch
          %2619 = sbr.rel (%p2617) target = $region176
        $region175: #{tpu_custom_call.1} parent=11 // pred_region
          %2621 = vsyncadd [#allocation36], 0
          %s2623 = sshll.u32 %s93, 4
          %s2624 = int_to_ptr.hbm [resolvable:$true] %s2623
          %s2625 = sshll.u32 [#allocation35], 4
          %s2626 = int_to_ptr.vmem [resolvable:$true] %s2625
          %2628 = dma.hbm_to_vmem [thread:$0]  %s2624, 16, %s2626, [#allocation36]
        $region176: #{tpu_custom_call.1} parent=11 // pred_fallthru
          _
        // Predicated region
        $region177: #{tpu_custom_call.1} parent=11 // pred_check
          %p2629 = pneg %p1275
        $region178: #{tpu_custom_call.1} parent=11 // pred_check_branch
          %2631 = sbr.rel (%p2629) target = $region180
        $region179: #{tpu_custom_call.1} parent=11 // pred_region
          %2633 = vsyncadd [#allocation36], 0
          %s2634 = sshll.u32 %s95, 4
          %s2635 = int_to_ptr.hbm [resolvable:$true] %s2634
          %s2636 = sshll.u32 [#allocation37], 4
          %s2637 = int_to_ptr.vmem [resolvable:$true] %s2636
          %2642 = dma.hbm_to_vmem [thread:$0]  %s2635, 256, %s2637, [#allocation36], 128, 128, 8
        $region180: #{tpu_custom_call.1} parent=11 // pred_fallthru
          _
        // Predicated region
        $region181: #{tpu_custom_call.1} parent=11 // pred_check
          %p2643 = pneg %p1296
        $region182: #{tpu_custom_call.1} parent=11 // pred_check_branch
          %2645 = sbr.rel (%p2643) target = $region184
        $region183: #{tpu_custom_call.1} parent=11 // pred_region
          %2647 = vsyncadd [#allocation39], 0
          %s2648 = sshll.u32 %s97, 4
          %s2649 = int_to_ptr.hbm [resolvable:$true] %s2648
          %s2650 = sshll.u32 [#allocation38], 4
          %s2651 = int_to_ptr.vmem [resolvable:$true] %s2650
          %2656 = dma.hbm_to_vmem [thread:$0]  %s2649, 256, %s2651, [#allocation39], 128, 128, 8
        $region184: #{tpu_custom_call.1} parent=11 // pred_fallthru
          _
        // Predicated region
        $region185: #{tpu_custom_call.1} parent=11 // pred_check
          %p2657 = pneg %p1317
        $region186: #{tpu_custom_call.1} parent=11 // pred_check_branch
          %2659 = sbr.rel (%p2657) target = $region188
        $region187: #{tpu_custom_call.1} parent=11 // pred_region
          %2661 = vsyncadd [#allocation39], 0
          %s2663 = sshll.u32 %s99, 4
          %s2664 = int_to_ptr.hbm [resolvable:$true] %s2663
          %s2665 = sshll.u32 [#allocation40], 4
          %s2666 = int_to_ptr.vmem [resolvable:$true] %s2665
          %2668 = dma.hbm_to_vmem [thread:$0]  %s2664, 64, %s2666, [#allocation39]
        $region188: #{tpu_custom_call.1} parent=11 // pred_fallthru
          _
        // Predicated region
        $region189: #{tpu_custom_call.1} parent=11 // pred_check
          %p2669 = pneg %p1338
        $region190: #{tpu_custom_call.1} parent=11 // pred_check_branch
          %2671 = sbr.rel (%p2669) target = $region192
        $region191: #{tpu_custom_call.1} parent=11 // pred_region
          %2673 = vsyncadd [#allocation42], 0
          %s2675 = sshll.u32 %s101, 4
          %s2676 = int_to_ptr.hbm [resolvable:$true] %s2675
          %s2677 = sshll.u32 [#allocation41], 4
          %s2678 = int_to_ptr.vmem [resolvable:$true] %s2677
          %2680 = dma.hbm_to_vmem [thread:$0]  %s2676, 16, %s2678, [#allocation42]
        $region192: #{tpu_custom_call.1} parent=11 // pred_fallthru
          _
        // Predicated region
        $region193: #{tpu_custom_call.1} parent=11 // pred_check
          %p2681 = pneg %p1359
        $region194: #{tpu_custom_call.1} parent=11 // pred_check_branch
          %2683 = sbr.rel (%p2681) target = $region196
        $region195: #{tpu_custom_call.1} parent=11 // pred_region
          %2685 = vsyncadd [#allocation42], 0
          %s2686 = sshll.u32 %s103, 4
          %s2687 = int_to_ptr.hbm [resolvable:$true] %s2686
          %s2688 = sshll.u32 [#allocation43], 4
          %s2689 = int_to_ptr.vmem [resolvable:$true] %s2688
          %2694 = dma.hbm_to_vmem [thread:$0]  %s2687, 256, %s2689, [#allocation42], 128, 128, 8
        $region196: #{tpu_custom_call.1} parent=11 // pred_fallthru
          _
        // Predicated region
        $region197: #{tpu_custom_call.1} parent=11 // pred_check
          %p2695 = pneg %p1380
        $region198: #{tpu_custom_call.1} parent=11 // pred_check_branch
          %2697 = sbr.rel (%p2695) target = $region200
        $region199: #{tpu_custom_call.1} parent=11 // pred_region
          %2699 = vsyncadd [#allocation45], 0
          %s2700 = sshll.u32 %s105, 4
          %s2701 = int_to_ptr.hbm [resolvable:$true] %s2700
          %s2702 = sshll.u32 [#allocation44], 4
          %s2703 = int_to_ptr.vmem [resolvable:$true] %s2702
          %2708 = dma.hbm_to_vmem [thread:$0]  %s2701, 256, %s2703, [#allocation45], 128, 128, 8
        $region200: #{tpu_custom_call.1} parent=11 // pred_fallthru
          _
        // Predicated region
        $region201: #{tpu_custom_call.1} parent=11 // pred_check
          %p2709 = pneg %p1401
        $region202: #{tpu_custom_call.1} parent=11 // pred_check_branch
          %2711 = sbr.rel (%p2709) target = $region204
        $region203: #{tpu_custom_call.1} parent=11 // pred_region
          %2713 = vsyncadd [#allocation45], 0
          %s2715 = sshll.u32 %s107, 4
          %s2716 = int_to_ptr.hbm [resolvable:$true] %s2715
          %s2717 = sshll.u32 [#allocation46], 4
          %s2718 = int_to_ptr.vmem [resolvable:$true] %s2717
          %2720 = dma.hbm_to_vmem [thread:$0]  %s2716, 16, %s2718, [#allocation45]
        $region204: #{tpu_custom_call.1} parent=11 // pred_fallthru
          _
        // Predicated region
        $region205: #{tpu_custom_call.1} parent=11 // pred_check
          %p2721 = pneg %p1422
        $region206: #{tpu_custom_call.1} parent=11 // pred_check_branch
          %2723 = sbr.rel (%p2721) target = $region208
        $region207: #{tpu_custom_call.1} parent=11 // pred_region
          _
        $region208: #{tpu_custom_call.1} parent=11 // pred_fallthru
          _
        // Predicated region
        $region209: #{tpu_custom_call.1} parent=11 // pred_check
          %p2724 = pneg %p1443
        $region210: #{tpu_custom_call.1} parent=11 // pred_check_branch
          %2726 = sbr.rel (%p2724) target = $region212
        $region211: #{tpu_custom_call.1} parent=11 // pred_region
          %2728 = vsyncadd [#allocation48], 0
          %s2730 = sshll.u32 %s111, 4
          %s2731 = int_to_ptr.hbm [resolvable:$true] %s2730
          %s2732 = sshll.u32 [#allocation47], 4
          %s2733 = int_to_ptr.vmem [resolvable:$true] %s2732
          %2735 = dma.hbm_to_vmem [thread:$0]  %s2731, 16, %s2733, [#allocation48]
        $region212: #{tpu_custom_call.1} parent=11 // pred_fallthru
          _
        // Predicated region
        $region213: #{tpu_custom_call.1} parent=11 // pred_check
          %p2736 = pneg %p1464
        $region214: #{tpu_custom_call.1} parent=11 // pred_check_branch
          %2738 = sbr.rel (%p2736) target = $region216
        $region215: #{tpu_custom_call.1} parent=11 // pred_region
          _
        $region216: #{tpu_custom_call.1} parent=11 // pred_fallthru
          _
        // Predicated region
        $region217: #{tpu_custom_call.1} parent=11 // pred_check
          %p2739 = pneg %p1485
        $region218: #{tpu_custom_call.1} parent=11 // pred_check_branch
          %2741 = sbr.rel (%p2739) target = $region220
        $region219: #{tpu_custom_call.1} parent=11 // pred_region
          %2743 = vsyncadd [#allocation48], 0
          %s2745 = sshll.u32 %s115, 4
          %s2746 = int_to_ptr.hbm [resolvable:$true] %s2745
          %s2747 = sshll.u32 [#allocation49], 4
          %s2748 = int_to_ptr.vmem [resolvable:$true] %s2747
          %2750 = dma.hbm_to_vmem [thread:$0]  %s2746, 16, %s2748, [#allocation48]
        $region220: #{tpu_custom_call.1} parent=11 // pred_fallthru
          _
        // Predicated region
        $region221: #{tpu_custom_call.1} parent=11 // pred_check
          %p2751 = pneg %p1506
        $region222: #{tpu_custom_call.1} parent=11 // pred_check_branch
          %2753 = sbr.rel (%p2751) target = $region224
        $region223: #{tpu_custom_call.1} parent=11 // pred_region
          %2755 = vsyncadd [#allocation51], 0
          %s2757 = sshll.u32 %s117, 4
          %s2758 = int_to_ptr.hbm [resolvable:$true] %s2757
          %s2759 = sshll.u32 [#allocation50], 4
          %s2760 = int_to_ptr.vmem [resolvable:$true] %s2759
          %2762 = dma.hbm_to_vmem [thread:$0]  %s2758, 32, %s2760, [#allocation51]
        $region224: #{tpu_custom_call.1} parent=11 // pred_fallthru
          _
        // Predicated region
        $region225: #{tpu_custom_call.1} parent=11 // pred_check
          %p2763 = pneg %p1527
        $region226: #{tpu_custom_call.1} parent=11 // pred_check_branch
          %2765 = sbr.rel (%p2763) target = $region228
        $region227: #{tpu_custom_call.1} parent=11 // pred_region
          %2767 = vsyncadd [#allocation51], 0
          %s2768 = sshll.u32 %s119, 4
          %s2769 = int_to_ptr.hbm [resolvable:$true] %s2768
          %s2770 = sshll.u32 [#allocation52], 4
          %s2771 = int_to_ptr.vmem [resolvable:$true] %s2770
          %2776 = dma.hbm_to_vmem [thread:$0]  %s2769, 256, %s2771, [#allocation51], 128, 128, 8
        $region228: #{tpu_custom_call.1} parent=11 // pred_fallthru
          _
        // Predicated region
        $region229: #{tpu_custom_call.1} parent=11 // pred_check
          %p2777 = pneg %p1548
        $region230: #{tpu_custom_call.1} parent=11 // pred_check_branch
          %2779 = sbr.rel (%p2777) target = $region232
        $region231: #{tpu_custom_call.1} parent=11 // pred_region
          %2781 = vsyncadd [#allocation54], 0
          %s2783 = sshll.u32 %s121, 4
          %s2784 = int_to_ptr.hbm [resolvable:$true] %s2783
          %s2785 = sshll.u32 [#allocation53], 4
          %s2786 = int_to_ptr.vmem [resolvable:$true] %s2785
          %2788 = dma.hbm_to_vmem [thread:$0]  %s2784, 16, %s2786, [#allocation54]
        $region232: #{tpu_custom_call.1} parent=11 // pred_fallthru
          _
        // Predicated region
        $region233: #{tpu_custom_call.1} parent=11 // pred_check
          %p2789 = pneg %p1569
        $region234: #{tpu_custom_call.1} parent=11 // pred_check_branch
          %2791 = sbr.rel (%p2789) target = $region236
        $region235: #{tpu_custom_call.1} parent=11 // pred_region
          _
        $region236: #{tpu_custom_call.1} parent=11 // pred_fallthru
          _
        // Predicated region
        $region237: #{tpu_custom_call.1} parent=11 // pred_check
          %p2792 = pneg %p1590
        $region238: #{tpu_custom_call.1} parent=11 // pred_check_branch
          %2794 = sbr.rel (%p2792) target = $region240
        $region239: #{tpu_custom_call.1} parent=11 // pred_region
          %2796 = vsyncadd [#allocation54], 0
          %s2797 = sshll.u32 %s125, 4
          %s2798 = int_to_ptr.hbm [resolvable:$true] %s2797
          %s2799 = sshll.u32 [#allocation55], 4
          %s2800 = int_to_ptr.vmem [resolvable:$true] %s2799
          %2805 = dma.hbm_to_vmem [thread:$0]  %s2798, 256, %s2800, [#allocation54], 128, 128, 8
        $region240: #{tpu_custom_call.1} parent=11 // pred_fallthru
          _
        // Predicated region
        $region241: #{tpu_custom_call.1} parent=11 // pred_check
          %p2806 = pneg %p1611
        $region242: #{tpu_custom_call.1} parent=11 // pred_check_branch
          %2808 = sbr.rel (%p2806) target = $region244
        $region243: #{tpu_custom_call.1} parent=11 // pred_region
          %2810 = vsyncadd [#allocation57], 0
          %s2812 = sshll.u32 %s127, 4
          %s2813 = int_to_ptr.hbm [resolvable:$true] %s2812
          %s2814 = sshll.u32 [#allocation56], 4
          %s2815 = int_to_ptr.vmem [resolvable:$true] %s2814
          %2817 = dma.hbm_to_vmem [thread:$0]  %s2813, 64, %s2815, [#allocation57]
        $region244: #{tpu_custom_call.1} parent=11 // pred_fallthru
          _
        // Predicated region
        $region245: #{tpu_custom_call.1} parent=11 // pred_check
          %p2818 = pneg %p1632
        $region246: #{tpu_custom_call.1} parent=11 // pred_check_branch
          %2820 = sbr.rel (%p2818) target = $region248
        $region247: #{tpu_custom_call.1} parent=11 // pred_region
          %2822 = vsyncadd [#allocation57], 0
          %s2824 = sshll.u32 %s129, 4
          %s2825 = int_to_ptr.hbm [resolvable:$true] %s2824
          %s2826 = sshll.u32 [#allocation58], 4
          %s2827 = int_to_ptr.vmem [resolvable:$true] %s2826
          %2829 = dma.hbm_to_vmem [thread:$0]  %s2825, 16, %s2827, [#allocation57]
        $region248: #{tpu_custom_call.1} parent=11 // pred_fallthru
          _
        // Predicated region
        $region249: #{tpu_custom_call.1} parent=11 // pred_check
          %p2830 = pneg %p1653
        $region250: #{tpu_custom_call.1} parent=11 // pred_check_branch
          %2832 = sbr.rel (%p2830) target = $region252
        $region251: #{tpu_custom_call.1} parent=11 // pred_region
          %2834 = vsyncadd [#allocation60], 0
          %s2835 = sshll.u32 %s131, 4
          %s2836 = int_to_ptr.hbm [resolvable:$true] %s2835
          %s2837 = sshll.u32 [#allocation59], 4
          %s2838 = int_to_ptr.vmem [resolvable:$true] %s2837
          %2843 = dma.hbm_to_vmem [thread:$0]  %s2836, 256, %s2838, [#allocation60], 128, 128, 8
        $region252: #{tpu_custom_call.1} parent=11 // pred_fallthru
          _
        // Predicated region
        $region253: #{tpu_custom_call.1} parent=11 // pred_check
          %p2844 = pneg %p1674
        $region254: #{tpu_custom_call.1} parent=11 // pred_check_branch
          %2846 = sbr.rel (%p2844) target = $region256
        $region255: #{tpu_custom_call.1} parent=11 // pred_region
          %2848 = vsyncadd [#allocation60], 0
          %s2849 = sshll.u32 %s133, 4
          %s2850 = int_to_ptr.hbm [resolvable:$true] %s2849
          %s2851 = sshll.u32 [#allocation61], 4
          %s2852 = int_to_ptr.vmem [resolvable:$true] %s2851
          %2857 = dma.hbm_to_vmem [thread:$0]  %s2850, 256, %s2852, [#allocation60], 128, 128, 8
        $region256: #{tpu_custom_call.1} parent=11 // pred_fallthru
          _
        // Predicated region
        $region257: #{tpu_custom_call.1} parent=11 // pred_check
          %p2858 = pneg %p1695
        $region258: #{tpu_custom_call.1} parent=11 // pred_check_branch
          %2860 = sbr.rel (%p2858) target = $region260
        $region259: #{tpu_custom_call.1} parent=11 // pred_region
          %2862 = vsyncadd [#allocation63], 0
          %s2864 = sshll.u32 %s135, 4
          %s2865 = int_to_ptr.hbm [resolvable:$true] %s2864
          %s2866 = sshll.u32 [#allocation62], 4
          %s2867 = int_to_ptr.vmem [resolvable:$true] %s2866
          %2869 = dma.hbm_to_vmem [thread:$0]  %s2865, 16, %s2867, [#allocation63]
        $region260: #{tpu_custom_call.1} parent=11 // pred_fallthru
          _
        // Predicated region
        $region261: #{tpu_custom_call.1} parent=11 // pred_check
          %p2870 = pneg %p1716
        $region262: #{tpu_custom_call.1} parent=11 // pred_check_branch
          %2872 = sbr.rel (%p2870) target = $region264
        $region263: #{tpu_custom_call.1} parent=11 // pred_region
          %2874 = vsyncadd [#allocation63], 0
          %s2875 = sshll.u32 %s137, 4
          %s2876 = int_to_ptr.hbm [resolvable:$true] %s2875
          %s2877 = sshll.u32 [#allocation64], 4
          %s2878 = int_to_ptr.vmem [resolvable:$true] %s2877
          %2883 = dma.hbm_to_vmem [thread:$0]  %s2876, 256, %s2878, [#allocation63], 128, 128, 8
        $region264: #{tpu_custom_call.1} parent=11 // pred_fallthru
          _
        // Predicated region
        $region265: #{tpu_custom_call.1} parent=11 // pred_check
          %p2884 = pneg %p1737
        $region266: #{tpu_custom_call.1} parent=11 // pred_check_branch
          %2886 = sbr.rel (%p2884) target = $region268
        $region267: #{tpu_custom_call.1} parent=11 // pred_region
          %2888 = vsyncadd [#allocation66], 0
          %s2889 = sshll.u32 %s139, 4
          %s2890 = int_to_ptr.hbm [resolvable:$true] %s2889
          %s2891 = sshll.u32 [#allocation65], 4
          %s2892 = int_to_ptr.vmem [resolvable:$true] %s2891
          %2897 = dma.hbm_to_vmem [thread:$0]  %s2890, 256, %s2892, [#allocation66], 128, 128, 8
        $region268: #{tpu_custom_call.1} parent=11 // pred_fallthru
          _
        // Predicated region
        $region269: #{tpu_custom_call.1} parent=11 // pred_check
          %p2898 = pneg %p1758
        $region270: #{tpu_custom_call.1} parent=11 // pred_check_branch
          %2900 = sbr.rel (%p2898) target = $region272
        $region271: #{tpu_custom_call.1} parent=11 // pred_region
          %2902 = vsyncadd [#allocation66], 0
          %s2904 = sshll.u32 %s141, 4
          %s2905 = int_to_ptr.hbm [resolvable:$true] %s2904
          %s2906 = sshll.u32 [#allocation67], 4
          %s2907 = int_to_ptr.vmem [resolvable:$true] %s2906
          %2909 = dma.hbm_to_vmem [thread:$0]  %s2905, 64, %s2907, [#allocation66]
        $region272: #{tpu_custom_call.1} parent=11 // pred_fallthru
          _
        // Predicated region
        $region273: #{tpu_custom_call.1} parent=11 // pred_check
          %p2910 = pneg %p1779
        $region274: #{tpu_custom_call.1} parent=11 // pred_check_branch
          %2912 = sbr.rel (%p2910) target = $region276
        $region275: #{tpu_custom_call.1} parent=11 // pred_region
          %2914 = vsyncadd [#allocation69], 0
          %s2916 = sshll.u32 %s143, 4
          %s2917 = int_to_ptr.hbm [resolvable:$true] %s2916
          %s2918 = sshll.u32 [#allocation68], 4
          %s2919 = int_to_ptr.vmem [resolvable:$true] %s2918
          %2921 = dma.hbm_to_vmem [thread:$0]  %s2917, 16, %s2919, [#allocation69]
        $region276: #{tpu_custom_call.1} parent=11 // pred_fallthru
          _
        // Predicated region
        $region277: #{tpu_custom_call.1} parent=11 // pred_check
          %p2922 = pneg %p1800
        $region278: #{tpu_custom_call.1} parent=11 // pred_check_branch
          %2924 = sbr.rel (%p2922) target = $region280
        $region279: #{tpu_custom_call.1} parent=11 // pred_region
          %2926 = vsyncadd [#allocation69], 0
          %s2927 = sshll.u32 %s145, 4
          %s2928 = int_to_ptr.hbm [resolvable:$true] %s2927
          %s2929 = sshll.u32 [#allocation70], 4
          %s2930 = int_to_ptr.vmem [resolvable:$true] %s2929
          %2935 = dma.hbm_to_vmem [thread:$0]  %s2928, 256, %s2930, [#allocation69], 128, 128, 8
        $region280: #{tpu_custom_call.1} parent=11 // pred_fallthru
          _
        // Predicated region
        $region281: #{tpu_custom_call.1} parent=11 // pred_check
          %p2936 = pneg %p1821
        $region282: #{tpu_custom_call.1} parent=11 // pred_check_branch
          %2938 = sbr.rel (%p2936) target = $region284
        $region283: #{tpu_custom_call.1} parent=11 // pred_region
          %2940 = vsyncadd [#allocation72], 0
          %s2941 = sshll.u32 %s147, 4
          %s2942 = int_to_ptr.hbm [resolvable:$true] %s2941
          %s2943 = sshll.u32 [#allocation71], 4
          %s2944 = int_to_ptr.vmem [resolvable:$true] %s2943
          %2949 = dma.hbm_to_vmem [thread:$0]  %s2942, 256, %s2944, [#allocation72], 128, 128, 8
        $region284: #{tpu_custom_call.1} parent=11 // pred_fallthru
          _
        // Predicated region
        $region285: #{tpu_custom_call.1} parent=11 // pred_check
          %p2950 = pneg %p1842
        $region286: #{tpu_custom_call.1} parent=11 // pred_check_branch
          %2952 = sbr.rel (%p2950) target = $region288
        $region287: #{tpu_custom_call.1} parent=11 // pred_region
          %2954 = vsyncadd [#allocation72], 0
          %s2956 = sshll.u32 %s149, 4
          %s2957 = int_to_ptr.hbm [resolvable:$true] %s2956
          %s2958 = sshll.u32 [#allocation73], 4
          %s2959 = int_to_ptr.vmem [resolvable:$true] %s2958
          %2961 = dma.hbm_to_vmem [thread:$0]  %s2957, 16, %s2959, [#allocation72]
        $region288: #{tpu_custom_call.1} parent=11 // pred_fallthru
          _
        // Predicated region
        $region289: #{tpu_custom_call.1} parent=11 // pred_check
          %p2962 = pneg %p1863
        $region290: #{tpu_custom_call.1} parent=11 // pred_check_branch
          %2964 = sbr.rel (%p2962) target = $region292
        $region291: #{tpu_custom_call.1} parent=11 // pred_region
          %2966 = vsyncadd [#allocation75], 0
          %s2967 = sshll.u32 %s151, 4
          %s2968 = int_to_ptr.hbm [resolvable:$true] %s2967
          %s2969 = sshll.u32 [#allocation74], 4
          %s2970 = int_to_ptr.vmem [resolvable:$true] %s2969
          %2975 = dma.hbm_to_vmem [thread:$0]  %s2968, 256, %s2970, [#allocation75], 128, 128, 8
        $region292: #{tpu_custom_call.1} parent=11 // pred_fallthru
          _
        // Predicated region
        $region293: #{tpu_custom_call.1} parent=11 // pred_check
          %p2976 = pneg %p1884
        $region294: #{tpu_custom_call.1} parent=11 // pred_check_branch
          %2978 = sbr.rel (%p2976) target = $region296
        $region295: #{tpu_custom_call.1} parent=11 // pred_region
          %2980 = vsyncadd [#allocation75], 0
          %s2982 = sshll.u32 %s153, 4
          %s2983 = int_to_ptr.hbm [resolvable:$true] %s2982
          %s2984 = sshll.u32 [#allocation76], 4
          %s2985 = int_to_ptr.vmem [resolvable:$true] %s2984
          %2987 = dma.hbm_to_vmem [thread:$0]  %s2983, 16, %s2985, [#allocation75]
        $region296: #{tpu_custom_call.1} parent=11 // pred_fallthru
          _
        // Predicated region
        $region297: #{tpu_custom_call.1} parent=11 // pred_check
          %p2988 = pneg %p1905
        $region298: #{tpu_custom_call.1} parent=11 // pred_check_branch
          %2990 = sbr.rel (%p2988) target = $region300
        $region299: #{tpu_custom_call.1} parent=11 // pred_region
          _
        $region300: #{tpu_custom_call.1} parent=11 // pred_fallthru
          _
        // Predicated region
        $region301: #{tpu_custom_call.1} parent=11 // pred_check
          %p2991 = pneg %p1926
        $region302: #{tpu_custom_call.1} parent=11 // pred_check_branch
          %2993 = sbr.rel (%p2991) target = $region304
        $region303: #{tpu_custom_call.1} parent=11 // pred_region
          %2995 = vsyncadd [#allocation78], 0
          %s2996 = sshll.u32 %s157, 4
          %s2997 = int_to_ptr.hbm [resolvable:$true] %s2996
          %s2998 = sshll.u32 [#allocation77], 4
          %s2999 = int_to_ptr.vmem [resolvable:$true] %s2998
          %3004 = dma.hbm_to_vmem [thread:$0]  %s2997, 256, %s2999, [#allocation78], 128, 128, 8
        $region304: #{tpu_custom_call.1} parent=11 // pred_fallthru
          _
        // Predicated region
        $region305: #{tpu_custom_call.1} parent=11 // pred_check
          %p3005 = pneg %p1947
        $region306: #{tpu_custom_call.1} parent=11 // pred_check_branch
          %3007 = sbr.rel (%p3005) target = $region308
        $region307: #{tpu_custom_call.1} parent=11 // pred_region
          %3009 = vsyncadd [#allocation78], 0
          %s3011 = sshll.u32 %s159, 4
          %s3012 = int_to_ptr.hbm [resolvable:$true] %s3011
          %s3013 = sshll.u32 [#allocation79], 4
          %s3014 = int_to_ptr.vmem [resolvable:$true] %s3013
          %3016 = dma.hbm_to_vmem [thread:$0]  %s3012, 64, %s3014, [#allocation78]
        $region308: #{tpu_custom_call.1} parent=11 // pred_fallthru
          _
        // Predicated region
        $region309: #{tpu_custom_call.1} parent=11 // pred_check
          %p3017 = pneg %p1968
        $region310: #{tpu_custom_call.1} parent=11 // pred_check_branch
          %3019 = sbr.rel (%p3017) target = $region312
        $region311: #{tpu_custom_call.1} parent=11 // pred_region
          %3021 = vsyncadd [#allocation81], 0
          %s3023 = sshll.u32 %s161, 4
          %s3024 = int_to_ptr.hbm [resolvable:$true] %s3023
          %s3025 = sshll.u32 [#allocation80], 4
          %s3026 = int_to_ptr.vmem [resolvable:$true] %s3025
          %3028 = dma.hbm_to_vmem [thread:$0]  %s3024, 16, %s3026, [#allocation81]
        $region312: #{tpu_custom_call.1} parent=11 // pred_fallthru
          _
        // Predicated region
        $region313: #{tpu_custom_call.1} parent=11 // pred_check
          %p3029 = pneg %p1989
        $region314: #{tpu_custom_call.1} parent=11 // pred_check_branch
          %3031 = sbr.rel (%p3029) target = $region316
        $region315: #{tpu_custom_call.1} parent=11 // pred_region
          %3033 = vsyncadd [#allocation81], 0
          %s3034 = sshll.u32 %s163, 4
          %s3035 = int_to_ptr.hbm [resolvable:$true] %s3034
          %s3036 = sshll.u32 [#allocation82], 4
          %s3037 = int_to_ptr.vmem [resolvable:$true] %s3036
          %3042 = dma.hbm_to_vmem [thread:$0]  %s3035, 256, %s3037, [#allocation81], 128, 128, 8
        $region316: #{tpu_custom_call.1} parent=11 // pred_fallthru
          _
        // Predicated region
        $region317: #{tpu_custom_call.1} parent=11 // pred_check
          %p3043 = pneg %p2010
        $region318: #{tpu_custom_call.1} parent=11 // pred_check_branch
          %3045 = sbr.rel (%p3043) target = $region320
        $region319: #{tpu_custom_call.1} parent=11 // pred_region
          %3047 = vsyncadd [#allocation84], 0
          %s3048 = sshll.u32 %s165, 4
          %s3049 = int_to_ptr.hbm [resolvable:$true] %s3048
          %s3050 = sshll.u32 [#allocation83], 4
          %s3051 = int_to_ptr.vmem [resolvable:$true] %s3050
          %3056 = dma.hbm_to_vmem [thread:$0]  %s3049, 256, %s3051, [#allocation84], 128, 128, 8
        $region320: #{tpu_custom_call.1} parent=11 // pred_fallthru
          _
        // Predicated region
        $region321: #{tpu_custom_call.1} parent=11 // pred_check
          %p3057 = pneg %p2031
        $region322: #{tpu_custom_call.1} parent=11 // pred_check_branch
          %3059 = sbr.rel (%p3057) target = $region324
        $region323: #{tpu_custom_call.1} parent=11 // pred_region
          %3061 = vsyncadd [#allocation84], 0
          %s3063 = sshll.u32 %s167, 4
          %s3064 = int_to_ptr.hbm [resolvable:$true] %s3063
          %s3065 = sshll.u32 [#allocation85], 4
          %s3066 = int_to_ptr.vmem [resolvable:$true] %s3065
          %3068 = dma.hbm_to_vmem [thread:$0]  %s3064, 16, %s3066, [#allocation84]
        $region324: #{tpu_custom_call.1} parent=11 // pred_fallthru
          _
        // Predicated region
        $region325: #{tpu_custom_call.1} parent=11 // pred_check
          %p3069 = pneg %p2052
        $region326: #{tpu_custom_call.1} parent=11 // pred_check_branch
          %3071 = sbr.rel (%p3069) target = $region328
        $region327: #{tpu_custom_call.1} parent=11 // pred_region
          %3073 = vsyncadd [#allocation87], 0
          %s3074 = sshll.u32 %s169, 4
          %s3075 = int_to_ptr.hbm [resolvable:$true] %s3074
          %s3076 = sshll.u32 [#allocation86], 4
          %s3077 = int_to_ptr.vmem [resolvable:$true] %s3076
          %3082 = dma.hbm_to_vmem [thread:$0]  %s3075, 256, %s3077, [#allocation87], 128, 128, 8
        $region328: #{tpu_custom_call.1} parent=11 // pred_fallthru
          _
        // Predicated region
        $region329: #{tpu_custom_call.1} parent=11 // pred_check
          %p3083 = pneg %p2073
        $region330: #{tpu_custom_call.1} parent=11 // pred_check_branch
          %3085 = sbr.rel (%p3083) target = $region332
        $region331: #{tpu_custom_call.1} parent=11 // pred_region
          %3087 = vsyncadd [#allocation87], 0
          %s3088 = sshll.u32 %s171, 4
          %s3089 = int_to_ptr.hbm [resolvable:$true] %s3088
          %s3090 = sshll.u32 [#allocation88], 4
          %s3091 = int_to_ptr.vmem [resolvable:$true] %s3090
          %3096 = dma.hbm_to_vmem [thread:$0]  %s3089, 256, %s3091, [#allocation87], 128, 128, 8
        $region332: #{tpu_custom_call.1} parent=11 // pred_fallthru
          _
        // Predicated region
        $region333: #{tpu_custom_call.1} parent=11 // pred_check
          %p3097 = pneg %p2094
        $region334: #{tpu_custom_call.1} parent=11 // pred_check_branch
          %3099 = sbr.rel (%p3097) target = $region336
        $region335: #{tpu_custom_call.1} parent=11 // pred_region
          %3101 = vsyncadd [#allocation90], 0
          %s3103 = sshll.u32 %s173, 4
          %s3104 = int_to_ptr.hbm [resolvable:$true] %s3103
          %s3105 = sshll.u32 [#allocation89], 4
          %s3106 = int_to_ptr.vmem [resolvable:$true] %s3105
          %3108 = dma.hbm_to_vmem [thread:$0]  %s3104, 64, %s3106, [#allocation90]
        $region336: #{tpu_custom_call.1} parent=11 // pred_fallthru
          _
        // Predicated region
        $region337: #{tpu_custom_call.1} parent=11 // pred_check
          %p3109 = pneg %p2115
        $region338: #{tpu_custom_call.1} parent=11 // pred_check_branch
          %3111 = sbr.rel (%p3109) target = $region340
        $region339: #{tpu_custom_call.1} parent=11 // pred_region
          %3113 = vsyncadd [#allocation90], 0
          %s3115 = sshll.u32 %s175, 4
          %s3116 = int_to_ptr.hbm [resolvable:$true] %s3115
          %s3117 = sshll.u32 [#allocation91], 4
          %s3118 = int_to_ptr.vmem [resolvable:$true] %s3117
          %3120 = dma.hbm_to_vmem [thread:$0]  %s3116, 16, %s3118, [#allocation90]
        $region340: #{tpu_custom_call.1} parent=11 // pred_fallthru
          _
        // Predicated region
        $region341: #{tpu_custom_call.1} parent=11 // pred_check
          %p3121 = pneg %p2136
        $region342: #{tpu_custom_call.1} parent=11 // pred_check_branch
          %3123 = sbr.rel (%p3121) target = $region344
        $region343: #{tpu_custom_call.1} parent=11 // pred_region
          %3125 = vsyncadd [#allocation93], 0
          %s3126 = sshll.u32 %s177, 4
          %s3127 = int_to_ptr.hbm [resolvable:$true] %s3126
          %s3128 = sshll.u32 [#allocation92], 4
          %s3129 = int_to_ptr.vmem [resolvable:$true] %s3128
          %3134 = dma.hbm_to_vmem [thread:$0]  %s3127, 256, %s3129, [#allocation93], 128, 128, 8
        $region344: #{tpu_custom_call.1} parent=11 // pred_fallthru
          _
        // Predicated region
        $region345: #{tpu_custom_call.1} parent=11 // pred_check
          %p3135 = pneg %p2157
        $region346: #{tpu_custom_call.1} parent=11 // pred_check_branch
          %3137 = sbr.rel (%p3135) target = $region348
        $region347: #{tpu_custom_call.1} parent=11 // pred_region
          %3139 = vsyncadd [#allocation93], 0
          %s3140 = sshll.u32 %s179, 4
          %s3141 = int_to_ptr.hbm [resolvable:$true] %s3140
          %s3142 = sshll.u32 [#allocation94], 4
          %s3143 = int_to_ptr.vmem [resolvable:$true] %s3142
          %3148 = dma.hbm_to_vmem [thread:$0]  %s3141, 256, %s3143, [#allocation93], 128, 128, 8
        $region348: #{tpu_custom_call.1} parent=11 // pred_fallthru
          _
        // Predicated region
        $region349: #{tpu_custom_call.1} parent=11 // pred_check
          %p3149 = pneg %p2178
        $region350: #{tpu_custom_call.1} parent=11 // pred_check_branch
          %3151 = sbr.rel (%p3149) target = $region352
        $region351: #{tpu_custom_call.1} parent=11 // pred_region
          %3153 = vsyncadd [#allocation96], 0
          %s3155 = sshll.u32 %s181, 4
          %s3156 = int_to_ptr.hbm [resolvable:$true] %s3155
          %s3157 = sshll.u32 [#allocation95], 4
          %s3158 = int_to_ptr.vmem [resolvable:$true] %s3157
          %3160 = dma.hbm_to_vmem [thread:$0]  %s3156, 16, %s3158, [#allocation96]
        $region352: #{tpu_custom_call.1} parent=11 // pred_fallthru
          _
        // Predicated region
        $region353: #{tpu_custom_call.1} parent=11 // pred_check
          %p3161 = pneg %p2199
        $region354: #{tpu_custom_call.1} parent=11 // pred_check_branch
          %3163 = sbr.rel (%p3161) target = $region356
        $region355: #{tpu_custom_call.1} parent=11 // pred_region
          %3165 = vsyncadd [#allocation96], 0
          %s3167 = sshll.u32 %s183, 4
          %s3168 = int_to_ptr.hbm [resolvable:$true] %s3167
          %s3169 = sshll.u32 [#allocation97], 4
          %s3170 = int_to_ptr.vmem [resolvable:$true] %s3169
          %3172 = dma.hbm_to_vmem [thread:$0]  %s3168, 32, %s3170, [#allocation96]
        $region356: #{tpu_custom_call.1} parent=11 // pred_fallthru
          _
        // Predicated region
        $region357: #{tpu_custom_call.1} parent=11 // pred_check
          %p3173 = pneg %p2220
        $region358: #{tpu_custom_call.1} parent=11 // pred_check_branch
          %3175 = sbr.rel (%p3173) target = $region360
        $region359: #{tpu_custom_call.1} parent=11 // pred_region
          %3177 = vsyncadd [#allocation99], 0
          %s3179 = sshll.u32 %s185, 4
          %s3180 = int_to_ptr.hbm [resolvable:$true] %s3179
          %s3181 = sshll.u32 [#allocation98], 4
          %s3182 = int_to_ptr.vmem [resolvable:$true] %s3181
          %3184 = dma.hbm_to_vmem [thread:$0]  %s3180, 16, %s3182, [#allocation99]
        $region360: #{tpu_custom_call.1} parent=11 // pred_fallthru
          _
        // Predicated region
        $region361: #{tpu_custom_call.1} parent=11 // pred_check
          %p3185 = pneg %p2241
        $region362: #{tpu_custom_call.1} parent=11 // pred_check_branch
          %3187 = sbr.rel (%p3185) target = $region364
        $region363: #{tpu_custom_call.1} parent=11 // pred_region
          _
        $region364: #{tpu_custom_call.1} parent=11 // pred_fallthru
          _
      $region12: #{tpu_custom_call.1} parent=5 // pred_fallthru
        _
      %p3188 = scmp.lt.s32.totalorder %s237, 2
      // Predicated region
      $region365: #{tpu_custom_call.1} parent=5 // pred_check
        %p3189 = pneg %p3188
      $region366: #{tpu_custom_call.1} parent=5 // pred_check_branch
        %3191 = sbr.rel (%p3189) target = $region368
      $region367: #{tpu_custom_call.1} parent=5 // pred_region
        // Predicated region
        $region369: #{tpu_custom_call.1} parent=367 // pred_check
          %p3192 = pneg %p257
        $region370: #{tpu_custom_call.1} parent=367 // pred_check_branch
          %3194 = sbr.rel (%p3192) target = $region372
        $region371: #{tpu_custom_call.1} parent=367 // pred_region
          %p3195 = scmp.lt.s32.totalorder %s237, 1
          %s3196 = scalar_select %p3195, %s237, 1
          %s3197 = smul.addr %s3196, 8
          %s3198 = scalar_lea.vmem %s1, %s3197
        $region372: #{tpu_custom_call.1} parent=367 // pred_fallthru
          _
        // Predicated region
        $region373: #{tpu_custom_call.1} parent=367 // pred_check
          %p3199 = pneg %p283
        $region374: #{tpu_custom_call.1} parent=367 // pred_check_branch
          %3201 = sbr.rel (%p3199) target = $region376
        $region375: #{tpu_custom_call.1} parent=367 // pred_region
          %p3202 = scmp.lt.s32.totalorder %s237, 1
          %s3203 = scalar_select %p3202, %s237, 1
          %s3204 = smul.addr %s3203, 8
          %s3205 = scalar_lea.vmem %s3, %s3204
        $region376: #{tpu_custom_call.1} parent=367 // pred_fallthru
          _
        // Predicated region
        $region377: #{tpu_custom_call.1} parent=367 // pred_check
          %p3206 = pneg %p309
        $region378: #{tpu_custom_call.1} parent=367 // pred_check_branch
          %3208 = sbr.rel (%p3206) target = $region380
        $region379: #{tpu_custom_call.1} parent=367 // pred_region
          %p3209 = scmp.lt.s32.totalorder %s237, 1
          %s3210 = scalar_select %p3209, %s237, 1
          %s3211 = smul.addr %s3210, 8
          %s3212 = scalar_lea.vmem %s5, %s3211
        $region380: #{tpu_custom_call.1} parent=367 // pred_fallthru
          _
        // Predicated region
        $region381: #{tpu_custom_call.1} parent=367 // pred_check
          %p3213 = pneg %p335
        $region382: #{tpu_custom_call.1} parent=367 // pred_check_branch
          %3215 = sbr.rel (%p3213) target = $region384
        $region383: #{tpu_custom_call.1} parent=367 // pred_region
          %p3216 = scmp.lt.s32.totalorder %s237, 1
          %s3217 = scalar_select %p3216, %s237, 1
          %s3218 = smul.addr %s3217, 2
          %s3219 = smul.addr %s3218, 8
          %s3220 = scalar_lea.vmem %s7, %s3219
        $region384: #{tpu_custom_call.1} parent=367 // pred_fallthru
          _
        // Predicated region
        $region385: #{tpu_custom_call.1} parent=367 // pred_check
          %p3221 = pneg %p361
        $region386: #{tpu_custom_call.1} parent=367 // pred_check_branch
          %3223 = sbr.rel (%p3221) target = $region388
        $region387: #{tpu_custom_call.1} parent=367 // pred_region
          %p3224 = scmp.lt.s32.totalorder %s237, 1
          %s3225 = scalar_select %p3224, %s237, 1
          %s3226 = smul.addr %s3225, 2
          %s3227 = smul.addr %s3226, 8
          %s3228 = scalar_lea.vmem %s9, %s3227
        $region388: #{tpu_custom_call.1} parent=367 // pred_fallthru
          _
        // Predicated region
        $region389: #{tpu_custom_call.1} parent=367 // pred_check
          %p3229 = pneg %p387
        $region390: #{tpu_custom_call.1} parent=367 // pred_check_branch
          %3231 = sbr.rel (%p3229) target = $region392
        $region391: #{tpu_custom_call.1} parent=367 // pred_region
          %p3232 = scmp.lt.s32.totalorder %s237, 1
          %s3233 = scalar_select %p3232, %s237, 1
          %s3234 = smul.addr %s3233, 8
          %s3235 = scalar_lea.vmem %s11, %s3234
        $region392: #{tpu_custom_call.1} parent=367 // pred_fallthru
          _
      $region368: #{tpu_custom_call.1} parent=5 // pred_fallthru
        _
      %p3236 = scmp.le.s32.totalorder 1, %s237
      %p3237 = scmp.lt.s32.totalorder %s237, 3
      %p3238 = pnand %p3236, %p3237
      %p3239 = pneg %p3238
      // Predicated region
      $region393: #{tpu_custom_call.1} parent=5 // pred_check
        _
      $region394: #{tpu_custom_call.1} parent=5 // pred_check_branch
        %3241 = sbr.rel (%p3238) target = $region396
      $region395: #{tpu_custom_call.1} parent=5 // pred_region
        %s3242 = ssub.s32 %s237, 1
        // Predicated region
        $region397: #{tpu_custom_call.1} parent=395 // pred_check
          %p3243 = pneg %p456
        $region398: #{tpu_custom_call.1} parent=395 // pred_check_branch
          %3245 = sbr.rel (%p3243) target = $region400
        $region399: #{tpu_custom_call.1} parent=395 // pred_region
          %3247 = dma.done [#allocation3], 128
        $region400: #{tpu_custom_call.1} parent=395 // pred_fallthru
          _
        // Predicated region
        $region401: #{tpu_custom_call.1} parent=395 // pred_check
          %p3248 = pneg %p477
        $region402: #{tpu_custom_call.1} parent=395 // pred_check_branch
          %3250 = sbr.rel (%p3248) target = $region404
        $region403: #{tpu_custom_call.1} parent=395 // pred_region
          %3252 = dma.done [#allocation6], 16
        $region404: #{tpu_custom_call.1} parent=395 // pred_fallthru
          _
        // Predicated region
        $region405: #{tpu_custom_call.1} parent=395 // pred_check
          %p3253 = pneg %p498
        $region406: #{tpu_custom_call.1} parent=395 // pred_check_branch
          %3255 = sbr.rel (%p3253) target = $region408
        $region407: #{tpu_custom_call.1} parent=395 // pred_region
          %3257 = dma.done [#allocation6], 64
        $region408: #{tpu_custom_call.1} parent=395 // pred_fallthru
          _
        // Predicated region
        $region409: #{tpu_custom_call.1} parent=395 // pred_check
          %p3258 = pneg %p519
        $region410: #{tpu_custom_call.1} parent=395 // pred_check_branch
          %3260 = sbr.rel (%p3258) target = $region412
        $region411: #{tpu_custom_call.1} parent=395 // pred_region
          %3262 = dma.done [#allocation9], 16
        $region412: #{tpu_custom_call.1} parent=395 // pred_fallthru
          _
        // Predicated region
        $region413: #{tpu_custom_call.1} parent=395 // pred_check
          %p3263 = pneg %p561
        $region414: #{tpu_custom_call.1} parent=395 // pred_check_branch
          %3265 = sbr.rel (%p3263) target = $region416
        $region415: #{tpu_custom_call.1} parent=395 // pred_region
          %3267 = dma.done [#allocation9], 16
        $region416: #{tpu_custom_call.1} parent=395 // pred_fallthru
          _
        // Predicated region
        $region417: #{tpu_custom_call.1} parent=395 // pred_check
          %p3268 = pneg %p603
        $region418: #{tpu_custom_call.1} parent=395 // pred_check_branch
          %3270 = sbr.rel (%p3268) target = $region420
        $region419: #{tpu_custom_call.1} parent=395 // pred_region
          %3272 = dma.done [#allocation12], 16
        $region420: #{tpu_custom_call.1} parent=395 // pred_fallthru
          _
        // Predicated region
        $region421: #{tpu_custom_call.1} parent=395 // pred_check
          %p3273 = pneg %p624
        $region422: #{tpu_custom_call.1} parent=395 // pred_check_branch
          %3275 = sbr.rel (%p3273) target = $region424
        $region423: #{tpu_custom_call.1} parent=395 // pred_region
          %3277 = dma.done [#allocation12], 32
        $region424: #{tpu_custom_call.1} parent=395 // pred_fallthru
          _
        // Predicated region
        $region425: #{tpu_custom_call.1} parent=395 // pred_check
          %p3278 = pneg %p687
        $region426: #{tpu_custom_call.1} parent=395 // pred_check_branch
          %3280 = sbr.rel (%p3278) target = $region428
        $region427: #{tpu_custom_call.1} parent=395 // pred_region
          %3282 = dma.done [#allocation15], 16
        $region428: #{tpu_custom_call.1} parent=395 // pred_fallthru
          _
        // Predicated region
        $region429: #{tpu_custom_call.1} parent=395 // pred_check
          %p3283 = pneg %p750
        $region430: #{tpu_custom_call.1} parent=395 // pred_check_branch
          %3285 = sbr.rel (%p3283) target = $region432
        $region431: #{tpu_custom_call.1} parent=395 // pred_region
          %3287 = dma.done [#allocation15], 64
        $region432: #{tpu_custom_call.1} parent=395 // pred_fallthru
          _
        // Predicated region
        $region433: #{tpu_custom_call.1} parent=395 // pred_check
          %p3288 = pneg %p771
        $region434: #{tpu_custom_call.1} parent=395 // pred_check_branch
          %3290 = sbr.rel (%p3288) target = $region436
        $region435: #{tpu_custom_call.1} parent=395 // pred_region
          %3292 = dma.done [#allocation18], 64
        $region436: #{tpu_custom_call.1} parent=395 // pred_fallthru
          _
        // Predicated region
        $region437: #{tpu_custom_call.1} parent=395 // pred_check
          %p3293 = pneg %p792
        $region438: #{tpu_custom_call.1} parent=395 // pred_check_branch
          %3295 = sbr.rel (%p3293) target = $region440
        $region439: #{tpu_custom_call.1} parent=395 // pred_region
          %3297 = dma.done [#allocation18], 16
        $region440: #{tpu_custom_call.1} parent=395 // pred_fallthru
          _
        // Predicated region
        $region441: #{tpu_custom_call.1} parent=395 // pred_check
          %p3298 = pneg %p855
        $region442: #{tpu_custom_call.1} parent=395 // pred_check_branch
          %3300 = sbr.rel (%p3298) target = $region444
        $region443: #{tpu_custom_call.1} parent=395 // pred_region
          %3302 = dma.done [#allocation21], 16
        $region444: #{tpu_custom_call.1} parent=395 // pred_fallthru
          _
        // Predicated region
        $region445: #{tpu_custom_call.1} parent=395 // pred_check
          %p3303 = pneg %p918
        $region446: #{tpu_custom_call.1} parent=395 // pred_check_branch
          %3305 = sbr.rel (%p3303) target = $region448
        $region447: #{tpu_custom_call.1} parent=395 // pred_region
          %3307 = dma.done [#allocation21], 64
        $region448: #{tpu_custom_call.1} parent=395 // pred_fallthru
          _
        // Predicated region
        $region449: #{tpu_custom_call.1} parent=395 // pred_check
          %p3308 = pneg %p939
        $region450: #{tpu_custom_call.1} parent=395 // pred_check_branch
          %3310 = sbr.rel (%p3308) target = $region452
        $region451: #{tpu_custom_call.1} parent=395 // pred_region
          %3312 = dma.done [#allocation24], 64
        $region452: #{tpu_custom_call.1} parent=395 // pred_fallthru
          _
        // Predicated region
        $region453: #{tpu_custom_call.1} parent=395 // pred_check
          %p3313 = pneg %p960
        $region454: #{tpu_custom_call.1} parent=395 // pred_check_branch
          %3315 = sbr.rel (%p3313) target = $region456
        $region455: #{tpu_custom_call.1} parent=395 // pred_region
          %3317 = dma.done [#allocation24], 16
        $region456: #{tpu_custom_call.1} parent=395 // pred_fallthru
          _
        // Predicated region
        $region457: #{tpu_custom_call.1} parent=395 // pred_check
          %p3318 = pneg %p1023
        $region458: #{tpu_custom_call.1} parent=395 // pred_check_branch
          %3320 = sbr.rel (%p3318) target = $region460
        $region459: #{tpu_custom_call.1} parent=395 // pred_region
          %3322 = dma.done [#allocation27], 16
        $region460: #{tpu_custom_call.1} parent=395 // pred_fallthru
          _
        // Predicated region
        $region461: #{tpu_custom_call.1} parent=395 // pred_check
          %p3323 = pneg %p1044
        $region462: #{tpu_custom_call.1} parent=395 // pred_check_branch
          %3325 = sbr.rel (%p3323) target = $region464
        $region463: #{tpu_custom_call.1} parent=395 // pred_region
          %3327 = dma.done [#allocation27], 32
        $region464: #{tpu_custom_call.1} parent=395 // pred_fallthru
          _
        // Predicated region
        $region465: #{tpu_custom_call.1} parent=395 // pred_check
          %p3328 = pneg %p1086
        $region466: #{tpu_custom_call.1} parent=395 // pred_check_branch
          %3330 = sbr.rel (%p3328) target = $region468
        $region467: #{tpu_custom_call.1} parent=395 // pred_region
          %3332 = dma.done [#allocation30], 128
        $region468: #{tpu_custom_call.1} parent=395 // pred_fallthru
          _
        // Predicated region
        $region469: #{tpu_custom_call.1} parent=395 // pred_check
          %p3333 = pneg %p1107
        $region470: #{tpu_custom_call.1} parent=395 // pred_check_branch
          %3335 = sbr.rel (%p3333) target = $region472
        $region471: #{tpu_custom_call.1} parent=395 // pred_region
          %3337 = dma.done [#allocation30], 16
        $region472: #{tpu_custom_call.1} parent=395 // pred_fallthru
          _
        // Predicated region
        $region473: #{tpu_custom_call.1} parent=395 // pred_check
          %p3338 = pneg %p1170
        $region474: #{tpu_custom_call.1} parent=395 // pred_check_branch
          %3340 = sbr.rel (%p3338) target = $region476
        $region475: #{tpu_custom_call.1} parent=395 // pred_region
          %3342 = dma.done [#allocation33], 64
        $region476: #{tpu_custom_call.1} parent=395 // pred_fallthru
          _
        // Predicated region
        $region477: #{tpu_custom_call.1} parent=395 // pred_check
          %p3343 = pneg %p1191
        $region478: #{tpu_custom_call.1} parent=395 // pred_check_branch
          %3345 = sbr.rel (%p3343) target = $region480
        $region479: #{tpu_custom_call.1} parent=395 // pred_region
          %3347 = dma.done [#allocation33], 16
        $region480: #{tpu_custom_call.1} parent=395 // pred_fallthru
          _
        // Predicated region
        $region481: #{tpu_custom_call.1} parent=395 // pred_check
          %p3348 = pneg %p1254
        $region482: #{tpu_custom_call.1} parent=395 // pred_check_branch
          %3350 = sbr.rel (%p3348) target = $region484
        $region483: #{tpu_custom_call.1} parent=395 // pred_region
          %3352 = dma.done [#allocation36], 16
        $region484: #{tpu_custom_call.1} parent=395 // pred_fallthru
          _
        // Predicated region
        $region485: #{tpu_custom_call.1} parent=395 // pred_check
          %p3353 = pneg %p1275
        $region486: #{tpu_custom_call.1} parent=395 // pred_check_branch
          %3355 = sbr.rel (%p3353) target = $region488
        $region487: #{tpu_custom_call.1} parent=395 // pred_region
          %3357 = dma.done [#allocation36], 256
        $region488: #{tpu_custom_call.1} parent=395 // pred_fallthru
          _
        // Predicated region
        $region489: #{tpu_custom_call.1} parent=395 // pred_check
          %p3358 = pneg %p1296
        $region490: #{tpu_custom_call.1} parent=395 // pred_check_branch
          %3360 = sbr.rel (%p3358) target = $region492
        $region491: #{tpu_custom_call.1} parent=395 // pred_region
          %3362 = dma.done [#allocation39], 256
        $region492: #{tpu_custom_call.1} parent=395 // pred_fallthru
          _
        // Predicated region
        $region493: #{tpu_custom_call.1} parent=395 // pred_check
          %p3363 = pneg %p1317
        $region494: #{tpu_custom_call.1} parent=395 // pred_check_branch
          %3365 = sbr.rel (%p3363) target = $region496
        $region495: #{tpu_custom_call.1} parent=395 // pred_region
          %3367 = dma.done [#allocation39], 64
        $region496: #{tpu_custom_call.1} parent=395 // pred_fallthru
          _
        // Predicated region
        $region497: #{tpu_custom_call.1} parent=395 // pred_check
          %p3368 = pneg %p1338
        $region498: #{tpu_custom_call.1} parent=395 // pred_check_branch
          %3370 = sbr.rel (%p3368) target = $region500
        $region499: #{tpu_custom_call.1} parent=395 // pred_region
          %3372 = dma.done [#allocation42], 16
        $region500: #{tpu_custom_call.1} parent=395 // pred_fallthru
          _
        // Predicated region
        $region501: #{tpu_custom_call.1} parent=395 // pred_check
          %p3373 = pneg %p1359
        $region502: #{tpu_custom_call.1} parent=395 // pred_check_branch
          %3375 = sbr.rel (%p3373) target = $region504
        $region503: #{tpu_custom_call.1} parent=395 // pred_region
          %3377 = dma.done [#allocation42], 256
        $region504: #{tpu_custom_call.1} parent=395 // pred_fallthru
          _
        // Predicated region
        $region505: #{tpu_custom_call.1} parent=395 // pred_check
          %p3378 = pneg %p1380
        $region506: #{tpu_custom_call.1} parent=395 // pred_check_branch
          %3380 = sbr.rel (%p3378) target = $region508
        $region507: #{tpu_custom_call.1} parent=395 // pred_region
          %3382 = dma.done [#allocation45], 256
        $region508: #{tpu_custom_call.1} parent=395 // pred_fallthru
          _
        // Predicated region
        $region509: #{tpu_custom_call.1} parent=395 // pred_check
          %p3383 = pneg %p1401
        $region510: #{tpu_custom_call.1} parent=395 // pred_check_branch
          %3385 = sbr.rel (%p3383) target = $region512
        $region511: #{tpu_custom_call.1} parent=395 // pred_region
          %3387 = dma.done [#allocation45], 16
        $region512: #{tpu_custom_call.1} parent=395 // pred_fallthru
          _
        // Predicated region
        $region513: #{tpu_custom_call.1} parent=395 // pred_check
          %p3388 = pneg %p1443
        $region514: #{tpu_custom_call.1} parent=395 // pred_check_branch
          %3390 = sbr.rel (%p3388) target = $region516
        $region515: #{tpu_custom_call.1} parent=395 // pred_region
          %3392 = dma.done [#allocation48], 16
        $region516: #{tpu_custom_call.1} parent=395 // pred_fallthru
          _
        // Predicated region
        $region517: #{tpu_custom_call.1} parent=395 // pred_check
          %p3393 = pneg %p1485
        $region518: #{tpu_custom_call.1} parent=395 // pred_check_branch
          %3395 = sbr.rel (%p3393) target = $region520
        $region519: #{tpu_custom_call.1} parent=395 // pred_region
          %3397 = dma.done [#allocation48], 16
        $region520: #{tpu_custom_call.1} parent=395 // pred_fallthru
          _
        // Predicated region
        $region521: #{tpu_custom_call.1} parent=395 // pred_check
          %p3398 = pneg %p1506
        $region522: #{tpu_custom_call.1} parent=395 // pred_check_branch
          %3400 = sbr.rel (%p3398) target = $region524
        $region523: #{tpu_custom_call.1} parent=395 // pred_region
          %3402 = dma.done [#allocation51], 32
        $region524: #{tpu_custom_call.1} parent=395 // pred_fallthru
          _
        // Predicated region
        $region525: #{tpu_custom_call.1} parent=395 // pred_check
          %p3403 = pneg %p1527
        $region526: #{tpu_custom_call.1} parent=395 // pred_check_branch
          %3405 = sbr.rel (%p3403) target = $region528
        $region527: #{tpu_custom_call.1} parent=395 // pred_region
          %3407 = dma.done [#allocation51], 256
        $region528: #{tpu_custom_call.1} parent=395 // pred_fallthru
          _
        // Predicated region
        $region529: #{tpu_custom_call.1} parent=395 // pred_check
          %p3408 = pneg %p1548
        $region530: #{tpu_custom_call.1} parent=395 // pred_check_branch
          %3410 = sbr.rel (%p3408) target = $region532
        $region531: #{tpu_custom_call.1} parent=395 // pred_region
          %3412 = dma.done [#allocation54], 16
        $region532: #{tpu_custom_call.1} parent=395 // pred_fallthru
          _
        // Predicated region
        $region533: #{tpu_custom_call.1} parent=395 // pred_check
          %p3413 = pneg %p1590
        $region534: #{tpu_custom_call.1} parent=395 // pred_check_branch
          %3415 = sbr.rel (%p3413) target = $region536
        $region535: #{tpu_custom_call.1} parent=395 // pred_region
          %3417 = dma.done [#allocation54], 256
        $region536: #{tpu_custom_call.1} parent=395 // pred_fallthru
          _
        // Predicated region
        $region537: #{tpu_custom_call.1} parent=395 // pred_check
          %p3418 = pneg %p1611
        $region538: #{tpu_custom_call.1} parent=395 // pred_check_branch
          %3420 = sbr.rel (%p3418) target = $region540
        $region539: #{tpu_custom_call.1} parent=395 // pred_region
          %3422 = dma.done [#allocation57], 64
        $region540: #{tpu_custom_call.1} parent=395 // pred_fallthru
          _
        // Predicated region
        $region541: #{tpu_custom_call.1} parent=395 // pred_check
          %p3423 = pneg %p1632
        $region542: #{tpu_custom_call.1} parent=395 // pred_check_branch
          %3425 = sbr.rel (%p3423) target = $region544
        $region543: #{tpu_custom_call.1} parent=395 // pred_region
          %3427 = dma.done [#allocation57], 16
        $region544: #{tpu_custom_call.1} parent=395 // pred_fallthru
          _
        // Predicated region
        $region545: #{tpu_custom_call.1} parent=395 // pred_check
          %p3428 = pneg %p1653
        $region546: #{tpu_custom_call.1} parent=395 // pred_check_branch
          %3430 = sbr.rel (%p3428) target = $region548
        $region547: #{tpu_custom_call.1} parent=395 // pred_region
          %3432 = dma.done [#allocation60], 256
        $region548: #{tpu_custom_call.1} parent=395 // pred_fallthru
          _
        // Predicated region
        $region549: #{tpu_custom_call.1} parent=395 // pred_check
          %p3433 = pneg %p1674
        $region550: #{tpu_custom_call.1} parent=395 // pred_check_branch
          %3435 = sbr.rel (%p3433) target = $region552
        $region551: #{tpu_custom_call.1} parent=395 // pred_region
          %3437 = dma.done [#allocation60], 256
        $region552: #{tpu_custom_call.1} parent=395 // pred_fallthru
          _
        // Predicated region
        $region553: #{tpu_custom_call.1} parent=395 // pred_check
          %p3438 = pneg %p1695
        $region554: #{tpu_custom_call.1} parent=395 // pred_check_branch
          %3440 = sbr.rel (%p3438) target = $region556
        $region555: #{tpu_custom_call.1} parent=395 // pred_region
          %3442 = dma.done [#allocation63], 16
        $region556: #{tpu_custom_call.1} parent=395 // pred_fallthru
          _
        // Predicated region
        $region557: #{tpu_custom_call.1} parent=395 // pred_check
          %p3443 = pneg %p1716
        $region558: #{tpu_custom_call.1} parent=395 // pred_check_branch
          %3445 = sbr.rel (%p3443) target = $region560
        $region559: #{tpu_custom_call.1} parent=395 // pred_region
          %3447 = dma.done [#allocation63], 256
        $region560: #{tpu_custom_call.1} parent=395 // pred_fallthru
          _
        // Predicated region
        $region561: #{tpu_custom_call.1} parent=395 // pred_check
          %p3448 = pneg %p1737
        $region562: #{tpu_custom_call.1} parent=395 // pred_check_branch
          %3450 = sbr.rel (%p3448) target = $region564
        $region563: #{tpu_custom_call.1} parent=395 // pred_region
          %3452 = dma.done [#allocation66], 256
        $region564: #{tpu_custom_call.1} parent=395 // pred_fallthru
          _
        // Predicated region
        $region565: #{tpu_custom_call.1} parent=395 // pred_check
          %p3453 = pneg %p1758
        $region566: #{tpu_custom_call.1} parent=395 // pred_check_branch
          %3455 = sbr.rel (%p3453) target = $region568
        $region567: #{tpu_custom_call.1} parent=395 // pred_region
          %3457 = dma.done [#allocation66], 64
        $region568: #{tpu_custom_call.1} parent=395 // pred_fallthru
          _
        // Predicated region
        $region569: #{tpu_custom_call.1} parent=395 // pred_check
          %p3458 = pneg %p1779
        $region570: #{tpu_custom_call.1} parent=395 // pred_check_branch
          %3460 = sbr.rel (%p3458) target = $region572
        $region571: #{tpu_custom_call.1} parent=395 // pred_region
          %3462 = dma.done [#allocation69], 16
        $region572: #{tpu_custom_call.1} parent=395 // pred_fallthru
          _
        // Predicated region
        $region573: #{tpu_custom_call.1} parent=395 // pred_check
          %p3463 = pneg %p1800
        $region574: #{tpu_custom_call.1} parent=395 // pred_check_branch
          %3465 = sbr.rel (%p3463) target = $region576
        $region575: #{tpu_custom_call.1} parent=395 // pred_region
          %3467 = dma.done [#allocation69], 256
        $region576: #{tpu_custom_call.1} parent=395 // pred_fallthru
          _
        // Predicated region
        $region577: #{tpu_custom_call.1} parent=395 // pred_check
          %p3468 = pneg %p1821
        $region578: #{tpu_custom_call.1} parent=395 // pred_check_branch
          %3470 = sbr.rel (%p3468) target = $region580
        $region579: #{tpu_custom_call.1} parent=395 // pred_region
          %3472 = dma.done [#allocation72], 256
        $region580: #{tpu_custom_call.1} parent=395 // pred_fallthru
          _
        // Predicated region
        $region581: #{tpu_custom_call.1} parent=395 // pred_check
          %p3473 = pneg %p1842
        $region582: #{tpu_custom_call.1} parent=395 // pred_check_branch
          %3475 = sbr.rel (%p3473) target = $region584
        $region583: #{tpu_custom_call.1} parent=395 // pred_region
          %3477 = dma.done [#allocation72], 16
        $region584: #{tpu_custom_call.1} parent=395 // pred_fallthru
          _
        // Predicated region
        $region585: #{tpu_custom_call.1} parent=395 // pred_check
          %p3478 = pneg %p1863
        $region586: #{tpu_custom_call.1} parent=395 // pred_check_branch
          %3480 = sbr.rel (%p3478) target = $region588
        $region587: #{tpu_custom_call.1} parent=395 // pred_region
          %3482 = dma.done [#allocation75], 256
        $region588: #{tpu_custom_call.1} parent=395 // pred_fallthru
          _
        // Predicated region
        $region589: #{tpu_custom_call.1} parent=395 // pred_check
          %p3483 = pneg %p1884
        $region590: #{tpu_custom_call.1} parent=395 // pred_check_branch
          %3485 = sbr.rel (%p3483) target = $region592
        $region591: #{tpu_custom_call.1} parent=395 // pred_region
          %3487 = dma.done [#allocation75], 16
        $region592: #{tpu_custom_call.1} parent=395 // pred_fallthru
          _
        // Predicated region
        $region593: #{tpu_custom_call.1} parent=395 // pred_check
          %p3488 = pneg %p1926
        $region594: #{tpu_custom_call.1} parent=395 // pred_check_branch
          %3490 = sbr.rel (%p3488) target = $region596
        $region595: #{tpu_custom_call.1} parent=395 // pred_region
          %3492 = dma.done [#allocation78], 256
        $region596: #{tpu_custom_call.1} parent=395 // pred_fallthru
          _
        // Predicated region
        $region597: #{tpu_custom_call.1} parent=395 // pred_check
          %p3493 = pneg %p1947
        $region598: #{tpu_custom_call.1} parent=395 // pred_check_branch
          %3495 = sbr.rel (%p3493) target = $region600
        $region599: #{tpu_custom_call.1} parent=395 // pred_region
          %3497 = dma.done [#allocation78], 64
        $region600: #{tpu_custom_call.1} parent=395 // pred_fallthru
          _
        // Predicated region
        $region601: #{tpu_custom_call.1} parent=395 // pred_check
          %p3498 = pneg %p1968
        $region602: #{tpu_custom_call.1} parent=395 // pred_check_branch
          %3500 = sbr.rel (%p3498) target = $region604
        $region603: #{tpu_custom_call.1} parent=395 // pred_region
          %3502 = dma.done [#allocation81], 16
        $region604: #{tpu_custom_call.1} parent=395 // pred_fallthru
          _
        // Predicated region
        $region605: #{tpu_custom_call.1} parent=395 // pred_check
          %p3503 = pneg %p1989
        $region606: #{tpu_custom_call.1} parent=395 // pred_check_branch
          %3505 = sbr.rel (%p3503) target = $region608
        $region607: #{tpu_custom_call.1} parent=395 // pred_region
          %3507 = dma.done [#allocation81], 256
        $region608: #{tpu_custom_call.1} parent=395 // pred_fallthru
          _
        // Predicated region
        $region609: #{tpu_custom_call.1} parent=395 // pred_check
          %p3508 = pneg %p2010
        $region610: #{tpu_custom_call.1} parent=395 // pred_check_branch
          %3510 = sbr.rel (%p3508) target = $region612
        $region611: #{tpu_custom_call.1} parent=395 // pred_region
          %3512 = dma.done [#allocation84], 256
        $region612: #{tpu_custom_call.1} parent=395 // pred_fallthru
          _
        // Predicated region
        $region613: #{tpu_custom_call.1} parent=395 // pred_check
          %p3513 = pneg %p2031
        $region614: #{tpu_custom_call.1} parent=395 // pred_check_branch
          %3515 = sbr.rel (%p3513) target = $region616
        $region615: #{tpu_custom_call.1} parent=395 // pred_region
          %3517 = dma.done [#allocation84], 16
        $region616: #{tpu_custom_call.1} parent=395 // pred_fallthru
          _
        // Predicated region
        $region617: #{tpu_custom_call.1} parent=395 // pred_check
          %p3518 = pneg %p2052
        $region618: #{tpu_custom_call.1} parent=395 // pred_check_branch
          %3520 = sbr.rel (%p3518) target = $region620
        $region619: #{tpu_custom_call.1} parent=395 // pred_region
          %3522 = dma.done [#allocation87], 256
        $region620: #{tpu_custom_call.1} parent=395 // pred_fallthru
          _
        // Predicated region
        $region621: #{tpu_custom_call.1} parent=395 // pred_check
          %p3523 = pneg %p2073
        $region622: #{tpu_custom_call.1} parent=395 // pred_check_branch
          %3525 = sbr.rel (%p3523) target = $region624
        $region623: #{tpu_custom_call.1} parent=395 // pred_region
          %3527 = dma.done [#allocation87], 256
        $region624: #{tpu_custom_call.1} parent=395 // pred_fallthru
          _
        // Predicated region
        $region625: #{tpu_custom_call.1} parent=395 // pred_check
          %p3528 = pneg %p2094
        $region626: #{tpu_custom_call.1} parent=395 // pred_check_branch
          %3530 = sbr.rel (%p3528) target = $region628
        $region627: #{tpu_custom_call.1} parent=395 // pred_region
          %3532 = dma.done [#allocation90], 64
        $region628: #{tpu_custom_call.1} parent=395 // pred_fallthru
          _
        // Predicated region
        $region629: #{tpu_custom_call.1} parent=395 // pred_check
          %p3533 = pneg %p2115
        $region630: #{tpu_custom_call.1} parent=395 // pred_check_branch
          %3535 = sbr.rel (%p3533) target = $region632
        $region631: #{tpu_custom_call.1} parent=395 // pred_region
          %3537 = dma.done [#allocation90], 16
        $region632: #{tpu_custom_call.1} parent=395 // pred_fallthru
          _
        // Predicated region
        $region633: #{tpu_custom_call.1} parent=395 // pred_check
          %p3538 = pneg %p2136
        $region634: #{tpu_custom_call.1} parent=395 // pred_check_branch
          %3540 = sbr.rel (%p3538) target = $region636
        $region635: #{tpu_custom_call.1} parent=395 // pred_region
          %3542 = dma.done [#allocation93], 256
        $region636: #{tpu_custom_call.1} parent=395 // pred_fallthru
          _
        // Predicated region
        $region637: #{tpu_custom_call.1} parent=395 // pred_check
          %p3543 = pneg %p2157
        $region638: #{tpu_custom_call.1} parent=395 // pred_check_branch
          %3545 = sbr.rel (%p3543) target = $region640
        $region639: #{tpu_custom_call.1} parent=395 // pred_region
          %3547 = dma.done [#allocation93], 256
        $region640: #{tpu_custom_call.1} parent=395 // pred_fallthru
          _
        // Predicated region
        $region641: #{tpu_custom_call.1} parent=395 // pred_check
          %p3548 = pneg %p2178
        $region642: #{tpu_custom_call.1} parent=395 // pred_check_branch
          %3550 = sbr.rel (%p3548) target = $region644
        $region643: #{tpu_custom_call.1} parent=395 // pred_region
          %3552 = dma.done [#allocation96], 16
        $region644: #{tpu_custom_call.1} parent=395 // pred_fallthru
          _
        // Predicated region
        $region645: #{tpu_custom_call.1} parent=395 // pred_check
          %p3553 = pneg %p2199
        $region646: #{tpu_custom_call.1} parent=395 // pred_check_branch
          %3555 = sbr.rel (%p3553) target = $region648
        $region647: #{tpu_custom_call.1} parent=395 // pred_region
          %3557 = dma.done [#allocation96], 32
        $region648: #{tpu_custom_call.1} parent=395 // pred_fallthru
          _
        // Predicated region
        $region649: #{tpu_custom_call.1} parent=395 // pred_check
          %p3558 = pneg %p2220
        $region650: #{tpu_custom_call.1} parent=395 // pred_check_branch
          %3560 = sbr.rel (%p3558) target = $region652
        $region651: #{tpu_custom_call.1} parent=395 // pred_region
          %3562 = dma.done [#allocation99], 16
        $region652: #{tpu_custom_call.1} parent=395 // pred_fallthru
          _
        %p3563 = scmp.lt.s32.totalorder %s242, 1
        %s3564 = scalar_select %p3563, %s242, 1
        %s3565 = smul.addr %s3564, 8
        %s3566 = scalar_lea.vmem %s1, %s3565
        %p3567 = pneg %p263
        %p3568 = pneg %p260
        %p3569 = scmp.lt.s32.totalorder %s242, 1
        %s3570 = scalar_select %p3569, %s242, 1
        %s3571 = smul.addr %s3570, 8
        %s3572 = scalar_lea.vmem %s3, %s3571
        %p3573 = pneg %p289
        %p3574 = pneg %p286
        %p3575 = scmp.lt.s32.totalorder %s242, 1
        %s3576 = scalar_select %p3575, %s242, 1
        %s3577 = smul.addr %s3576, 8
        %s3578 = scalar_lea.vmem %s5, %s3577
        %p3579 = pneg %p315
        %p3580 = pneg %p312
        %p3581 = scmp.lt.s32.totalorder %s242, 1
        %s3582 = scalar_select %p3581, %s242, 1
        %s3583 = smul.addr %s3582, 2
        %s3584 = smul.addr %s3583, 8
        %s3585 = scalar_lea.vmem %s7, %s3584
        %p3586 = pneg %p341
        %p3587 = pneg %p338
        %p3588 = scmp.lt.s32.totalorder %s242, 1
        %s3589 = scalar_select %p3588, %s242, 1
        %s3590 = smul.addr %s3589, 2
        %s3591 = smul.addr %s3590, 8
        %s3592 = scalar_lea.vmem %s9, %s3591
        %p3593 = pneg %p367
        %p3594 = pneg %p364
        %p3595 = scmp.lt.s32.totalorder %s242, 1
        %s3596 = scalar_select %p3595, %s242, 1
        %s3597 = smul.addr %s3596, 8
        %s3598 = scalar_lea.vmem %s11, %s3597
        %p3599 = pneg %p393
        %p3600 = pneg %p390
        %p3601 = pneg %p414
        %p3602 = pneg %p411
        %p3603 = pneg %p435
        %p3604 = pneg %p432
        %p3605 = pneg %p456
        %p3606 = pneg %p453
        %p3607 = pneg %p477
        %p3608 = pneg %p474
        %p3609 = pneg %p498
        %p3610 = pneg %p495
        %p3611 = pneg %p519
        %p3612 = pneg %p516
        %p3613 = pneg %p540
        %p3614 = pneg %p537
        %p3615 = pneg %p561
        %p3616 = pneg %p558
        %p3617 = pneg %p582
        %p3618 = pneg %p579
        %p3619 = pneg %p603
        %p3620 = pneg %p600
        %p3621 = pneg %p624
        %p3622 = pneg %p621
        %p3623 = pneg %p645
        %p3624 = pneg %p642
        %p3625 = pneg %p666
        %p3626 = pneg %p663
        %p3627 = pneg %p687
        %p3628 = pneg %p684
        %p3629 = pneg %p708
        %p3630 = pneg %p705
        %p3631 = pneg %p729
        %p3632 = pneg %p726
        %p3633 = pneg %p750
        %p3634 = pneg %p747
        %p3635 = pneg %p771
        %p3636 = pneg %p768
        %p3637 = pneg %p792
        %p3638 = pneg %p789
        %p3639 = pneg %p813
        %p3640 = pneg %p810
        %p3641 = pneg %p834
        %p3642 = pneg %p831
        %p3643 = pneg %p855
        %p3644 = pneg %p852
        %p3645 = pneg %p876
        %p3646 = pneg %p873
        %p3647 = pneg %p897
        %p3648 = pneg %p894
        %p3649 = pneg %p918
        %p3650 = pneg %p915
        %p3651 = pneg %p939
        %p3652 = pneg %p936
        %p3653 = pneg %p960
        %p3654 = pneg %p957
        %p3655 = pneg %p981
        %p3656 = pneg %p978
        %p3657 = pneg %p1002
        %p3658 = pneg %p999
        %p3659 = pneg %p1023
        %p3660 = pneg %p1020
        %p3661 = pneg %p1044
        %p3662 = pneg %p1041
        %p3663 = pneg %p1065
        %p3664 = pneg %p1062
        %p3665 = pneg %p1086
        %p3666 = pneg %p1083
        %p3667 = pneg %p1107
        %p3668 = pneg %p1104
        %p3669 = pneg %p1128
        %p3670 = pneg %p1125
        %p3671 = pneg %p1149
        %p3672 = pneg %p1146
        %p3673 = pneg %p1170
        %p3674 = pneg %p1167
        %p3675 = pneg %p1191
        %p3676 = pneg %p1188
        %p3677 = pneg %p1212
        %p3678 = pneg %p1209
        %p3679 = pneg %p1233
        %p3680 = pneg %p1230
        %p3681 = pneg %p1254
        %p3682 = pneg %p1251
        %p3683 = pneg %p1275
        %p3684 = pneg %p1272
        %p3685 = pneg %p1296
        %p3686 = pneg %p1293
        %p3687 = pneg %p1317
        %p3688 = pneg %p1314
        %p3689 = pneg %p1338
        %p3690 = pneg %p1335
        %p3691 = pneg %p1359
        %p3692 = pneg %p1356
        %p3693 = pneg %p1380
        %p3694 = pneg %p1377
        %p3695 = pneg %p1401
        %p3696 = pneg %p1398
        %p3697 = pneg %p1422
        %p3698 = pneg %p1419
        %p3699 = pneg %p1443
        %p3700 = pneg %p1440
        %p3701 = pneg %p1464
        %p3702 = pneg %p1461
        %p3703 = pneg %p1485
        %p3704 = pneg %p1482
        %p3705 = pneg %p1506
        %p3706 = pneg %p1503
        %p3707 = pneg %p1527
        %p3708 = pneg %p1524
        %p3709 = pneg %p1548
        %p3710 = pneg %p1545
        %p3711 = pneg %p1569
        %p3712 = pneg %p1566
        %p3713 = pneg %p1590
        %p3714 = pneg %p1587
        %p3715 = pneg %p1611
        %p3716 = pneg %p1608
        %p3717 = pneg %p1632
        %p3718 = pneg %p1629
        %p3719 = pneg %p1653
        %p3720 = pneg %p1650
        %p3721 = pneg %p1674
        %p3722 = pneg %p1671
        %p3723 = pneg %p1695
        %p3724 = pneg %p1692
        %p3725 = pneg %p1716
        %p3726 = pneg %p1713
        %p3727 = pneg %p1737
        %p3728 = pneg %p1734
        %p3729 = pneg %p1758
        %p3730 = pneg %p1755
        %p3731 = pneg %p1779
        %p3732 = pneg %p1776
        %p3733 = pneg %p1800
        %p3734 = pneg %p1797
        %p3735 = pneg %p1821
        %p3736 = pneg %p1818
        %p3737 = pneg %p1842
        %p3738 = pneg %p1839
        %p3739 = pneg %p1863
        %p3740 = pneg %p1860
        %p3741 = pneg %p1884
        %p3742 = pneg %p1881
        %p3743 = pneg %p1905
        %p3744 = pneg %p1902
        %p3745 = pneg %p1926
        %p3746 = pneg %p1923
        %p3747 = pneg %p1947
        %p3748 = pneg %p1944
        %p3749 = pneg %p1968
        %p3750 = pneg %p1965
        %p3751 = pneg %p1989
        %p3752 = pneg %p1986
        %p3753 = pneg %p2010
        %p3754 = pneg %p2007
        %p3755 = pneg %p2031
        %p3756 = pneg %p2028
        %p3757 = pneg %p2052
        %p3758 = pneg %p2049
        %p3759 = pneg %p2073
        %p3760 = pneg %p2070
        %p3761 = pneg %p2094
        %p3762 = pneg %p2091
        %p3763 = pneg %p2115
        %p3764 = pneg %p2112
        %p3765 = pneg %p2136
        %p3766 = pneg %p2133
        %p3767 = pneg %p2157
        %p3768 = pneg %p2154
        %p3769 = pneg %p2178
        %p3770 = pneg %p2175
        %p3771 = pneg %p2199
        %p3772 = pneg %p2196
        %p3773 = pneg %p2220
        %p3774 = pneg %p2217
        %p3775 = pneg %p2241
        %p3776 = pneg %p2238
        %p3777 = pneg %p2267
        %p3778 = pneg %p2264
        %s3779 = sand.u32 %s2254, 1
        %s3780 = scalar_lea.sflag [#allocation4], %s3779
        %s3781 = sand.u32 %s2254, 1
        %s3782 = smul.addr %s3781, 8
        %s3783 = scalar_lea.vmem [#allocation100], %s3782
        %p3784 = pneg %p2293
        %p3785 = pneg %p2290
        %s3786 = sand.u32 %s2280, 1
        %s3787 = scalar_lea.sflag [#allocation102], %s3786
        %s3788 = sand.u32 %s2280, 1
        %s3789 = smul.addr %s3788, 8
        %s3790 = scalar_lea.vmem [#allocation101], %s3789
        %p3791 = scmp.lt.s32.totalorder %s242, 1
        %s3792 = scalar_select %p3791, %s242, 1
        %s3793 = smul.addr %s3792, 8
        %s3794 = scalar_lea.vmem %s1, %s3793
        %p3795 = scmp.lt.s32.totalorder %s242, 1
        %s3796 = scalar_select %p3795, %s242, 1
        %s3797 = smul.addr %s3796, 8
        %s3798 = scalar_lea.vmem %s3, %s3797
        %p3799 = scmp.lt.s32.totalorder %s242, 1
        %s3800 = scalar_select %p3799, %s242, 1
        %s3801 = smul.addr %s3800, 8
        %s3802 = scalar_lea.vmem %s5, %s3801
        %p3803 = scmp.lt.s32.totalorder %s242, 1
        %s3804 = scalar_select %p3803, %s242, 1
        %s3805 = smul.addr %s3804, 2
        %s3806 = smul.addr %s3805, 8
        %s3807 = scalar_lea.vmem %s7, %s3806
        %p3808 = scmp.lt.s32.totalorder %s242, 1
        %s3809 = scalar_select %p3808, %s242, 1
        %s3810 = smul.addr %s3809, 2
        %s3811 = smul.addr %s3810, 8
        %s3812 = scalar_lea.vmem %s9, %s3811
        %p3813 = scmp.lt.s32.totalorder %s242, 1
        %s3814 = scalar_select %p3813, %s242, 1
        %s3815 = smul.addr %s3814, 8
        %s3816 = scalar_lea.vmem %s11, %s3815
        %v3817 = vld [vmem:[%s3794] sm:$0xff]
        %v3818 = vld [vmem:[%s3798] sm:$0xff]
        %v3819 = vld [vmem:[%s3802] sm:$0xff]
        %v3820 = vld [vmem:[%s3807] sm:$0xff]
        %v3821 = vld [vmem:[%s3807 + $0x8] sm:$0xff]
        %v3822 = vld [vmem:[%s3812] sm:$0xff]
        %v3823 = vld [vmem:[%s3812 + $0x8] sm:$0xff]
        %v3824 = vld [vmem:[%s3816] sm:$0xff]
        %v3825 = vld [vmem:[%s13] sm:$0xff]
        %v3826 = vld [vmem:[%s13 + $0x8] sm:$0xff]
        %v3827 = vld [vmem:[%s15] sm:$0xff]
        %v3828 = vld [vmem:[%s15 + $0x8] sm:$0xff]
        %v3829 = vld [vmem:[#allocation2] sm:$0xff]
        %v3830 = vld [vmem:[#allocation7] sm:$0xf]
        %v3831 = vld [vmem:[#allocation5] sm:$0x1]
        %v3833 = vperm.slane %v3831, 0
        %vm3835 = vcmask 31744
        %v3837 = vsel %vm3835, %v3817, 0
        %vm3839 = vcmask 1043456
        %v3841 = vsel %vm3839, %v3830, 0
        %3843 = vmatpush.msra.mxu0 0.0
        %3844 = vmatpush.msra.mxu0 0.0
        %3845 = vmatpush.msra.mxu0 0.0
        %3846 = vmatpush.msra.mxu0 0.0
        %3847 = vmatpush.msra.mxu0 0.0
        %3848 = vmatpush.msra.mxu0 0.0
        %3849 = vmatpush.msra.mxu0 0.0
        %3850 = vmatpush.msra.mxu0 0.0
        %3851 = vmatpush.msra.mxu0 0.0
        %3852 = vmatpush.msra.mxu0 0.0
        %3853 = vmatpush.msra.mxu0 0.0
        %3854 = vmatpush.msra.mxu0 0.0
        %3855 = vmatpush.msra.mxu0 0.0
        %3856 = vmatpush.msra.mxu0 0.0
        %3857 = vmatpush.msra.mxu0 0.0
        %3858 = vmatpush.msra.mxu0 %v3841
        %3859 = vmatmul.f32.gmra.mxu0 %v3837
        %v3860 = vpop.f32.mrf.mxu0
        %v3861 = vadd.f32 %v3833, %v3860
        %3862 = vdwg.mxu0
        %v3863 = vld [vmem:[#allocation73] sm:$0x1]
        %v3864 = vld [vmem:[#allocation74] sm:$0xff]
        %v3865 = vld [vmem:[#allocation74 + $0x8] sm:$0xff]
        %vm3866 = vcmask 130048
        %v3868 = vsel %vm3866, %v3861, 0
        %3870 = vmatpush.msra.mxu0 0.0
        %3871 = vmatpush.msra.mxu0 0.0
        %3872 = vmatpush.msra.mxu0 0.0
        %3873 = vmatpush.msra.mxu0 0.0
        %3874 = vmatpush.msra.mxu0 0.0
        %3875 = vmatpush.msra.mxu0 0.0
        %3876 = vmatpush.msra.mxu0 0.0
        %3877 = vmatpush.msra.mxu0 0.0
        %3878 = vmatpush.msra.mxu0 0.0
        %3879 = vmatpush.msra.mxu0 0.0
        %3880 = vmatpush.msra.mxu0 0.0
        %3881 = vmatpush.msra.mxu0 0.0
        %3882 = vmatpush.msra.mxu0 0.0
        %3883 = vmatpush.msra.mxu0 0.0
        %3884 = vmatpush.msra.mxu0 %v3865
        %3885 = vmatpush.msra.mxu0 %v3864
        %3886 = vmatmul.f32.gmra.mxu0 %v3868
        %v3887 = vpop.f32.mrf.mxu0
        %v3888 = vadd.f32 0.0, %v3887
        %3889 = vdwg.mxu0
        %v3891 = vperm.slane %v3863, 0
        %v3893 = vadd.f32 %v3891, %v3888
        %v3894 = vmax.f32 %v3893, 0.0
        %vm3895 = vcmask 64512
        %v3897 = vsel %vm3895, %v3825, 0
        %v3900 = vsel %vm3895, %v3826, 0
        %3902 = vmatpush.msra.mxu0 0.0
        %3903 = vmatpush.msra.mxu0 0.0
        %3904 = vmatpush.msra.mxu0 0.0
        %3905 = vmatpush.msra.mxu0 0.0
        %3906 = vmatpush.msra.mxu0 0.0
        %3907 = vmatpush.msra.mxu0 0.0
        %3908 = vmatpush.msra.mxu0 0.0
        %3909 = vmatpush.msra.mxu0 0.0
        %3910 = vmatpush.msra.mxu0 0.0
        %3911 = vmatpush.msra.mxu0 0.0
        %3912 = vmatpush.msra.mxu0 0.0
        %3913 = vmatpush.msra.mxu0 0.0
        %3914 = vmatpush.msra.mxu0 0.0
        %3915 = vmatpush.msra.mxu0 0.0
        %3916 = vmatpush.msra.mxu0 0.0
        %3917 = vmatpush.msra.mxu0 %v3894
        %3918 = vmatmul.f32.gmra.mxu0 %v3897
        %v3919 = vpop.f32.mrf.mxu0
        %v3920 = vadd.f32 0.0, %v3919
        %3921 = vmatmul.f32.gmra.mxu0 %v3900
        %v3922 = vpop.f32.mrf.mxu0
        %v3923 = vadd.f32 0.0, %v3922
        %3924 = vdwg.mxu0
        %v3926 = vsel %vm3895, %v3827, 0
        %v3929 = vsel %vm3895, %v3828, 0
        %3931 = vmatpush.msra.mxu0 0.0
        %3932 = vmatpush.msra.mxu0 0.0
        %3933 = vmatpush.msra.mxu0 0.0
        %3934 = vmatpush.msra.mxu0 0.0
        %3935 = vmatpush.msra.mxu0 0.0
        %3936 = vmatpush.msra.mxu0 0.0
        %3937 = vmatpush.msra.mxu0 0.0
        %3938 = vmatpush.msra.mxu0 0.0
        %3939 = vmatpush.msra.mxu0 0.0
        %3940 = vmatpush.msra.mxu0 0.0
        %3941 = vmatpush.msra.mxu0 0.0
        %3942 = vmatpush.msra.mxu0 0.0
        %3943 = vmatpush.msra.mxu0 0.0
        %3944 = vmatpush.msra.mxu0 0.0
        %3945 = vmatpush.msra.mxu0 0.0
        %3946 = vmatpush.msra.mxu0 %v3894
        %3947 = vmatmul.f32.gmra.mxu0 %v3926
        %v3948 = vpop.f32.mrf.mxu0
        %v3949 = vadd.f32 0.0, %v3948
        %3950 = vmatmul.f32.gmra.mxu0 %v3929
        %v3951 = vpop.f32.mrf.mxu0
        %v3952 = vadd.f32 0.0, %v3951
        %3953 = vdwg.mxu0
        %v3954 = vld [vmem:[#allocation76] sm:$0x1]
        %v3955 = vld [vmem:[%s155] sm:$0xff]
        %v3956 = vld [vmem:[%s155 + $0x8] sm:$0xff]
        %v3958 = vsel %vm3866, %v3920, 0
        %v3961 = vsel %vm3866, %v3923, 0
        %3963 = vmatpush.msra.mxu0 0.0
        %3964 = vmatpush.msra.mxu0 0.0
        %3965 = vmatpush.msra.mxu0 0.0
        %3966 = vmatpush.msra.mxu0 0.0
        %3967 = vmatpush.msra.mxu0 0.0
        %3968 = vmatpush.msra.mxu0 0.0
        %3969 = vmatpush.msra.mxu0 0.0
        %3970 = vmatpush.msra.mxu0 0.0
        %3971 = vmatpush.msra.mxu0 0.0
        %3972 = vmatpush.msra.mxu0 0.0
        %3973 = vmatpush.msra.mxu0 0.0
        %3974 = vmatpush.msra.mxu0 0.0
        %3975 = vmatpush.msra.mxu0 0.0
        %3976 = vmatpush.msra.mxu0 0.0
        %3977 = vmatpush.msra.mxu0 %v3956
        %3978 = vmatpush.msra.mxu0 %v3955
        %3979 = vmatmul.f32.gmra.mxu0 %v3958
        %v3980 = vpop.f32.mrf.mxu0
        %v3981 = vadd.f32 0.0, %v3980
        %3982 = vmatmul.f32.gmra.mxu0 %v3961
        %v3983 = vpop.f32.mrf.mxu0
        %v3984 = vadd.f32 0.0, %v3983
        %3985 = vdwg.mxu0
        %v3987 = vperm.slane %v3954, 0
        %v3989 = vadd.f32 %v3987, %v3981
        %v3990 = vadd.f32 %v3987, %v3984
        %v3991 = vld [vmem:[#allocation77] sm:$0xff]
        %v3992 = vld [vmem:[#allocation77 + $0x8] sm:$0xff]
        %v3994 = vsel %vm3866, %v3949, 0
        %v3997 = vsel %vm3866, %v3952, 0
        %3999 = vmatpush.msra.mxu0 0.0
        %4000 = vmatpush.msra.mxu0 0.0
        %4001 = vmatpush.msra.mxu0 0.0
        %4002 = vmatpush.msra.mxu0 0.0
        %4003 = vmatpush.msra.mxu0 0.0
        %4004 = vmatpush.msra.mxu0 0.0
        %4005 = vmatpush.msra.mxu0 0.0
        %4006 = vmatpush.msra.mxu0 0.0
        %4007 = vmatpush.msra.mxu0 0.0
        %4008 = vmatpush.msra.mxu0 0.0
        %4009 = vmatpush.msra.mxu0 0.0
        %4010 = vmatpush.msra.mxu0 0.0
        %4011 = vmatpush.msra.mxu0 0.0
        %4012 = vmatpush.msra.mxu0 0.0
        %4013 = vmatpush.msra.mxu0 %v3992
        %4014 = vmatpush.msra.mxu0 %v3991
        %4015 = vmatmul.f32.gmra.mxu0 %v3994
        %v4016 = vpop.f32.mrf.mxu0
        %v4017 = vadd.f32 0.0, %v4016
        %4018 = vmatmul.f32.gmra.mxu0 %v3997
        %v4019 = vpop.f32.mrf.mxu0
        %v4020 = vadd.f32 0.0, %v4019
        %4021 = vdwg.mxu0
        %v4022 = vadd.f32 %v3989, %v4017
        %v4023 = vadd.f32 %v3990, %v4020
        %v4024 = vld [vmem:[#allocation79] sm:$0xf]
        %v4026 = vsel %vm3835, %v3820, 0
        %v4029 = vsel %vm3835, %v3821, 0
        %v4032 = vsel %vm3839, %v4024, 0
        %4034 = vmatpush.msra.mxu0 0.0
        %4035 = vmatpush.msra.mxu0 0.0
        %4036 = vmatpush.msra.mxu0 0.0
        %4037 = vmatpush.msra.mxu0 0.0
        %4038 = vmatpush.msra.mxu0 0.0
        %4039 = vmatpush.msra.mxu0 0.0
        %4040 = vmatpush.msra.mxu0 0.0
        %4041 = vmatpush.msra.mxu0 0.0
        %4042 = vmatpush.msra.mxu0 0.0
        %4043 = vmatpush.msra.mxu0 0.0
        %4044 = vmatpush.msra.mxu0 0.0
        %4045 = vmatpush.msra.mxu0 0.0
        %4046 = vmatpush.msra.mxu0 0.0
        %4047 = vmatpush.msra.mxu0 0.0
        %4048 = vmatpush.msra.mxu0 0.0
        %4049 = vmatpush.msra.mxu0 %v4032
        %4050 = vmatmul.f32.gmra.mxu0 %v4026
        %v4051 = vpop.f32.mrf.mxu0
        %v4052 = vadd.f32 0.0, %v4051
        %4053 = vmatmul.f32.gmra.mxu0 %v4029
        %v4054 = vpop.f32.mrf.mxu0
        %v4055 = vadd.f32 0.0, %v4054
        %4056 = vdwg.mxu0
        %v4057 = vadd.f32 %v4022, %v4052
        %v4058 = vadd.f32 %v4023, %v4055
        %v4059 = vmax.f32 %v4057, 0.0
        %v4060 = vmax.f32 %v4058, 0.0
        %v4062 = vsel %vm3866, %v3829, 0
        %4064 = vmatpush.msra.mxu0 0.0
        %4065 = vmatpush.msra.mxu0 0.0
        %4066 = vmatpush.msra.mxu0 0.0
        %4067 = vmatpush.msra.mxu0 0.0
        %4068 = vmatpush.msra.mxu0 0.0
        %4069 = vmatpush.msra.mxu0 0.0
        %4070 = vmatpush.msra.mxu0 0.0
        %4071 = vmatpush.msra.mxu0 0.0
        %4072 = vmatpush.msra.mxu0 0.0
        %4073 = vmatpush.msra.mxu0 0.0
        %4074 = vmatpush.msra.mxu0 0.0
        %4075 = vmatpush.msra.mxu0 0.0
        %4076 = vmatpush.msra.mxu0 0.0
        %4077 = vmatpush.msra.mxu0 0.0
        %4078 = vmatpush.msra.mxu0 %v4060
        %4079 = vmatpush.msra.mxu0 %v4059
        %4080 = vmatmul.f32.gmra.mxu0 %v4062
        %v4081 = vpop.f32.mrf.mxu0
        %v4082 = vadd.f32 0.0, %v4081
        %4083 = vdwg.mxu0
        %v4084 = vld [vmem:[#allocation80] sm:$0x1]
        %v4085 = vld [vmem:[#allocation82] sm:$0xff]
        %v4086 = vld [vmem:[#allocation82 + $0x8] sm:$0xff]
        %v4088 = vsel %vm3866, %v3894, 0
        %4090 = vmatpush.msra.mxu0 0.0
        %4091 = vmatpush.msra.mxu0 0.0
        %4092 = vmatpush.msra.mxu0 0.0
        %4093 = vmatpush.msra.mxu0 0.0
        %4094 = vmatpush.msra.mxu0 0.0
        %4095 = vmatpush.msra.mxu0 0.0
        %4096 = vmatpush.msra.mxu0 0.0
        %4097 = vmatpush.msra.mxu0 0.0
        %4098 = vmatpush.msra.mxu0 0.0
        %4099 = vmatpush.msra.mxu0 0.0
        %4100 = vmatpush.msra.mxu0 0.0
        %4101 = vmatpush.msra.mxu0 0.0
        %4102 = vmatpush.msra.mxu0 0.0
        %4103 = vmatpush.msra.mxu0 0.0
        %4104 = vmatpush.msra.mxu0 %v4086
        %4105 = vmatpush.msra.mxu0 %v4085
        %4106 = vmatmul.f32.gmra.mxu0 %v4088
        %v4107 = vpop.f32.mrf.mxu0
        %v4108 = vadd.f32 0.0, %v4107
        %4109 = vdwg.mxu0
        %v4111 = vperm.slane %v4084, 0
        %v4113 = vadd.f32 %v4111, %v4108
        %v4114 = vld [vmem:[#allocation83] sm:$0xff]
        %v4115 = vld [vmem:[#allocation83 + $0x8] sm:$0xff]
        %v4117 = vsel %vm3866, %v4082, 0
        %4119 = vmatpush.msra.mxu0 0.0
        %4120 = vmatpush.msra.mxu0 0.0
        %4121 = vmatpush.msra.mxu0 0.0
        %4122 = vmatpush.msra.mxu0 0.0
        %4123 = vmatpush.msra.mxu0 0.0
        %4124 = vmatpush.msra.mxu0 0.0
        %4125 = vmatpush.msra.mxu0 0.0
        %4126 = vmatpush.msra.mxu0 0.0
        %4127 = vmatpush.msra.mxu0 0.0
        %4128 = vmatpush.msra.mxu0 0.0
        %4129 = vmatpush.msra.mxu0 0.0
        %4130 = vmatpush.msra.mxu0 0.0
        %4131 = vmatpush.msra.mxu0 0.0
        %4132 = vmatpush.msra.mxu0 0.0
        %4133 = vmatpush.msra.mxu0 %v4115
        %4134 = vmatpush.msra.mxu0 %v4114
        %4135 = vmatmul.f32.gmra.mxu0 %v4117
        %v4136 = vpop.f32.mrf.mxu0
        %v4137 = vadd.f32 0.0, %v4136
        %4138 = vdwg.mxu0
        %v4139 = vadd.f32 %v4113, %v4137
        %v4140 = vmax.f32 %v4139, 0.0
        %v4141 = vadd.f32 %v3894, %v4140
        %4142 = vmatpush.msra.mxu0 0.0
        %4143 = vmatpush.msra.mxu0 0.0
        %4144 = vmatpush.msra.mxu0 0.0
        %4145 = vmatpush.msra.mxu0 0.0
        %4146 = vmatpush.msra.mxu0 0.0
        %4147 = vmatpush.msra.mxu0 0.0
        %4148 = vmatpush.msra.mxu0 0.0
        %4149 = vmatpush.msra.mxu0 0.0
        %4150 = vmatpush.msra.mxu0 0.0
        %4151 = vmatpush.msra.mxu0 0.0
        %4152 = vmatpush.msra.mxu0 0.0
        %4153 = vmatpush.msra.mxu0 0.0
        %4154 = vmatpush.msra.mxu0 0.0
        %4155 = vmatpush.msra.mxu0 0.0
        %4156 = vmatpush.msra.mxu0 0.0
        %4157 = vmatpush.msra.mxu0 %v4141
        %4158 = vmatmul.f32.gmra.mxu0 %v3897
        %v4159 = vpop.f32.mrf.mxu0
        %v4160 = vadd.f32 0.0, %v4159
        %4161 = vmatmul.f32.gmra.mxu0 %v3900
        %v4162 = vpop.f32.mrf.mxu0
        %v4163 = vadd.f32 0.0, %v4162
        %4164 = vdwg.mxu0
        %4165 = vmatpush.msra.mxu0 0.0
        %4166 = vmatpush.msra.mxu0 0.0
        %4167 = vmatpush.msra.mxu0 0.0
        %4168 = vmatpush.msra.mxu0 0.0
        %4169 = vmatpush.msra.mxu0 0.0
        %4170 = vmatpush.msra.mxu0 0.0
        %4171 = vmatpush.msra.mxu0 0.0
        %4172 = vmatpush.msra.mxu0 0.0
        %4173 = vmatpush.msra.mxu0 0.0
        %4174 = vmatpush.msra.mxu0 0.0
        %4175 = vmatpush.msra.mxu0 0.0
        %4176 = vmatpush.msra.mxu0 0.0
        %4177 = vmatpush.msra.mxu0 0.0
        %4178 = vmatpush.msra.mxu0 0.0
        %4179 = vmatpush.msra.mxu0 0.0
        %4180 = vmatpush.msra.mxu0 %v4141
        %4181 = vmatmul.f32.gmra.mxu0 %v3926
        %v4182 = vpop.f32.mrf.mxu0
        %v4183 = vadd.f32 0.0, %v4182
        %4184 = vmatmul.f32.gmra.mxu0 %v3929
        %v4185 = vpop.f32.mrf.mxu0
        %v4186 = vadd.f32 0.0, %v4185
        %4187 = vdwg.mxu0
        %v4188 = vld [vmem:[#allocation85] sm:$0x1]
        %v4189 = vld [vmem:[#allocation86] sm:$0xff]
        %v4190 = vld [vmem:[#allocation86 + $0x8] sm:$0xff]
        %v4192 = vsel %vm3866, %v4160, 0
        %v4195 = vsel %vm3866, %v4163, 0
        %4197 = vmatpush.msra.mxu0 0.0
        %4198 = vmatpush.msra.mxu0 0.0
        %4199 = vmatpush.msra.mxu0 0.0
        %4200 = vmatpush.msra.mxu0 0.0
        %4201 = vmatpush.msra.mxu0 0.0
        %4202 = vmatpush.msra.mxu0 0.0
        %4203 = vmatpush.msra.mxu0 0.0
        %4204 = vmatpush.msra.mxu0 0.0
        %4205 = vmatpush.msra.mxu0 0.0
        %4206 = vmatpush.msra.mxu0 0.0
        %4207 = vmatpush.msra.mxu0 0.0
        %4208 = vmatpush.msra.mxu0 0.0
        %4209 = vmatpush.msra.mxu0 0.0
        %4210 = vmatpush.msra.mxu0 0.0
        %4211 = vmatpush.msra.mxu0 %v4190
        %4212 = vmatpush.msra.mxu0 %v4189
        %4213 = vmatmul.f32.gmra.mxu0 %v4192
        %v4214 = vpop.f32.mrf.mxu0
        %v4215 = vadd.f32 0.0, %v4214
        %4216 = vmatmul.f32.gmra.mxu0 %v4195
        %v4217 = vpop.f32.mrf.mxu0
        %v4218 = vadd.f32 0.0, %v4217
        %4219 = vdwg.mxu0
        %v4221 = vperm.slane %v4188, 0
        %v4223 = vadd.f32 %v4221, %v4215
        %v4224 = vadd.f32 %v4221, %v4218
        %v4225 = vld [vmem:[#allocation88] sm:$0xff]
        %v4226 = vld [vmem:[#allocation88 + $0x8] sm:$0xff]
        %v4228 = vsel %vm3866, %v4183, 0
        %v4231 = vsel %vm3866, %v4186, 0
        %4233 = vmatpush.msra.mxu0 0.0
        %4234 = vmatpush.msra.mxu0 0.0
        %4235 = vmatpush.msra.mxu0 0.0
        %4236 = vmatpush.msra.mxu0 0.0
        %4237 = vmatpush.msra.mxu0 0.0
        %4238 = vmatpush.msra.mxu0 0.0
        %4239 = vmatpush.msra.mxu0 0.0
        %4240 = vmatpush.msra.mxu0 0.0
        %4241 = vmatpush.msra.mxu0 0.0
        %4242 = vmatpush.msra.mxu0 0.0
        %4243 = vmatpush.msra.mxu0 0.0
        %4244 = vmatpush.msra.mxu0 0.0
        %4245 = vmatpush.msra.mxu0 0.0
        %4246 = vmatpush.msra.mxu0 0.0
        %4247 = vmatpush.msra.mxu0 %v4226
        %4248 = vmatpush.msra.mxu0 %v4225
        %4249 = vmatmul.f32.gmra.mxu0 %v4228
        %v4250 = vpop.f32.mrf.mxu0
        %v4251 = vadd.f32 0.0, %v4250
        %4252 = vmatmul.f32.gmra.mxu0 %v4231
        %v4253 = vpop.f32.mrf.mxu0
        %v4254 = vadd.f32 0.0, %v4253
        %4255 = vdwg.mxu0
        %v4256 = vadd.f32 %v4223, %v4251
        %v4257 = vadd.f32 %v4224, %v4254
        %v4258 = vld [vmem:[#allocation89] sm:$0xf]
        %v4260 = vsel %vm3839, %v4258, 0
        %4262 = vmatpush.msra.mxu0 0.0
        %4263 = vmatpush.msra.mxu0 0.0
        %4264 = vmatpush.msra.mxu0 0.0
        %4265 = vmatpush.msra.mxu0 0.0
        %4266 = vmatpush.msra.mxu0 0.0
        %4267 = vmatpush.msra.mxu0 0.0
        %4268 = vmatpush.msra.mxu0 0.0
        %4269 = vmatpush.msra.mxu0 0.0
        %4270 = vmatpush.msra.mxu0 0.0
        %4271 = vmatpush.msra.mxu0 0.0
        %4272 = vmatpush.msra.mxu0 0.0
        %4273 = vmatpush.msra.mxu0 0.0
        %4274 = vmatpush.msra.mxu0 0.0
        %4275 = vmatpush.msra.mxu0 0.0
        %4276 = vmatpush.msra.mxu0 0.0
        %4277 = vmatpush.msra.mxu0 %v4260
        %4278 = vmatmul.f32.gmra.mxu0 %v4026
        %v4279 = vpop.f32.mrf.mxu0
        %v4280 = vadd.f32 0.0, %v4279
        %4281 = vmatmul.f32.gmra.mxu0 %v4029
        %v4282 = vpop.f32.mrf.mxu0
        %v4283 = vadd.f32 0.0, %v4282
        %4284 = vdwg.mxu0
        %v4285 = vadd.f32 %v4256, %v4280
        %v4286 = vadd.f32 %v4257, %v4283
        %v4287 = vmax.f32 %v4285, 0.0
        %v4288 = vmax.f32 %v4286, 0.0
        %4289 = vmatpush.msra.mxu0 0.0
        %4290 = vmatpush.msra.mxu0 0.0
        %4291 = vmatpush.msra.mxu0 0.0
        %4292 = vmatpush.msra.mxu0 0.0
        %4293 = vmatpush.msra.mxu0 0.0
        %4294 = vmatpush.msra.mxu0 0.0
        %4295 = vmatpush.msra.mxu0 0.0
        %4296 = vmatpush.msra.mxu0 0.0
        %4297 = vmatpush.msra.mxu0 0.0
        %4298 = vmatpush.msra.mxu0 0.0
        %4299 = vmatpush.msra.mxu0 0.0
        %4300 = vmatpush.msra.mxu0 0.0
        %4301 = vmatpush.msra.mxu0 0.0
        %4302 = vmatpush.msra.mxu0 0.0
        %4303 = vmatpush.msra.mxu0 %v4288
        %4304 = vmatpush.msra.mxu0 %v4287
        %4305 = vmatmul.f32.gmra.mxu0 %v4062
        %v4306 = vpop.f32.mrf.mxu0
        %v4307 = vadd.f32 0.0, %v4306
        %4308 = vdwg.mxu0
        %v4309 = vld [vmem:[#allocation91] sm:$0x1]
        %v4310 = vld [vmem:[#allocation92] sm:$0xff]
        %v4311 = vld [vmem:[#allocation92 + $0x8] sm:$0xff]
        %v4313 = vsel %vm3866, %v4141, 0
        %4315 = vmatpush.msra.mxu0 0.0
        %4316 = vmatpush.msra.mxu0 0.0
        %4317 = vmatpush.msra.mxu0 0.0
        %4318 = vmatpush.msra.mxu0 0.0
        %4319 = vmatpush.msra.mxu0 0.0
        %4320 = vmatpush.msra.mxu0 0.0
        %4321 = vmatpush.msra.mxu0 0.0
        %4322 = vmatpush.msra.mxu0 0.0
        %4323 = vmatpush.msra.mxu0 0.0
        %4324 = vmatpush.msra.mxu0 0.0
        %4325 = vmatpush.msra.mxu0 0.0
        %4326 = vmatpush.msra.mxu0 0.0
        %4327 = vmatpush.msra.mxu0 0.0
        %4328 = vmatpush.msra.mxu0 0.0
        %4329 = vmatpush.msra.mxu0 %v4311
        %4330 = vmatpush.msra.mxu0 %v4310
        %4331 = vmatmul.f32.gmra.mxu0 %v4313
        %v4332 = vpop.f32.mrf.mxu0
        %v4333 = vadd.f32 0.0, %v4332
        %4334 = vdwg.mxu0
        %v4336 = vperm.slane %v4309, 0
        %v4338 = vadd.f32 %v4336, %v4333
        %v4339 = vld [vmem:[#allocation94] sm:$0xff]
        %v4340 = vld [vmem:[#allocation94 + $0x8] sm:$0xff]
        %v4342 = vsel %vm3866, %v4307, 0
        %4344 = vmatpush.msra.mxu0 0.0
        %4345 = vmatpush.msra.mxu0 0.0
        %4346 = vmatpush.msra.mxu0 0.0
        %4347 = vmatpush.msra.mxu0 0.0
        %4348 = vmatpush.msra.mxu0 0.0
        %4349 = vmatpush.msra.mxu0 0.0
        %4350 = vmatpush.msra.mxu0 0.0
        %4351 = vmatpush.msra.mxu0 0.0
        %4352 = vmatpush.msra.mxu0 0.0
        %4353 = vmatpush.msra.mxu0 0.0
        %4354 = vmatpush.msra.mxu0 0.0
        %4355 = vmatpush.msra.mxu0 0.0
        %4356 = vmatpush.msra.mxu0 0.0
        %4357 = vmatpush.msra.mxu0 0.0
        %4358 = vmatpush.msra.mxu0 %v4340
        %4359 = vmatpush.msra.mxu0 %v4339
        %4360 = vmatmul.f32.gmra.mxu0 %v4342
        %v4361 = vpop.f32.mrf.mxu0
        %v4362 = vadd.f32 0.0, %v4361
        %4363 = vdwg.mxu0
        %v4364 = vadd.f32 %v4338, %v4362
        %v4365 = vmax.f32 %v4364, 0.0
        %v4366 = vadd.f32 %v4141, %v4365
        %v4367 = vld [vmem:[#allocation49] sm:$0x1]
        %v4368 = vld [vmem:[#allocation50] sm:$0x3]
        %vm4369 = vcmask 15360
        %v4371 = vsel %vm4369, %v3818, 0
        %vm4373 = vcmask 1041408
        %v4375 = vsel %vm4373, %v4368, 0
        %4377 = vmatpush.msra.mxu0 0.0
        %4378 = vmatpush.msra.mxu0 0.0
        %4379 = vmatpush.msra.mxu0 0.0
        %4380 = vmatpush.msra.mxu0 0.0
        %4381 = vmatpush.msra.mxu0 0.0
        %4382 = vmatpush.msra.mxu0 0.0
        %4383 = vmatpush.msra.mxu0 0.0
        %4384 = vmatpush.msra.mxu0 0.0
        %4385 = vmatpush.msra.mxu0 0.0
        %4386 = vmatpush.msra.mxu0 0.0
        %4387 = vmatpush.msra.mxu0 0.0
        %4388 = vmatpush.msra.mxu0 0.0
        %4389 = vmatpush.msra.mxu0 0.0
        %4390 = vmatpush.msra.mxu0 0.0
        %4391 = vmatpush.msra.mxu0 0.0
        %4392 = vmatpush.msra.mxu0 %v4375
        %4393 = vmatmul.f32.gmra.mxu0 %v4371
        %v4394 = vpop.f32.mrf.mxu0
        %v4395 = vadd.f32 0.0, %v4394
        %4396 = vdwg.mxu0
        %v4398 = vperm.slane %v4367, 0
        %v4400 = vadd.f32 %v4398, %v4395
        %v4401 = vld [vmem:[#allocation52] sm:$0xff]
        %v4402 = vld [vmem:[#allocation52 + $0x8] sm:$0xff]
        %v4404 = vsel %vm3866, %v4366, 0
        %4406 = vmatpush.msra.mxu0 0.0
        %4407 = vmatpush.msra.mxu0 0.0
        %4408 = vmatpush.msra.mxu0 0.0
        %4409 = vmatpush.msra.mxu0 0.0
        %4410 = vmatpush.msra.mxu0 0.0
        %4411 = vmatpush.msra.mxu0 0.0
        %4412 = vmatpush.msra.mxu0 0.0
        %4413 = vmatpush.msra.mxu0 0.0
        %4414 = vmatpush.msra.mxu0 0.0
        %4415 = vmatpush.msra.mxu0 0.0
        %4416 = vmatpush.msra.mxu0 0.0
        %4417 = vmatpush.msra.mxu0 0.0
        %4418 = vmatpush.msra.mxu0 0.0
        %4419 = vmatpush.msra.mxu0 0.0
        %4420 = vmatpush.msra.mxu0 %v4402
        %4421 = vmatpush.msra.mxu0 %v4401
        %4422 = vmatmul.f32.gmra.mxu0 %v4404
        %v4423 = vpop.f32.mrf.mxu0
        %v4424 = vadd.f32 0.0, %v4423
        %4425 = vdwg.mxu0
        %v4426 = vadd.f32 %v4400, %v4424
        %v4427 = vmax.f32 %v4426, 0.0
        %4428 = vmatpush.msra.mxu0 0.0
        %4429 = vmatpush.msra.mxu0 0.0
        %4430 = vmatpush.msra.mxu0 0.0
        %4431 = vmatpush.msra.mxu0 0.0
        %4432 = vmatpush.msra.mxu0 0.0
        %4433 = vmatpush.msra.mxu0 0.0
        %4434 = vmatpush.msra.mxu0 0.0
        %4435 = vmatpush.msra.mxu0 0.0
        %4436 = vmatpush.msra.mxu0 0.0
        %4437 = vmatpush.msra.mxu0 0.0
        %4438 = vmatpush.msra.mxu0 0.0
        %4439 = vmatpush.msra.mxu0 0.0
        %4440 = vmatpush.msra.mxu0 0.0
        %4441 = vmatpush.msra.mxu0 0.0
        %4442 = vmatpush.msra.mxu0 0.0
        %4443 = vmatpush.msra.mxu0 %v4427
        %4444 = vmatmul.f32.gmra.mxu0 %v3897
        %v4445 = vpop.f32.mrf.mxu0
        %v4446 = vadd.f32 0.0, %v4445
        %4447 = vmatmul.f32.gmra.mxu0 %v3900
        %v4448 = vpop.f32.mrf.mxu0
        %v4449 = vadd.f32 0.0, %v4448
        %4450 = vdwg.mxu0
        %4451 = vmatpush.msra.mxu0 0.0
        %4452 = vmatpush.msra.mxu0 0.0
        %4453 = vmatpush.msra.mxu0 0.0
        %4454 = vmatpush.msra.mxu0 0.0
        %4455 = vmatpush.msra.mxu0 0.0
        %4456 = vmatpush.msra.mxu0 0.0
        %4457 = vmatpush.msra.mxu0 0.0
        %4458 = vmatpush.msra.mxu0 0.0
        %4459 = vmatpush.msra.mxu0 0.0
        %4460 = vmatpush.msra.mxu0 0.0
        %4461 = vmatpush.msra.mxu0 0.0
        %4462 = vmatpush.msra.mxu0 0.0
        %4463 = vmatpush.msra.mxu0 0.0
        %4464 = vmatpush.msra.mxu0 0.0
        %4465 = vmatpush.msra.mxu0 0.0
        %4466 = vmatpush.msra.mxu0 %v4427
        %4467 = vmatmul.f32.gmra.mxu0 %v3926
        %v4468 = vpop.f32.mrf.mxu0
        %v4469 = vadd.f32 0.0, %v4468
        %4470 = vmatmul.f32.gmra.mxu0 %v3929
        %v4471 = vpop.f32.mrf.mxu0
        %v4472 = vadd.f32 0.0, %v4471
        %4473 = vdwg.mxu0
        %v4474 = vld [vmem:[#allocation53] sm:$0x1]
        %v4475 = vld [vmem:[%s123] sm:$0xff]
        %v4476 = vld [vmem:[%s123 + $0x8] sm:$0xff]
        %v4478 = vsel %vm3866, %v4446, 0
        %v4481 = vsel %vm3866, %v4449, 0
        %4483 = vmatpush.msra.mxu0 0.0
        %4484 = vmatpush.msra.mxu0 0.0
        %4485 = vmatpush.msra.mxu0 0.0
        %4486 = vmatpush.msra.mxu0 0.0
        %4487 = vmatpush.msra.mxu0 0.0
        %4488 = vmatpush.msra.mxu0 0.0
        %4489 = vmatpush.msra.mxu0 0.0
        %4490 = vmatpush.msra.mxu0 0.0
        %4491 = vmatpush.msra.mxu0 0.0
        %4492 = vmatpush.msra.mxu0 0.0
        %4493 = vmatpush.msra.mxu0 0.0
        %4494 = vmatpush.msra.mxu0 0.0
        %4495 = vmatpush.msra.mxu0 0.0
        %4496 = vmatpush.msra.mxu0 0.0
        %4497 = vmatpush.msra.mxu0 %v4476
        %4498 = vmatpush.msra.mxu0 %v4475
        %4499 = vmatmul.f32.gmra.mxu0 %v4478
        %v4500 = vpop.f32.mrf.mxu0
        %v4501 = vadd.f32 0.0, %v4500
        %4502 = vmatmul.f32.gmra.mxu0 %v4481
        %v4503 = vpop.f32.mrf.mxu0
        %v4504 = vadd.f32 0.0, %v4503
        %4505 = vdwg.mxu0
        %v4507 = vperm.slane %v4474, 0
        %v4509 = vadd.f32 %v4507, %v4501
        %v4510 = vadd.f32 %v4507, %v4504
        %v4511 = vld [vmem:[#allocation55] sm:$0xff]
        %v4512 = vld [vmem:[#allocation55 + $0x8] sm:$0xff]
        %v4514 = vsel %vm3866, %v4469, 0
        %v4517 = vsel %vm3866, %v4472, 0
        %4519 = vmatpush.msra.mxu0 0.0
        %4520 = vmatpush.msra.mxu0 0.0
        %4521 = vmatpush.msra.mxu0 0.0
        %4522 = vmatpush.msra.mxu0 0.0
        %4523 = vmatpush.msra.mxu0 0.0
        %4524 = vmatpush.msra.mxu0 0.0
        %4525 = vmatpush.msra.mxu0 0.0
        %4526 = vmatpush.msra.mxu0 0.0
        %4527 = vmatpush.msra.mxu0 0.0
        %4528 = vmatpush.msra.mxu0 0.0
        %4529 = vmatpush.msra.mxu0 0.0
        %4530 = vmatpush.msra.mxu0 0.0
        %4531 = vmatpush.msra.mxu0 0.0
        %4532 = vmatpush.msra.mxu0 0.0
        %4533 = vmatpush.msra.mxu0 %v4512
        %4534 = vmatpush.msra.mxu0 %v4511
        %4535 = vmatmul.f32.gmra.mxu0 %v4514
        %v4536 = vpop.f32.mrf.mxu0
        %v4537 = vadd.f32 0.0, %v4536
        %4538 = vmatmul.f32.gmra.mxu0 %v4517
        %v4539 = vpop.f32.mrf.mxu0
        %v4540 = vadd.f32 0.0, %v4539
        %4541 = vdwg.mxu0
        %v4542 = vadd.f32 %v4509, %v4537
        %v4543 = vadd.f32 %v4510, %v4540
        %v4544 = vld [vmem:[#allocation56] sm:$0xf]
        %v4546 = vsel %vm3839, %v4544, 0
        %4548 = vmatpush.msra.mxu0 0.0
        %4549 = vmatpush.msra.mxu0 0.0
        %4550 = vmatpush.msra.mxu0 0.0
        %4551 = vmatpush.msra.mxu0 0.0
        %4552 = vmatpush.msra.mxu0 0.0
        %4553 = vmatpush.msra.mxu0 0.0
        %4554 = vmatpush.msra.mxu0 0.0
        %4555 = vmatpush.msra.mxu0 0.0
        %4556 = vmatpush.msra.mxu0 0.0
        %4557 = vmatpush.msra.mxu0 0.0
        %4558 = vmatpush.msra.mxu0 0.0
        %4559 = vmatpush.msra.mxu0 0.0
        %4560 = vmatpush.msra.mxu0 0.0
        %4561 = vmatpush.msra.mxu0 0.0
        %4562 = vmatpush.msra.mxu0 0.0
        %4563 = vmatpush.msra.mxu0 %v4546
        %4564 = vmatmul.f32.gmra.mxu0 %v4026
        %v4565 = vpop.f32.mrf.mxu0
        %v4566 = vadd.f32 0.0, %v4565
        %4567 = vmatmul.f32.gmra.mxu0 %v4029
        %v4568 = vpop.f32.mrf.mxu0
        %v4569 = vadd.f32 0.0, %v4568
        %4570 = vdwg.mxu0
        %v4571 = vadd.f32 %v4542, %v4566
        %v4572 = vadd.f32 %v4543, %v4569
        %v4573 = vmax.f32 %v4571, 0.0
        %v4574 = vmax.f32 %v4572, 0.0
        %4575 = vmatpush.msra.mxu0 0.0
        %4576 = vmatpush.msra.mxu0 0.0
        %4577 = vmatpush.msra.mxu0 0.0
        %4578 = vmatpush.msra.mxu0 0.0
        %4579 = vmatpush.msra.mxu0 0.0
        %4580 = vmatpush.msra.mxu0 0.0
        %4581 = vmatpush.msra.mxu0 0.0
        %4582 = vmatpush.msra.mxu0 0.0
        %4583 = vmatpush.msra.mxu0 0.0
        %4584 = vmatpush.msra.mxu0 0.0
        %4585 = vmatpush.msra.mxu0 0.0
        %4586 = vmatpush.msra.mxu0 0.0
        %4587 = vmatpush.msra.mxu0 0.0
        %4588 = vmatpush.msra.mxu0 0.0
        %4589 = vmatpush.msra.mxu0 %v4574
        %4590 = vmatpush.msra.mxu0 %v4573
        %4591 = vmatmul.f32.gmra.mxu0 %v4062
        %v4592 = vpop.f32.mrf.mxu0
        %v4593 = vadd.f32 0.0, %v4592
        %4594 = vdwg.mxu0
        %v4595 = vld [vmem:[#allocation58] sm:$0x1]
        %v4596 = vld [vmem:[#allocation59] sm:$0xff]
        %v4597 = vld [vmem:[#allocation59 + $0x8] sm:$0xff]
        %v4599 = vsel %vm3866, %v4427, 0
        %4601 = vmatpush.msra.mxu0 0.0
        %4602 = vmatpush.msra.mxu0 0.0
        %4603 = vmatpush.msra.mxu0 0.0
        %4604 = vmatpush.msra.mxu0 0.0
        %4605 = vmatpush.msra.mxu0 0.0
        %4606 = vmatpush.msra.mxu0 0.0
        %4607 = vmatpush.msra.mxu0 0.0
        %4608 = vmatpush.msra.mxu0 0.0
        %4609 = vmatpush.msra.mxu0 0.0
        %4610 = vmatpush.msra.mxu0 0.0
        %4611 = vmatpush.msra.mxu0 0.0
        %4612 = vmatpush.msra.mxu0 0.0
        %4613 = vmatpush.msra.mxu0 0.0
        %4614 = vmatpush.msra.mxu0 0.0
        %4615 = vmatpush.msra.mxu0 %v4597
        %4616 = vmatpush.msra.mxu0 %v4596
        %4617 = vmatmul.f32.gmra.mxu0 %v4599
        %v4618 = vpop.f32.mrf.mxu0
        %v4619 = vadd.f32 0.0, %v4618
        %4620 = vdwg.mxu0
        %v4622 = vperm.slane %v4595, 0
        %v4624 = vadd.f32 %v4622, %v4619
        %v4625 = vld [vmem:[#allocation61] sm:$0xff]
        %v4626 = vld [vmem:[#allocation61 + $0x8] sm:$0xff]
        %v4628 = vsel %vm3866, %v4593, 0
        %4630 = vmatpush.msra.mxu0 0.0
        %4631 = vmatpush.msra.mxu0 0.0
        %4632 = vmatpush.msra.mxu0 0.0
        %4633 = vmatpush.msra.mxu0 0.0
        %4634 = vmatpush.msra.mxu0 0.0
        %4635 = vmatpush.msra.mxu0 0.0
        %4636 = vmatpush.msra.mxu0 0.0
        %4637 = vmatpush.msra.mxu0 0.0
        %4638 = vmatpush.msra.mxu0 0.0
        %4639 = vmatpush.msra.mxu0 0.0
        %4640 = vmatpush.msra.mxu0 0.0
        %4641 = vmatpush.msra.mxu0 0.0
        %4642 = vmatpush.msra.mxu0 0.0
        %4643 = vmatpush.msra.mxu0 0.0
        %4644 = vmatpush.msra.mxu0 %v4626
        %4645 = vmatpush.msra.mxu0 %v4625
        %4646 = vmatmul.f32.gmra.mxu0 %v4628
        %v4647 = vpop.f32.mrf.mxu0
        %v4648 = vadd.f32 0.0, %v4647
        %4649 = vdwg.mxu0
        %v4650 = vadd.f32 %v4624, %v4648
        %v4651 = vmax.f32 %v4650, 0.0
        %v4652 = vadd.f32 %v4427, %v4651
        %4653 = vmatpush.msra.mxu0 0.0
        %4654 = vmatpush.msra.mxu0 0.0
        %4655 = vmatpush.msra.mxu0 0.0
        %4656 = vmatpush.msra.mxu0 0.0
        %4657 = vmatpush.msra.mxu0 0.0
        %4658 = vmatpush.msra.mxu0 0.0
        %4659 = vmatpush.msra.mxu0 0.0
        %4660 = vmatpush.msra.mxu0 0.0
        %4661 = vmatpush.msra.mxu0 0.0
        %4662 = vmatpush.msra.mxu0 0.0
        %4663 = vmatpush.msra.mxu0 0.0
        %4664 = vmatpush.msra.mxu0 0.0
        %4665 = vmatpush.msra.mxu0 0.0
        %4666 = vmatpush.msra.mxu0 0.0
        %4667 = vmatpush.msra.mxu0 0.0
        %4668 = vmatpush.msra.mxu0 %v4652
        %4669 = vmatmul.f32.gmra.mxu0 %v3897
        %v4670 = vpop.f32.mrf.mxu0
        %v4671 = vadd.f32 0.0, %v4670
        %4672 = vmatmul.f32.gmra.mxu0 %v3900
        %v4673 = vpop.f32.mrf.mxu0
        %v4674 = vadd.f32 0.0, %v4673
        %4675 = vdwg.mxu0
        %4676 = vmatpush.msra.mxu0 0.0
        %4677 = vmatpush.msra.mxu0 0.0
        %4678 = vmatpush.msra.mxu0 0.0
        %4679 = vmatpush.msra.mxu0 0.0
        %4680 = vmatpush.msra.mxu0 0.0
        %4681 = vmatpush.msra.mxu0 0.0
        %4682 = vmatpush.msra.mxu0 0.0
        %4683 = vmatpush.msra.mxu0 0.0
        %4684 = vmatpush.msra.mxu0 0.0
        %4685 = vmatpush.msra.mxu0 0.0
        %4686 = vmatpush.msra.mxu0 0.0
        %4687 = vmatpush.msra.mxu0 0.0
        %4688 = vmatpush.msra.mxu0 0.0
        %4689 = vmatpush.msra.mxu0 0.0
        %4690 = vmatpush.msra.mxu0 0.0
        %4691 = vmatpush.msra.mxu0 %v4652
        %4692 = vmatmul.f32.gmra.mxu0 %v3926
        %v4693 = vpop.f32.mrf.mxu0
        %v4694 = vadd.f32 0.0, %v4693
        %4695 = vmatmul.f32.gmra.mxu0 %v3929
        %v4696 = vpop.f32.mrf.mxu0
        %v4697 = vadd.f32 0.0, %v4696
        %4698 = vdwg.mxu0
        %v4699 = vld [vmem:[#allocation62] sm:$0x1]
        %v4700 = vld [vmem:[#allocation64] sm:$0xff]
        %v4701 = vld [vmem:[#allocation64 + $0x8] sm:$0xff]
        %v4703 = vsel %vm3866, %v4671, 0
        %v4706 = vsel %vm3866, %v4674, 0
        %4708 = vmatpush.msra.mxu0 0.0
        %4709 = vmatpush.msra.mxu0 0.0
        %4710 = vmatpush.msra.mxu0 0.0
        %4711 = vmatpush.msra.mxu0 0.0
        %4712 = vmatpush.msra.mxu0 0.0
        %4713 = vmatpush.msra.mxu0 0.0
        %4714 = vmatpush.msra.mxu0 0.0
        %4715 = vmatpush.msra.mxu0 0.0
        %4716 = vmatpush.msra.mxu0 0.0
        %4717 = vmatpush.msra.mxu0 0.0
        %4718 = vmatpush.msra.mxu0 0.0
        %4719 = vmatpush.msra.mxu0 0.0
        %4720 = vmatpush.msra.mxu0 0.0
        %4721 = vmatpush.msra.mxu0 0.0
        %4722 = vmatpush.msra.mxu0 %v4701
        %4723 = vmatpush.msra.mxu0 %v4700
        %4724 = vmatmul.f32.gmra.mxu0 %v4703
        %v4725 = vpop.f32.mrf.mxu0
        %v4726 = vadd.f32 0.0, %v4725
        %4727 = vmatmul.f32.gmra.mxu0 %v4706
        %v4728 = vpop.f32.mrf.mxu0
        %v4729 = vadd.f32 0.0, %v4728
        %4730 = vdwg.mxu0
        %v4732 = vperm.slane %v4699, 0
        %v4734 = vadd.f32 %v4732, %v4726
        %v4735 = vadd.f32 %v4732, %v4729
        %v4736 = vld [vmem:[#allocation65] sm:$0xff]
        %v4737 = vld [vmem:[#allocation65 + $0x8] sm:$0xff]
        %v4739 = vsel %vm3866, %v4694, 0
        %v4742 = vsel %vm3866, %v4697, 0
        %4744 = vmatpush.msra.mxu0 0.0
        %4745 = vmatpush.msra.mxu0 0.0
        %4746 = vmatpush.msra.mxu0 0.0
        %4747 = vmatpush.msra.mxu0 0.0
        %4748 = vmatpush.msra.mxu0 0.0
        %4749 = vmatpush.msra.mxu0 0.0
        %4750 = vmatpush.msra.mxu0 0.0
        %4751 = vmatpush.msra.mxu0 0.0
        %4752 = vmatpush.msra.mxu0 0.0
        %4753 = vmatpush.msra.mxu0 0.0
        %4754 = vmatpush.msra.mxu0 0.0
        %4755 = vmatpush.msra.mxu0 0.0
        %4756 = vmatpush.msra.mxu0 0.0
        %4757 = vmatpush.msra.mxu0 0.0
        %4758 = vmatpush.msra.mxu0 %v4737
        %4759 = vmatpush.msra.mxu0 %v4736
        %4760 = vmatmul.f32.gmra.mxu0 %v4739
        %v4761 = vpop.f32.mrf.mxu0
        %v4762 = vadd.f32 0.0, %v4761
        %4763 = vmatmul.f32.gmra.mxu0 %v4742
        %v4764 = vpop.f32.mrf.mxu0
        %v4765 = vadd.f32 0.0, %v4764
        %4766 = vdwg.mxu0
        %v4767 = vadd.f32 %v4734, %v4762
        %v4768 = vadd.f32 %v4735, %v4765
        %v4769 = vld [vmem:[#allocation67] sm:$0xf]
        %v4771 = vsel %vm3839, %v4769, 0
        %4773 = vmatpush.msra.mxu0 0.0
        %4774 = vmatpush.msra.mxu0 0.0
        %4775 = vmatpush.msra.mxu0 0.0
        %4776 = vmatpush.msra.mxu0 0.0
        %4777 = vmatpush.msra.mxu0 0.0
        %4778 = vmatpush.msra.mxu0 0.0
        %4779 = vmatpush.msra.mxu0 0.0
        %4780 = vmatpush.msra.mxu0 0.0
        %4781 = vmatpush.msra.mxu0 0.0
        %4782 = vmatpush.msra.mxu0 0.0
        %4783 = vmatpush.msra.mxu0 0.0
        %4784 = vmatpush.msra.mxu0 0.0
        %4785 = vmatpush.msra.mxu0 0.0
        %4786 = vmatpush.msra.mxu0 0.0
        %4787 = vmatpush.msra.mxu0 0.0
        %4788 = vmatpush.msra.mxu0 %v4771
        %4789 = vmatmul.f32.gmra.mxu0 %v4026
        %v4790 = vpop.f32.mrf.mxu0
        %v4791 = vadd.f32 0.0, %v4790
        %4792 = vmatmul.f32.gmra.mxu0 %v4029
        %v4793 = vpop.f32.mrf.mxu0
        %v4794 = vadd.f32 0.0, %v4793
        %4795 = vdwg.mxu0
        %v4796 = vadd.f32 %v4767, %v4791
        %v4797 = vadd.f32 %v4768, %v4794
        %v4798 = vmax.f32 %v4796, 0.0
        %v4799 = vmax.f32 %v4797, 0.0
        %4800 = vmatpush.msra.mxu0 0.0
        %4801 = vmatpush.msra.mxu0 0.0
        %4802 = vmatpush.msra.mxu0 0.0
        %4803 = vmatpush.msra.mxu0 0.0
        %4804 = vmatpush.msra.mxu0 0.0
        %4805 = vmatpush.msra.mxu0 0.0
        %4806 = vmatpush.msra.mxu0 0.0
        %4807 = vmatpush.msra.mxu0 0.0
        %4808 = vmatpush.msra.mxu0 0.0
        %4809 = vmatpush.msra.mxu0 0.0
        %4810 = vmatpush.msra.mxu0 0.0
        %4811 = vmatpush.msra.mxu0 0.0
        %4812 = vmatpush.msra.mxu0 0.0
        %4813 = vmatpush.msra.mxu0 0.0
        %4814 = vmatpush.msra.mxu0 %v4799
        %4815 = vmatpush.msra.mxu0 %v4798
        %4816 = vmatmul.f32.gmra.mxu0 %v4062
        %v4817 = vpop.f32.mrf.mxu0
        %v4818 = vadd.f32 0.0, %v4817
        %4819 = vdwg.mxu0
        %v4820 = vld [vmem:[#allocation68] sm:$0x1]
        %v4821 = vld [vmem:[#allocation70] sm:$0xff]
        %v4822 = vld [vmem:[#allocation70 + $0x8] sm:$0xff]
        %v4824 = vsel %vm3866, %v4652, 0
        %4826 = vmatpush.msra.mxu0 0.0
        %4827 = vmatpush.msra.mxu0 0.0
        %4828 = vmatpush.msra.mxu0 0.0
        %4829 = vmatpush.msra.mxu0 0.0
        %4830 = vmatpush.msra.mxu0 0.0
        %4831 = vmatpush.msra.mxu0 0.0
        %4832 = vmatpush.msra.mxu0 0.0
        %4833 = vmatpush.msra.mxu0 0.0
        %4834 = vmatpush.msra.mxu0 0.0
        %4835 = vmatpush.msra.mxu0 0.0
        %4836 = vmatpush.msra.mxu0 0.0
        %4837 = vmatpush.msra.mxu0 0.0
        %4838 = vmatpush.msra.mxu0 0.0
        %4839 = vmatpush.msra.mxu0 0.0
        %4840 = vmatpush.msra.mxu0 %v4822
        %4841 = vmatpush.msra.mxu0 %v4821
        %4842 = vmatmul.f32.gmra.mxu0 %v4824
        %v4843 = vpop.f32.mrf.mxu0
        %v4844 = vadd.f32 0.0, %v4843
        %4845 = vdwg.mxu0
        %v4847 = vperm.slane %v4820, 0
        %v4849 = vadd.f32 %v4847, %v4844
        %v4850 = vld [vmem:[#allocation71] sm:$0xff]
        %v4851 = vld [vmem:[#allocation71 + $0x8] sm:$0xff]
        %v4853 = vsel %vm3866, %v4818, 0
        %4855 = vmatpush.msra.mxu0 0.0
        %4856 = vmatpush.msra.mxu0 0.0
        %4857 = vmatpush.msra.mxu0 0.0
        %4858 = vmatpush.msra.mxu0 0.0
        %4859 = vmatpush.msra.mxu0 0.0
        %4860 = vmatpush.msra.mxu0 0.0
        %4861 = vmatpush.msra.mxu0 0.0
        %4862 = vmatpush.msra.mxu0 0.0
        %4863 = vmatpush.msra.mxu0 0.0
        %4864 = vmatpush.msra.mxu0 0.0
        %4865 = vmatpush.msra.mxu0 0.0
        %4866 = vmatpush.msra.mxu0 0.0
        %4867 = vmatpush.msra.mxu0 0.0
        %4868 = vmatpush.msra.mxu0 0.0
        %4869 = vmatpush.msra.mxu0 %v4851
        %4870 = vmatpush.msra.mxu0 %v4850
        %4871 = vmatmul.f32.gmra.mxu0 %v4853
        %v4872 = vpop.f32.mrf.mxu0
        %v4873 = vadd.f32 0.0, %v4872
        %4874 = vdwg.mxu0
        %v4875 = vadd.f32 %v4849, %v4873
        %v4876 = vmax.f32 %v4875, 0.0
        %v4877 = vadd.f32 %v4652, %v4876
        %v4878 = vld [vmem:[%s113] sm:$0xff]
        %v4879 = vld [vmem:[%s113 + $0x8] sm:$0xff]
        %v4880 = vld [vmem:[#allocation47] sm:$0x1]
        %v4882 = vperm.slane %v4880, 0
        %v4885 = vsel %vm3866, %v4877, 0
        %4887 = vmatpush.msra.mxu0 0.0
        %4888 = vmatpush.msra.mxu0 0.0
        %4889 = vmatpush.msra.mxu0 0.0
        %4890 = vmatpush.msra.mxu0 0.0
        %4891 = vmatpush.msra.mxu0 0.0
        %4892 = vmatpush.msra.mxu0 0.0
        %4893 = vmatpush.msra.mxu0 0.0
        %4894 = vmatpush.msra.mxu0 0.0
        %4895 = vmatpush.msra.mxu0 0.0
        %4896 = vmatpush.msra.mxu0 0.0
        %4897 = vmatpush.msra.mxu0 0.0
        %4898 = vmatpush.msra.mxu0 0.0
        %4899 = vmatpush.msra.mxu0 0.0
        %4900 = vmatpush.msra.mxu0 0.0
        %4901 = vmatpush.msra.mxu0 %v4879
        %4902 = vmatpush.msra.mxu0 %v4878
        %4903 = vmatmul.f32.gmra.mxu0 %v4885
        %v4904 = vpop.f32.mrf.mxu0
        %v4905 = vadd.f32 %v4882, %v4904
        %4906 = vdwg.mxu0
        %v4907 = vld [vmem:[%s109] sm:$0xff]
        %v4908 = vld [vmem:[%s109 + $0x8] sm:$0xff]
        %v4909 = vld [vmem:[#allocation46] sm:$0x1]
        %v4911 = vperm.slane %v4909, 0
        %4913 = vmatpush.msra.mxu0 0.0
        %4914 = vmatpush.msra.mxu0 0.0
        %4915 = vmatpush.msra.mxu0 0.0
        %4916 = vmatpush.msra.mxu0 0.0
        %4917 = vmatpush.msra.mxu0 0.0
        %4918 = vmatpush.msra.mxu0 0.0
        %4919 = vmatpush.msra.mxu0 0.0
        %4920 = vmatpush.msra.mxu0 0.0
        %4921 = vmatpush.msra.mxu0 0.0
        %4922 = vmatpush.msra.mxu0 0.0
        %4923 = vmatpush.msra.mxu0 0.0
        %4924 = vmatpush.msra.mxu0 0.0
        %4925 = vmatpush.msra.mxu0 0.0
        %4926 = vmatpush.msra.mxu0 0.0
        %4927 = vmatpush.msra.mxu0 %v4908
        %4928 = vmatpush.msra.mxu0 %v4907
        %4929 = vmatmul.f32.gmra.mxu0 %v4885
        %v4930 = vpop.f32.mrf.mxu0
        %v4931 = vadd.f32 %v4911, %v4930
        %4932 = vdwg.mxu0
        %v4933 = vld [vmem:[#allocation97] sm:$0x3]
        %v4934 = vld [vmem:[#allocation95] sm:$0x1]
        %v4936 = vperm.slane %v4934, 0
        %v4939 = vsel %vm4369, %v3819, 0
        %v4942 = vsel %vm4373, %v4933, 0
        %4944 = vmatpush.msra.mxu0 0.0
        %4945 = vmatpush.msra.mxu0 0.0
        %4946 = vmatpush.msra.mxu0 0.0
        %4947 = vmatpush.msra.mxu0 0.0
        %4948 = vmatpush.msra.mxu0 0.0
        %4949 = vmatpush.msra.mxu0 0.0
        %4950 = vmatpush.msra.mxu0 0.0
        %4951 = vmatpush.msra.mxu0 0.0
        %4952 = vmatpush.msra.mxu0 0.0
        %4953 = vmatpush.msra.mxu0 0.0
        %4954 = vmatpush.msra.mxu0 0.0
        %4955 = vmatpush.msra.mxu0 0.0
        %4956 = vmatpush.msra.mxu0 0.0
        %4957 = vmatpush.msra.mxu0 0.0
        %4958 = vmatpush.msra.mxu0 0.0
        %4959 = vmatpush.msra.mxu0 %v4942
        %4960 = vmatmul.f32.gmra.mxu0 %v4939
        %v4961 = vpop.f32.mrf.mxu0
        %v4962 = vadd.f32 %v4936, %v4961
        %4963 = vdwg.mxu0
        %v4964 = vmax.f32 %v4962, 0.0
        %v4965 = vld [vmem:[%s187] sm:$0xff]
        %v4966 = vld [vmem:[%s187 + $0x8] sm:$0xff]
        %v4967 = vld [vmem:[#allocation98] sm:$0x1]
        %v4969 = vperm.slane %v4967, 0
        %v4972 = vsel %vm3866, %v4964, 0
        %4974 = vmatpush.msra.mxu0 0.0
        %4975 = vmatpush.msra.mxu0 0.0
        %4976 = vmatpush.msra.mxu0 0.0
        %4977 = vmatpush.msra.mxu0 0.0
        %4978 = vmatpush.msra.mxu0 0.0
        %4979 = vmatpush.msra.mxu0 0.0
        %4980 = vmatpush.msra.mxu0 0.0
        %4981 = vmatpush.msra.mxu0 0.0
        %4982 = vmatpush.msra.mxu0 0.0
        %4983 = vmatpush.msra.mxu0 0.0
        %4984 = vmatpush.msra.mxu0 0.0
        %4985 = vmatpush.msra.mxu0 0.0
        %4986 = vmatpush.msra.mxu0 0.0
        %4987 = vmatpush.msra.mxu0 0.0
        %4988 = vmatpush.msra.mxu0 %v4966
        %4989 = vmatpush.msra.mxu0 %v4965
        %4990 = vmatmul.f32.gmra.mxu0 %v4972
        %v4991 = vpop.f32.mrf.mxu0
        %v4992 = vadd.f32 %v4969, %v4991
        %4993 = vdwg.mxu0
        %v4994 = vld [vmem:[#allocation11] sm:$0x1]
        %v4995 = vld [vmem:[#allocation13] sm:$0x3]
        %v4997 = vsel %vm4373, %v4995, 0
        %4999 = vmatpush.msra.mxu0 0.0
        %5000 = vmatpush.msra.mxu0 0.0
        %5001 = vmatpush.msra.mxu0 0.0
        %5002 = vmatpush.msra.mxu0 0.0
        %5003 = vmatpush.msra.mxu0 0.0
        %5004 = vmatpush.msra.mxu0 0.0
        %5005 = vmatpush.msra.mxu0 0.0
        %5006 = vmatpush.msra.mxu0 0.0
        %5007 = vmatpush.msra.mxu0 0.0
        %5008 = vmatpush.msra.mxu0 0.0
        %5009 = vmatpush.msra.mxu0 0.0
        %5010 = vmatpush.msra.mxu0 0.0
        %5011 = vmatpush.msra.mxu0 0.0
        %5012 = vmatpush.msra.mxu0 0.0
        %5013 = vmatpush.msra.mxu0 0.0
        %5014 = vmatpush.msra.mxu0 %v4997
        %5015 = vmatmul.f32.gmra.mxu0 %v4371
        %v5016 = vpop.f32.mrf.mxu0
        %v5017 = vadd.f32 0.0, %v5016
        %5018 = vdwg.mxu0
        %v5020 = vperm.slane %v4994, 0
        %v5022 = vadd.f32 %v5020, %v5017
        %v5023 = vld [vmem:[%s35] sm:$0xff]
        %v5024 = vld [vmem:[%s35 + $0x8] sm:$0xff]
        %5025 = vmatpush.msra.mxu0 0.0
        %5026 = vmatpush.msra.mxu0 0.0
        %5027 = vmatpush.msra.mxu0 0.0
        %5028 = vmatpush.msra.mxu0 0.0
        %5029 = vmatpush.msra.mxu0 0.0
        %5030 = vmatpush.msra.mxu0 0.0
        %5031 = vmatpush.msra.mxu0 0.0
        %5032 = vmatpush.msra.mxu0 0.0
        %5033 = vmatpush.msra.mxu0 0.0
        %5034 = vmatpush.msra.mxu0 0.0
        %5035 = vmatpush.msra.mxu0 0.0
        %5036 = vmatpush.msra.mxu0 0.0
        %5037 = vmatpush.msra.mxu0 0.0
        %5038 = vmatpush.msra.mxu0 0.0
        %5039 = vmatpush.msra.mxu0 %v5024
        %5040 = vmatpush.msra.mxu0 %v5023
        %5041 = vmatmul.f32.gmra.mxu0 %v4404
        %v5042 = vpop.f32.mrf.mxu0
        %v5043 = vadd.f32 0.0, %v5042
        %5044 = vdwg.mxu0
        %v5045 = vadd.f32 %v5022, %v5043
        %v5046 = vld [vmem:[%s37] sm:$0xff]
        %v5047 = vld [vmem:[%s37 + $0x8] sm:$0xff]
        %v5049 = vsel %vm3866, %v4992, 0
        %5051 = vmatpush.msra.mxu0 0.0
        %5052 = vmatpush.msra.mxu0 0.0
        %5053 = vmatpush.msra.mxu0 0.0
        %5054 = vmatpush.msra.mxu0 0.0
        %5055 = vmatpush.msra.mxu0 0.0
        %5056 = vmatpush.msra.mxu0 0.0
        %5057 = vmatpush.msra.mxu0 0.0
        %5058 = vmatpush.msra.mxu0 0.0
        %5059 = vmatpush.msra.mxu0 0.0
        %5060 = vmatpush.msra.mxu0 0.0
        %5061 = vmatpush.msra.mxu0 0.0
        %5062 = vmatpush.msra.mxu0 0.0
        %5063 = vmatpush.msra.mxu0 0.0
        %5064 = vmatpush.msra.mxu0 0.0
        %5065 = vmatpush.msra.mxu0 %v5047
        %5066 = vmatpush.msra.mxu0 %v5046
        %5067 = vmatmul.f32.gmra.mxu0 %v5049
        %v5068 = vpop.f32.mrf.mxu0
        %v5069 = vadd.f32 0.0, %v5068
        %5070 = vdwg.mxu0
        %v5071 = vadd.f32 %v5045, %v5069
        %v5072 = vmax.f32 %v5071, 0.0
        %5073 = vmatpush.msra.mxu0 0.0
        %5074 = vmatpush.msra.mxu0 0.0
        %5075 = vmatpush.msra.mxu0 0.0
        %5076 = vmatpush.msra.mxu0 0.0
        %5077 = vmatpush.msra.mxu0 0.0
        %5078 = vmatpush.msra.mxu0 0.0
        %5079 = vmatpush.msra.mxu0 0.0
        %5080 = vmatpush.msra.mxu0 0.0
        %5081 = vmatpush.msra.mxu0 0.0
        %5082 = vmatpush.msra.mxu0 0.0
        %5083 = vmatpush.msra.mxu0 0.0
        %5084 = vmatpush.msra.mxu0 0.0
        %5085 = vmatpush.msra.mxu0 0.0
        %5086 = vmatpush.msra.mxu0 0.0
        %5087 = vmatpush.msra.mxu0 0.0
        %5088 = vmatpush.msra.mxu0 %v5072
        %5089 = vmatmul.f32.gmra.mxu0 %v3897
        %v5090 = vpop.f32.mrf.mxu0
        %v5091 = vadd.f32 0.0, %v5090
        %5092 = vmatmul.f32.gmra.mxu0 %v3900
        %v5093 = vpop.f32.mrf.mxu0
        %v5094 = vadd.f32 0.0, %v5093
        %5095 = vdwg.mxu0
        %5096 = vmatpush.msra.mxu0 0.0
        %5097 = vmatpush.msra.mxu0 0.0
        %5098 = vmatpush.msra.mxu0 0.0
        %5099 = vmatpush.msra.mxu0 0.0
        %5100 = vmatpush.msra.mxu0 0.0
        %5101 = vmatpush.msra.mxu0 0.0
        %5102 = vmatpush.msra.mxu0 0.0
        %5103 = vmatpush.msra.mxu0 0.0
        %5104 = vmatpush.msra.mxu0 0.0
        %5105 = vmatpush.msra.mxu0 0.0
        %5106 = vmatpush.msra.mxu0 0.0
        %5107 = vmatpush.msra.mxu0 0.0
        %5108 = vmatpush.msra.mxu0 0.0
        %5109 = vmatpush.msra.mxu0 0.0
        %5110 = vmatpush.msra.mxu0 0.0
        %5111 = vmatpush.msra.mxu0 %v5072
        %5112 = vmatmul.f32.gmra.mxu0 %v3926
        %v5113 = vpop.f32.mrf.mxu0
        %v5114 = vadd.f32 0.0, %v5113
        %5115 = vmatmul.f32.gmra.mxu0 %v3929
        %v5116 = vpop.f32.mrf.mxu0
        %v5117 = vadd.f32 0.0, %v5116
        %5118 = vdwg.mxu0
        %v5119 = vld [vmem:[#allocation14] sm:$0x1]
        %v5120 = vld [vmem:[%s41] sm:$0xff]
        %v5121 = vld [vmem:[%s41 + $0x8] sm:$0xff]
        %v5123 = vsel %vm3866, %v5091, 0
        %v5126 = vsel %vm3866, %v5094, 0
        %5128 = vmatpush.msra.mxu0 0.0
        %5129 = vmatpush.msra.mxu0 0.0
        %5130 = vmatpush.msra.mxu0 0.0
        %5131 = vmatpush.msra.mxu0 0.0
        %5132 = vmatpush.msra.mxu0 0.0
        %5133 = vmatpush.msra.mxu0 0.0
        %5134 = vmatpush.msra.mxu0 0.0
        %5135 = vmatpush.msra.mxu0 0.0
        %5136 = vmatpush.msra.mxu0 0.0
        %5137 = vmatpush.msra.mxu0 0.0
        %5138 = vmatpush.msra.mxu0 0.0
        %5139 = vmatpush.msra.mxu0 0.0
        %5140 = vmatpush.msra.mxu0 0.0
        %5141 = vmatpush.msra.mxu0 0.0
        %5142 = vmatpush.msra.mxu0 %v5121
        %5143 = vmatpush.msra.mxu0 %v5120
        %5144 = vmatmul.f32.gmra.mxu0 %v5123
        %v5145 = vpop.f32.mrf.mxu0
        %v5146 = vadd.f32 0.0, %v5145
        %5147 = vmatmul.f32.gmra.mxu0 %v5126
        %v5148 = vpop.f32.mrf.mxu0
        %v5149 = vadd.f32 0.0, %v5148
        %5150 = vdwg.mxu0
        %v5152 = vperm.slane %v5119, 0
        %v5154 = vadd.f32 %v5152, %v5146
        %v5155 = vadd.f32 %v5152, %v5149
        %v5156 = vld [vmem:[%s43] sm:$0xff]
        %v5157 = vld [vmem:[%s43 + $0x8] sm:$0xff]
        %v5159 = vsel %vm3866, %v5114, 0
        %v5162 = vsel %vm3866, %v5117, 0
        %5164 = vmatpush.msra.mxu0 0.0
        %5165 = vmatpush.msra.mxu0 0.0
        %5166 = vmatpush.msra.mxu0 0.0
        %5167 = vmatpush.msra.mxu0 0.0
        %5168 = vmatpush.msra.mxu0 0.0
        %5169 = vmatpush.msra.mxu0 0.0
        %5170 = vmatpush.msra.mxu0 0.0
        %5171 = vmatpush.msra.mxu0 0.0
        %5172 = vmatpush.msra.mxu0 0.0
        %5173 = vmatpush.msra.mxu0 0.0
        %5174 = vmatpush.msra.mxu0 0.0
        %5175 = vmatpush.msra.mxu0 0.0
        %5176 = vmatpush.msra.mxu0 0.0
        %5177 = vmatpush.msra.mxu0 0.0
        %5178 = vmatpush.msra.mxu0 %v5157
        %5179 = vmatpush.msra.mxu0 %v5156
        %5180 = vmatmul.f32.gmra.mxu0 %v5159
        %v5181 = vpop.f32.mrf.mxu0
        %v5182 = vadd.f32 0.0, %v5181
        %5183 = vmatmul.f32.gmra.mxu0 %v5162
        %v5184 = vpop.f32.mrf.mxu0
        %v5185 = vadd.f32 0.0, %v5184
        %5186 = vdwg.mxu0
        %v5187 = vadd.f32 %v5154, %v5182
        %v5188 = vadd.f32 %v5155, %v5185
        %v5189 = vld [vmem:[#allocation16] sm:$0xf]
        %v5191 = vsel %vm3839, %v5189, 0
        %5193 = vmatpush.msra.mxu0 0.0
        %5194 = vmatpush.msra.mxu0 0.0
        %5195 = vmatpush.msra.mxu0 0.0
        %5196 = vmatpush.msra.mxu0 0.0
        %5197 = vmatpush.msra.mxu0 0.0
        %5198 = vmatpush.msra.mxu0 0.0
        %5199 = vmatpush.msra.mxu0 0.0
        %5200 = vmatpush.msra.mxu0 0.0
        %5201 = vmatpush.msra.mxu0 0.0
        %5202 = vmatpush.msra.mxu0 0.0
        %5203 = vmatpush.msra.mxu0 0.0
        %5204 = vmatpush.msra.mxu0 0.0
        %5205 = vmatpush.msra.mxu0 0.0
        %5206 = vmatpush.msra.mxu0 0.0
        %5207 = vmatpush.msra.mxu0 0.0
        %5208 = vmatpush.msra.mxu0 %v5191
        %5209 = vmatmul.f32.gmra.mxu0 %v4026
        %v5210 = vpop.f32.mrf.mxu0
        %v5211 = vadd.f32 0.0, %v5210
        %5212 = vmatmul.f32.gmra.mxu0 %v4029
        %v5213 = vpop.f32.mrf.mxu0
        %v5214 = vadd.f32 0.0, %v5213
        %5215 = vdwg.mxu0
        %v5216 = vadd.f32 %v5187, %v5211
        %v5217 = vadd.f32 %v5188, %v5214
        %v5218 = vld [vmem:[#allocation17] sm:$0xf]
        %v5220 = vsel %vm3835, %v3822, 0
        %v5223 = vsel %vm3835, %v3823, 0
        %v5226 = vsel %vm3839, %v5218, 0
        %5228 = vmatpush.msra.mxu0 0.0
        %5229 = vmatpush.msra.mxu0 0.0
        %5230 = vmatpush.msra.mxu0 0.0
        %5231 = vmatpush.msra.mxu0 0.0
        %5232 = vmatpush.msra.mxu0 0.0
        %5233 = vmatpush.msra.mxu0 0.0
        %5234 = vmatpush.msra.mxu0 0.0
        %5235 = vmatpush.msra.mxu0 0.0
        %5236 = vmatpush.msra.mxu0 0.0
        %5237 = vmatpush.msra.mxu0 0.0
        %5238 = vmatpush.msra.mxu0 0.0
        %5239 = vmatpush.msra.mxu0 0.0
        %5240 = vmatpush.msra.mxu0 0.0
        %5241 = vmatpush.msra.mxu0 0.0
        %5242 = vmatpush.msra.mxu0 0.0
        %5243 = vmatpush.msra.mxu0 %v5226
        %5244 = vmatmul.f32.gmra.mxu0 %v5220
        %v5245 = vpop.f32.mrf.mxu0
        %v5246 = vadd.f32 0.0, %v5245
        %5247 = vmatmul.f32.gmra.mxu0 %v5223
        %v5248 = vpop.f32.mrf.mxu0
        %v5249 = vadd.f32 0.0, %v5248
        %5250 = vdwg.mxu0
        %v5251 = vadd.f32 %v5216, %v5246
        %v5252 = vadd.f32 %v5217, %v5249
        %v5253 = vmax.f32 %v5251, 0.0
        %v5254 = vmax.f32 %v5252, 0.0
        %5255 = vmatpush.msra.mxu0 0.0
        %5256 = vmatpush.msra.mxu0 0.0
        %5257 = vmatpush.msra.mxu0 0.0
        %5258 = vmatpush.msra.mxu0 0.0
        %5259 = vmatpush.msra.mxu0 0.0
        %5260 = vmatpush.msra.mxu0 0.0
        %5261 = vmatpush.msra.mxu0 0.0
        %5262 = vmatpush.msra.mxu0 0.0
        %5263 = vmatpush.msra.mxu0 0.0
        %5264 = vmatpush.msra.mxu0 0.0
        %5265 = vmatpush.msra.mxu0 0.0
        %5266 = vmatpush.msra.mxu0 0.0
        %5267 = vmatpush.msra.mxu0 0.0
        %5268 = vmatpush.msra.mxu0 0.0
        %5269 = vmatpush.msra.mxu0 %v5254
        %5270 = vmatpush.msra.mxu0 %v5253
        %5271 = vmatmul.f32.gmra.mxu0 %v4062
        %v5272 = vpop.f32.mrf.mxu0
        %v5273 = vadd.f32 0.0, %v5272
        %5274 = vdwg.mxu0
        %v5275 = vld [vmem:[#allocation19] sm:$0x1]
        %v5276 = vld [vmem:[%s51] sm:$0xff]
        %v5277 = vld [vmem:[%s51 + $0x8] sm:$0xff]
        %v5279 = vsel %vm3866, %v5072, 0
        %5281 = vmatpush.msra.mxu0 0.0
        %5282 = vmatpush.msra.mxu0 0.0
        %5283 = vmatpush.msra.mxu0 0.0
        %5284 = vmatpush.msra.mxu0 0.0
        %5285 = vmatpush.msra.mxu0 0.0
        %5286 = vmatpush.msra.mxu0 0.0
        %5287 = vmatpush.msra.mxu0 0.0
        %5288 = vmatpush.msra.mxu0 0.0
        %5289 = vmatpush.msra.mxu0 0.0
        %5290 = vmatpush.msra.mxu0 0.0
        %5291 = vmatpush.msra.mxu0 0.0
        %5292 = vmatpush.msra.mxu0 0.0
        %5293 = vmatpush.msra.mxu0 0.0
        %5294 = vmatpush.msra.mxu0 0.0
        %5295 = vmatpush.msra.mxu0 %v5277
        %5296 = vmatpush.msra.mxu0 %v5276
        %5297 = vmatmul.f32.gmra.mxu0 %v5279
        %v5298 = vpop.f32.mrf.mxu0
        %v5299 = vadd.f32 0.0, %v5298
        %5300 = vdwg.mxu0
        %v5302 = vperm.slane %v5275, 0
        %v5304 = vadd.f32 %v5302, %v5299
        %v5305 = vld [vmem:[%s53] sm:$0xff]
        %v5306 = vld [vmem:[%s53 + $0x8] sm:$0xff]
        %v5308 = vsel %vm3866, %v5273, 0
        %5310 = vmatpush.msra.mxu0 0.0
        %5311 = vmatpush.msra.mxu0 0.0
        %5312 = vmatpush.msra.mxu0 0.0
        %5313 = vmatpush.msra.mxu0 0.0
        %5314 = vmatpush.msra.mxu0 0.0
        %5315 = vmatpush.msra.mxu0 0.0
        %5316 = vmatpush.msra.mxu0 0.0
        %5317 = vmatpush.msra.mxu0 0.0
        %5318 = vmatpush.msra.mxu0 0.0
        %5319 = vmatpush.msra.mxu0 0.0
        %5320 = vmatpush.msra.mxu0 0.0
        %5321 = vmatpush.msra.mxu0 0.0
        %5322 = vmatpush.msra.mxu0 0.0
        %5323 = vmatpush.msra.mxu0 0.0
        %5324 = vmatpush.msra.mxu0 %v5306
        %5325 = vmatpush.msra.mxu0 %v5305
        %5326 = vmatmul.f32.gmra.mxu0 %v5308
        %v5327 = vpop.f32.mrf.mxu0
        %v5328 = vadd.f32 0.0, %v5327
        %5329 = vdwg.mxu0
        %v5330 = vadd.f32 %v5304, %v5328
        %v5331 = vmax.f32 %v5330, 0.0
        %v5332 = vadd.f32 %v5072, %v5331
        %5333 = vmatpush.msra.mxu0 0.0
        %5334 = vmatpush.msra.mxu0 0.0
        %5335 = vmatpush.msra.mxu0 0.0
        %5336 = vmatpush.msra.mxu0 0.0
        %5337 = vmatpush.msra.mxu0 0.0
        %5338 = vmatpush.msra.mxu0 0.0
        %5339 = vmatpush.msra.mxu0 0.0
        %5340 = vmatpush.msra.mxu0 0.0
        %5341 = vmatpush.msra.mxu0 0.0
        %5342 = vmatpush.msra.mxu0 0.0
        %5343 = vmatpush.msra.mxu0 0.0
        %5344 = vmatpush.msra.mxu0 0.0
        %5345 = vmatpush.msra.mxu0 0.0
        %5346 = vmatpush.msra.mxu0 0.0
        %5347 = vmatpush.msra.mxu0 0.0
        %5348 = vmatpush.msra.mxu0 %v5332
        %5349 = vmatmul.f32.gmra.mxu0 %v3897
        %v5350 = vpop.f32.mrf.mxu0
        %v5351 = vadd.f32 0.0, %v5350
        %5352 = vmatmul.f32.gmra.mxu0 %v3900
        %v5353 = vpop.f32.mrf.mxu0
        %v5354 = vadd.f32 0.0, %v5353
        %5355 = vdwg.mxu0
        %5356 = vmatpush.msra.mxu0 0.0
        %5357 = vmatpush.msra.mxu0 0.0
        %5358 = vmatpush.msra.mxu0 0.0
        %5359 = vmatpush.msra.mxu0 0.0
        %5360 = vmatpush.msra.mxu0 0.0
        %5361 = vmatpush.msra.mxu0 0.0
        %5362 = vmatpush.msra.mxu0 0.0
        %5363 = vmatpush.msra.mxu0 0.0
        %5364 = vmatpush.msra.mxu0 0.0
        %5365 = vmatpush.msra.mxu0 0.0
        %5366 = vmatpush.msra.mxu0 0.0
        %5367 = vmatpush.msra.mxu0 0.0
        %5368 = vmatpush.msra.mxu0 0.0
        %5369 = vmatpush.msra.mxu0 0.0
        %5370 = vmatpush.msra.mxu0 0.0
        %5371 = vmatpush.msra.mxu0 %v5332
        %5372 = vmatmul.f32.gmra.mxu0 %v3926
        %v5373 = vpop.f32.mrf.mxu0
        %v5374 = vadd.f32 0.0, %v5373
        %5375 = vmatmul.f32.gmra.mxu0 %v3929
        %v5376 = vpop.f32.mrf.mxu0
        %v5377 = vadd.f32 0.0, %v5376
        %5378 = vdwg.mxu0
        %v5379 = vld [vmem:[#allocation20] sm:$0x1]
        %v5380 = vld [vmem:[%s57] sm:$0xff]
        %v5381 = vld [vmem:[%s57 + $0x8] sm:$0xff]
        %v5383 = vsel %vm3866, %v5351, 0
        %v5386 = vsel %vm3866, %v5354, 0
        %5388 = vmatpush.msra.mxu0 0.0
        %5389 = vmatpush.msra.mxu0 0.0
        %5390 = vmatpush.msra.mxu0 0.0
        %5391 = vmatpush.msra.mxu0 0.0
        %5392 = vmatpush.msra.mxu0 0.0
        %5393 = vmatpush.msra.mxu0 0.0
        %5394 = vmatpush.msra.mxu0 0.0
        %5395 = vmatpush.msra.mxu0 0.0
        %5396 = vmatpush.msra.mxu0 0.0
        %5397 = vmatpush.msra.mxu0 0.0
        %5398 = vmatpush.msra.mxu0 0.0
        %5399 = vmatpush.msra.mxu0 0.0
        %5400 = vmatpush.msra.mxu0 0.0
        %5401 = vmatpush.msra.mxu0 0.0
        %5402 = vmatpush.msra.mxu0 %v5381
        %5403 = vmatpush.msra.mxu0 %v5380
        %5404 = vmatmul.f32.gmra.mxu0 %v5383
        %v5405 = vpop.f32.mrf.mxu0
        %v5406 = vadd.f32 0.0, %v5405
        %5407 = vmatmul.f32.gmra.mxu0 %v5386
        %v5408 = vpop.f32.mrf.mxu0
        %v5409 = vadd.f32 0.0, %v5408
        %5410 = vdwg.mxu0
        %v5412 = vperm.slane %v5379, 0
        %v5414 = vadd.f32 %v5412, %v5406
        %v5415 = vadd.f32 %v5412, %v5409
        %v5416 = vld [vmem:[%s59] sm:$0xff]
        %v5417 = vld [vmem:[%s59 + $0x8] sm:$0xff]
        %v5419 = vsel %vm3866, %v5374, 0
        %v5422 = vsel %vm3866, %v5377, 0
        %5424 = vmatpush.msra.mxu0 0.0
        %5425 = vmatpush.msra.mxu0 0.0
        %5426 = vmatpush.msra.mxu0 0.0
        %5427 = vmatpush.msra.mxu0 0.0
        %5428 = vmatpush.msra.mxu0 0.0
        %5429 = vmatpush.msra.mxu0 0.0
        %5430 = vmatpush.msra.mxu0 0.0
        %5431 = vmatpush.msra.mxu0 0.0
        %5432 = vmatpush.msra.mxu0 0.0
        %5433 = vmatpush.msra.mxu0 0.0
        %5434 = vmatpush.msra.mxu0 0.0
        %5435 = vmatpush.msra.mxu0 0.0
        %5436 = vmatpush.msra.mxu0 0.0
        %5437 = vmatpush.msra.mxu0 0.0
        %5438 = vmatpush.msra.mxu0 %v5417
        %5439 = vmatpush.msra.mxu0 %v5416
        %5440 = vmatmul.f32.gmra.mxu0 %v5419
        %v5441 = vpop.f32.mrf.mxu0
        %v5442 = vadd.f32 0.0, %v5441
        %5443 = vmatmul.f32.gmra.mxu0 %v5422
        %v5444 = vpop.f32.mrf.mxu0
        %v5445 = vadd.f32 0.0, %v5444
        %5446 = vdwg.mxu0
        %v5447 = vadd.f32 %v5414, %v5442
        %v5448 = vadd.f32 %v5415, %v5445
        %v5449 = vld [vmem:[#allocation22] sm:$0xf]
        %v5451 = vsel %vm3839, %v5449, 0
        %5453 = vmatpush.msra.mxu0 0.0
        %5454 = vmatpush.msra.mxu0 0.0
        %5455 = vmatpush.msra.mxu0 0.0
        %5456 = vmatpush.msra.mxu0 0.0
        %5457 = vmatpush.msra.mxu0 0.0
        %5458 = vmatpush.msra.mxu0 0.0
        %5459 = vmatpush.msra.mxu0 0.0
        %5460 = vmatpush.msra.mxu0 0.0
        %5461 = vmatpush.msra.mxu0 0.0
        %5462 = vmatpush.msra.mxu0 0.0
        %5463 = vmatpush.msra.mxu0 0.0
        %5464 = vmatpush.msra.mxu0 0.0
        %5465 = vmatpush.msra.mxu0 0.0
        %5466 = vmatpush.msra.mxu0 0.0
        %5467 = vmatpush.msra.mxu0 0.0
        %5468 = vmatpush.msra.mxu0 %v5451
        %5469 = vmatmul.f32.gmra.mxu0 %v4026
        %v5470 = vpop.f32.mrf.mxu0
        %v5471 = vadd.f32 0.0, %v5470
        %5472 = vmatmul.f32.gmra.mxu0 %v4029
        %v5473 = vpop.f32.mrf.mxu0
        %v5474 = vadd.f32 0.0, %v5473
        %5475 = vdwg.mxu0
        %v5476 = vadd.f32 %v5447, %v5471
        %v5477 = vadd.f32 %v5448, %v5474
        %v5478 = vld [vmem:[#allocation23] sm:$0xf]
        %v5480 = vsel %vm3839, %v5478, 0
        %5482 = vmatpush.msra.mxu0 0.0
        %5483 = vmatpush.msra.mxu0 0.0
        %5484 = vmatpush.msra.mxu0 0.0
        %5485 = vmatpush.msra.mxu0 0.0
        %5486 = vmatpush.msra.mxu0 0.0
        %5487 = vmatpush.msra.mxu0 0.0
        %5488 = vmatpush.msra.mxu0 0.0
        %5489 = vmatpush.msra.mxu0 0.0
        %5490 = vmatpush.msra.mxu0 0.0
        %5491 = vmatpush.msra.mxu0 0.0
        %5492 = vmatpush.msra.mxu0 0.0
        %5493 = vmatpush.msra.mxu0 0.0
        %5494 = vmatpush.msra.mxu0 0.0
        %5495 = vmatpush.msra.mxu0 0.0
        %5496 = vmatpush.msra.mxu0 0.0
        %5497 = vmatpush.msra.mxu0 %v5480
        %5498 = vmatmul.f32.gmra.mxu0 %v5220
        %v5499 = vpop.f32.mrf.mxu0
        %v5500 = vadd.f32 0.0, %v5499
        %5501 = vmatmul.f32.gmra.mxu0 %v5223
        %v5502 = vpop.f32.mrf.mxu0
        %v5503 = vadd.f32 0.0, %v5502
        %5504 = vdwg.mxu0
        %v5505 = vadd.f32 %v5476, %v5500
        %v5506 = vadd.f32 %v5477, %v5503
        %v5507 = vmax.f32 %v5505, 0.0
        %v5508 = vmax.f32 %v5506, 0.0
        %5509 = vmatpush.msra.mxu0 0.0
        %5510 = vmatpush.msra.mxu0 0.0
        %5511 = vmatpush.msra.mxu0 0.0
        %5512 = vmatpush.msra.mxu0 0.0
        %5513 = vmatpush.msra.mxu0 0.0
        %5514 = vmatpush.msra.mxu0 0.0
        %5515 = vmatpush.msra.mxu0 0.0
        %5516 = vmatpush.msra.mxu0 0.0
        %5517 = vmatpush.msra.mxu0 0.0
        %5518 = vmatpush.msra.mxu0 0.0
        %5519 = vmatpush.msra.mxu0 0.0
        %5520 = vmatpush.msra.mxu0 0.0
        %5521 = vmatpush.msra.mxu0 0.0
        %5522 = vmatpush.msra.mxu0 0.0
        %5523 = vmatpush.msra.mxu0 %v5508
        %5524 = vmatpush.msra.mxu0 %v5507
        %5525 = vmatmul.f32.gmra.mxu0 %v4062
        %v5526 = vpop.f32.mrf.mxu0
        %v5527 = vadd.f32 0.0, %v5526
        %5528 = vdwg.mxu0
        %v5529 = vld [vmem:[#allocation25] sm:$0x1]
        %v5530 = vld [vmem:[%s67] sm:$0xff]
        %v5531 = vld [vmem:[%s67 + $0x8] sm:$0xff]
        %v5533 = vsel %vm3866, %v5332, 0
        %5535 = vmatpush.msra.mxu0 0.0
        %5536 = vmatpush.msra.mxu0 0.0
        %5537 = vmatpush.msra.mxu0 0.0
        %5538 = vmatpush.msra.mxu0 0.0
        %5539 = vmatpush.msra.mxu0 0.0
        %5540 = vmatpush.msra.mxu0 0.0
        %5541 = vmatpush.msra.mxu0 0.0
        %5542 = vmatpush.msra.mxu0 0.0
        %5543 = vmatpush.msra.mxu0 0.0
        %5544 = vmatpush.msra.mxu0 0.0
        %5545 = vmatpush.msra.mxu0 0.0
        %5546 = vmatpush.msra.mxu0 0.0
        %5547 = vmatpush.msra.mxu0 0.0
        %5548 = vmatpush.msra.mxu0 0.0
        %5549 = vmatpush.msra.mxu0 %v5531
        %5550 = vmatpush.msra.mxu0 %v5530
        %5551 = vmatmul.f32.gmra.mxu0 %v5533
        %v5552 = vpop.f32.mrf.mxu0
        %v5553 = vadd.f32 0.0, %v5552
        %5554 = vdwg.mxu0
        %v5556 = vperm.slane %v5529, 0
        %v5558 = vadd.f32 %v5556, %v5553
        %v5559 = vld [vmem:[%s69] sm:$0xff]
        %v5560 = vld [vmem:[%s69 + $0x8] sm:$0xff]
        %v5562 = vsel %vm3866, %v5527, 0
        %5564 = vmatpush.msra.mxu0 0.0
        %5565 = vmatpush.msra.mxu0 0.0
        %5566 = vmatpush.msra.mxu0 0.0
        %5567 = vmatpush.msra.mxu0 0.0
        %5568 = vmatpush.msra.mxu0 0.0
        %5569 = vmatpush.msra.mxu0 0.0
        %5570 = vmatpush.msra.mxu0 0.0
        %5571 = vmatpush.msra.mxu0 0.0
        %5572 = vmatpush.msra.mxu0 0.0
        %5573 = vmatpush.msra.mxu0 0.0
        %5574 = vmatpush.msra.mxu0 0.0
        %5575 = vmatpush.msra.mxu0 0.0
        %5576 = vmatpush.msra.mxu0 0.0
        %5577 = vmatpush.msra.mxu0 0.0
        %5578 = vmatpush.msra.mxu0 %v5560
        %5579 = vmatpush.msra.mxu0 %v5559
        %5580 = vmatmul.f32.gmra.mxu0 %v5562
        %v5581 = vpop.f32.mrf.mxu0
        %v5582 = vadd.f32 0.0, %v5581
        %5583 = vdwg.mxu0
        %v5584 = vadd.f32 %v5558, %v5582
        %v5585 = vmax.f32 %v5584, 0.0
        %v5586 = vadd.f32 %v5332, %v5585
        %v5587 = vld [vmem:[%s29] sm:$0xff]
        %v5588 = vld [vmem:[%s29 + $0x8] sm:$0xff]
        %v5589 = vld [vmem:[#allocation10] sm:$0x1]
        %v5591 = vperm.slane %v5589, 0
        %v5594 = vsel %vm3866, %v5586, 0
        %5596 = vmatpush.msra.mxu0 0.0
        %5597 = vmatpush.msra.mxu0 0.0
        %5598 = vmatpush.msra.mxu0 0.0
        %5599 = vmatpush.msra.mxu0 0.0
        %5600 = vmatpush.msra.mxu0 0.0
        %5601 = vmatpush.msra.mxu0 0.0
        %5602 = vmatpush.msra.mxu0 0.0
        %5603 = vmatpush.msra.mxu0 0.0
        %5604 = vmatpush.msra.mxu0 0.0
        %5605 = vmatpush.msra.mxu0 0.0
        %5606 = vmatpush.msra.mxu0 0.0
        %5607 = vmatpush.msra.mxu0 0.0
        %5608 = vmatpush.msra.mxu0 0.0
        %5609 = vmatpush.msra.mxu0 0.0
        %5610 = vmatpush.msra.mxu0 %v5588
        %5611 = vmatpush.msra.mxu0 %v5587
        %5612 = vmatmul.f32.gmra.mxu0 %v5594
        %v5613 = vpop.f32.mrf.mxu0
        %v5614 = vadd.f32 %v5591, %v5613
        %5615 = vdwg.mxu0
        %v5616 = vld [vmem:[%s25] sm:$0xff]
        %v5617 = vld [vmem:[%s25 + $0x8] sm:$0xff]
        %v5618 = vld [vmem:[#allocation8] sm:$0x1]
        %v5620 = vperm.slane %v5618, 0
        %5622 = vmatpush.msra.mxu0 0.0
        %5623 = vmatpush.msra.mxu0 0.0
        %5624 = vmatpush.msra.mxu0 0.0
        %5625 = vmatpush.msra.mxu0 0.0
        %5626 = vmatpush.msra.mxu0 0.0
        %5627 = vmatpush.msra.mxu0 0.0
        %5628 = vmatpush.msra.mxu0 0.0
        %5629 = vmatpush.msra.mxu0 0.0
        %5630 = vmatpush.msra.mxu0 0.0
        %5631 = vmatpush.msra.mxu0 0.0
        %5632 = vmatpush.msra.mxu0 0.0
        %5633 = vmatpush.msra.mxu0 0.0
        %5634 = vmatpush.msra.mxu0 0.0
        %5635 = vmatpush.msra.mxu0 0.0
        %5636 = vmatpush.msra.mxu0 %v5617
        %5637 = vmatpush.msra.mxu0 %v5616
        %5638 = vmatmul.f32.gmra.mxu0 %v5594
        %v5639 = vpop.f32.mrf.mxu0
        %v5640 = vadd.f32 %v5620, %v5639
        %5641 = vdwg.mxu0
        %v5642 = vmax.f32 %v5640, 0.0
        %vm5643 = vcmp.ne.f32.partialorder %v5640, %v5640
        %v5644 = vadd.f32 %v5640, 0.0
        %v5645 = vand.u32 2147483647, %v5640
        %v5646 = vsub.f32 0.0, %v5645
        %v5647 = vmul.f32 %v5646, 1.442695
        %v5648 = vpow.pop %v5647
        %v5649 = vadd.f32 %v5648, 1.0
        %v5650 = vlog2.pop %v5649
        %v5651 = vmul.f32 %v5650, 0.6931472
        %v5652 = vmul.f32 -0.5, %v5648
        %v5653 = vadd.f32 %v5652, 1.0
        %v5654 = vmul.f32 %v5653, %v5648
        %v5655 = vand.u32 2147483647, %v5648
        %vm5656 = vcmp.lt.f32.partialorder %v5655, 0.0004427343
        %v5657 = vsel %vm5656, %v5654, %v5651
        %v5658 = vadd.f32 %v5642, %v5657
        %v5659 = vsel %vm5643, %v5644, %v5658
        %v5660 = vadd.f32 %v5659, 0.01
        %v5661 = vmax.f32 %v4931, 0.0
        %vm5662 = vcmp.ne.f32.partialorder %v4931, %v4931
        %v5663 = vadd.f32 %v4931, 0.0
        %v5664 = vand.u32 2147483647, %v4931
        %v5665 = vsub.f32 0.0, %v5664
        %v5666 = vmul.f32 %v5665, 1.442695
        %v5667 = vpow.pop %v5666
        %v5668 = vadd.f32 %v5667, 1.0
        %v5669 = vlog2.pop %v5668
        %v5670 = vmul.f32 %v5669, 0.6931472
        %v5671 = vmul.f32 -0.5, %v5667
        %v5672 = vadd.f32 %v5671, 1.0
        %v5673 = vmul.f32 %v5672, %v5667
        %v5674 = vand.u32 2147483647, %v5667
        %vm5675 = vcmp.lt.f32.partialorder %v5674, 0.0004427343
        %v5676 = vsel %vm5675, %v5673, %v5670
        %v5677 = vadd.f32 %v5661, %v5676
        %v5678 = vsel %vm5662, %v5663, %v5677
        %v5679 = vadd.f32 %v5678, 0.01
        %v5680 = vmul.f32 %v5660, %v3824
        %v5681 = vadd.f32 %v5614, %v5680
        %v5682 = vrcp.pop %v5660
        %v5683 = vmul.f32 %v5660, %v5682
        %v5684 = vsub.f32 1.0, %v5683
        %v5685 = vmul.f32 %v5682, %v5684
        %v5686 = vadd.f32 %v5682, %v5685
        %vm5687 = vweird.f32 %v5660
        %vm5688 = vweird.f32 %v5682
        %vm5689 = vmor %vm5687, %vm5688
        %v5690 = vsel %vm5689, %v5682, %v5686
        %v5691 = vand.u32 2147483647, %v5660
        %vm5692 = vcmp.eq.f32.partialorder %v5691, 8.507059e+37
        %v5693 = vand.u32 %v5660, 2147483648
        %v5694 = vor.u32 1.1754944e-38, %v5693
        %v5695 = vsel %vm5692, %v5694, %v5690
        %v5696 = vmul.f32 %v5679, %v5695
        %v5697 = vlog2.pop %v5696
        %v5698 = vmul.f32 %v5697, 0.6931472
        %v5699 = vmul.f32 %v5660, %v5660
        %v5700 = vsub.f32 %v5614, %v4905
        %v5701 = vmul.f32 %v5700, %v5700
        %v5702 = vadd.f32 %v5699, %v5701
        %v5703 = vmul.f32 %v5679, 2.0
        %v5704 = vmul.f32 %v5703, %v5679
        %v5705 = vrcp.pop %v5704
        %v5706 = vmul.f32 %v5704, %v5705
        %v5707 = vsub.f32 1.0, %v5706
        %v5708 = vmul.f32 %v5705, %v5707
        %v5709 = vadd.f32 %v5705, %v5708
        %vm5710 = vweird.f32 %v5704
        %vm5711 = vweird.f32 %v5705
        %vm5712 = vmor %vm5710, %vm5711
        %v5713 = vsel %vm5712, %v5705, %v5709
        %v5714 = vand.u32 2147483647, %v5704
        %vm5715 = vcmp.eq.f32.partialorder %v5714, 8.507059e+37
        %v5716 = vand.u32 %v5704, 2147483648
        %v5717 = vor.u32 1.1754944e-38, %v5716
        %v5718 = vsel %vm5715, %v5717, %v5713
        %v5719 = vmul.f32 %v5702, %v5718
        %v5720 = vadd.f32 %v5698, %v5719
        %v5721 = vsub.f32 %v5720, 0.5
        %v5722 = vld [vmem:[#allocation26] sm:$0x1]
        %v5723 = vld [vmem:[#allocation28] sm:$0x3]
        %v5725 = vsel %vm4373, %v5723, 0
        %5727 = vmatpush.msra.mxu0 0.0
        %5728 = vmatpush.msra.mxu0 0.0
        %5729 = vmatpush.msra.mxu0 0.0
        %5730 = vmatpush.msra.mxu0 0.0
        %5731 = vmatpush.msra.mxu0 0.0
        %5732 = vmatpush.msra.mxu0 0.0
        %5733 = vmatpush.msra.mxu0 0.0
        %5734 = vmatpush.msra.mxu0 0.0
        %5735 = vmatpush.msra.mxu0 0.0
        %5736 = vmatpush.msra.mxu0 0.0
        %5737 = vmatpush.msra.mxu0 0.0
        %5738 = vmatpush.msra.mxu0 0.0
        %5739 = vmatpush.msra.mxu0 0.0
        %5740 = vmatpush.msra.mxu0 0.0
        %5741 = vmatpush.msra.mxu0 0.0
        %5742 = vmatpush.msra.mxu0 %v5725
        %5743 = vmatmul.f32.gmra.mxu0 %v4371
        %v5744 = vpop.f32.mrf.mxu0
        %v5745 = vadd.f32 0.0, %v5744
        %5746 = vdwg.mxu0
        %v5748 = vperm.slane %v5722, 0
        %v5750 = vadd.f32 %v5748, %v5745
        %v5751 = vld [vmem:[%s75] sm:$0xff]
        %v5752 = vld [vmem:[%s75 + $0x8] sm:$0xff]
        %5753 = vmatpush.msra.mxu0 0.0
        %5754 = vmatpush.msra.mxu0 0.0
        %5755 = vmatpush.msra.mxu0 0.0
        %5756 = vmatpush.msra.mxu0 0.0
        %5757 = vmatpush.msra.mxu0 0.0
        %5758 = vmatpush.msra.mxu0 0.0
        %5759 = vmatpush.msra.mxu0 0.0
        %5760 = vmatpush.msra.mxu0 0.0
        %5761 = vmatpush.msra.mxu0 0.0
        %5762 = vmatpush.msra.mxu0 0.0
        %5763 = vmatpush.msra.mxu0 0.0
        %5764 = vmatpush.msra.mxu0 0.0
        %5765 = vmatpush.msra.mxu0 0.0
        %5766 = vmatpush.msra.mxu0 0.0
        %5767 = vmatpush.msra.mxu0 %v5752
        %5768 = vmatpush.msra.mxu0 %v5751
        %5769 = vmatmul.f32.gmra.mxu0 %v4404
        %v5770 = vpop.f32.mrf.mxu0
        %v5771 = vadd.f32 0.0, %v5770
        %5772 = vdwg.mxu0
        %v5773 = vadd.f32 %v5750, %v5771
        %v5774 = vld [vmem:[#allocation29] sm:$0xff]
        %v5776 = vsel %vm3895, %v5681, 0
        %5778 = vmatpush.msra.mxu0 0.0
        %5779 = vmatpush.msra.mxu0 0.0
        %5780 = vmatpush.msra.mxu0 0.0
        %5781 = vmatpush.msra.mxu0 0.0
        %5782 = vmatpush.msra.mxu0 0.0
        %5783 = vmatpush.msra.mxu0 0.0
        %5784 = vmatpush.msra.mxu0 0.0
        %5785 = vmatpush.msra.mxu0 0.0
        %5786 = vmatpush.msra.mxu0 0.0
        %5787 = vmatpush.msra.mxu0 0.0
        %5788 = vmatpush.msra.mxu0 0.0
        %5789 = vmatpush.msra.mxu0 0.0
        %5790 = vmatpush.msra.mxu0 0.0
        %5791 = vmatpush.msra.mxu0 0.0
        %5792 = vmatpush.msra.mxu0 0.0
        %5793 = vmatpush.msra.mxu0 %v5774
        %5794 = vmatmul.f32.gmra.mxu0 %v5776
        %v5795 = vpop.f32.mrf.mxu0
        %v5796 = vadd.f32 0.0, %v5795
        %5797 = vdwg.mxu0
        %v5798 = vadd.f32 %v5773, %v5796
        %v5799 = vmax.f32 %v5798, 0.0
        %5800 = vmatpush.msra.mxu0 0.0
        %5801 = vmatpush.msra.mxu0 0.0
        %5802 = vmatpush.msra.mxu0 0.0
        %5803 = vmatpush.msra.mxu0 0.0
        %5804 = vmatpush.msra.mxu0 0.0
        %5805 = vmatpush.msra.mxu0 0.0
        %5806 = vmatpush.msra.mxu0 0.0
        %5807 = vmatpush.msra.mxu0 0.0
        %5808 = vmatpush.msra.mxu0 0.0
        %5809 = vmatpush.msra.mxu0 0.0
        %5810 = vmatpush.msra.mxu0 0.0
        %5811 = vmatpush.msra.mxu0 0.0
        %5812 = vmatpush.msra.mxu0 0.0
        %5813 = vmatpush.msra.mxu0 0.0
        %5814 = vmatpush.msra.mxu0 0.0
        %5815 = vmatpush.msra.mxu0 %v5799
        %5816 = vmatmul.f32.gmra.mxu0 %v3897
        %v5817 = vpop.f32.mrf.mxu0
        %v5818 = vadd.f32 0.0, %v5817
        %5819 = vmatmul.f32.gmra.mxu0 %v3900
        %v5820 = vpop.f32.mrf.mxu0
        %v5821 = vadd.f32 0.0, %v5820
        %5822 = vdwg.mxu0
        %5823 = vmatpush.msra.mxu0 0.0
        %5824 = vmatpush.msra.mxu0 0.0
        %5825 = vmatpush.msra.mxu0 0.0
        %5826 = vmatpush.msra.mxu0 0.0
        %5827 = vmatpush.msra.mxu0 0.0
        %5828 = vmatpush.msra.mxu0 0.0
        %5829 = vmatpush.msra.mxu0 0.0
        %5830 = vmatpush.msra.mxu0 0.0
        %5831 = vmatpush.msra.mxu0 0.0
        %5832 = vmatpush.msra.mxu0 0.0
        %5833 = vmatpush.msra.mxu0 0.0
        %5834 = vmatpush.msra.mxu0 0.0
        %5835 = vmatpush.msra.mxu0 0.0
        %5836 = vmatpush.msra.mxu0 0.0
        %5837 = vmatpush.msra.mxu0 0.0
        %5838 = vmatpush.msra.mxu0 %v5799
        %5839 = vmatmul.f32.gmra.mxu0 %v3926
        %v5840 = vpop.f32.mrf.mxu0
        %v5841 = vadd.f32 0.0, %v5840
        %5842 = vmatmul.f32.gmra.mxu0 %v3929
        %v5843 = vpop.f32.mrf.mxu0
        %v5844 = vadd.f32 0.0, %v5843
        %5845 = vdwg.mxu0
        %v5846 = vld [vmem:[#allocation31] sm:$0x1]
        %v5847 = vld [vmem:[%s81] sm:$0xff]
        %v5848 = vld [vmem:[%s81 + $0x8] sm:$0xff]
        %v5850 = vsel %vm3866, %v5818, 0
        %v5853 = vsel %vm3866, %v5821, 0
        %5855 = vmatpush.msra.mxu0 0.0
        %5856 = vmatpush.msra.mxu0 0.0
        %5857 = vmatpush.msra.mxu0 0.0
        %5858 = vmatpush.msra.mxu0 0.0
        %5859 = vmatpush.msra.mxu0 0.0
        %5860 = vmatpush.msra.mxu0 0.0
        %5861 = vmatpush.msra.mxu0 0.0
        %5862 = vmatpush.msra.mxu0 0.0
        %5863 = vmatpush.msra.mxu0 0.0
        %5864 = vmatpush.msra.mxu0 0.0
        %5865 = vmatpush.msra.mxu0 0.0
        %5866 = vmatpush.msra.mxu0 0.0
        %5867 = vmatpush.msra.mxu0 0.0
        %5868 = vmatpush.msra.mxu0 0.0
        %5869 = vmatpush.msra.mxu0 %v5848
        %5870 = vmatpush.msra.mxu0 %v5847
        %5871 = vmatmul.f32.gmra.mxu0 %v5850
        %v5872 = vpop.f32.mrf.mxu0
        %v5873 = vadd.f32 0.0, %v5872
        %5874 = vmatmul.f32.gmra.mxu0 %v5853
        %v5875 = vpop.f32.mrf.mxu0
        %v5876 = vadd.f32 0.0, %v5875
        %5877 = vdwg.mxu0
        %v5879 = vperm.slane %v5846, 0
        %v5881 = vadd.f32 %v5879, %v5873
        %v5882 = vadd.f32 %v5879, %v5876
        %v5883 = vld [vmem:[%s83] sm:$0xff]
        %v5884 = vld [vmem:[%s83 + $0x8] sm:$0xff]
        %v5886 = vsel %vm3866, %v5841, 0
        %v5889 = vsel %vm3866, %v5844, 0
        %5891 = vmatpush.msra.mxu0 0.0
        %5892 = vmatpush.msra.mxu0 0.0
        %5893 = vmatpush.msra.mxu0 0.0
        %5894 = vmatpush.msra.mxu0 0.0
        %5895 = vmatpush.msra.mxu0 0.0
        %5896 = vmatpush.msra.mxu0 0.0
        %5897 = vmatpush.msra.mxu0 0.0
        %5898 = vmatpush.msra.mxu0 0.0
        %5899 = vmatpush.msra.mxu0 0.0
        %5900 = vmatpush.msra.mxu0 0.0
        %5901 = vmatpush.msra.mxu0 0.0
        %5902 = vmatpush.msra.mxu0 0.0
        %5903 = vmatpush.msra.mxu0 0.0
        %5904 = vmatpush.msra.mxu0 0.0
        %5905 = vmatpush.msra.mxu0 %v5884
        %5906 = vmatpush.msra.mxu0 %v5883
        %5907 = vmatmul.f32.gmra.mxu0 %v5886
        %v5908 = vpop.f32.mrf.mxu0
        %v5909 = vadd.f32 0.0, %v5908
        %5910 = vmatmul.f32.gmra.mxu0 %v5889
        %v5911 = vpop.f32.mrf.mxu0
        %v5912 = vadd.f32 0.0, %v5911
        %5913 = vdwg.mxu0
        %v5914 = vadd.f32 %v5881, %v5909
        %v5915 = vadd.f32 %v5882, %v5912
        %v5916 = vld [vmem:[#allocation32] sm:$0xf]
        %v5918 = vsel %vm3839, %v5916, 0
        %5920 = vmatpush.msra.mxu0 0.0
        %5921 = vmatpush.msra.mxu0 0.0
        %5922 = vmatpush.msra.mxu0 0.0
        %5923 = vmatpush.msra.mxu0 0.0
        %5924 = vmatpush.msra.mxu0 0.0
        %5925 = vmatpush.msra.mxu0 0.0
        %5926 = vmatpush.msra.mxu0 0.0
        %5927 = vmatpush.msra.mxu0 0.0
        %5928 = vmatpush.msra.mxu0 0.0
        %5929 = vmatpush.msra.mxu0 0.0
        %5930 = vmatpush.msra.mxu0 0.0
        %5931 = vmatpush.msra.mxu0 0.0
        %5932 = vmatpush.msra.mxu0 0.0
        %5933 = vmatpush.msra.mxu0 0.0
        %5934 = vmatpush.msra.mxu0 0.0
        %5935 = vmatpush.msra.mxu0 %v5918
        %5936 = vmatmul.f32.gmra.mxu0 %v4026
        %v5937 = vpop.f32.mrf.mxu0
        %v5938 = vadd.f32 0.0, %v5937
        %5939 = vmatmul.f32.gmra.mxu0 %v4029
        %v5940 = vpop.f32.mrf.mxu0
        %v5941 = vadd.f32 0.0, %v5940
        %5942 = vdwg.mxu0
        %v5943 = vadd.f32 %v5914, %v5938
        %v5944 = vadd.f32 %v5915, %v5941
        %v5945 = vmax.f32 %v5943, 0.0
        %v5946 = vmax.f32 %v5944, 0.0
        %5947 = vmatpush.msra.mxu0 0.0
        %5948 = vmatpush.msra.mxu0 0.0
        %5949 = vmatpush.msra.mxu0 0.0
        %5950 = vmatpush.msra.mxu0 0.0
        %5951 = vmatpush.msra.mxu0 0.0
        %5952 = vmatpush.msra.mxu0 0.0
        %5953 = vmatpush.msra.mxu0 0.0
        %5954 = vmatpush.msra.mxu0 0.0
        %5955 = vmatpush.msra.mxu0 0.0
        %5956 = vmatpush.msra.mxu0 0.0
        %5957 = vmatpush.msra.mxu0 0.0
        %5958 = vmatpush.msra.mxu0 0.0
        %5959 = vmatpush.msra.mxu0 0.0
        %5960 = vmatpush.msra.mxu0 0.0
        %5961 = vmatpush.msra.mxu0 %v5946
        %5962 = vmatpush.msra.mxu0 %v5945
        %5963 = vmatmul.f32.gmra.mxu0 %v4062
        %v5964 = vpop.f32.mrf.mxu0
        %v5965 = vadd.f32 0.0, %v5964
        %5966 = vdwg.mxu0
        %v5967 = vld [vmem:[#allocation34] sm:$0x1]
        %v5968 = vld [vmem:[%s89] sm:$0xff]
        %v5969 = vld [vmem:[%s89 + $0x8] sm:$0xff]
        %v5971 = vsel %vm3866, %v5799, 0
        %5973 = vmatpush.msra.mxu0 0.0
        %5974 = vmatpush.msra.mxu0 0.0
        %5975 = vmatpush.msra.mxu0 0.0
        %5976 = vmatpush.msra.mxu0 0.0
        %5977 = vmatpush.msra.mxu0 0.0
        %5978 = vmatpush.msra.mxu0 0.0
        %5979 = vmatpush.msra.mxu0 0.0
        %5980 = vmatpush.msra.mxu0 0.0
        %5981 = vmatpush.msra.mxu0 0.0
        %5982 = vmatpush.msra.mxu0 0.0
        %5983 = vmatpush.msra.mxu0 0.0
        %5984 = vmatpush.msra.mxu0 0.0
        %5985 = vmatpush.msra.mxu0 0.0
        %5986 = vmatpush.msra.mxu0 0.0
        %5987 = vmatpush.msra.mxu0 %v5969
        %5988 = vmatpush.msra.mxu0 %v5968
        %5989 = vmatmul.f32.gmra.mxu0 %v5971
        %v5990 = vpop.f32.mrf.mxu0
        %v5991 = vadd.f32 0.0, %v5990
        %5992 = vdwg.mxu0
        %v5994 = vperm.slane %v5967, 0
        %v5996 = vadd.f32 %v5994, %v5991
        %v5997 = vld [vmem:[%s91] sm:$0xff]
        %v5998 = vld [vmem:[%s91 + $0x8] sm:$0xff]
        %v6000 = vsel %vm3866, %v5965, 0
        %6002 = vmatpush.msra.mxu0 0.0
        %6003 = vmatpush.msra.mxu0 0.0
        %6004 = vmatpush.msra.mxu0 0.0
        %6005 = vmatpush.msra.mxu0 0.0
        %6006 = vmatpush.msra.mxu0 0.0
        %6007 = vmatpush.msra.mxu0 0.0
        %6008 = vmatpush.msra.mxu0 0.0
        %6009 = vmatpush.msra.mxu0 0.0
        %6010 = vmatpush.msra.mxu0 0.0
        %6011 = vmatpush.msra.mxu0 0.0
        %6012 = vmatpush.msra.mxu0 0.0
        %6013 = vmatpush.msra.mxu0 0.0
        %6014 = vmatpush.msra.mxu0 0.0
        %6015 = vmatpush.msra.mxu0 0.0
        %6016 = vmatpush.msra.mxu0 %v5998
        %6017 = vmatpush.msra.mxu0 %v5997
        %6018 = vmatmul.f32.gmra.mxu0 %v6000
        %v6019 = vpop.f32.mrf.mxu0
        %v6020 = vadd.f32 0.0, %v6019
        %6021 = vdwg.mxu0
        %v6022 = vadd.f32 %v5996, %v6020
        %v6023 = vmax.f32 %v6022, 0.0
        %v6024 = vadd.f32 %v5799, %v6023
        %6025 = vmatpush.msra.mxu0 0.0
        %6026 = vmatpush.msra.mxu0 0.0
        %6027 = vmatpush.msra.mxu0 0.0
        %6028 = vmatpush.msra.mxu0 0.0
        %6029 = vmatpush.msra.mxu0 0.0
        %6030 = vmatpush.msra.mxu0 0.0
        %6031 = vmatpush.msra.mxu0 0.0
        %6032 = vmatpush.msra.mxu0 0.0
        %6033 = vmatpush.msra.mxu0 0.0
        %6034 = vmatpush.msra.mxu0 0.0
        %6035 = vmatpush.msra.mxu0 0.0
        %6036 = vmatpush.msra.mxu0 0.0
        %6037 = vmatpush.msra.mxu0 0.0
        %6038 = vmatpush.msra.mxu0 0.0
        %6039 = vmatpush.msra.mxu0 0.0
        %6040 = vmatpush.msra.mxu0 %v6024
        %6041 = vmatmul.f32.gmra.mxu0 %v3897
        %v6042 = vpop.f32.mrf.mxu0
        %v6043 = vadd.f32 0.0, %v6042
        %6044 = vmatmul.f32.gmra.mxu0 %v3900
        %v6045 = vpop.f32.mrf.mxu0
        %v6046 = vadd.f32 0.0, %v6045
        %6047 = vdwg.mxu0
        %6048 = vmatpush.msra.mxu0 0.0
        %6049 = vmatpush.msra.mxu0 0.0
        %6050 = vmatpush.msra.mxu0 0.0
        %6051 = vmatpush.msra.mxu0 0.0
        %6052 = vmatpush.msra.mxu0 0.0
        %6053 = vmatpush.msra.mxu0 0.0
        %6054 = vmatpush.msra.mxu0 0.0
        %6055 = vmatpush.msra.mxu0 0.0
        %6056 = vmatpush.msra.mxu0 0.0
        %6057 = vmatpush.msra.mxu0 0.0
        %6058 = vmatpush.msra.mxu0 0.0
        %6059 = vmatpush.msra.mxu0 0.0
        %6060 = vmatpush.msra.mxu0 0.0
        %6061 = vmatpush.msra.mxu0 0.0
        %6062 = vmatpush.msra.mxu0 0.0
        %6063 = vmatpush.msra.mxu0 %v6024
        %6064 = vmatmul.f32.gmra.mxu0 %v3926
        %v6065 = vpop.f32.mrf.mxu0
        %v6066 = vadd.f32 0.0, %v6065
        %6067 = vmatmul.f32.gmra.mxu0 %v3929
        %v6068 = vpop.f32.mrf.mxu0
        %v6069 = vadd.f32 0.0, %v6068
        %6070 = vdwg.mxu0
        %v6071 = vld [vmem:[#allocation35] sm:$0x1]
        %v6072 = vld [vmem:[#allocation37] sm:$0xff]
        %v6073 = vld [vmem:[#allocation37 + $0x8] sm:$0xff]
        %v6075 = vsel %vm3866, %v6043, 0
        %v6078 = vsel %vm3866, %v6046, 0
        %6080 = vmatpush.msra.mxu0 0.0
        %6081 = vmatpush.msra.mxu0 0.0
        %6082 = vmatpush.msra.mxu0 0.0
        %6083 = vmatpush.msra.mxu0 0.0
        %6084 = vmatpush.msra.mxu0 0.0
        %6085 = vmatpush.msra.mxu0 0.0
        %6086 = vmatpush.msra.mxu0 0.0
        %6087 = vmatpush.msra.mxu0 0.0
        %6088 = vmatpush.msra.mxu0 0.0
        %6089 = vmatpush.msra.mxu0 0.0
        %6090 = vmatpush.msra.mxu0 0.0
        %6091 = vmatpush.msra.mxu0 0.0
        %6092 = vmatpush.msra.mxu0 0.0
        %6093 = vmatpush.msra.mxu0 0.0
        %6094 = vmatpush.msra.mxu0 %v6073
        %6095 = vmatpush.msra.mxu0 %v6072
        %6096 = vmatmul.f32.gmra.mxu0 %v6075
        %v6097 = vpop.f32.mrf.mxu0
        %v6098 = vadd.f32 0.0, %v6097
        %6099 = vmatmul.f32.gmra.mxu0 %v6078
        %v6100 = vpop.f32.mrf.mxu0
        %v6101 = vadd.f32 0.0, %v6100
        %6102 = vdwg.mxu0
        %v6104 = vperm.slane %v6071, 0
        %v6106 = vadd.f32 %v6104, %v6098
        %v6107 = vadd.f32 %v6104, %v6101
        %v6108 = vld [vmem:[#allocation38] sm:$0xff]
        %v6109 = vld [vmem:[#allocation38 + $0x8] sm:$0xff]
        %v6111 = vsel %vm3866, %v6066, 0
        %v6114 = vsel %vm3866, %v6069, 0
        %6116 = vmatpush.msra.mxu0 0.0
        %6117 = vmatpush.msra.mxu0 0.0
        %6118 = vmatpush.msra.mxu0 0.0
        %6119 = vmatpush.msra.mxu0 0.0
        %6120 = vmatpush.msra.mxu0 0.0
        %6121 = vmatpush.msra.mxu0 0.0
        %6122 = vmatpush.msra.mxu0 0.0
        %6123 = vmatpush.msra.mxu0 0.0
        %6124 = vmatpush.msra.mxu0 0.0
        %6125 = vmatpush.msra.mxu0 0.0
        %6126 = vmatpush.msra.mxu0 0.0
        %6127 = vmatpush.msra.mxu0 0.0
        %6128 = vmatpush.msra.mxu0 0.0
        %6129 = vmatpush.msra.mxu0 0.0
        %6130 = vmatpush.msra.mxu0 %v6109
        %6131 = vmatpush.msra.mxu0 %v6108
        %6132 = vmatmul.f32.gmra.mxu0 %v6111
        %v6133 = vpop.f32.mrf.mxu0
        %v6134 = vadd.f32 0.0, %v6133
        %6135 = vmatmul.f32.gmra.mxu0 %v6114
        %v6136 = vpop.f32.mrf.mxu0
        %v6137 = vadd.f32 0.0, %v6136
        %6138 = vdwg.mxu0
        %v6139 = vadd.f32 %v6106, %v6134
        %v6140 = vadd.f32 %v6107, %v6137
        %v6141 = vld [vmem:[#allocation40] sm:$0xf]
        %v6143 = vsel %vm3839, %v6141, 0
        %6145 = vmatpush.msra.mxu0 0.0
        %6146 = vmatpush.msra.mxu0 0.0
        %6147 = vmatpush.msra.mxu0 0.0
        %6148 = vmatpush.msra.mxu0 0.0
        %6149 = vmatpush.msra.mxu0 0.0
        %6150 = vmatpush.msra.mxu0 0.0
        %6151 = vmatpush.msra.mxu0 0.0
        %6152 = vmatpush.msra.mxu0 0.0
        %6153 = vmatpush.msra.mxu0 0.0
        %6154 = vmatpush.msra.mxu0 0.0
        %6155 = vmatpush.msra.mxu0 0.0
        %6156 = vmatpush.msra.mxu0 0.0
        %6157 = vmatpush.msra.mxu0 0.0
        %6158 = vmatpush.msra.mxu0 0.0
        %6159 = vmatpush.msra.mxu0 0.0
        %6160 = vmatpush.msra.mxu0 %v6143
        %6161 = vmatmul.f32.gmra.mxu0 %v4026
        %v6162 = vpop.f32.mrf.mxu0
        %v6163 = vadd.f32 0.0, %v6162
        %6164 = vmatmul.f32.gmra.mxu0 %v4029
        %v6165 = vpop.f32.mrf.mxu0
        %v6166 = vadd.f32 0.0, %v6165
        %6167 = vdwg.mxu0
        %v6168 = vadd.f32 %v6139, %v6163
        %v6169 = vadd.f32 %v6140, %v6166
        %v6170 = vmax.f32 %v6168, 0.0
        %v6171 = vmax.f32 %v6169, 0.0
        %6172 = vmatpush.msra.mxu0 0.0
        %6173 = vmatpush.msra.mxu0 0.0
        %6174 = vmatpush.msra.mxu0 0.0
        %6175 = vmatpush.msra.mxu0 0.0
        %6176 = vmatpush.msra.mxu0 0.0
        %6177 = vmatpush.msra.mxu0 0.0
        %6178 = vmatpush.msra.mxu0 0.0
        %6179 = vmatpush.msra.mxu0 0.0
        %6180 = vmatpush.msra.mxu0 0.0
        %6181 = vmatpush.msra.mxu0 0.0
        %6182 = vmatpush.msra.mxu0 0.0
        %6183 = vmatpush.msra.mxu0 0.0
        %6184 = vmatpush.msra.mxu0 0.0
        %6185 = vmatpush.msra.mxu0 0.0
        %6186 = vmatpush.msra.mxu0 %v6171
        %6187 = vmatpush.msra.mxu0 %v6170
        %6188 = vmatmul.f32.gmra.mxu0 %v4062
        %v6189 = vpop.f32.mrf.mxu0
        %v6190 = vadd.f32 0.0, %v6189
        %6191 = vdwg.mxu0
        %v6192 = vld [vmem:[#allocation41] sm:$0x1]
        %v6193 = vld [vmem:[#allocation43] sm:$0xff]
        %v6194 = vld [vmem:[#allocation43 + $0x8] sm:$0xff]
        %v6196 = vsel %vm3866, %v6024, 0
        %6198 = vmatpush.msra.mxu0 0.0
        %6199 = vmatpush.msra.mxu0 0.0
        %6200 = vmatpush.msra.mxu0 0.0
        %6201 = vmatpush.msra.mxu0 0.0
        %6202 = vmatpush.msra.mxu0 0.0
        %6203 = vmatpush.msra.mxu0 0.0
        %6204 = vmatpush.msra.mxu0 0.0
        %6205 = vmatpush.msra.mxu0 0.0
        %6206 = vmatpush.msra.mxu0 0.0
        %6207 = vmatpush.msra.mxu0 0.0
        %6208 = vmatpush.msra.mxu0 0.0
        %6209 = vmatpush.msra.mxu0 0.0
        %6210 = vmatpush.msra.mxu0 0.0
        %6211 = vmatpush.msra.mxu0 0.0
        %6212 = vmatpush.msra.mxu0 %v6194
        %6213 = vmatpush.msra.mxu0 %v6193
        %6214 = vmatmul.f32.gmra.mxu0 %v6196
        %v6215 = vpop.f32.mrf.mxu0
        %v6216 = vadd.f32 0.0, %v6215
        %6217 = vdwg.mxu0
        %v6219 = vperm.slane %v6192, 0
        %v6221 = vadd.f32 %v6219, %v6216
        %v6222 = vld [vmem:[#allocation44] sm:$0xff]
        %v6223 = vld [vmem:[#allocation44 + $0x8] sm:$0xff]
        %v6225 = vsel %vm3866, %v6190, 0
        %6227 = vmatpush.msra.mxu0 0.0
        %6228 = vmatpush.msra.mxu0 0.0
        %6229 = vmatpush.msra.mxu0 0.0
        %6230 = vmatpush.msra.mxu0 0.0
        %6231 = vmatpush.msra.mxu0 0.0
        %6232 = vmatpush.msra.mxu0 0.0
        %6233 = vmatpush.msra.mxu0 0.0
        %6234 = vmatpush.msra.mxu0 0.0
        %6235 = vmatpush.msra.mxu0 0.0
        %6236 = vmatpush.msra.mxu0 0.0
        %6237 = vmatpush.msra.mxu0 0.0
        %6238 = vmatpush.msra.mxu0 0.0
        %6239 = vmatpush.msra.mxu0 0.0
        %6240 = vmatpush.msra.mxu0 0.0
        %6241 = vmatpush.msra.mxu0 %v6223
        %6242 = vmatpush.msra.mxu0 %v6222
        %6243 = vmatmul.f32.gmra.mxu0 %v6225
        %v6244 = vpop.f32.mrf.mxu0
        %v6245 = vadd.f32 0.0, %v6244
        %6246 = vdwg.mxu0
        %v6247 = vadd.f32 %v6221, %v6245
        %v6248 = vmax.f32 %v6247, 0.0
        %v6249 = vadd.f32 %v6024, %v6248
        %6250 = vst.msk [vmem:[%s3783] sm:$0xff] %vm3866, %v6249
        %6251 = vst.msk [vmem:[%s3790] sm:$0xff] %vm3895, %v5721
        %s6252 = sand.u32 %s2254, 1
        %s6253 = scalar_lea.sflag [#allocation4], %s6252
        %s6254 = sand.u32 %s2254, 1
        %s6255 = smul.addr %s6254, 8
        %s6256 = scalar_lea.vmem [#allocation100], %s6255
        %s6257 = sand.u32 %s2280, 1
        %s6258 = scalar_lea.sflag [#allocation102], %s6257
        %s6259 = sand.u32 %s2280, 1
        %s6260 = smul.addr %s6259, 8
        %s6261 = scalar_lea.vmem [#allocation101], %s6260
        // Predicated region
        $region653: #{tpu_custom_call.1} parent=395 // pred_check
          %p6262 = pneg %p2264
        $region654: #{tpu_custom_call.1} parent=395 // pred_check_branch
          %6264 = sbr.rel (%p6262) target = $region656
        $region655: #{tpu_custom_call.1} parent=395 // pred_region
          %6266 = vsyncadd %s6253, 0
          %s6267 = smul.addr %s242, 8
          %s6268 = scalar_lea.hbm %s189, %s6267
          %s6270 = sshll.u32 %s6256, 4
          %s6271 = int_to_ptr.vmem [resolvable:$true] %s6270
          %s6272 = sshll.u32 %s6268, 4
          %s6273 = int_to_ptr.hbm [resolvable:$true] %s6272
          %6275 = dma.vmem_to_hbm [thread:$0]  %s6271, 128, %s6273, %s6253
        $region656: #{tpu_custom_call.1} parent=395 // pred_fallthru
          _
        // Predicated region
        $region657: #{tpu_custom_call.1} parent=395 // pred_check
          %p6276 = pneg %p2290
        $region658: #{tpu_custom_call.1} parent=395 // pred_check_branch
          %6278 = sbr.rel (%p6276) target = $region660
        $region659: #{tpu_custom_call.1} parent=395 // pred_region
          %6280 = vsyncadd %s6258, 0
          %s6281 = smul.addr %s242, 8
          %s6282 = scalar_lea.hbm %s191, %s6281
          %s6284 = sshll.u32 %s6261, 4
          %s6285 = int_to_ptr.vmem [resolvable:$true] %s6284
          %s6286 = sshll.u32 %s6282, 4
          %s6287 = int_to_ptr.hbm [resolvable:$true] %s6286
          %6289 = dma.vmem_to_hbm [thread:$0]  %s6285, 128, %s6287, %s6258
        $region660: #{tpu_custom_call.1} parent=395 // pred_fallthru
          _
      $region396: #{tpu_custom_call.1} parent=5 // pred_fallthru
        _
      %p6290 = scmp.le.s32.totalorder 2, %s237
      // Predicated region
      $region661: #{tpu_custom_call.1} parent=5 // pred_check
        %p6291 = pneg %p6290
      $region662: #{tpu_custom_call.1} parent=5 // pred_check_branch
        %6293 = sbr.rel (%p6291) target = $region664
      $region663: #{tpu_custom_call.1} parent=5 // pred_region
        %s6294 = ssub.s32 %s237, 2
        // Predicated region
        $region665: #{tpu_custom_call.1} parent=663 // pred_check
          %p6295 = pneg %p2270
        $region666: #{tpu_custom_call.1} parent=663 // pred_check_branch
          %6297 = sbr.rel (%p6295) target = $region668
        $region667: #{tpu_custom_call.1} parent=663 // pred_region
          %s6298 = sand.u32 %s2255, 1
          %s6299 = scalar_lea.sflag [#allocation4], %s6298
          %s6300 = sand.u32 %s2255, 1
          %s6301 = smul.addr %s6300, 8
          %s6302 = scalar_lea.vmem [#allocation100], %s6301
          %6304 = dma.done %s6299, 128
        $region668: #{tpu_custom_call.1} parent=663 // pred_fallthru
          _
        // Predicated region
        $region669: #{tpu_custom_call.1} parent=663 // pred_check
          %p6305 = pneg %p2296
        $region670: #{tpu_custom_call.1} parent=663 // pred_check_branch
          %6307 = sbr.rel (%p6305) target = $region672
        $region671: #{tpu_custom_call.1} parent=663 // pred_region
          %s6308 = sand.u32 %s2281, 1
          %s6309 = scalar_lea.sflag [#allocation102], %s6308
          %s6310 = sand.u32 %s2281, 1
          %s6311 = smul.addr %s6310, 8
          %s6312 = scalar_lea.vmem [#allocation101], %s6311
          %6314 = dma.done %s6309, 128
        $region672: #{tpu_custom_call.1} parent=663 // pred_fallthru
          _
      $region664: #{tpu_custom_call.1} parent=5 // pred_fallthru
        _
    $region6: #{tpu_custom_call.1} parent=1 // loop_footer
      %s241 = sadd.s32 1, %s237
    $region7: #{tpu_custom_call.1} parent=1 // loop_footer_branch
      %236 = sbr.rel target = $region3
    $region8: #{tpu_custom_call.1} parent=1 // loop_exit
      _
    %6315 = vsyncpa [#allocation3], 1
    %s6316 = scalar_lea.sflag [#allocation3], 1
    %6317 = vsyncpa %s6316, 1
    %6318 = vsyncpa [#allocation6], 1
    %6319 = vsyncpa [#allocation9], 1
    %6320 = vsyncpa [#allocation12], 1
    %6321 = vsyncpa [#allocation15], 1
    %6322 = vsyncpa [#allocation18], 1
    %6323 = vsyncpa [#allocation21], 1
    %6324 = vsyncpa [#allocation24], 1
    %6325 = vsyncpa [#allocation27], 1
    %6326 = vsyncpa [#allocation30], 1
    %6327 = vsyncpa [#allocation33], 1
    %6328 = vsyncpa [#allocation36], 1
    %6329 = vsyncpa [#allocation39], 1
    %6330 = vsyncpa [#allocation42], 1
    %6331 = vsyncpa [#allocation45], 1
    %6332 = vsyncpa [#allocation48], 1
    %6333 = vsyncpa [#allocation51], 1
    %6334 = vsyncpa [#allocation54], 1
    %6335 = vsyncpa [#allocation57], 1
    %6336 = vsyncpa [#allocation60], 1
    %6337 = vsyncpa [#allocation63], 1
    %6338 = vsyncpa [#allocation66], 1
    %6339 = vsyncpa [#allocation69], 1
    %6340 = vsyncpa [#allocation72], 1
    %6341 = vsyncpa [#allocation75], 1
    %6342 = vsyncpa [#allocation78], 1
    %6343 = vsyncpa [#allocation81], 1
    %6344 = vsyncpa [#allocation84], 1
    %6345 = vsyncpa [#allocation87], 1
    %6346 = vsyncpa [#allocation90], 1
    %6347 = vsyncpa [#allocation93], 1
    %6348 = vsyncpa [#allocation96], 1
    %6349 = vsyncpa [#allocation99], 1
    %6350 = vsyncpa [#allocation4], 1
    %s6351 = scalar_lea.sflag [#allocation4], 1
    %6352 = vsyncpa %s6351, 1
    %6353 = vsyncpa [#allocation102], 1
    %s6354 = scalar_lea.sflag [#allocation102], 1
    %6355 = vsyncpa %s6354, 1

</llo_original>
